<compile_context>
chip_gen: v7x
topology: tpu7x:2x2x1
jax: 0.10.0
libtpu: 0.0.40
codegen_flags: <defaults>
</compile_context>

<pallas_src>
import jax
import jax.numpy as jnp
from jax.experimental import pallas as pl
from jax.experimental.pallas import tpu as pltpu

_LN_EPS = 1e-5
_VMEM_LIMIT = 32 * 1024 * 1024  # safe scoped-VMEM request on v5e/v6e/v7x


# ----------------------------- Pallas kernels -----------------------------

def _expand_ln_kernel(x_ref, w_ref, p_ref, g_ref, b_ref, o_ref):
    # PatchExpansion: y = x @ W (no bias) fused with the LayerNorm(Dh) that follows
    # the 2x2 pixel shuffle.  LN acts on each contiguous Dh chunk of the (tm, 2D)
    # matmul output; chunk mean/var are produced with a block-diagonal averaging
    # matrix P (MXU work, no in-kernel reshapes).
    f32 = jnp.float32
    y = jnp.dot(x_ref[...], w_ref[...], preferred_element_type=f32)   # (tm, 2D)
    mu = jnp.dot(y, p_ref[...], preferred_element_type=f32)           # per-chunk mean
    e = y - mu
    var = jnp.dot(e * e, p_ref[...], preferred_element_type=f32)      # per-chunk var
    o_ref[...] = e * jax.lax.rsqrt(var + _LN_EPS) * g_ref[...] + b_ref[...]


def _cbam_stage_kernel(y_ref, e_ref, wt_ref, wb_ref, b_ref,
                       w1_ref, w2_ref, k_ref, o_ref):
    # Fused per-batch stage tail:
    #   z   = concat([y, enc], -1) @ W + b  ==  y @ W_top + enc @ W_bot + b
    #   z  *= sigmoid(MLP(avgpool(z)) + MLP(maxpool(z)))           (channel attention)
    #   z  *= sigmoid(conv7x7([mean_c(z), max_c(z)]))              (spatial attention)
    # The 7x7 conv (incl. zero padding) is a single MXU matmul against the
    # precomputed band matrices k_ref[0] (avg channel) / k_ref[1] (max channel).
    f32 = jnp.float32

    z = (jnp.dot(y_ref[...], wt_ref[...], preferred_element_type=f32)
         + jnp.dot(e_ref[...], wb_ref[...], preferred_element_type=f32)
         + b_ref[...])                                               # (HWo, Dh)

    # ---- channel attention (pool over spatial rows, shared 2-layer MLP) ----
    avg = jnp.mean(z, axis=0, keepdims=True)                         # (1, Dh)
    mx = jnp.max(z, axis=0, keepdims=True)                           # (1, Dh)

    def mlp(p):
        h = jnp.maximum(jnp.dot(p, w1_ref[...], preferred_element_type=f32), 0.0)
        return jnp.dot(h, w2_ref[...], preferred_element_type=f32)

    ca = jax.nn.sigmoid(mlp(avg) + mlp(mx))                          # (1, Dh)
    z = z * ca

    # ---- spatial attention (7x7 conv as MXU matmul) ----
    s_avg = jnp.mean(z, axis=-1, keepdims=True)                      # (HWo, 1)
    s_max = jnp.max(z, axis=-1, keepdims=True)                       # (HWo, 1)
    logits = (jnp.dot(k_ref[0], s_avg, preferred_element_type=f32)
              + jnp.dot(k_ref[1], s_max, preferred_element_type=f32))  # (HWo, 1)
    o_ref[...] = z * jax.nn.sigmoid(logits)


# ----------------------------- kernel wrappers -----------------------------

def expand_ln(x2d, w, P, g4, b4, max_tile=256):
    # y = LN_chunks(x2d @ w); row-tiled with tm = min(M, 256); remainder handled by
    # zero-padding rows (padded rows are finite and sliced off afterwards).
    M, D = x2d.shape
    N = w.shape[1]
    tm = min(M, max_tile)
    nblk = pl.cdiv(M, tm)
    Mp = nblk * tm
    xp = x2d if Mp == M else jnp.pad(x2d, ((0, Mp - M), (0, 0)))
    out = pl.pallas_call(
        _expand_ln_kernel,
        grid=(nblk,),
        in_specs=[pl.BlockSpec((tm, D), lambda i: (i, 0)),
                  pl.BlockSpec((D, N), lambda i: (0, 0)),
                  pl.BlockSpec((N, N), lambda i: (0, 0)),
                  pl.BlockSpec((1, N), lambda i: (0, 0)),
                  pl.BlockSpec((1, N), lambda i: (0, 0))],
        out_specs=pl.BlockSpec((tm, N), lambda i: (i, 0)),
        out_shape=jax.ShapeDtypeStruct((Mp, N), jnp.float32),
        compiler_params=pltpu.CompilerParams(
            dimension_semantics=("parallel",),
            vmem_limit_bytes=_VMEM_LIMIT),
    )(xp, w, P, g4, b4)
    return out if Mp == M else out[:M]


def cbam_stage(y, enc, wt, wb, bias, w1, w2, K):
    # y, enc: (B, HWo, Dh); grid over batch, marked "parallel" (v7x dual-TC friendly).
    B, HWo, Dh = y.shape
    Cr = w1.shape[1]
    return pl.pallas_call(
        _cbam_stage_kernel,
        grid=(B,),
        in_specs=[pl.BlockSpec((None, HWo, Dh), lambda b: (b, 0, 0)),
                  pl.BlockSpec((None, HWo, Dh), lambda b: (b, 0, 0)),
                  pl.BlockSpec((Dh, Dh), lambda b: (0, 0)),
                  pl.BlockSpec((Dh, Dh), lambda b: (0, 0)),
                  pl.BlockSpec((1, Dh), lambda b: (0, 0)),
                  pl.BlockSpec((Dh, Cr), lambda b: (0, 0)),
                  pl.BlockSpec((Cr, Dh), lambda b: (0, 0)),
                  pl.BlockSpec((2, HWo, HWo), lambda b: (0, 0, 0))],
        out_specs=pl.BlockSpec((None, HWo, Dh), lambda b: (b, 0, 0)),
        out_shape=jax.ShapeDtypeStruct((B, HWo, Dh), jnp.float32),
        compiler_params=pltpu.CompilerParams(
            dimension_semantics=("parallel",),
            vmem_limit_bytes=_VMEM_LIMIT),
    )(y, enc, wt, wb, bias, w1, w2, K)


# --------------------------- derived weight helpers ---------------------------

def _chunk_mean_matrix(dh):
    # Block-diagonal averaging matrix: (y @ P)[i] = mean of the Dh chunk containing i.
    blk = jnp.arange(4 * dh) // dh
    return (blk[:, None] == blk[None, :]).astype(jnp.float32) / dh       # (4Dh, 4Dh)


def _conv7x7_matrices(w, Ho, Wo):
    # w: (2, 7, 7) conv taps ([avg, max] channels) -> K: (2, HWo, HWo) with
    # K[c, p, q] = w[c, qy-py+3, qx-px+3] when |qy-py|<=3 and |qx-px|<=3, else 0.
    # Zero padding of the conv is baked into the zeros of K.
    py = jnp.repeat(jnp.arange(Ho), Wo)
    px = jnp.tile(jnp.arange(Wo), Ho)
    dY = py[None, :] - py[:, None]
    dX = px[None, :] - px[:, None]
    valid = (jnp.abs(dY) <= 3) & (jnp.abs(dX) <= 3)
    iy = jnp.clip(dY + 3, 0, 6)
    ix = jnp.clip(dX + 3, 0, 6)
    return jnp.where(valid[None], w[:, iy, ix], 0.0)                     # (2, HWo, HWo)


# ----------------------------- model glue -----------------------------

def decoder_forward(x, encoder_features, params):
    for p, enc in zip(params, encoder_features):
        B, H, W, D = x.shape
        Dh = D // 2
        Ho, Wo = 2 * H, 2 * W
        HWo = Ho * Wo

        # --- PatchExpansion: Linear(D -> 2D, no bias) + LN(Dh) fused in one kernel;
        #     the 2x2 pixel shuffle is pure layout work done in XLA.
        y = expand_ln(x.reshape(B * H * W, D), p['expand_w'],
                      _chunk_mean_matrix(Dh),
                      jnp.tile(p['ln_g'], 4)[None, :],
                      jnp.tile(p['ln_b'], 4)[None, :])
        y = (y.reshape(B, H, W, 2, 2, Dh)
              .transpose(0, 1, 3, 2, 4, 5)
              .reshape(B, HWo, Dh))

        # --- fused: skip-concat Linear(D -> Dh) + CBAM (channel + spatial attention)
        K = _conv7x7_matrices(p['sa_w'], Ho, Wo)
        out = cbam_stage(y, enc.reshape(B, HWo, Dh),
                         p['cat_w'][:Dh], p['cat_w'][Dh:], p['cat_b'][None, :],
                         p['ca_w1'], p['ca_w2'], K)
        x = out.reshape(B, Ho, Wo, Dh)
    return x


def init_params(key, C):
    params = []
    dims = [8 * C, 4 * C, 2 * C]
    for i, D in enumerate(dims):
        Dh = D // 2
        Cr = max(Dh // 16, 1)
        ks = jax.random.split(jax.random.fold_in(key, i), 6)
        params.append(dict(
            expand_w=jax.random.normal(ks[0], (D, 2 * D), jnp.float32) / jnp.sqrt(D),
            ln_g=jnp.ones((Dh,), jnp.float32),
            ln_b=jnp.zeros((Dh,), jnp.float32),
            cat_w=jax.random.normal(ks[1], (D, Dh), jnp.float32) / jnp.sqrt(D),
            cat_b=jax.random.normal(ks[2], (Dh,), jnp.float32) * 0.01,
            ca_w1=jax.random.normal(ks[3], (Dh, Cr), jnp.float32) / jnp.sqrt(Dh),
            ca_w2=jax.random.normal(ks[4], (Cr, Dh), jnp.float32) / jnp.sqrt(Cr),
            sa_w=jax.random.normal(ks[5], (2, 7, 7), jnp.float32) * 0.1,   # 7x7x2 conv
        ))
    return params


if __name__ == "__main__":
    key = jax.random.PRNGKey(0)
    B, C, H0, W0 = 2, 16, 2, 2          # Decoder(C=16, partioned_ip_res=(2,2))
    kx, ke0, ke1, ke2, kp = jax.random.split(key, 5)
    x = jax.random.normal(kx, (B, H0, W0, 8 * C), jnp.float32)
    encoder_features = [
        jax.random.normal(ke0, (B, 2 * H0, 2 * W0, 4 * C), jnp.float32),
        jax.random.normal(ke1, (B, 4 * H0, 4 * W0, 2 * C), jnp.float32),
        jax.random.normal(ke2, (B, 8 * H0, 8 * W0, 1 * C), jnp.float32),
    ]
    params = init_params(kp, C)

    fwd = jax.jit(decoder_forward)
    out = jax.block_until_ready(fwd(x, encoder_features, params))
    assert out.shape == (B, 8 * H0, 8 * W0, C), out.shape
    assert bool(jnp.all(jnp.isfinite(out)))
    print("KERNEL_OK")
</pallas_src>

<mosaic_0001>
module attributes {stable_mosaic.version = 11 : i64} {
  func.func @_expand_ln_kernel(%arg0: i32, %arg1: memref<8x128xf32, #tpu.memory_space<vmem>>, %arg2: memref<128x256xf32, #tpu.memory_space<vmem>>, %arg3: memref<256x256xf32, #tpu.memory_space<vmem>>, %arg4: memref<1x256xf32, #tpu.memory_space<vmem>>, %arg5: memref<1x256xf32, #tpu.memory_space<vmem>>, %arg6: memref<8x256xf32, #tpu.memory_space<vmem>>) attributes {dimension_semantics = [#tpu.dimension_semantics<parallel>], iteration_bounds = array<i64: 1>, scalar_prefetch = 0 : i64, scratch_operands = 0 : i64, tpu.core_type = #tpu.core_type<tc>, window_params = [{transform_indices = @transform_0, window_bounds = array<i64: 8, 128>}, {pipeline_mode = #tpu.pipeline_mode<synchronous>, transform_indices = @transform_1, window_bounds = array<i64: 128, 256>}, {pipeline_mode = #tpu.pipeline_mode<synchronous>, transform_indices = @transform_2, window_bounds = array<i64: 256, 256>}, {pipeline_mode = #tpu.pipeline_mode<synchronous>, transform_indices = @transform_3, window_bounds = array<i64: 1, 256>}, {pipeline_mode = #tpu.pipeline_mode<synchronous>, transform_indices = @transform_4, window_bounds = array<i64: 1, 256>}, {transform_indices = @transform_5, window_bounds = array<i64: 8, 256>}]} {
    %c0 = arith.constant 0 : index
    %c0_0 = arith.constant 0 : index
    %0 = vector.load %arg1[%c0, %c0_0] : memref<8x128xf32, #tpu.memory_space<vmem>>, vector<8x128xf32>
    %c0_1 = arith.constant 0 : index
    %c0_2 = arith.constant 0 : index
    %1 = vector.load %arg2[%c0_1, %c0_2] : memref<128x256xf32, #tpu.memory_space<vmem>>, vector<128x256xf32>
    %cst = arith.constant dense<0.000000e+00> : vector<8x256xf32>
    %2 = tpu.matmul %0, %1, %cst {dimension_numbers = #tpu.dot_dimension_numbers<[1], [0], [0], [1], [0, 0, 1, 1], [], []>} : vector<8x128xf32>, vector<128x256xf32>, vector<8x256xf32> -> vector<8x256xf32>
    %c0_3 = arith.constant 0 : index
    %c0_4 = arith.constant 0 : index
    %3 = vector.load %arg3[%c0_3, %c0_4] : memref<256x256xf32, #tpu.memory_space<vmem>>, vector<256x256xf32>
    %cst_5 = arith.constant dense<0.000000e+00> : vector<8x256xf32>
    %4 = tpu.matmul %2, %3, %cst_5 {dimension_numbers = #tpu.dot_dimension_numbers<[1], [0], [0], [1], [0, 0, 1, 1], [], []>} : vector<8x256xf32>, vector<256x256xf32>, vector<8x256xf32> -> vector<8x256xf32>
    %5 = arith.subf %2, %4 : vector<8x256xf32>
    %6 = arith.mulf %5, %5 : vector<8x256xf32>
    %c0_6 = arith.constant 0 : index
    %c0_7 = arith.constant 0 : index
    %7 = vector.load %arg3[%c0_6, %c0_7] : memref<256x256xf32, #tpu.memory_space<vmem>>, vector<256x256xf32>
    %cst_8 = arith.constant dense<0.000000e+00> : vector<8x256xf32>
    %8 = tpu.matmul %6, %7, %cst_8 {dimension_numbers = #tpu.dot_dimension_numbers<[1], [0], [0], [1], [0, 0, 1, 1], [], []>} : vector<8x256xf32>, vector<256x256xf32>, vector<8x256xf32> -> vector<8x256xf32>
    %cst_9 = arith.constant 9.99999974E-6 : f32
    %9 = vector.broadcast %cst_9 : f32 to vector<8x256xf32>
    %10 = arith.addf %8, %9 : vector<8x256xf32>
    %11 = math.rsqrt %10 : vector<8x256xf32>
    %12 = arith.mulf %5, %11 : vector<8x256xf32>
    %c0_10 = arith.constant 0 : index
    %c0_11 = arith.constant 0 : index
    %13 = vector.load %arg4[%c0_10, %c0_11] : memref<1x256xf32, #tpu.memory_space<vmem>>, vector<1x256xf32>
    %14 = vector.broadcast %13 : vector<1x256xf32> to vector<8x256xf32>
    %15 = arith.mulf %12, %14 : vector<8x256xf32>
    %c0_12 = arith.constant 0 : index
    %c0_13 = arith.constant 0 : index
    %16 = vector.load %arg5[%c0_12, %c0_13] : memref<1x256xf32, #tpu.memory_space<vmem>>, vector<1x256xf32>
    %17 = vector.broadcast %16 : vector<1x256xf32> to vector<8x256xf32>
    %18 = arith.addf %15, %17 : vector<8x256xf32>
    %c0_14 = arith.constant 0 : index
    %c0_15 = arith.constant 0 : index
    %19 = vector.load %arg6[%c0_14, %c0_15] : memref<8x256xf32, #tpu.memory_space<vmem>>, vector<8x256xf32>
    tpu.vector_store %arg6[%c0_14, %c0_15], %18 {strides = array<i32>} : memref<8x256xf32, #tpu.memory_space<vmem>>, vector<8x256xf32>,
    return
  }
  func.func @transform_0(%arg0: i32) -> (i32, i32) {
    %c0_i32 = arith.constant 0 : i32
    %c0_i32_0 = arith.constant 0 : i32
    return %arg0, %c0_i32 : i32, i32
  }
  func.func @transform_1(%arg0: i32) -> (i32, i32) {
    %c0_i32 = arith.constant 0 : i32
    %c0_i32_0 = arith.constant 0 : i32
    %c0_i32_1 = arith.constant 0 : i32
    return %c0_i32, %c0_i32_0 : i32, i32
  }
  func.func @transform_2(%arg0: i32) -> (i32, i32) {
    %c0_i32 = arith.constant 0 : i32
    %c0_i32_0 = arith.constant 0 : i32
    %c0_i32_1 = arith.constant 0 : i32
    return %c0_i32, %c0_i32_0 : i32, i32
  }
  func.func @transform_3(%arg0: i32) -> (i32, i32) {
    %c0_i32 = arith.constant 0 : i32
    %c0_i32_0 = arith.constant 0 : i32
    %c0_i32_1 = arith.constant 0 : i32
    return %c0_i32, %c0_i32_0 : i32, i32
  }
  func.func @transform_4(%arg0: i32) -> (i32, i32) {
    %c0_i32 = arith.constant 0 : i32
    %c0_i32_0 = arith.constant 0 : i32
    %c0_i32_1 = arith.constant 0 : i32
    return %c0_i32, %c0_i32_0 : i32, i32
  }
  func.func @transform_5(%arg0: i32) -> (i32, i32) {
    %c0_i32 = arith.constant 0 : i32
    %c0_i32_0 = arith.constant 0 : i32
    return %arg0, %c0_i32 : i32, i32
  }
}

module attributes {stable_mosaic.version = 11 : i64} {
  func.func @_cbam_stage_kernel(%arg0: i32, %arg1: memref<1x16x64xf32, #tpu.memory_space<vmem>>, %arg2: memref<1x16x64xf32, #tpu.memory_space<vmem>>, %arg3: memref<64x64xf32, #tpu.memory_space<vmem>>, %arg4: memref<64x64xf32, #tpu.memory_space<vmem>>, %arg5: memref<1x64xf32, #tpu.memory_space<vmem>>, %arg6: memref<64x4xf32, #tpu.memory_space<vmem>>, %arg7: memref<4x64xf32, #tpu.memory_space<vmem>>, %arg8: memref<2x16x16xf32, #tpu.memory_space<vmem>>, %arg9: memref<1x16x64xf32, #tpu.memory_space<vmem>>) attributes {dimension_semantics = [#tpu.dimension_semantics<parallel>], iteration_bounds = array<i64: 2>, scalar_prefetch = 0 : i64, scratch_operands = 0 : i64, tpu.core_type = #tpu.core_type<tc>, window_params = [{transform_indices = @transform_0, window_bounds = array<i64: 1, 16, 64>}, {transform_indices = @transform_1, window_bounds = array<i64: 1, 16, 64>}, {pipeline_mode = #tpu.pipeline_mode<synchronous>, transform_indices = @transform_2, window_bounds = array<i64: 64, 64>}, {pipeline_mode = #tpu.pipeline_mode<synchronous>, transform_indices = @transform_3, window_bounds = array<i64: 64, 64>}, {pipeline_mode = #tpu.pipeline_mode<synchronous>, transform_indices = @transform_4, window_bounds = array<i64: 1, 64>}, {pipeline_mode = #tpu.pipeline_mode<synchronous>, transform_indices = @transform_5, window_bounds = array<i64: 64, 4>}, {pipeline_mode = #tpu.pipeline_mode<synchronous>, transform_indices = @transform_6, window_bounds = array<i64: 4, 64>}, {pipeline_mode = #tpu.pipeline_mode<synchronous>, transform_indices = @transform_7, window_bounds = array<i64: 2, 16, 16>}, {transform_indices = @transform_8, window_bounds = array<i64: 1, 16, 64>}]} {
    %c0 = arith.constant 0 : index
    %c0_0 = arith.constant 0 : index
    %c0_1 = arith.constant 0 : index
    %0 = vector.load %arg1[%c0, %c0_0, %c0_1] : memref<1x16x64xf32, #tpu.memory_space<vmem>>, vector<1x16x64xf32>
    %1 = vector.shape_cast %0 : vector<1x16x64xf32> to vector<16x64xf32>
    %c0_2 = arith.constant 0 : index
    %c0_3 = arith.constant 0 : index
    %2 = vector.load %arg3[%c0_2, %c0_3] : memref<64x64xf32, #tpu.memory_space<vmem>>, vector<64x64xf32>
    %cst = arith.constant dense<0.000000e+00> : vector<16x64xf32>
    %3 = tpu.matmul %1, %2, %cst {dimension_numbers = #tpu.dot_dimension_numbers<[1], [0], [0], [1], [0, 0, 1, 1], [], []>} : vector<16x64xf32>, vector<64x64xf32>, vector<16x64xf32> -> vector<16x64xf32>
    %c0_4 = arith.constant 0 : index
    %c0_5 = arith.constant 0 : index
    %c0_6 = arith.constant 0 : index
    %4 = vector.load %arg2[%c0_4, %c0_5, %c0_6] : memref<1x16x64xf32, #tpu.memory_space<vmem>>, vector<1x16x64xf32>
    %5 = vector.shape_cast %4 : vector<1x16x64xf32> to vector<16x64xf32>
    %c0_7 = arith.constant 0 : index
    %c0_8 = arith.constant 0 : index
    %6 = vector.load %arg4[%c0_7, %c0_8] : memref<64x64xf32, #tpu.memory_space<vmem>>, vector<64x64xf32>
    %cst_9 = arith.constant dense<0.000000e+00> : vector<16x64xf32>
    %7 = tpu.matmul %5, %6, %cst_9 {dimension_numbers = #tpu.dot_dimension_numbers<[1], [0], [0], [1], [0, 0, 1, 1], [], []>} : vector<16x64xf32>, vector<64x64xf32>, vector<16x64xf32> -> vector<16x64xf32>
    %8 = arith.addf %3, %7 : vector<16x64xf32>
    %c0_10 = arith.constant 0 : index
    %c0_11 = arith.constant 0 : index
    %9 = vector.load %arg5[%c0_10, %c0_11] : memref<1x64xf32, #tpu.memory_space<vmem>>, vector<1x64xf32>
    %10 = vector.broadcast %9 : vector<1x64xf32> to vector<16x64xf32>
    %11 = arith.addf %8, %10 : vector<16x64xf32>
    %cst_12 = arith.constant dense<0.000000e+00> : vector<64xf32>
    %12 = vector.multi_reduction <add>, %11, %cst_12 [0] : vector<16x64xf32> to vector<64xf32>
    %13 = vector.shape_cast %12 : vector<64xf32> to vector<1x64xf32>
    %cst_13 = arith.constant 1.600000e+01 : f32
    %14 = vector.broadcast %cst_13 : f32 to vector<1x64xf32>
    %15 = arith.divf %13, %14 : vector<1x64xf32>
    %cst_14 = arith.constant dense<0xFF800000> : vector<64xf32>
    %16 = vector.multi_reduction <maximumf>, %11, %cst_14 [0] : vector<16x64xf32> to vector<64xf32>
    %17 = vector.shape_cast %16 : vector<64xf32> to vector<1x64xf32>
    %c0_15 = arith.constant 0 : index
    %c0_16 = arith.constant 0 : index
    %18 = vector.load %arg6[%c0_15, %c0_16] : memref<64x4xf32, #tpu.memory_space<vmem>>, vector<64x4xf32>
    %cst_17 = arith.constant dense<0.000000e+00> : vector<1x4xf32>
    %19 = tpu.matmul %15, %18, %cst_17 {dimension_numbers = #tpu.dot_dimension_numbers<[1], [0], [0], [1], [0, 0, 1, 1], [], []>} : vector<1x64xf32>, vector<64x4xf32>, vector<1x4xf32> -> vector<1x4xf32>
    %cst_18 = arith.constant 0.000000e+00 : f32
    %20 = vector.broadcast %cst_18 : f32 to vector<1x4xf32>
    %21 = arith.maximumf %19, %20 : vector<1x4xf32>
    %c0_19 = arith.constant 0 : index
    %c0_20 = arith.constant 0 : index
    %22 = vector.load %arg7[%c0_19, %c0_20] : memref<4x64xf32, #tpu.memory_space<vmem>>, vector<4x64xf32>
    %cst_21 = arith.constant dense<0.000000e+00> : vector<1x64xf32>
    %23 = tpu.matmul %21, %22, %cst_21 {dimension_numbers = #tpu.dot_dimension_numbers<[1], [0], [0], [1], [0, 0, 1, 1], [], []>} : vector<1x4xf32>, vector<4x64xf32>, vector<1x64xf32> -> vector<1x64xf32>
    %c0_22 = arith.constant 0 : index
    %c0_23 = arith.constant 0 : index
    %24 = vector.load %arg6[%c0_22, %c0_23] : memref<64x4xf32, #tpu.memory_space<vmem>>, vector<64x4xf32>
    %cst_24 = arith.constant dense<0.000000e+00> : vector<1x4xf32>
    %25 = tpu.matmul %17, %24, %cst_24 {dimension_numbers = #tpu.dot_dimension_numbers<[1], [0], [0], [1], [0, 0, 1, 1], [], []>} : vector<1x64xf32>, vector<64x4xf32>, vector<1x4xf32> -> vector<1x4xf32>
    %cst_25 = arith.constant 0.000000e+00 : f32
    %26 = vector.broadcast %cst_25 : f32 to vector<1x4xf32>
    %27 = arith.maximumf %25, %26 : vector<1x4xf32>
    %c0_26 = arith.constant 0 : index
    %c0_27 = arith.constant 0 : index
    %28 = vector.load %arg7[%c0_26, %c0_27] : memref<4x64xf32, #tpu.memory_space<vmem>>, vector<4x64xf32>
    %cst_28 = arith.constant dense<0.000000e+00> : vector<1x64xf32>
    %29 = tpu.matmul %27, %28, %cst_28 {dimension_numbers = #tpu.dot_dimension_numbers<[1], [0], [0], [1], [0, 0, 1, 1], [], []>} : vector<1x4xf32>, vector<4x64xf32>, vector<1x64xf32> -> vector<1x64xf32>
    %30 = arith.addf %23, %29 : vector<1x64xf32>
    %31 = arith.negf %30 : vector<1x64xf32>
    %32 = math.exp %31 : vector<1x64xf32>
    %cst_29 = arith.constant 1.000000e+00 : f32
    %33 = vector.broadcast %cst_29 : f32 to vector<1x64xf32>
    %34 = arith.addf %33, %32 : vector<1x64xf32>
    %35 = arith.divf %33, %34 : vector<1x64xf32>
    %36 = vector.broadcast %35 : vector<1x64xf32> to vector<16x64xf32>
    %37 = arith.mulf %11, %36 : vector<16x64xf32>
    %cst_30 = arith.constant dense<0.000000e+00> : vector<16xf32>
    %38 = vector.multi_reduction <add>, %37, %cst_30 [1] : vector<16x64xf32> to vector<16xf32>
    %39 = vector.shape_cast %38 : vector<16xf32> to vector<16x1xf32>
    %cst_31 = arith.constant 6.400000e+01 : f32
    %40 = vector.broadcast %cst_31 : f32 to vector<16x1xf32>
    %41 = arith.divf %39, %40 : vector<16x1xf32>
    %cst_32 = arith.constant dense<0xFF800000> : vector<16xf32>
    %42 = vector.multi_reduction <maximumf>, %37, %cst_32 [1] : vector<16x64xf32> to vector<16xf32>
    %43 = vector.shape_cast %42 : vector<16xf32> to vector<16x1xf32>
    %c0_33 = arith.constant 0 : index
    %c0_34 = arith.constant 0 : index
    %c0_35 = arith.constant 0 : index
    %44 = vector.load %arg8[%c0_33, %c0_34, %c0_35] : memref<2x16x16xf32, #tpu.memory_space<vmem>>, vector<1x16x16xf32>
    %45 = vector.shape_cast %44 : vector<1x16x16xf32> to vector<16x16xf32>
    %cst_36 = arith.constant dense<0.000000e+00> : vector<16x1xf32>
    %46 = tpu.matmul %45, %41, %cst_36 {dimension_numbers = #tpu.dot_dimension_numbers<[1], [0], [0], [1], [0, 0, 1, 1], [], []>} : vector<16x16xf32>, vector<16x1xf32>, vector<16x1xf32> -> vector<16x1xf32>
    %c1 = arith.constant 1 : index
    %c0_37 = arith.constant 0 : index
    %c0_38 = arith.constant 0 : index
    %47 = vector.load %arg8[%c1, %c0_37, %c0_38] : memref<2x16x16xf32, #tpu.memory_space<vmem>>, vector<1x16x16xf32>
    %48 = vector.shape_cast %47 : vector<1x16x16xf32> to vector<16x16xf32>
    %cst_39 = arith.constant dense<0.000000e+00> : vector<16x1xf32>
    %49 = tpu.matmul %48, %43, %cst_39 {dimension_numbers = #tpu.dot_dimension_numbers<[1], [0], [0], [1], [0, 0, 1, 1], [], []>} : vector<16x16xf32>, vector<16x1xf32>, vector<16x1xf32> -> vector<16x1xf32>
    %50 = arith.addf %46, %49 : vector<16x1xf32>
    %51 = arith.negf %50 : vector<16x1xf32>
    %52 = math.exp %51 : vector<16x1xf32>
    %cst_40 = arith.constant 1.000000e+00 : f32
    %53 = vector.broadcast %cst_40 : f32 to vector<16x1xf32>
    %54 = arith.addf %53, %52 : vector<16x1xf32>
    %55 = arith.divf %53, %54 : vector<16x1xf32>
    %56 = vector.broadcast %55 : vector<16x1xf32> to vector<16x64xf32>
    %57 = arith.mulf %37, %56 : vector<16x64xf32>
    %c0_41 = arith.constant 0 : index
    %c0_42 = arith.constant 0 : index
    %c0_43 = arith.constant 0 : index
    %58 = vector.load %arg9[%c0_41, %c0_42, %c0_43] : memref<1x16x64xf32, #tpu.memory_space<vmem>>, vector<1x16x64xf32>
    %59 = vector.shape_cast %58 : vector<1x16x64xf32> to vector<16x64xf32>
    %60 = vector.shape_cast %57 : vector<16x64xf32> to vector<1x16x64xf32>
    tpu.vector_store %arg9[%c0_41, %c0_42, %c0_43], %60 {strides = array<i32>} : memref<1x16x64xf32, #tpu.memory_space<vmem>>, vector<1x16x64xf32>,
    return
  }
  func.func @transform_0(%arg0: i32) -> (i32, i32, i32) {
    %c0_i32 = arith.constant 0 : i32
    %c0_i32_0 = arith.constant 0 : i32
    %c0_i32_1 = arith.constant 0 : i32
    return %arg0, %c0_i32, %c0_i32_0 : i32, i32, i32
  }
  func.func @transform_1(%arg0: i32) -> (i32, i32, i32) {
    %c0_i32 = arith.constant 0 : i32
    %c0_i32_0 = arith.constant 0 : i32
    %c0_i32_1 = arith.constant 0 : i32
    return %arg0, %c0_i32, %c0_i32_0 : i32, i32, i32
  }
  func.func @transform_2(%arg0: i32) -> (i32, i32) {
    %c0_i32 = arith.constant 0 : i32
    %c0_i32_0 = arith.constant 0 : i32
    %c0_i32_1 = arith.constant 0 : i32
    return %c0_i32, %c0_i32_0 : i32, i32
  }
  func.func @transform_3(%arg0: i32) -> (i32, i32) {
    %c0_i32 = arith.constant 0 : i32
    %c0_i32_0 = arith.constant 0 : i32
    %c0_i32_1 = arith.constant 0 : i32
    return %c0_i32, %c0_i32_0 : i32, i32
  }
  func.func @transform_4(%arg0: i32) -> (i32, i32) {
    %c0_i32 = arith.constant 0 : i32
    %c0_i32_0 = arith.constant 0 : i32
    %c0_i32_1 = arith.constant 0 : i32
    return %c0_i32, %c0_i32_0 : i32, i32
  }
  func.func @transform_5(%arg0: i32) -> (i32, i32) {
    %c0_i32 = arith.constant 0 : i32
    %c0_i32_0 = arith.constant 0 : i32
    %c0_i32_1 = arith.constant 0 : i32
    return %c0_i32, %c0_i32_0 : i32, i32
  }
  func.func @transform_6(%arg0: i32) -> (i32, i32) {
    %c0_i32 = arith.constant 0 : i32
    %c0_i32_0 = arith.constant 0 : i32
    %c0_i32_1 = arith.constant 0 : i32
    return %c0_i32, %c0_i32_0 : i32, i32
  }
  func.func @transform_7(%arg0: i32) -> (i32, i32, i32) {
    %c0_i32 = arith.constant 0 : i32
    %c0_i32_0 = arith.constant 0 : i32
    %c0_i32_1 = arith.constant 0 : i32
    %c0_i32_2 = arith.constant 0 : i32
    return %c0_i32, %c0_i32_0, %c0_i32_1 : i32, i32, i32
  }
  func.func @transform_8(%arg0: i32) -> (i32, i32, i32) {
    %c0_i32 = arith.constant 0 : i32
    %c0_i32_0 = arith.constant 0 : i32
    %c0_i32_1 = arith.constant 0 : i32
    return %arg0, %c0_i32, %c0_i32_0 : i32, i32, i32
  }
}

module attributes {stable_mosaic.version = 11 : i64} {
  func.func @_expand_ln_kernel(%arg0: i32, %arg1: memref<32x64xf32, #tpu.memory_space<vmem>>, %arg2: memref<64x128xf32, #tpu.memory_space<vmem>>, %arg3: memref<128x128xf32, #tpu.memory_space<vmem>>, %arg4: memref<1x128xf32, #tpu.memory_space<vmem>>, %arg5: memref<1x128xf32, #tpu.memory_space<vmem>>, %arg6: memref<32x128xf32, #tpu.memory_space<vmem>>) attributes {dimension_semantics = [#tpu.dimension_semantics<parallel>], iteration_bounds = array<i64: 1>, scalar_prefetch = 0 : i64, scratch_operands = 0 : i64, tpu.core_type = #tpu.core_type<tc>, window_params = [{transform_indices = @transform_0, window_bounds = array<i64: 32, 64>}, {pipeline_mode = #tpu.pipeline_mode<synchronous>, transform_indices = @transform_1, window_bounds = array<i64: 64, 128>}, {pipeline_mode = #tpu.pipeline_mode<synchronous>, transform_indices = @transform_2, window_bounds = array<i64: 128, 128>}, {pipeline_mode = #tpu.pipeline_mode<synchronous>, transform_indices = @transform_3, window_bounds = array<i64: 1, 128>}, {pipeline_mode = #tpu.pipeline_mode<synchronous>, transform_indices = @transform_4, window_bounds = array<i64: 1, 128>}, {transform_indices = @transform_5, window_bounds = array<i64: 32, 128>}]} {
    %c0 = arith.constant 0 : index
    %c0_0 = arith.constant 0 : index
    %0 = vector.load %arg1[%c0, %c0_0] : memref<32x64xf32, #tpu.memory_space<vmem>>, vector<32x64xf32>
    %c0_1 = arith.constant 0 : index
    %c0_2 = arith.constant 0 : index
    %1 = vector.load %arg2[%c0_1, %c0_2] : memref<64x128xf32, #tpu.memory_space<vmem>>, vector<64x128xf32>
    %cst = arith.constant dense<0.000000e+00> : vector<32x128xf32>
    %2 = tpu.matmul %0, %1, %cst {dimension_numbers = #tpu.dot_dimension_numbers<[1], [0], [0], [1], [0, 0, 1, 1], [], []>} : vector<32x64xf32>, vector<64x128xf32>, vector<32x128xf32> -> vector<32x128xf32>
    %c0_3 = arith.constant 0 : index
    %c0_4 = arith.constant 0 : index
    %3 = vector.load %arg3[%c0_3, %c0_4] : memref<128x128xf32, #tpu.memory_space<vmem>>, vector<128x128xf32>
    %cst_5 = arith.constant dense<0.000000e+00> : vector<32x128xf32>
    %4 = tpu.matmul %2, %3, %cst_5 {dimension_numbers = #tpu.dot_dimension_numbers<[1], [0], [0], [1], [0, 0, 1, 1], [], []>} : vector<32x128xf32>, vector<128x128xf32>, vector<32x128xf32> -> vector<32x128xf32>
    %5 = arith.subf %2, %4 : vector<32x128xf32>
    %6 = arith.mulf %5, %5 : vector<32x128xf32>
    %c0_6 = arith.constant 0 : index
    %c0_7 = arith.constant 0 : index
    %7 = vector.load %arg3[%c0_6, %c0_7] : memref<128x128xf32, #tpu.memory_space<vmem>>, vector<128x128xf32>
    %cst_8 = arith.constant dense<0.000000e+00> : vector<32x128xf32>
    %8 = tpu.matmul %6, %7, %cst_8 {dimension_numbers = #tpu.dot_dimension_numbers<[1], [0], [0], [1], [0, 0, 1, 1], [], []>} : vector<32x128xf32>, vector<128x128xf32>, vector<32x128xf32> -> vector<32x128xf32>
    %cst_9 = arith.constant 9.99999974E-6 : f32
    %9 = vector.broadcast %cst_9 : f32 to vector<32x128xf32>
    %10 = arith.addf %8, %9 : vector<32x128xf32>
    %11 = math.rsqrt %10 : vector<32x128xf32>
    %12 = arith.mulf %5, %11 : vector<32x128xf32>
    %c0_10 = arith.constant 0 : index
    %c0_11 = arith.constant 0 : index
    %13 = vector.load %arg4[%c0_10, %c0_11] : memref<1x128xf32, #tpu.memory_space<vmem>>, vector<1x128xf32>
    %14 = vector.broadcast %13 : vector<1x128xf32> to vector<32x128xf32>
    %15 = arith.mulf %12, %14 : vector<32x128xf32>
    %c0_12 = arith.constant 0 : index
    %c0_13 = arith.constant 0 : index
    %16 = vector.load %arg5[%c0_12, %c0_13] : memref<1x128xf32, #tpu.memory_space<vmem>>, vector<1x128xf32>
    %17 = vector.broadcast %16 : vector<1x128xf32> to vector<32x128xf32>
    %18 = arith.addf %15, %17 : vector<32x128xf32>
    %c0_14 = arith.constant 0 : index
    %c0_15 = arith.constant 0 : index
    %19 = vector.load %arg6[%c0_14, %c0_15] : memref<32x128xf32, #tpu.memory_space<vmem>>, vector<32x128xf32>
    tpu.vector_store %arg6[%c0_14, %c0_15], %18 {strides = array<i32>} : memref<32x128xf32, #tpu.memory_space<vmem>>, vector<32x128xf32>,
    return
  }
  func.func @transform_0(%arg0: i32) -> (i32, i32) {
    %c0_i32 = arith.constant 0 : i32
    %c0_i32_0 = arith.constant 0 : i32
    return %arg0, %c0_i32 : i32, i32
  }
  func.func @transform_1(%arg0: i32) -> (i32, i32) {
    %c0_i32 = arith.constant 0 : i32
    %c0_i32_0 = arith.constant 0 : i32
    %c0_i32_1 = arith.constant 0 : i32
    return %c0_i32, %c0_i32_0 : i32, i32
  }
  func.func @transform_2(%arg0: i32) -> (i32, i32) {
    %c0_i32 = arith.constant 0 : i32
    %c0_i32_0 = arith.constant 0 : i32
    %c0_i32_1 = arith.constant 0 : i32
    return %c0_i32, %c0_i32_0 : i32, i32
  }
  func.func @transform_3(%arg0: i32) -> (i32, i32) {
    %c0_i32 = arith.constant 0 : i32
    %c0_i32_0 = arith.constant 0 : i32
    %c0_i32_1 = arith.constant 0 : i32
    return %c0_i32, %c0_i32_0 : i32, i32
  }
  func.func @transform_4(%arg0: i32) -> (i32, i32) {
    %c0_i32 = arith.constant 0 : i32
    %c0_i32_0 = arith.constant 0 : i32
    %c0_i32_1 = arith.constant 0 : i32
    return %c0_i32, %c0_i32_0 : i32, i32
  }
  func.func @transform_5(%arg0: i32) -> (i32, i32) {
    %c0_i32 = arith.constant 0 : i32
    %c0_i32_0 = arith.constant 0 : i32
    return %arg0, %c0_i32 : i32, i32
  }
}

module attributes {stable_mosaic.version = 11 : i64} {
  func.func @_cbam_stage_kernel(%arg0: i32, %arg1: memref<1x64x32xf32, #tpu.memory_space<vmem>>, %arg2: memref<1x64x32xf32, #tpu.memory_space<vmem>>, %arg3: memref<32x32xf32, #tpu.memory_space<vmem>>, %arg4: memref<32x32xf32, #tpu.memory_space<vmem>>, %arg5: memref<1x32xf32, #tpu.memory_space<vmem>>, %arg6: memref<32x2xf32, #tpu.memory_space<vmem>>, %arg7: memref<2x32xf32, #tpu.memory_space<vmem>>, %arg8: memref<2x64x64xf32, #tpu.memory_space<vmem>>, %arg9: memref<1x64x32xf32, #tpu.memory_space<vmem>>) attributes {dimension_semantics = [#tpu.dimension_semantics<parallel>], iteration_bounds = array<i64: 2>, scalar_prefetch = 0 : i64, scratch_operands = 0 : i64, tpu.core_type = #tpu.core_type<tc>, window_params = [{transform_indices = @transform_0, window_bounds = array<i64: 1, 64, 32>}, {transform_indices = @transform_1, window_bounds = array<i64: 1, 64, 32>}, {pipeline_mode = #tpu.pipeline_mode<synchronous>, transform_indices = @transform_2, window_bounds = array<i64: 32, 32>}, {pipeline_mode = #tpu.pipeline_mode<synchronous>, transform_indices = @transform_3, window_bounds = array<i64: 32, 32>}, {pipeline_mode = #tpu.pipeline_mode<synchronous>, transform_indices = @transform_4, window_bounds = array<i64: 1, 32>}, {pipeline_mode = #tpu.pipeline_mode<synchronous>, transform_indices = @transform_5, window_bounds = array<i64: 32, 2>}, {pipeline_mode = #tpu.pipeline_mode<synchronous>, transform_indices = @transform_6, window_bounds = array<i64: 2, 32>}, {pipeline_mode = #tpu.pipeline_mode<synchronous>, transform_indices = @transform_7, window_bounds = array<i64: 2, 64, 64>}, {transform_indices = @transform_8, window_bounds = array<i64: 1, 64, 32>}]} {
    %c0 = arith.constant 0 : index
    %c0_0 = arith.constant 0 : index
    %c0_1 = arith.constant 0 : index
    %0 = vector.load %arg1[%c0, %c0_0, %c0_1] : memref<1x64x32xf32, #tpu.memory_space<vmem>>, vector<1x64x32xf32>
    %1 = vector.shape_cast %0 : vector<1x64x32xf32> to vector<64x32xf32>
    %c0_2 = arith.constant 0 : index
    %c0_3 = arith.constant 0 : index
    %2 = vector.load %arg3[%c0_2, %c0_3] : memref<32x32xf32, #tpu.memory_space<vmem>>, vector<32x32xf32>
    %cst = arith.constant dense<0.000000e+00> : vector<64x32xf32>
    %3 = tpu.matmul %1, %2, %cst {dimension_numbers = #tpu.dot_dimension_numbers<[1], [0], [0], [1], [0, 0, 1, 1], [], []>} : vector<64x32xf32>, vector<32x32xf32>, vector<64x32xf32> -> vector<64x32xf32>
    %c0_4 = arith.constant 0 : index
    %c0_5 = arith.constant 0 : index
    %c0_6 = arith.constant 0 : index
    %4 = vector.load %arg2[%c0_4, %c0_5, %c0_6] : memref<1x64x32xf32, #tpu.memory_space<vmem>>, vector<1x64x32xf32>
    %5 = vector.shape_cast %4 : vector<1x64x32xf32> to vector<64x32xf32>
    %c0_7 = arith.constant 0 : index
    %c0_8 = arith.constant 0 : index
    %6 = vector.load %arg4[%c0_7, %c0_8] : memref<32x32xf32, #tpu.memory_space<vmem>>, vector<32x32xf32>
    %cst_9 = arith.constant dense<0.000000e+00> : vector<64x32xf32>
    %7 = tpu.matmul %5, %6, %cst_9 {dimension_numbers = #tpu.dot_dimension_numbers<[1], [0], [0], [1], [0, 0, 1, 1], [], []>} : vector<64x32xf32>, vector<32x32xf32>, vector<64x32xf32> -> vector<64x32xf32>
    %8 = arith.addf %3, %7 : vector<64x32xf32>
    %c0_10 = arith.constant 0 : index
    %c0_11 = arith.constant 0 : index
    %9 = vector.load %arg5[%c0_10, %c0_11] : memref<1x32xf32, #tpu.memory_space<vmem>>, vector<1x32xf32>
    %10 = vector.broadcast %9 : vector<1x32xf32> to vector<64x32xf32>
    %11 = arith.addf %8, %10 : vector<64x32xf32>
    %cst_12 = arith.constant dense<0.000000e+00> : vector<32xf32>
    %12 = vector.multi_reduction <add>, %11, %cst_12 [0] : vector<64x32xf32> to vector<32xf32>
    %13 = vector.shape_cast %12 : vector<32xf32> to vector<1x32xf32>
    %cst_13 = arith.constant 6.400000e+01 : f32
    %14 = vector.broadcast %cst_13 : f32 to vector<1x32xf32>
    %15 = arith.divf %13, %14 : vector<1x32xf32>
    %cst_14 = arith.constant dense<0xFF800000> : vector<32xf32>
    %16 = vector.multi_reduction <maximumf>, %11, %cst_14 [0] : vector<64x32xf32> to vector<32xf32>
    %17 = vector.shape_cast %16 : vector<32xf32> to vector<1x32xf32>
    %c0_15 = arith.constant 0 : index
    %c0_16 = arith.constant 0 : index
    %18 = vector.load %arg6[%c0_15, %c0_16] : memref<32x2xf32, #tpu.memory_space<vmem>>, vector<32x2xf32>
    %cst_17 = arith.constant dense<0.000000e+00> : vector<1x2xf32>
    %19 = tpu.matmul %15, %18, %cst_17 {dimension_numbers = #tpu.dot_dimension_numbers<[1], [0], [0], [1], [0, 0, 1, 1], [], []>} : vector<1x32xf32>, vector<32x2xf32>, vector<1x2xf32> -> vector<1x2xf32>
    %cst_18 = arith.constant 0.000000e+00 : f32
    %20 = vector.broadcast %cst_18 : f32 to vector<1x2xf32>
    %21 = arith.maximumf %19, %20 : vector<1x2xf32>
    %c0_19 = arith.constant 0 : index
    %c0_20 = arith.constant 0 : index
    %22 = vector.load %arg7[%c0_19, %c0_20] : memref<2x32xf32, #tpu.memory_space<vmem>>, vector<2x32xf32>
    %cst_21 = arith.constant dense<0.000000e+00> : vector<1x32xf32>
    %23 = tpu.matmul %21, %22, %cst_21 {dimension_numbers = #tpu.dot_dimension_numbers<[1], [0], [0], [1], [0, 0, 1, 1], [], []>} : vector<1x2xf32>, vector<2x32xf32>, vector<1x32xf32> -> vector<1x32xf32>
    %c0_22 = arith.constant 0 : index
    %c0_23 = arith.constant 0 : index
    %24 = vector.load %arg6[%c0_22, %c0_23] : memref<32x2xf32, #tpu.memory_space<vmem>>, vector<32x2xf32>
    %cst_24 = arith.constant dense<0.000000e+00> : vector<1x2xf32>
    %25 = tpu.matmul %17, %24, %cst_24 {dimension_numbers = #tpu.dot_dimension_numbers<[1], [0], [0], [1], [0, 0, 1, 1], [], []>} : vector<1x32xf32>, vector<32x2xf32>, vector<1x2xf32> -> vector<1x2xf32>
    %cst_25 = arith.constant 0.000000e+00 : f32
    %26 = vector.broadcast %cst_25 : f32 to vector<1x2xf32>
    %27 = arith.maximumf %25, %26 : vector<1x2xf32>
    %c0_26 = arith.constant 0 : index
    %c0_27 = arith.constant 0 : index
    %28 = vector.load %arg7[%c0_26, %c0_27] : memref<2x32xf32, #tpu.memory_space<vmem>>, vector<2x32xf32>
    %cst_28 = arith.constant dense<0.000000e+00> : vector<1x32xf32>
    %29 = tpu.matmul %27, %28, %cst_28 {dimension_numbers = #tpu.dot_dimension_numbers<[1], [0], [0], [1], [0, 0, 1, 1], [], []>} : vector<1x2xf32>, vector<2x32xf32>, vector<1x32xf32> -> vector<1x32xf32>
    %30 = arith.addf %23, %29 : vector<1x32xf32>
    %31 = arith.negf %30 : vector<1x32xf32>
    %32 = math.exp %31 : vector<1x32xf32>
    %cst_29 = arith.constant 1.000000e+00 : f32
    %33 = vector.broadcast %cst_29 : f32 to vector<1x32xf32>
    %34 = arith.addf %33, %32 : vector<1x32xf32>
    %35 = arith.divf %33, %34 : vector<1x32xf32>
    %36 = vector.broadcast %35 : vector<1x32xf32> to vector<64x32xf32>
    %37 = arith.mulf %11, %36 : vector<64x32xf32>
    %cst_30 = arith.constant dense<0.000000e+00> : vector<64xf32>
    %38 = vector.multi_reduction <add>, %37, %cst_30 [1] : vector<64x32xf32> to vector<64xf32>
    %39 = vector.shape_cast %38 : vector<64xf32> to vector<64x1xf32>
    %cst_31 = arith.constant 3.200000e+01 : f32
    %40 = vector.broadcast %cst_31 : f32 to vector<64x1xf32>
    %41 = arith.divf %39, %40 : vector<64x1xf32>
    %cst_32 = arith.constant dense<0xFF800000> : vector<64xf32>
    %42 = vector.multi_reduction <maximumf>, %37, %cst_32 [1] : vector<64x32xf32> to vector<64xf32>
    %43 = vector.shape_cast %42 : vector<64xf32> to vector<64x1xf32>
    %c0_33 = arith.constant 0 : index
    %c0_34 = arith.constant 0 : index
    %c0_35 = arith.constant 0 : index
    %44 = vector.load %arg8[%c0_33, %c0_34, %c0_35] : memref<2x64x64xf32, #tpu.memory_space<vmem>>, vector<1x64x64xf32>
    %45 = vector.shape_cast %44 : vector<1x64x64xf32> to vector<64x64xf32>
    %cst_36 = arith.constant dense<0.000000e+00> : vector<64x1xf32>
    %46 = tpu.matmul %45, %41, %cst_36 {dimension_numbers = #tpu.dot_dimension_numbers<[1], [0], [0], [1], [0, 0, 1, 1], [], []>} : vector<64x64xf32>, vector<64x1xf32>, vector<64x1xf32> -> vector<64x1xf32>
    %c1 = arith.constant 1 : index
    %c0_37 = arith.constant 0 : index
    %c0_38 = arith.constant 0 : index
    %47 = vector.load %arg8[%c1, %c0_37, %c0_38] : memref<2x64x64xf32, #tpu.memory_space<vmem>>, vector<1x64x64xf32>
    %48 = vector.shape_cast %47 : vector<1x64x64xf32> to vector<64x64xf32>
    %cst_39 = arith.constant dense<0.000000e+00> : vector<64x1xf32>
    %49 = tpu.matmul %48, %43, %cst_39 {dimension_numbers = #tpu.dot_dimension_numbers<[1], [0], [0], [1], [0, 0, 1, 1], [], []>} : vector<64x64xf32>, vector<64x1xf32>, vector<64x1xf32> -> vector<64x1xf32>
    %50 = arith.addf %46, %49 : vector<64x1xf32>
    %51 = arith.negf %50 : vector<64x1xf32>
    %52 = math.exp %51 : vector<64x1xf32>
    %cst_40 = arith.constant 1.000000e+00 : f32
    %53 = vector.broadcast %cst_40 : f32 to vector<64x1xf32>
    %54 = arith.addf %53, %52 : vector<64x1xf32>
    %55 = arith.divf %53, %54 : vector<64x1xf32>
    %56 = vector.broadcast %55 : vector<64x1xf32> to vector<64x32xf32>
    %57 = arith.mulf %37, %56 : vector<64x32xf32>
    %c0_41 = arith.constant 0 : index
    %c0_42 = arith.constant 0 : index
    %c0_43 = arith.constant 0 : index
    %58 = vector.load %arg9[%c0_41, %c0_42, %c0_43] : memref<1x64x32xf32, #tpu.memory_space<vmem>>, vector<1x64x32xf32>
    %59 = vector.shape_cast %58 : vector<1x64x32xf32> to vector<64x32xf32>
    %60 = vector.shape_cast %57 : vector<64x32xf32> to vector<1x64x32xf32>
    tpu.vector_store %arg9[%c0_41, %c0_42, %c0_43], %60 {strides = array<i32>} : memref<1x64x32xf32, #tpu.memory_space<vmem>>, vector<1x64x32xf32>,
    return
  }
  func.func @transform_0(%arg0: i32) -> (i32, i32, i32) {
    %c0_i32 = arith.constant 0 : i32
    %c0_i32_0 = arith.constant 0 : i32
    %c0_i32_1 = arith.constant 0 : i32
    return %arg0, %c0_i32, %c0_i32_0 : i32, i32, i32
  }
  func.func @transform_1(%arg0: i32) -> (i32, i32, i32) {
    %c0_i32 = arith.constant 0 : i32
    %c0_i32_0 = arith.constant 0 : i32
    %c0_i32_1 = arith.constant 0 : i32
    return %arg0, %c0_i32, %c0_i32_0 : i32, i32, i32
  }
  func.func @transform_2(%arg0: i32) -> (i32, i32) {
    %c0_i32 = arith.constant 0 : i32
    %c0_i32_0 = arith.constant 0 : i32
    %c0_i32_1 = arith.constant 0 : i32
    return %c0_i32, %c0_i32_0 : i32, i32
  }
  func.func @transform_3(%arg0: i32) -> (i32, i32) {
    %c0_i32 = arith.constant 0 : i32
    %c0_i32_0 = arith.constant 0 : i32
    %c0_i32_1 = arith.constant 0 : i32
    return %c0_i32, %c0_i32_0 : i32, i32
  }
  func.func @transform_4(%arg0: i32) -> (i32, i32) {
    %c0_i32 = arith.constant 0 : i32
    %c0_i32_0 = arith.constant 0 : i32
    %c0_i32_1 = arith.constant 0 : i32
    return %c0_i32, %c0_i32_0 : i32, i32
  }
  func.func @transform_5(%arg0: i32) -> (i32, i32) {
    %c0_i32 = arith.constant 0 : i32
    %c0_i32_0 = arith.constant 0 : i32
    %c0_i32_1 = arith.constant 0 : i32
    return %c0_i32, %c0_i32_0 : i32, i32
  }
  func.func @transform_6(%arg0: i32) -> (i32, i32) {
    %c0_i32 = arith.constant 0 : i32
    %c0_i32_0 = arith.constant 0 : i32
    %c0_i32_1 = arith.constant 0 : i32
    return %c0_i32, %c0_i32_0 : i32, i32
  }
  func.func @transform_7(%arg0: i32) -> (i32, i32, i32) {
    %c0_i32 = arith.constant 0 : i32
    %c0_i32_0 = arith.constant 0 : i32
    %c0_i32_1 = arith.constant 0 : i32
    %c0_i32_2 = arith.constant 0 : i32
    return %c0_i32, %c0_i32_0, %c0_i32_1 : i32, i32, i32
  }
  func.func @transform_8(%arg0: i32) -> (i32, i32, i32) {
    %c0_i32 = arith.constant 0 : i32
    %c0_i32_0 = arith.constant 0 : i32
    %c0_i32_1 = arith.constant 0 : i32
    return %arg0, %c0_i32, %c0_i32_0 : i32, i32, i32
  }
}

module attributes {stable_mosaic.version = 11 : i64} {
  func.func @_expand_ln_kernel(%arg0: i32, %arg1: memref<128x32xf32, #tpu.memory_space<vmem>>, %arg2: memref<32x64xf32, #tpu.memory_space<vmem>>, %arg3: memref<64x64xf32, #tpu.memory_space<vmem>>, %arg4: memref<1x64xf32, #tpu.memory_space<vmem>>, %arg5: memref<1x64xf32, #tpu.memory_space<vmem>>, %arg6: memref<128x64xf32, #tpu.memory_space<vmem>>) attributes {dimension_semantics = [#tpu.dimension_semantics<parallel>], iteration_bounds = array<i64: 1>, scalar_prefetch = 0 : i64, scratch_operands = 0 : i64, tpu.core_type = #tpu.core_type<tc>, window_params = [{transform_indices = @transform_0, window_bounds = array<i64: 128, 32>}, {pipeline_mode = #tpu.pipeline_mode<synchronous>, transform_indices = @transform_1, window_bounds = array<i64: 32, 64>}, {pipeline_mode = #tpu.pipeline_mode<synchronous>, transform_indices = @transform_2, window_bounds = array<i64: 64, 64>}, {pipeline_mode = #tpu.pipeline_mode<synchronous>, transform_indices = @transform_3, window_bounds = array<i64: 1, 64>}, {pipeline_mode = #tpu.pipeline_mode<synchronous>, transform_indices = @transform_4, window_bounds = array<i64: 1, 64>}, {transform_indices = @transform_5, window_bounds = array<i64: 128, 64>}]} {
    %c0 = arith.constant 0 : index
    %c0_0 = arith.constant 0 : index
    %0 = vector.load %arg1[%c0, %c0_0] : memref<128x32xf32, #tpu.memory_space<vmem>>, vector<128x32xf32>
    %c0_1 = arith.constant 0 : index
    %c0_2 = arith.constant 0 : index
    %1 = vector.load %arg2[%c0_1, %c0_2] : memref<32x64xf32, #tpu.memory_space<vmem>>, vector<32x64xf32>
    %cst = arith.constant dense<0.000000e+00> : vector<128x64xf32>
    %2 = tpu.matmul %0, %1, %cst {dimension_numbers = #tpu.dot_dimension_numbers<[1], [0], [0], [1], [0, 0, 1, 1], [], []>} : vector<128x32xf32>, vector<32x64xf32>, vector<128x64xf32> -> vector<128x64xf32>
    %c0_3 = arith.constant 0 : index
    %c0_4 = arith.constant 0 : index
    %3 = vector.load %arg3[%c0_3, %c0_4] : memref<64x64xf32, #tpu.memory_space<vmem>>, vector<64x64xf32>
    %cst_5 = arith.constant dense<0.000000e+00> : vector<128x64xf32>
    %4 = tpu.matmul %2, %3, %cst_5 {dimension_numbers = #tpu.dot_dimension_numbers<[1], [0], [0], [1], [0, 0, 1, 1], [], []>} : vector<128x64xf32>, vector<64x64xf32>, vector<128x64xf32> -> vector<128x64xf32>
    %5 = arith.subf %2, %4 : vector<128x64xf32>
    %6 = arith.mulf %5, %5 : vector<128x64xf32>
    %c0_6 = arith.constant 0 : index
    %c0_7 = arith.constant 0 : index
    %7 = vector.load %arg3[%c0_6, %c0_7] : memref<64x64xf32, #tpu.memory_space<vmem>>, vector<64x64xf32>
    %cst_8 = arith.constant dense<0.000000e+00> : vector<128x64xf32>
    %8 = tpu.matmul %6, %7, %cst_8 {dimension_numbers = #tpu.dot_dimension_numbers<[1], [0], [0], [1], [0, 0, 1, 1], [], []>} : vector<128x64xf32>, vector<64x64xf32>, vector<128x64xf32> -> vector<128x64xf32>
    %cst_9 = arith.constant 9.99999974E-6 : f32
    %9 = vector.broadcast %cst_9 : f32 to vector<128x64xf32>
    %10 = arith.addf %8, %9 : vector<128x64xf32>
    %11 = math.rsqrt %10 : vector<128x64xf32>
    %12 = arith.mulf %5, %11 : vector<128x64xf32>
    %c0_10 = arith.constant 0 : index
    %c0_11 = arith.constant 0 : index
    %13 = vector.load %arg4[%c0_10, %c0_11] : memref<1x64xf32, #tpu.memory_space<vmem>>, vector<1x64xf32>
    %14 = vector.broadcast %13 : vector<1x64xf32> to vector<128x64xf32>
    %15 = arith.mulf %12, %14 : vector<128x64xf32>
    %c0_12 = arith.constant 0 : index
    %c0_13 = arith.constant 0 : index
    %16 = vector.load %arg5[%c0_12, %c0_13] : memref<1x64xf32, #tpu.memory_space<vmem>>, vector<1x64xf32>
    %17 = vector.broadcast %16 : vector<1x64xf32> to vector<128x64xf32>
    %18 = arith.addf %15, %17 : vector<128x64xf32>
    %c0_14 = arith.constant 0 : index
    %c0_15 = arith.constant 0 : index
    %19 = vector.load %arg6[%c0_14, %c0_15] : memref<128x64xf32, #tpu.memory_space<vmem>>, vector<128x64xf32>
    tpu.vector_store %arg6[%c0_14, %c0_15], %18 {strides = array<i32>} : memref<128x64xf32, #tpu.memory_space<vmem>>, vector<128x64xf32>,
    return
  }
  func.func @transform_0(%arg0: i32) -> (i32, i32) {
    %c0_i32 = arith.constant 0 : i32
    %c0_i32_0 = arith.constant 0 : i32
    return %arg0, %c0_i32 : i32, i32
  }
  func.func @transform_1(%arg0: i32) -> (i32, i32) {
    %c0_i32 = arith.constant 0 : i32
    %c0_i32_0 = arith.constant 0 : i32
    %c0_i32_1 = arith.constant 0 : i32
    return %c0_i32, %c0_i32_0 : i32, i32
  }
  func.func @transform_2(%arg0: i32) -> (i32, i32) {
    %c0_i32 = arith.constant 0 : i32
    %c0_i32_0 = arith.constant 0 : i32
    %c0_i32_1 = arith.constant 0 : i32
    return %c0_i32, %c0_i32_0 : i32, i32
  }
  func.func @transform_3(%arg0: i32) -> (i32, i32) {
    %c0_i32 = arith.constant 0 : i32
    %c0_i32_0 = arith.constant 0 : i32
    %c0_i32_1 = arith.constant 0 : i32
    return %c0_i32, %c0_i32_0 : i32, i32
  }
  func.func @transform_4(%arg0: i32) -> (i32, i32) {
    %c0_i32 = arith.constant 0 : i32
    %c0_i32_0 = arith.constant 0 : i32
    %c0_i32_1 = arith.constant 0 : i32
    return %c0_i32, %c0_i32_0 : i32, i32
  }
  func.func @transform_5(%arg0: i32) -> (i32, i32) {
    %c0_i32 = arith.constant 0 : i32
    %c0_i32_0 = arith.constant 0 : i32
    return %arg0, %c0_i32 : i32, i32
  }
}

module attributes {stable_mosaic.version = 11 : i64} {
  func.func @_cbam_stage_kernel(%arg0: i32, %arg1: memref<1x256x16xf32, #tpu.memory_space<vmem>>, %arg2: memref<1x256x16xf32, #tpu.memory_space<vmem>>, %arg3: memref<16x16xf32, #tpu.memory_space<vmem>>, %arg4: memref<16x16xf32, #tpu.memory_space<vmem>>, %arg5: memref<1x16xf32, #tpu.memory_space<vmem>>, %arg6: memref<16x1xf32, #tpu.memory_space<vmem>>, %arg7: memref<1x16xf32, #tpu.memory_space<vmem>>, %arg8: memref<2x256x256xf32, #tpu.memory_space<vmem>>, %arg9: memref<1x256x16xf32, #tpu.memory_space<vmem>>) attributes {dimension_semantics = [#tpu.dimension_semantics<parallel>], iteration_bounds = array<i64: 2>, scalar_prefetch = 0 : i64, scratch_operands = 0 : i64, tpu.core_type = #tpu.core_type<tc>, window_params = [{transform_indices = @transform_0, window_bounds = array<i64: 1, 256, 16>}, {transform_indices = @transform_1, window_bounds = array<i64: 1, 256, 16>}, {pipeline_mode = #tpu.pipeline_mode<synchronous>, transform_indices = @transform_2, window_bounds = array<i64: 16, 16>}, {pipeline_mode = #tpu.pipeline_mode<synchronous>, transform_indices = @transform_3, window_bounds = array<i64: 16, 16>}, {pipeline_mode = #tpu.pipeline_mode<synchronous>, transform_indices = @transform_4, window_bounds = array<i64: 1, 16>}, {pipeline_mode = #tpu.pipeline_mode<synchronous>, transform_indices = @transform_5, window_bounds = array<i64: 16, 1>}, {pipeline_mode = #tpu.pipeline_mode<synchronous>, transform_indices = @transform_6, window_bounds = array<i64: 1, 16>}, {pipeline_mode = #tpu.pipeline_mode<synchronous>, transform_indices = @transform_7, window_bounds = array<i64: 2, 256, 256>}, {transform_indices = @transform_8, window_bounds = array<i64: 1, 256, 16>}]} {
    %c0 = arith.constant 0 : index
    %c0_0 = arith.constant 0 : index
    %c0_1 = arith.constant 0 : index
    %0 = vector.load %arg1[%c0, %c0_0, %c0_1] : memref<1x256x16xf32, #tpu.memory_space<vmem>>, vector<1x256x16xf32>
    %1 = vector.shape_cast %0 : vector<1x256x16xf32> to vector<256x16xf32>
    %c0_2 = arith.constant 0 : index
    %c0_3 = arith.constant 0 : index
    %2 = vector.load %arg3[%c0_2, %c0_3] : memref<16x16xf32, #tpu.memory_space<vmem>>, vector<16x16xf32>
    %cst = arith.constant dense<0.000000e+00> : vector<256x16xf32>
    %3 = tpu.matmul %1, %2, %cst {dimension_numbers = #tpu.dot_dimension_numbers<[1], [0], [0], [1], [0, 0, 1, 1], [], []>} : vector<256x16xf32>, vector<16x16xf32>, vector<256x16xf32> -> vector<256x16xf32>
    %c0_4 = arith.constant 0 : index
    %c0_5 = arith.constant 0 : index
    %c0_6 = arith.constant 0 : index
    %4 = vector.load %arg2[%c0_4, %c0_5, %c0_6] : memref<1x256x16xf32, #tpu.memory_space<vmem>>, vector<1x256x16xf32>
    %5 = vector.shape_cast %4 : vector<1x256x16xf32> to vector<256x16xf32>
    %c0_7 = arith.constant 0 : index
    %c0_8 = arith.constant 0 : index
    %6 = vector.load %arg4[%c0_7, %c0_8] : memref<16x16xf32, #tpu.memory_space<vmem>>, vector<16x16xf32>
    %cst_9 = arith.constant dense<0.000000e+00> : vector<256x16xf32>
    %7 = tpu.matmul %5, %6, %cst_9 {dimension_numbers = #tpu.dot_dimension_numbers<[1], [0], [0], [1], [0, 0, 1, 1], [], []>} : vector<256x16xf32>, vector<16x16xf32>, vector<256x16xf32> -> vector<256x16xf32>
    %8 = arith.addf %3, %7 : vector<256x16xf32>
    %c0_10 = arith.constant 0 : index
    %c0_11 = arith.constant 0 : index
    %9 = vector.load %arg5[%c0_10, %c0_11] : memref<1x16xf32, #tpu.memory_space<vmem>>, vector<1x16xf32>
    %10 = vector.broadcast %9 : vector<1x16xf32> to vector<256x16xf32>
    %11 = arith.addf %8, %10 : vector<256x16xf32>
    %cst_12 = arith.constant dense<0.000000e+00> : vector<16xf32>
    %12 = vector.multi_reduction <add>, %11, %cst_12 [0] : vector<256x16xf32> to vector<16xf32>
    %13 = vector.shape_cast %12 : vector<16xf32> to vector<1x16xf32>
    %cst_13 = arith.constant 2.560000e+02 : f32
    %14 = vector.broadcast %cst_13 : f32 to vector<1x16xf32>
    %15 = arith.divf %13, %14 : vector<1x16xf32>
    %cst_14 = arith.constant dense<0xFF800000> : vector<16xf32>
    %16 = vector.multi_reduction <maximumf>, %11, %cst_14 [0] : vector<256x16xf32> to vector<16xf32>
    %17 = vector.shape_cast %16 : vector<16xf32> to vector<1x16xf32>
    %c0_15 = arith.constant 0 : index
    %c0_16 = arith.constant 0 : index
    %18 = vector.load %arg6[%c0_15, %c0_16] : memref<16x1xf32, #tpu.memory_space<vmem>>, vector<16x1xf32>
    %cst_17 = arith.constant dense<0.000000e+00> : vector<1x1xf32>
    %19 = tpu.matmul %15, %18, %cst_17 {dimension_numbers = #tpu.dot_dimension_numbers<[1], [0], [0], [1], [0, 0, 1, 1], [], []>} : vector<1x16xf32>, vector<16x1xf32>, vector<1x1xf32> -> vector<1x1xf32>
    %cst_18 = arith.constant 0.000000e+00 : f32
    %20 = vector.broadcast %cst_18 : f32 to vector<1x1xf32>
    %21 = arith.maximumf %19, %20 : vector<1x1xf32>
    %c0_19 = arith.constant 0 : index
    %c0_20 = arith.constant 0 : index
    %22 = vector.load %arg7[%c0_19, %c0_20] : memref<1x16xf32, #tpu.memory_space<vmem>>, vector<1x16xf32>
    %cst_21 = arith.constant dense<0.000000e+00> : vector<1x16xf32>
    %23 = tpu.matmul %21, %22, %cst_21 {dimension_numbers = #tpu.dot_dimension_numbers<[1], [0], [0], [1], [0, 0, 1, 1], [], []>} : vector<1x1xf32>, vector<1x16xf32>, vector<1x16xf32> -> vector<1x16xf32>
    %c0_22 = arith.constant 0 : index
    %c0_23 = arith.constant 0 : index
    %24 = vector.load %arg6[%c0_22, %c0_23] : memref<16x1xf32, #tpu.memory_space<vmem>>, vector<16x1xf32>
    %cst_24 = arith.constant dense<0.000000e+00> : vector<1x1xf32>
    %25 = tpu.matmul %17, %24, %cst_24 {dimension_numbers = #tpu.dot_dimension_numbers<[1], [0], [0], [1], [0, 0, 1, 1], [], []>} : vector<1x16xf32>, vector<16x1xf32>, vector<1x1xf32> -> vector<1x1xf32>
    %cst_25 = arith.constant 0.000000e+00 : f32
    %26 = vector.broadcast %cst_25 : f32 to vector<1x1xf32>
    %27 = arith.maximumf %25, %26 : vector<1x1xf32>
    %c0_26 = arith.constant 0 : index
    %c0_27 = arith.constant 0 : index
    %28 = vector.load %arg7[%c0_26, %c0_27] : memref<1x16xf32, #tpu.memory_space<vmem>>, vector<1x16xf32>
    %cst_28 = arith.constant dense<0.000000e+00> : vector<1x16xf32>
    %29 = tpu.matmul %27, %28, %cst_28 {dimension_numbers = #tpu.dot_dimension_numbers<[1], [0], [0], [1], [0, 0, 1, 1], [], []>} : vector<1x1xf32>, vector<1x16xf32>, vector<1x16xf32> -> vector<1x16xf32>
    %30 = arith.addf %23, %29 : vector<1x16xf32>
    %31 = arith.negf %30 : vector<1x16xf32>
    %32 = math.exp %31 : vector<1x16xf32>
    %cst_29 = arith.constant 1.000000e+00 : f32
    %33 = vector.broadcast %cst_29 : f32 to vector<1x16xf32>
    %34 = arith.addf %33, %32 : vector<1x16xf32>
    %35 = arith.divf %33, %34 : vector<1x16xf32>
    %36 = vector.broadcast %35 : vector<1x16xf32> to vector<256x16xf32>
    %37 = arith.mulf %11, %36 : vector<256x16xf32>
    %cst_30 = arith.constant dense<0.000000e+00> : vector<256xf32>
    %38 = vector.multi_reduction <add>, %37, %cst_30 [1] : vector<256x16xf32> to vector<256xf32>
    %39 = vector.shape_cast %38 : vector<256xf32> to vector<256x1xf32>
    %cst_31 = arith.constant 1.600000e+01 : f32
    %40 = vector.broadcast %cst_31 : f32 to vector<256x1xf32>
    %41 = arith.divf %39, %40 : vector<256x1xf32>
    %cst_32 = arith.constant dense<0xFF800000> : vector<256xf32>
    %42 = vector.multi_reduction <maximumf>, %37, %cst_32 [1] : vector<256x16xf32> to vector<256xf32>
    %43 = vector.shape_cast %42 : vector<256xf32> to vector<256x1xf32>
    %c0_33 = arith.constant 0 : index
    %c0_34 = arith.constant 0 : index
    %c0_35 = arith.constant 0 : index
    %44 = vector.load %arg8[%c0_33, %c0_34, %c0_35] : memref<2x256x256xf32, #tpu.memory_space<vmem>>, vector<1x256x256xf32>
    %45 = vector.shape_cast %44 : vector<1x256x256xf32> to vector<256x256xf32>
    %cst_36 = arith.constant dense<0.000000e+00> : vector<256x1xf32>
    %46 = tpu.matmul %45, %41, %cst_36 {dimension_numbers = #tpu.dot_dimension_numbers<[1], [0], [0], [1], [0, 0, 1, 1], [], []>} : vector<256x256xf32>, vector<256x1xf32>, vector<256x1xf32> -> vector<256x1xf32>
    %c1 = arith.constant 1 : index
    %c0_37 = arith.constant 0 : index
    %c0_38 = arith.constant 0 : index
    %47 = vector.load %arg8[%c1, %c0_37, %c0_38] : memref<2x256x256xf32, #tpu.memory_space<vmem>>, vector<1x256x256xf32>
    %48 = vector.shape_cast %47 : vector<1x256x256xf32> to vector<256x256xf32>
    %cst_39 = arith.constant dense<0.000000e+00> : vector<256x1xf32>
    %49 = tpu.matmul %48, %43, %cst_39 {dimension_numbers = #tpu.dot_dimension_numbers<[1], [0], [0], [1], [0, 0, 1, 1], [], []>} : vector<256x256xf32>, vector<256x1xf32>, vector<256x1xf32> -> vector<256x1xf32>
    %50 = arith.addf %46, %49 : vector<256x1xf32>
    %51 = arith.negf %50 : vector<256x1xf32>
    %52 = math.exp %51 : vector<256x1xf32>
    %cst_40 = arith.constant 1.000000e+00 : f32
    %53 = vector.broadcast %cst_40 : f32 to vector<256x1xf32>
    %54 = arith.addf %53, %52 : vector<256x1xf32>
    %55 = arith.divf %53, %54 : vector<256x1xf32>
    %56 = vector.broadcast %55 : vector<256x1xf32> to vector<256x16xf32>
    %57 = arith.mulf %37, %56 : vector<256x16xf32>
    %c0_41 = arith.constant 0 : index
    %c0_42 = arith.constant 0 : index
    %c0_43 = arith.constant 0 : index
    %58 = vector.load %arg9[%c0_41, %c0_42, %c0_43] : memref<1x256x16xf32, #tpu.memory_space<vmem>>, vector<1x256x16xf32>
    %59 = vector.shape_cast %58 : vector<1x256x16xf32> to vector<256x16xf32>
    %60 = vector.shape_cast %57 : vector<256x16xf32> to vector<1x256x16xf32>
    tpu.vector_store %arg9[%c0_41, %c0_42, %c0_43], %60 {strides = array<i32>} : memref<1x256x16xf32, #tpu.memory_space<vmem>>, vector<1x256x16xf32>,
    return
  }
  func.func @transform_0(%arg0: i32) -> (i32, i32, i32) {
    %c0_i32 = arith.constant 0 : i32
    %c0_i32_0 = arith.constant 0 : i32
    %c0_i32_1 = arith.constant 0 : i32
    return %arg0, %c0_i32, %c0_i32_0 : i32, i32, i32
  }
  func.func @transform_1(%arg0: i32) -> (i32, i32, i32) {
    %c0_i32 = arith.constant 0 : i32
    %c0_i32_0 = arith.constant 0 : i32
    %c0_i32_1 = arith.constant 0 : i32
    return %arg0, %c0_i32, %c0_i32_0 : i32, i32, i32
  }
  func.func @transform_2(%arg0: i32) -> (i32, i32) {
    %c0_i32 = arith.constant 0 : i32
    %c0_i32_0 = arith.constant 0 : i32
    %c0_i32_1 = arith.constant 0 : i32
    return %c0_i32, %c0_i32_0 : i32, i32
  }
  func.func @transform_3(%arg0: i32) -> (i32, i32) {
    %c0_i32 = arith.constant 0 : i32
    %c0_i32_0 = arith.constant 0 : i32
    %c0_i32_1 = arith.constant 0 : i32
    return %c0_i32, %c0_i32_0 : i32, i32
  }
  func.func @transform_4(%arg0: i32) -> (i32, i32) {
    %c0_i32 = arith.constant 0 : i32
    %c0_i32_0 = arith.constant 0 : i32
    %c0_i32_1 = arith.constant 0 : i32
    return %c0_i32, %c0_i32_0 : i32, i32
  }
  func.func @transform_5(%arg0: i32) -> (i32, i32) {
    %c0_i32 = arith.constant 0 : i32
    %c0_i32_0 = arith.constant 0 : i32
    %c0_i32_1 = arith.constant 0 : i32
    return %c0_i32, %c0_i32_0 : i32, i32
  }
  func.func @transform_6(%arg0: i32) -> (i32, i32) {
    %c0_i32 = arith.constant 0 : i32
    %c0_i32_0 = arith.constant 0 : i32
    %c0_i32_1 = arith.constant 0 : i32
    return %c0_i32, %c0_i32_0 : i32, i32
  }
  func.func @transform_7(%arg0: i32) -> (i32, i32, i32) {
    %c0_i32 = arith.constant 0 : i32
    %c0_i32_0 = arith.constant 0 : i32
    %c0_i32_1 = arith.constant 0 : i32
    %c0_i32_2 = arith.constant 0 : i32
    return %c0_i32, %c0_i32_0, %c0_i32_1 : i32, i32, i32
  }
  func.func @transform_8(%arg0: i32) -> (i32, i32, i32) {
    %c0_i32 = arith.constant 0 : i32
    %c0_i32_0 = arith.constant 0 : i32
    %c0_i32_1 = arith.constant 0 : i32
    return %arg0, %c0_i32, %c0_i32_0 : i32, i32, i32
  }
}

</mosaic_0001>

<llo_original>
// kernel: tile.51
$region0: #{tile.51}
  #allocation2 [shape = 's32[1]{0}', space=sflag, size = 0x4, scoped, tag = 'scoped memory for tile.51']
  %s0 = inlined_call_operand.hbm [shape: f32[64], index: 0, kind: input, shape index: {}]
  %s1 = inlined_call_operand.vmem [shape: f32[4,64], index: 1, kind: output, shape index: {}]
  $region1: #{tile.51} parent=0
    #allocation0 [shape = 'u8[512]{0}', space=vmem, size = 0x400, scoped, tag = 'operand span for operand 0']
    #allocation1 [shape = 's32[1]{0}', space=sflag, size = 0x4, scoped, tag = 'scoped memory for tile.51']
    %2 = vsyncpa [#allocation1], 0
    // Predicated region
    $region2: #{tile.51} parent=1 // pred_check
      _
    $region3: #{tile.51} parent=1 // pred_check_branch
      %4 = sbr.rel (0) target = $region5
    $region4: #{tile.51} parent=1 // pred_region
      %s6 = ssub.s32 16, 16
      %7 = vsyncadd [#allocation1], %s6
      %s9 = sshll.u32 [#allocation0], 4
      %s10 = int_to_ptr.vmem [resolvable:$true] %s9
      %12 = dma.hbm_to_vmem [thread:$0]  %s0, 16, %s10, [#allocation1]
    $region5: #{tile.51} parent=1 // pred_fallthru
      _
    // Predicated region
    $region6: #{tile.51} parent=1 // pred_check
      _
    $region7: #{tile.51} parent=1 // pred_check_branch
      %14 = sbr.rel (0) target = $region9
    $region8: #{tile.51} parent=1 // pred_region
      %15 = dma.done [#allocation1], 16
    $region9: #{tile.51} parent=1 // pred_fallthru
      _
    %v16 = vld [vmem:[#allocation0] ss:$0 sm:$0xff]
    %17 = vst [vmem:[%s1] sm:$0xf] %v16
    %18 = vsyncpa [#allocation1], 1

// kernel: tile.52
$region0: #{tile.52}
  %s0 = inlined_call_operand.vmem [shape: f32[4,64], index: 0, kind: input, shape index: {}]
  %s1 = inlined_call_operand.vmem [shape: f32[1,256], index: 1, kind: output, shape index: {}]
  $region1: #{tile.52} parent=0
    #allocation0 [shape = 'u8[8192]{0}', space=vmem, size = 0x2000, scoped, tag = 'scoped mem for output reshape']
    #allocation1 [shape = 'u8[4096]{0}', space=vmem, size = 0x1000, scoped, tag = 'scoped mem for input reshape']
    %s3 = sshllo.u32 0, 4
    %v4 = vld [vmem:[%s0] sm:%s3]
    %5 = vst [vmem:[#allocation1] sm:%s3] %v4
    %s6 = smov 3
    %v7 = vld [vmem:[#allocation1] ss:$2 sm:%s6]
    %vm8 = vcmask 523264
    %9 = vst.msk [vmem:[#allocation0] ss:$8 sm:$0x3] %vm8, %v7
    %s10 = scalar_lea.vmem [#allocation1], 1
    %s11 = smov 3
    %v12 = vld [vmem:[%s10] ss:$2 sm:%s11]
    %13 = vrot.lane.b32.xlu0 %v12, 64
    %v14 = vpop.permute.xlu0 %13
    %vm15 = vcmask 1048064
    %16 = vst.msk [vmem:[#allocation0] ss:$8 sm:$0x3] %vm15, %v14
    %s18 = sshllo.u32 0, 1
    %v20 = vld [vmem:[#allocation0] sm:%s18]
    %s21 = sshllo.u32 0, 1
    %22 = vst [vmem:[%s1] sm:%s21] %v20
    %s23 = scalar_lea.vmem [#allocation0], 8
    %v24 = vld [vmem:[%s23] sm:%s18]
    %s25 = sshllo.u32 0, 1
    %s26 = scalar_lea.vmem %s1, 1
    %27 = vst [vmem:[%s26] sm:%s25] %v24

// kernel: tile.67
$region0: #{tile.67}
  #allocation2 [shape = 's32[1]{0}', space=sflag, size = 0x4, scoped, tag = 'scoped memory for tile.67']
  %s0 = inlined_call_operand.hbm [shape: f32[32], index: 0, kind: input, shape index: {}]
  %s1 = inlined_call_operand.vmem [shape: f32[4,32], index: 1, kind: output, shape index: {}]
  $region1: #{tile.67} parent=0
    #allocation0 [shape = 'u8[512]{0}', space=vmem, size = 0x400, scoped, tag = 'operand span for operand 0']
    #allocation1 [shape = 's32[1]{0}', space=sflag, size = 0x4, scoped, tag = 'scoped memory for tile.67']
    %2 = vsyncpa [#allocation1], 0
    // Predicated region
    $region2: #{tile.67} parent=1 // pred_check
      _
    $region3: #{tile.67} parent=1 // pred_check_branch
      %4 = sbr.rel (0) target = $region5
    $region4: #{tile.67} parent=1 // pred_region
      %s6 = ssub.s32 16, 16
      %7 = vsyncadd [#allocation1], %s6
      %s9 = sshll.u32 [#allocation0], 4
      %s10 = int_to_ptr.vmem [resolvable:$true] %s9
      %12 = dma.hbm_to_vmem [thread:$0]  %s0, 16, %s10, [#allocation1]
    $region5: #{tile.67} parent=1 // pred_fallthru
      _
    // Predicated region
    $region6: #{tile.67} parent=1 // pred_check
      _
    $region7: #{tile.67} parent=1 // pred_check_branch
      %14 = sbr.rel (0) target = $region9
    $region8: #{tile.67} parent=1 // pred_region
      %15 = dma.done [#allocation1], 16
    $region9: #{tile.67} parent=1 // pred_fallthru
      _
    %v16 = vld [vmem:[#allocation0] ss:$0 sm:$0xff]
    %17 = vst [vmem:[%s1] sm:$0xf] %v16
    %18 = vsyncpa [#allocation1], 1

// kernel: tile.68
$region0: #{tile.68}
  %s0 = inlined_call_operand.vmem [shape: f32[4,32], index: 0, kind: input, shape index: {}]
  %s1 = inlined_call_operand.vmem [shape: f32[1,128], index: 1, kind: output, shape index: {}]
  $region1: #{tile.68} parent=0
    #allocation0 [shape = 'u8[4096]{0}', space=vmem, size = 0x1000, scoped, tag = 'scoped mem for output reshape']
    #allocation1 [shape = 'u8[4096]{0}', space=vmem, size = 0x1000, scoped, tag = 'scoped mem for input reshape']
    %s3 = sshllo.u32 0, 4
    %v4 = vld [vmem:[%s0] sm:%s3]
    %5 = vst [vmem:[#allocation1] sm:%s3] %v4
    %v6 = vld [vmem:[#allocation1] sm:$0x1]
    %vm7 = vcmask 261120
    %8 = vst.msk [vmem:[#allocation0] sm:$0x1] %vm7, %v6
    %s9 = scalar_lea.vmem [#allocation1], 3
    %v10 = vld [vmem:[%s9] sm:$0x1]
    %11 = vrot.lane.b32.xlu0 %v10, 96
    %v12 = vpop.permute.xlu0 %11
    %vm13 = vcmask 1048320
    %14 = vst.msk [vmem:[#allocation0] sm:$0x1] %vm13, %v12
    %s15 = scalar_lea.vmem [#allocation1], 2
    %v16 = vld [vmem:[%s15] sm:$0x1]
    %17 = vrot.lane.b32.xlu0 %v16, 64
    %v18 = vpop.permute.xlu0 %17
    %vm19 = vcmask 785920
    %20 = vst.msk [vmem:[#allocation0] sm:$0x1] %vm19, %v18
    %s21 = scalar_lea.vmem [#allocation1], 1
    %v22 = vld [vmem:[%s21] sm:$0x1]
    %23 = vrot.lane.b32.xlu0 %v22, 32
    %v24 = vpop.permute.xlu0 %23
    %vm25 = vcmask 523520
    %26 = vst.msk [vmem:[#allocation0] sm:$0x1] %vm25, %v24
    %s28 = sshllo.u32 0, 1
    %v30 = vld [vmem:[#allocation0] sm:%s28]
    %s31 = sshllo.u32 0, 1
    %32 = vst [vmem:[%s1] sm:%s31] %v30

// kernel: decoder_forward.6
$region0: #{decoder_forward.6}
  #allocation0 [shape = 'u32[]', space=smem, size = 0x4, offset = 0x4, fixed_abs, tag = 'smem constant byte address 0x4 - core index']
  #allocation1 [shape = 'u32[144,128]{1,0:T(1,128)}', space=vmem, size = 0x12000, scoped, tag = 'internal scratch']
  %s0 = inlined_call_operand.hbm [shape: f32[8,128], index: 0, kind: input, shape index: {}]
  %s1 = inlined_call_operand.hbm [shape: f32[128,256], index: 1, kind: input, shape index: {}]
  %s2 = inlined_call_operand.vmem [shape: f32[256,256], index: 2, kind: input, shape index: {}]
  %s3 = inlined_call_operand.vmem [shape: f32[1,256], index: 3, kind: input, shape index: {}]
  %s4 = inlined_call_operand.vmem [shape: f32[1,256], index: 4, kind: input, shape index: {}]
  %s5 = inlined_call_operand.vmem [shape: f32[8,256], index: 5, kind: output, shape index: {}]
  %s6 = sld [smem:[#allocation0]]
  $region38: #{decoder_forward.6} parent=0
    _
  %s8 = ssub.s32 1, %s6
  %s9 = scalar_select 0, %s8, %s6
  $region1: #{decoder_forward.6} parent=0
    #allocation2 [shape = 'u8[4096]{0}', space=vmem, size = 0x1000, scoped, tag = 'input window, operand 0, single buffered']
    #allocation3 [shape = 's32[1]{0}', space=sflag, size = 0x4, scoped, tag = 'scoped memory for decoder_forward.6']
    #allocation4 [shape = 'u8[131072]{0}', space=vmem, size = 0x20000, scoped, tag = 'input window, operand 1, single buffered']
    #allocation5 [shape = 's32[1]{0}', space=sflag, size = 0x4, scoped, tag = 'scoped memory for decoder_forward.6']
    %10 = vsyncpa [#allocation3], 0
    %11 = vsyncpa [#allocation5], 0
    // Predicated region
    $region2: #{decoder_forward.6} parent=1 // pred_check
      _
    $region3: #{decoder_forward.6} parent=1 // pred_check_branch
      %13 = sbr.rel (0) target = $region5
    $region4: #{decoder_forward.6} parent=1 // pred_region
      %s15 = ssub.s32 128, 128
      %16 = vsyncadd [#allocation3], %s15
      %s18 = sshll.u32 [#allocation2], 4
      %s19 = int_to_ptr.vmem [resolvable:$true] %s18
      %21 = dma.hbm_to_vmem [thread:$0]  %s0, 128, %s19, [#allocation3]
    $region5: #{decoder_forward.6} parent=1 // pred_fallthru
      _
    // Predicated region
    $region6: #{decoder_forward.6} parent=1 // pred_check
      _
    $region7: #{decoder_forward.6} parent=1 // pred_check_branch
      %23 = sbr.rel (0) target = $region9
    $region8: #{decoder_forward.6} parent=1 // pred_region
      %s25 = ssub.s32 4096, 4096
      %26 = vsyncadd [#allocation5], %s25
      %s27 = sshll.u32 [#allocation4], 4
      %s28 = int_to_ptr.vmem [resolvable:$true] %s27
      %33 = dma.hbm_to_vmem [thread:$0]  %s1, 4096, %s28, [#allocation5], 256, 256, 16
    $region9: #{decoder_forward.6} parent=1 // pred_fallthru
      _
    // Predicated region
    $region10: #{decoder_forward.6} parent=1 // pred_check
      _
    $region11: #{decoder_forward.6} parent=1 // pred_check_branch
      %35 = sbr.rel (0) target = $region13
    $region12: #{decoder_forward.6} parent=1 // pred_region
      _
    $region13: #{decoder_forward.6} parent=1 // pred_fallthru
      _
    // Predicated region
    $region14: #{decoder_forward.6} parent=1 // pred_check
      _
    $region15: #{decoder_forward.6} parent=1 // pred_check_branch
      %37 = sbr.rel (0) target = $region17
    $region16: #{decoder_forward.6} parent=1 // pred_region
      _
    $region17: #{decoder_forward.6} parent=1 // pred_fallthru
      _
    // Predicated region
    $region18: #{decoder_forward.6} parent=1 // pred_check
      _
    $region19: #{decoder_forward.6} parent=1 // pred_check_branch
      %39 = sbr.rel (0) target = $region21
    $region20: #{decoder_forward.6} parent=1 // pred_region
      _
    $region21: #{decoder_forward.6} parent=1 // pred_fallthru
      _
    // Predicated region
    $region22: #{decoder_forward.6} parent=1 // pred_check
      _
    $region23: #{decoder_forward.6} parent=1 // pred_check_branch
      %41 = sbr.rel (0) target = $region25
    $region24: #{decoder_forward.6} parent=1 // pred_region
      %42 = dma.done [#allocation3], 128
    $region25: #{decoder_forward.6} parent=1 // pred_fallthru
      _
    // Predicated region
    $region26: #{decoder_forward.6} parent=1 // pred_check
      _
    $region27: #{decoder_forward.6} parent=1 // pred_check_branch
      %44 = sbr.rel (0) target = $region29
    $region28: #{decoder_forward.6} parent=1 // pred_region
      %45 = dma.done [#allocation5], 4096
    $region29: #{decoder_forward.6} parent=1 // pred_fallthru
      _
    %v46 = vld [vmem:[#allocation2] sm:$0xff]
    %v47 = vld [vmem:[#allocation4] sm:$0xff]
    %v48 = vld [vmem:[#allocation4 + $0x8] sm:$0xff]
    %v49 = vld [vmem:[#allocation4 + $0x10] sm:$0xff]
    %v50 = vld [vmem:[#allocation4 + $0x18] sm:$0xff]
    %v51 = vld [vmem:[#allocation4 + $0x20] sm:$0xff]
    %v52 = vld [vmem:[#allocation4 + $0x28] sm:$0xff]
    %v53 = vld [vmem:[#allocation4 + $0x30] sm:$0xff]
    %v54 = vld [vmem:[#allocation4 + $0x38] sm:$0xff]
    %v55 = vld [vmem:[#allocation4 + $0x40] sm:$0xff]
    %v56 = vld [vmem:[#allocation4 + $0x48] sm:$0xff]
    %v57 = vld [vmem:[#allocation4 + $0x50] sm:$0xff]
    %v58 = vld [vmem:[#allocation4 + $0x58] sm:$0xff]
    %v59 = vld [vmem:[#allocation4 + $0x60] sm:$0xff]
    %v60 = vld [vmem:[#allocation4 + $0x68] sm:$0xff]
    %v61 = vld [vmem:[#allocation4 + $0x70] sm:$0xff]
    %v62 = vld [vmem:[#allocation4 + $0x78] sm:$0xff]
    %v63 = vld [vmem:[#allocation4 + $0x80] sm:$0xff]
    %v64 = vld [vmem:[#allocation4 + $0x88] sm:$0xff]
    %v65 = vld [vmem:[#allocation4 + $0x90] sm:$0xff]
    %v66 = vld [vmem:[#allocation4 + $0x98] sm:$0xff]
    %v67 = vld [vmem:[#allocation4 + $0xa0] sm:$0xff]
    %v68 = vld [vmem:[#allocation4 + $0xa8] sm:$0xff]
    %v69 = vld [vmem:[#allocation4 + $0xb0] sm:$0xff]
    %v70 = vld [vmem:[#allocation4 + $0xb8] sm:$0xff]
    %v71 = vld [vmem:[#allocation4 + $0xc0] sm:$0xff]
    %v72 = vld [vmem:[#allocation4 + $0xc8] sm:$0xff]
    %v73 = vld [vmem:[#allocation4 + $0xd0] sm:$0xff]
    %v74 = vld [vmem:[#allocation4 + $0xd8] sm:$0xff]
    %v75 = vld [vmem:[#allocation4 + $0xe0] sm:$0xff]
    %v76 = vld [vmem:[#allocation4 + $0xe8] sm:$0xff]
    %v77 = vld [vmem:[#allocation4 + $0xf0] sm:$0xff]
    %v78 = vld [vmem:[#allocation4 + $0xf8] sm:$0xff]
    %79 = vmatprep.subr.mxu0 %v48
    %80 = vmatpush1.msra.mxu0 %v47
    %81 = vmatprep.subr.mxu0 %v50
    %82 = vmatpush1.msra.mxu0 %v49
    %83 = vmatprep.subr.mxu0 %v52
    %84 = vmatpush1.msra.mxu0 %v51
    %85 = vmatprep.subr.mxu0 %v54
    %86 = vmatpush1.msra.mxu0 %v53
    %87 = vmatprep.subr.mxu0 %v56
    %88 = vmatpush1.msra.mxu0 %v55
    %89 = vmatprep.subr.mxu0 %v58
    %90 = vmatpush1.msra.mxu0 %v57
    %91 = vmatprep.subr.mxu0 %v60
    %92 = vmatpush1.msra.mxu0 %v59
    %93 = vmatprep.subr.mxu0 %v62
    %94 = vmatpush1.msra.mxu0 %v61
    %95 = vmatprep.subr.mxu0 %v64
    %96 = vmatpush1.msra.mxu0 %v63
    %97 = vmatprep.subr.mxu0 %v66
    %98 = vmatpush1.msra.mxu0 %v65
    %99 = vmatprep.subr.mxu0 %v68
    %100 = vmatpush1.msra.mxu0 %v67
    %101 = vmatprep.subr.mxu0 %v70
    %102 = vmatpush1.msra.mxu0 %v69
    %103 = vmatprep.subr.mxu0 %v72
    %104 = vmatpush1.msra.mxu0 %v71
    %105 = vmatprep.subr.mxu0 %v74
    %106 = vmatpush1.msra.mxu0 %v73
    %107 = vmatprep.subr.mxu0 %v76
    %108 = vmatpush1.msra.mxu0 %v75
    %109 = vmatprep.subr.mxu0 %v78
    %110 = vmatpush1.msra.mxu0 %v77
    %111 = vmatprep.subr.mxu0 0.0
    %112 = vmatpush1.msra.mxu0 0.0
    %113 = vmatprep.subr.mxu0 0.0
    %114 = vmatpush1.msra.mxu0 0.0
    %115 = vmatprep.subr.mxu0 0.0
    %116 = vmatpush1.msra.mxu0 0.0
    %117 = vmatprep.subr.mxu0 0.0
    %118 = vmatpush1.msra.mxu0 0.0
    %119 = vmatprep.subr.mxu0 0.0
    %120 = vmatpush1.msra.mxu0 0.0
    %121 = vmatprep.subr.mxu0 0.0
    %122 = vmatpush1.msra.mxu0 0.0
    %123 = vmatprep.subr.mxu0 0.0
    %124 = vmatpush1.msra.mxu0 0.0
    %125 = vmatprep.subr.mxu0 0.0
    %126 = vmatpush1.msra.mxu0 0.0
    %127 = vmatprep.subr.mxu0 0.0
    %128 = vmatpush1.msra.mxu0 0.0
    %129 = vmatprep.subr.mxu0 0.0
    %130 = vmatpush1.msra.mxu0 0.0
    %131 = vmatprep.subr.mxu0 0.0
    %132 = vmatpush1.msra.mxu0 0.0
    %133 = vmatprep.subr.mxu0 0.0
    %134 = vmatpush1.msra.mxu0 0.0
    %135 = vmatprep.subr.mxu0 0.0
    %136 = vmatpush1.msra.mxu0 0.0
    %137 = vmatprep.subr.mxu0 0.0
    %138 = vmatpush1.msra.mxu0 0.0
    %139 = vmatprep.subr.mxu0 0.0
    %140 = vmatpush1.msra.mxu0 0.0
    %141 = vmatprep.subr.mxu0 0.0
    %142 = vmatpush1.msra.mxu0 0.0
    %143 = vmatprep.mubr.f32.mxu0 0.0
    %144 = vmatmul.mubr.f32.gmra.mrb[0].mxu0 %v46
    %v145 = vpop.f32.mrb[0].mxu0
    %v146 = vadd.f32 0.0, %v145
    %v147 = vpop.f32.mrb[0].mxu0
    %v148 = vadd.f32 0.0, %v147
    %149 = vdwg.mxu0
    %v150 = vld [vmem:[%s2] sm:$0xff]
    %v151 = vld [vmem:[%s2 + $0x8] sm:$0xff]
    %v152 = vld [vmem:[%s2 + $0x10] sm:$0xff]
    %v153 = vld [vmem:[%s2 + $0x18] sm:$0xff]
    %v154 = vld [vmem:[%s2 + $0x20] sm:$0xff]
    %v155 = vld [vmem:[%s2 + $0x28] sm:$0xff]
    %v156 = vld [vmem:[%s2 + $0x30] sm:$0xff]
    %v157 = vld [vmem:[%s2 + $0x38] sm:$0xff]
    %v158 = vld [vmem:[%s2 + $0x40] sm:$0xff]
    %v159 = vld [vmem:[%s2 + $0x48] sm:$0xff]
    %v160 = vld [vmem:[%s2 + $0x50] sm:$0xff]
    %v161 = vld [vmem:[%s2 + $0x58] sm:$0xff]
    %v162 = vld [vmem:[%s2 + $0x60] sm:$0xff]
    %v163 = vld [vmem:[%s2 + $0x68] sm:$0xff]
    %v164 = vld [vmem:[%s2 + $0x70] sm:$0xff]
    %v165 = vld [vmem:[%s2 + $0x78] sm:$0xff]
    %v166 = vld [vmem:[%s2 + $0x80] sm:$0xff]
    %v167 = vld [vmem:[%s2 + $0x88] sm:$0xff]
    %v168 = vld [vmem:[%s2 + $0x90] sm:$0xff]
    %v169 = vld [vmem:[%s2 + $0x98] sm:$0xff]
    %v170 = vld [vmem:[%s2 + $0xa0] sm:$0xff]
    %v171 = vld [vmem:[%s2 + $0xa8] sm:$0xff]
    %v172 = vld [vmem:[%s2 + $0xb0] sm:$0xff]
    %v173 = vld [vmem:[%s2 + $0xb8] sm:$0xff]
    %v174 = vld [vmem:[%s2 + $0xc0] sm:$0xff]
    %v175 = vld [vmem:[%s2 + $0xc8] sm:$0xff]
    %v176 = vld [vmem:[%s2 + $0xd0] sm:$0xff]
    %v177 = vld [vmem:[%s2 + $0xd8] sm:$0xff]
    %v178 = vld [vmem:[%s2 + $0xe0] sm:$0xff]
    %v179 = vld [vmem:[%s2 + $0xe8] sm:$0xff]
    %v180 = vld [vmem:[%s2 + $0xf0] sm:$0xff]
    %v181 = vld [vmem:[%s2 + $0xf8] sm:$0xff]
    %v182 = vld [vmem:[%s2 + $0x100] sm:$0xff]
    %v183 = vld [vmem:[%s2 + $0x108] sm:$0xff]
    %v184 = vld [vmem:[%s2 + $0x110] sm:$0xff]
    %v185 = vld [vmem:[%s2 + $0x118] sm:$0xff]
    %v186 = vld [vmem:[%s2 + $0x120] sm:$0xff]
    %v187 = vld [vmem:[%s2 + $0x128] sm:$0xff]
    %v188 = vld [vmem:[%s2 + $0x130] sm:$0xff]
    %v189 = vld [vmem:[%s2 + $0x138] sm:$0xff]
    %v190 = vld [vmem:[%s2 + $0x140] sm:$0xff]
    %v191 = vld [vmem:[%s2 + $0x148] sm:$0xff]
    %v192 = vld [vmem:[%s2 + $0x150] sm:$0xff]
    %v193 = vld [vmem:[%s2 + $0x158] sm:$0xff]
    %v194 = vld [vmem:[%s2 + $0x160] sm:$0xff]
    %v195 = vld [vmem:[%s2 + $0x168] sm:$0xff]
    %v196 = vld [vmem:[%s2 + $0x170] sm:$0xff]
    %v197 = vld [vmem:[%s2 + $0x178] sm:$0xff]
    %v198 = vld [vmem:[%s2 + $0x180] sm:$0xff]
    %v199 = vld [vmem:[%s2 + $0x188] sm:$0xff]
    %v200 = vld [vmem:[%s2 + $0x190] sm:$0xff]
    %v201 = vld [vmem:[%s2 + $0x198] sm:$0xff]
    %v202 = vld [vmem:[%s2 + $0x1a0] sm:$0xff]
    %v203 = vld [vmem:[%s2 + $0x1a8] sm:$0xff]
    %v204 = vld [vmem:[%s2 + $0x1b0] sm:$0xff]
    %v205 = vld [vmem:[%s2 + $0x1b8] sm:$0xff]
    %v206 = vld [vmem:[%s2 + $0x1c0] sm:$0xff]
    %v207 = vld [vmem:[%s2 + $0x1c8] sm:$0xff]
    %v208 = vld [vmem:[%s2 + $0x1d0] sm:$0xff]
    %v209 = vld [vmem:[%s2 + $0x1d8] sm:$0xff]
    %v210 = vld [vmem:[%s2 + $0x1e0] sm:$0xff]
    %v211 = vld [vmem:[%s2 + $0x1e8] sm:$0xff]
    %v212 = vld [vmem:[%s2 + $0x1f0] sm:$0xff]
    %v213 = vld [vmem:[%s2 + $0x1f8] sm:$0xff]
    %214 = vmatprep.subr.mxu0 %v151
    %215 = vmatpush1.msra.mxu0 %v150
    %216 = vmatprep.subr.mxu0 %v153
    %217 = vmatpush1.msra.mxu0 %v152
    %218 = vmatprep.subr.mxu0 %v155
    %219 = vmatpush1.msra.mxu0 %v154
    %220 = vmatprep.subr.mxu0 %v157
    %221 = vmatpush1.msra.mxu0 %v156
    %222 = vmatprep.subr.mxu0 %v159
    %223 = vmatpush1.msra.mxu0 %v158
    %224 = vmatprep.subr.mxu0 %v161
    %225 = vmatpush1.msra.mxu0 %v160
    %226 = vmatprep.subr.mxu0 %v163
    %227 = vmatpush1.msra.mxu0 %v162
    %228 = vmatprep.subr.mxu0 %v165
    %229 = vmatpush1.msra.mxu0 %v164
    %230 = vmatprep.subr.mxu0 %v167
    %231 = vmatpush1.msra.mxu0 %v166
    %232 = vmatprep.subr.mxu0 %v169
    %233 = vmatpush1.msra.mxu0 %v168
    %234 = vmatprep.subr.mxu0 %v171
    %235 = vmatpush1.msra.mxu0 %v170
    %236 = vmatprep.subr.mxu0 %v173
    %237 = vmatpush1.msra.mxu0 %v172
    %238 = vmatprep.subr.mxu0 %v175
    %239 = vmatpush1.msra.mxu0 %v174
    %240 = vmatprep.subr.mxu0 %v177
    %241 = vmatpush1.msra.mxu0 %v176
    %242 = vmatprep.subr.mxu0 %v179
    %243 = vmatpush1.msra.mxu0 %v178
    %244 = vmatprep.subr.mxu0 %v181
    %245 = vmatpush1.msra.mxu0 %v180
    %246 = vmatprep.subr.mxu0 %v183
    %247 = vmatpush1.msra.mxu0 %v182
    %248 = vmatprep.subr.mxu0 %v185
    %249 = vmatpush1.msra.mxu0 %v184
    %250 = vmatprep.subr.mxu0 %v187
    %251 = vmatpush1.msra.mxu0 %v186
    %252 = vmatprep.subr.mxu0 %v189
    %253 = vmatpush1.msra.mxu0 %v188
    %254 = vmatprep.subr.mxu0 %v191
    %255 = vmatpush1.msra.mxu0 %v190
    %256 = vmatprep.subr.mxu0 %v193
    %257 = vmatpush1.msra.mxu0 %v192
    %258 = vmatprep.subr.mxu0 %v195
    %259 = vmatpush1.msra.mxu0 %v194
    %260 = vmatprep.subr.mxu0 %v197
    %261 = vmatpush1.msra.mxu0 %v196
    %262 = vmatprep.subr.mxu0 %v199
    %263 = vmatpush1.msra.mxu0 %v198
    %264 = vmatprep.subr.mxu0 %v201
    %265 = vmatpush1.msra.mxu0 %v200
    %266 = vmatprep.subr.mxu0 %v203
    %267 = vmatpush1.msra.mxu0 %v202
    %268 = vmatprep.subr.mxu0 %v205
    %269 = vmatpush1.msra.mxu0 %v204
    %270 = vmatprep.subr.mxu0 %v207
    %271 = vmatpush1.msra.mxu0 %v206
    %272 = vmatprep.subr.mxu0 %v209
    %273 = vmatpush1.msra.mxu0 %v208
    %274 = vmatprep.subr.mxu0 %v211
    %275 = vmatpush1.msra.mxu0 %v210
    %276 = vmatprep.subr.mxu0 %v213
    %277 = vmatpush1.msra.mxu0 %v212
    %278 = vmatprep.mubr.f32.mxu0 %v148
    %279 = vmatmul.mubr.f32.gmra.mrb[0].mxu0 %v146
    %v280 = vpop.f32.mrb[0].mxu0
    %v281 = vadd.f32 0.0, %v280
    %v282 = vpop.f32.mrb[0].mxu0
    %v283 = vadd.f32 0.0, %v282
    %284 = vdwg.mxu0
    %v285 = vsub.f32 %v146, %v281
    %v286 = vsub.f32 %v148, %v283
    %v287 = vmul.f32 %v285, %v285
    %v288 = vmul.f32 %v286, %v286
    %289 = vmatprep.subr.mxu0 %v151
    %290 = vmatpush1.msra.mxu0 %v150
    %291 = vmatprep.subr.mxu0 %v153
    %292 = vmatpush1.msra.mxu0 %v152
    %293 = vmatprep.subr.mxu0 %v155
    %294 = vmatpush1.msra.mxu0 %v154
    %295 = vmatprep.subr.mxu0 %v157
    %296 = vmatpush1.msra.mxu0 %v156
    %297 = vmatprep.subr.mxu0 %v159
    %298 = vmatpush1.msra.mxu0 %v158
    %299 = vmatprep.subr.mxu0 %v161
    %300 = vmatpush1.msra.mxu0 %v160
    %301 = vmatprep.subr.mxu0 %v163
    %302 = vmatpush1.msra.mxu0 %v162
    %303 = vmatprep.subr.mxu0 %v165
    %304 = vmatpush1.msra.mxu0 %v164
    %305 = vmatprep.subr.mxu0 %v167
    %306 = vmatpush1.msra.mxu0 %v166
    %307 = vmatprep.subr.mxu0 %v169
    %308 = vmatpush1.msra.mxu0 %v168
    %309 = vmatprep.subr.mxu0 %v171
    %310 = vmatpush1.msra.mxu0 %v170
    %311 = vmatprep.subr.mxu0 %v173
    %312 = vmatpush1.msra.mxu0 %v172
    %313 = vmatprep.subr.mxu0 %v175
    %314 = vmatpush1.msra.mxu0 %v174
    %315 = vmatprep.subr.mxu0 %v177
    %316 = vmatpush1.msra.mxu0 %v176
    %317 = vmatprep.subr.mxu0 %v179
    %318 = vmatpush1.msra.mxu0 %v178
    %319 = vmatprep.subr.mxu0 %v181
    %320 = vmatpush1.msra.mxu0 %v180
    %321 = vmatprep.subr.mxu0 %v183
    %322 = vmatpush1.msra.mxu0 %v182
    %323 = vmatprep.subr.mxu0 %v185
    %324 = vmatpush1.msra.mxu0 %v184
    %325 = vmatprep.subr.mxu0 %v187
    %326 = vmatpush1.msra.mxu0 %v186
    %327 = vmatprep.subr.mxu0 %v189
    %328 = vmatpush1.msra.mxu0 %v188
    %329 = vmatprep.subr.mxu0 %v191
    %330 = vmatpush1.msra.mxu0 %v190
    %331 = vmatprep.subr.mxu0 %v193
    %332 = vmatpush1.msra.mxu0 %v192
    %333 = vmatprep.subr.mxu0 %v195
    %334 = vmatpush1.msra.mxu0 %v194
    %335 = vmatprep.subr.mxu0 %v197
    %336 = vmatpush1.msra.mxu0 %v196
    %337 = vmatprep.subr.mxu0 %v199
    %338 = vmatpush1.msra.mxu0 %v198
    %339 = vmatprep.subr.mxu0 %v201
    %340 = vmatpush1.msra.mxu0 %v200
    %341 = vmatprep.subr.mxu0 %v203
    %342 = vmatpush1.msra.mxu0 %v202
    %343 = vmatprep.subr.mxu0 %v205
    %344 = vmatpush1.msra.mxu0 %v204
    %345 = vmatprep.subr.mxu0 %v207
    %346 = vmatpush1.msra.mxu0 %v206
    %347 = vmatprep.subr.mxu0 %v209
    %348 = vmatpush1.msra.mxu0 %v208
    %349 = vmatprep.subr.mxu0 %v211
    %350 = vmatpush1.msra.mxu0 %v210
    %351 = vmatprep.subr.mxu0 %v213
    %352 = vmatpush1.msra.mxu0 %v212
    %353 = vmatprep.mubr.f32.mxu0 %v288
    %354 = vmatmul.mubr.f32.gmra.mrb[0].mxu0 %v287
    %v355 = vpop.f32.mrb[0].mxu0
    %v356 = vadd.f32 1e-05, %v355
    %v357 = vpop.f32.mrb[0].mxu0
    %v358 = vadd.f32 1e-05, %v357
    %359 = vdwg.mxu0
    %v360 = vrsqrt.pop %v356
    %v361 = vrsqrt.pop %v358
    %v362 = vmul.f32 %v285, %v360
    %v363 = vmul.f32 %v286, %v361
    %v364 = vld [vmem:[%s3] sm:$0x3]
    %v366 = vlaneseq
    %v367 = vshrl.u32 %v366, 7
    %v368 = vsub.s32 0, %v367
    %v369 = vrot.slane %v364, %v368
    %v370 = vlaneseq
    %v371 = vshrl.u32 %v370, 7
    %v372 = vsub.s32 1, %v371
    %v373 = vrot.slane %v364, %v372
    %v376 = vmul.f32 %v362, %v369
    %v377 = vmul.f32 %v363, %v373
    %v378 = vld [vmem:[%s4] sm:$0x3]
    %v380 = vlaneseq
    %v381 = vshrl.u32 %v380, 7
    %v382 = vsub.s32 0, %v381
    %v383 = vrot.slane %v378, %v382
    %v384 = vlaneseq
    %v385 = vshrl.u32 %v384, 7
    %v386 = vsub.s32 1, %v385
    %v387 = vrot.slane %v378, %v386
    %v390 = vadd.f32 %v376, %v383
    %v391 = vadd.f32 %v377, %v387
    %392 = vst [vmem:[%s5] sm:$0xff] %v390
    %393 = vst [vmem:[%s5 + $0x8] sm:$0xff] %v391
    // Predicated region
    $region30: #{decoder_forward.6} parent=1 // pred_check
      _
    $region31: #{decoder_forward.6} parent=1 // pred_check_branch
      %395 = sbr.rel (0) target = $region33
    $region32: #{decoder_forward.6} parent=1 // pred_region
      _
    $region33: #{decoder_forward.6} parent=1 // pred_fallthru
      _
    // Predicated region
    $region34: #{decoder_forward.6} parent=1 // pred_check
      _
    $region35: #{decoder_forward.6} parent=1 // pred_check_branch
      %397 = sbr.rel (0) target = $region37
    $region36: #{decoder_forward.6} parent=1 // pred_region
      _
    $region37: #{decoder_forward.6} parent=1 // pred_fallthru
      _
    %398 = vsyncpa [#allocation3], 1
    %399 = vsyncpa [#allocation5], 1

// kernel: decoder_forward.8
$region0: #{decoder_forward.8}
  #allocation0 [shape = 'u32[]', space=smem, size = 0x4, offset = 0x4, fixed_abs, tag = 'smem constant byte address 0x4 - core index']
  #allocation1 [shape = 'u32[144,128]{1,0:T(1,128)}', space=vmem, size = 0x12000, scoped, tag = 'internal scratch']
  %s0 = inlined_call_operand.vmem [shape: f32[32,64], index: 0, kind: input, shape index: {}]
  %s1 = inlined_call_operand.hbm [shape: f32[64,128], index: 1, kind: input, shape index: {}]
  %s2 = inlined_call_operand.vmem [shape: f32[128,128], index: 2, kind: input, shape index: {}]
  %s3 = inlined_call_operand.vmem [shape: f32[1,128], index: 3, kind: input, shape index: {}]
  %s4 = inlined_call_operand.vmem [shape: f32[1,128], index: 4, kind: input, shape index: {}]
  %s5 = inlined_call_operand.vmem [shape: f32[32,128], index: 5, kind: output, shape index: {}]
  %s6 = sld [smem:[#allocation0]]
  $region34: #{decoder_forward.8} parent=0
    _
  %s8 = ssub.s32 1, %s6
  %s9 = scalar_select 0, %s8, %s6
  $region1: #{decoder_forward.8} parent=0
    #allocation2 [shape = 'u8[32768]{0}', space=vmem, size = 0x8000, scoped, tag = 'input window, operand 1, single buffered']
    #allocation3 [shape = 's32[1]{0}', space=sflag, size = 0x4, scoped, tag = 'scoped memory for decoder_forward.8']
    %10 = vsyncpa [#allocation3], 0
    // Predicated region
    $region2: #{decoder_forward.8} parent=1 // pred_check
      _
    $region3: #{decoder_forward.8} parent=1 // pred_check_branch
      %12 = sbr.rel (0) target = $region5
    $region4: #{decoder_forward.8} parent=1 // pred_region
      _
    $region5: #{decoder_forward.8} parent=1 // pred_fallthru
      _
    // Predicated region
    $region6: #{decoder_forward.8} parent=1 // pred_check
      _
    $region7: #{decoder_forward.8} parent=1 // pred_check_branch
      %14 = sbr.rel (0) target = $region9
    $region8: #{decoder_forward.8} parent=1 // pred_region
      %s16 = ssub.s32 1024, 1024
      %17 = vsyncadd [#allocation3], %s16
      %s18 = sshll.u32 [#allocation2], 4
      %s19 = int_to_ptr.vmem [resolvable:$true] %s18
      %24 = dma.hbm_to_vmem [thread:$0]  %s1, 1024, %s19, [#allocation3], 128, 128, 8
    $region9: #{decoder_forward.8} parent=1 // pred_fallthru
      _
    // Predicated region
    $region10: #{decoder_forward.8} parent=1 // pred_check
      _
    $region11: #{decoder_forward.8} parent=1 // pred_check_branch
      %26 = sbr.rel (0) target = $region13
    $region12: #{decoder_forward.8} parent=1 // pred_region
      _
    $region13: #{decoder_forward.8} parent=1 // pred_fallthru
      _
    // Predicated region
    $region14: #{decoder_forward.8} parent=1 // pred_check
      _
    $region15: #{decoder_forward.8} parent=1 // pred_check_branch
      %28 = sbr.rel (0) target = $region17
    $region16: #{decoder_forward.8} parent=1 // pred_region
      _
    $region17: #{decoder_forward.8} parent=1 // pred_fallthru
      _
    // Predicated region
    $region18: #{decoder_forward.8} parent=1 // pred_check
      _
    $region19: #{decoder_forward.8} parent=1 // pred_check_branch
      %30 = sbr.rel (0) target = $region21
    $region20: #{decoder_forward.8} parent=1 // pred_region
      _
    $region21: #{decoder_forward.8} parent=1 // pred_fallthru
      _
    // Predicated region
    $region22: #{decoder_forward.8} parent=1 // pred_check
      _
    $region23: #{decoder_forward.8} parent=1 // pred_check_branch
      %32 = sbr.rel (0) target = $region25
    $region24: #{decoder_forward.8} parent=1 // pred_region
      %33 = dma.done [#allocation3], 1024
    $region25: #{decoder_forward.8} parent=1 // pred_fallthru
      _
    %v34 = vld [vmem:[%s0] sm:$0xff]
    %v35 = vld [vmem:[%s0 + $0x8] sm:$0xff]
    %v36 = vld [vmem:[%s0 + $0x10] sm:$0xff]
    %v37 = vld [vmem:[%s0 + $0x18] sm:$0xff]
    %v38 = vld [vmem:[#allocation2] sm:$0xff]
    %v39 = vld [vmem:[#allocation2 + $0x8] sm:$0xff]
    %v40 = vld [vmem:[#allocation2 + $0x10] sm:$0xff]
    %v41 = vld [vmem:[#allocation2 + $0x18] sm:$0xff]
    %v42 = vld [vmem:[#allocation2 + $0x20] sm:$0xff]
    %v43 = vld [vmem:[#allocation2 + $0x28] sm:$0xff]
    %v44 = vld [vmem:[#allocation2 + $0x30] sm:$0xff]
    %v45 = vld [vmem:[#allocation2 + $0x38] sm:$0xff]
    %vm46 = vcmask 523264
    %v48 = vsel %vm46, %v34, 0
    %v51 = vsel %vm46, %v35, 0
    %v54 = vsel %vm46, %v36, 0
    %v57 = vsel %vm46, %v37, 0
    %59 = vmatprep.subr.mxu0 0.0
    %60 = vmatpush1.msra.mxu0 %v38
    %61 = vmatprep.subr.mxu0 0.0
    %62 = vmatpush1.msra.mxu0 %v39
    %63 = vmatprep.subr.mxu0 0.0
    %64 = vmatpush1.msra.mxu0 %v40
    %65 = vmatprep.subr.mxu0 0.0
    %66 = vmatpush1.msra.mxu0 %v41
    %67 = vmatprep.subr.mxu0 0.0
    %68 = vmatpush1.msra.mxu0 %v42
    %69 = vmatprep.subr.mxu0 0.0
    %70 = vmatpush1.msra.mxu0 %v43
    %71 = vmatprep.subr.mxu0 0.0
    %72 = vmatpush1.msra.mxu0 %v44
    %73 = vmatprep.subr.mxu0 0.0
    %74 = vmatpush1.msra.mxu0 %v45
    %75 = vmatprep.subr.mxu0 0.0
    %76 = vmatpush1.msra.mxu0 0.0
    %77 = vmatprep.subr.mxu0 0.0
    %78 = vmatpush1.msra.mxu0 0.0
    %79 = vmatprep.subr.mxu0 0.0
    %80 = vmatpush1.msra.mxu0 0.0
    %81 = vmatprep.subr.mxu0 0.0
    %82 = vmatpush1.msra.mxu0 0.0
    %83 = vmatprep.subr.mxu0 0.0
    %84 = vmatpush1.msra.mxu0 0.0
    %85 = vmatprep.subr.mxu0 0.0
    %86 = vmatpush1.msra.mxu0 0.0
    %87 = vmatprep.subr.mxu0 0.0
    %88 = vmatpush1.msra.mxu0 0.0
    %89 = vmatprep.subr.mxu0 0.0
    %90 = vmatpush1.msra.mxu0 0.0
    %91 = vmatprep.subr.mxu0 0.0
    %92 = vmatpush1.msra.mxu0 0.0
    %93 = vmatprep.subr.mxu0 0.0
    %94 = vmatpush1.msra.mxu0 0.0
    %95 = vmatprep.subr.mxu0 0.0
    %96 = vmatpush1.msra.mxu0 0.0
    %97 = vmatprep.subr.mxu0 0.0
    %98 = vmatpush1.msra.mxu0 0.0
    %99 = vmatprep.subr.mxu0 0.0
    %100 = vmatpush1.msra.mxu0 0.0
    %101 = vmatprep.subr.mxu0 0.0
    %102 = vmatpush1.msra.mxu0 0.0
    %103 = vmatprep.subr.mxu0 0.0
    %104 = vmatpush1.msra.mxu0 0.0
    %105 = vmatprep.subr.mxu0 0.0
    %106 = vmatpush1.msra.mxu0 0.0
    %107 = vmatprep.subr.mxu0 0.0
    %108 = vmatpush1.msra.mxu0 0.0
    %109 = vmatprep.subr.mxu0 0.0
    %110 = vmatpush1.msra.mxu0 0.0
    %111 = vmatprep.subr.mxu0 0.0
    %112 = vmatpush1.msra.mxu0 0.0
    %113 = vmatprep.subr.mxu0 0.0
    %114 = vmatpush1.msra.mxu0 0.0
    %115 = vmatprep.subr.mxu0 0.0
    %116 = vmatpush1.msra.mxu0 0.0
    %117 = vmatprep.subr.mxu0 0.0
    %118 = vmatpush1.msra.mxu0 0.0
    %119 = vmatprep.subr.mxu0 0.0
    %120 = vmatpush1.msra.mxu0 0.0
    %121 = vmatprep.subr.mxu0 0.0
    %122 = vmatpush1.msra.mxu0 0.0
    %123 = vmatprep.mubr.f32.mxu0 0.0
    %124 = vmatmul.mubr.f32.gmra.mrb[0].mxu0 %v48
    %v125 = vpop.f32.mrb[0].mxu0
    %v126 = vadd.f32 0.0, %v125
    %v127 = vpop.f32.mrb[0].mxu0
    %128 = vmatprep.mubr.f32.mxu0 0.0
    %129 = vmatmul.mubr.f32.gmra.mrb[0].mxu0 %v51
    %v130 = vpop.f32.mrb[0].mxu0
    %v131 = vadd.f32 0.0, %v130
    %v132 = vpop.f32.mrb[0].mxu0
    %133 = vmatprep.mubr.f32.mxu0 0.0
    %134 = vmatmul.mubr.f32.gmra.mrb[0].mxu0 %v54
    %v135 = vpop.f32.mrb[0].mxu0
    %v136 = vadd.f32 0.0, %v135
    %v137 = vpop.f32.mrb[0].mxu0
    %138 = vmatprep.mubr.f32.mxu0 0.0
    %139 = vmatmul.mubr.f32.gmra.mrb[0].mxu0 %v57
    %v140 = vpop.f32.mrb[0].mxu0
    %v141 = vadd.f32 0.0, %v140
    %v142 = vpop.f32.mrb[0].mxu0
    %143 = vdwg.mxu0
    %v144 = vld [vmem:[%s2] sm:$0xff]
    %v145 = vld [vmem:[%s2 + $0x8] sm:$0xff]
    %v146 = vld [vmem:[%s2 + $0x10] sm:$0xff]
    %v147 = vld [vmem:[%s2 + $0x18] sm:$0xff]
    %v148 = vld [vmem:[%s2 + $0x20] sm:$0xff]
    %v149 = vld [vmem:[%s2 + $0x28] sm:$0xff]
    %v150 = vld [vmem:[%s2 + $0x30] sm:$0xff]
    %v151 = vld [vmem:[%s2 + $0x38] sm:$0xff]
    %v152 = vld [vmem:[%s2 + $0x40] sm:$0xff]
    %v153 = vld [vmem:[%s2 + $0x48] sm:$0xff]
    %v154 = vld [vmem:[%s2 + $0x50] sm:$0xff]
    %v155 = vld [vmem:[%s2 + $0x58] sm:$0xff]
    %v156 = vld [vmem:[%s2 + $0x60] sm:$0xff]
    %v157 = vld [vmem:[%s2 + $0x68] sm:$0xff]
    %v158 = vld [vmem:[%s2 + $0x70] sm:$0xff]
    %v159 = vld [vmem:[%s2 + $0x78] sm:$0xff]
    %160 = vmatprep.subr.mxu0 0.0
    %161 = vmatpush1.msra.mxu0 %v144
    %162 = vmatprep.subr.mxu0 0.0
    %163 = vmatpush1.msra.mxu0 %v145
    %164 = vmatprep.subr.mxu0 0.0
    %165 = vmatpush1.msra.mxu0 %v146
    %166 = vmatprep.subr.mxu0 0.0
    %167 = vmatpush1.msra.mxu0 %v147
    %168 = vmatprep.subr.mxu0 0.0
    %169 = vmatpush1.msra.mxu0 %v148
    %170 = vmatprep.subr.mxu0 0.0
    %171 = vmatpush1.msra.mxu0 %v149
    %172 = vmatprep.subr.mxu0 0.0
    %173 = vmatpush1.msra.mxu0 %v150
    %174 = vmatprep.subr.mxu0 0.0
    %175 = vmatpush1.msra.mxu0 %v151
    %176 = vmatprep.subr.mxu0 0.0
    %177 = vmatpush1.msra.mxu0 %v152
    %178 = vmatprep.subr.mxu0 0.0
    %179 = vmatpush1.msra.mxu0 %v153
    %180 = vmatprep.subr.mxu0 0.0
    %181 = vmatpush1.msra.mxu0 %v154
    %182 = vmatprep.subr.mxu0 0.0
    %183 = vmatpush1.msra.mxu0 %v155
    %184 = vmatprep.subr.mxu0 0.0
    %185 = vmatpush1.msra.mxu0 %v156
    %186 = vmatprep.subr.mxu0 0.0
    %187 = vmatpush1.msra.mxu0 %v157
    %188 = vmatprep.subr.mxu0 0.0
    %189 = vmatpush1.msra.mxu0 %v158
    %190 = vmatprep.subr.mxu0 0.0
    %191 = vmatpush1.msra.mxu0 %v159
    %192 = vmatprep.subr.mxu0 0.0
    %193 = vmatpush1.msra.mxu0 0.0
    %194 = vmatprep.subr.mxu0 0.0
    %195 = vmatpush1.msra.mxu0 0.0
    %196 = vmatprep.subr.mxu0 0.0
    %197 = vmatpush1.msra.mxu0 0.0
    %198 = vmatprep.subr.mxu0 0.0
    %199 = vmatpush1.msra.mxu0 0.0
    %200 = vmatprep.subr.mxu0 0.0
    %201 = vmatpush1.msra.mxu0 0.0
    %202 = vmatprep.subr.mxu0 0.0
    %203 = vmatpush1.msra.mxu0 0.0
    %204 = vmatprep.subr.mxu0 0.0
    %205 = vmatpush1.msra.mxu0 0.0
    %206 = vmatprep.subr.mxu0 0.0
    %207 = vmatpush1.msra.mxu0 0.0
    %208 = vmatprep.subr.mxu0 0.0
    %209 = vmatpush1.msra.mxu0 0.0
    %210 = vmatprep.subr.mxu0 0.0
    %211 = vmatpush1.msra.mxu0 0.0
    %212 = vmatprep.subr.mxu0 0.0
    %213 = vmatpush1.msra.mxu0 0.0
    %214 = vmatprep.subr.mxu0 0.0
    %215 = vmatpush1.msra.mxu0 0.0
    %216 = vmatprep.subr.mxu0 0.0
    %217 = vmatpush1.msra.mxu0 0.0
    %218 = vmatprep.subr.mxu0 0.0
    %219 = vmatpush1.msra.mxu0 0.0
    %220 = vmatprep.subr.mxu0 0.0
    %221 = vmatpush1.msra.mxu0 0.0
    %222 = vmatprep.subr.mxu0 0.0
    %223 = vmatpush1.msra.mxu0 0.0
    %224 = vmatprep.mubr.f32.mxu0 0.0
    %225 = vmatmul.mubr.f32.gmra.mrb[0].mxu0 %v126
    %v226 = vpop.f32.mrb[0].mxu0
    %v227 = vadd.f32 0.0, %v226
    %v228 = vpop.f32.mrb[0].mxu0
    %229 = vmatprep.mubr.f32.mxu0 0.0
    %230 = vmatmul.mubr.f32.gmra.mrb[0].mxu0 %v131
    %v231 = vpop.f32.mrb[0].mxu0
    %v232 = vadd.f32 0.0, %v231
    %v233 = vpop.f32.mrb[0].mxu0
    %234 = vmatprep.mubr.f32.mxu0 0.0
    %235 = vmatmul.mubr.f32.gmra.mrb[0].mxu0 %v136
    %v236 = vpop.f32.mrb[0].mxu0
    %v237 = vadd.f32 0.0, %v236
    %v238 = vpop.f32.mrb[0].mxu0
    %239 = vmatprep.mubr.f32.mxu0 0.0
    %240 = vmatmul.mubr.f32.gmra.mrb[0].mxu0 %v141
    %v241 = vpop.f32.mrb[0].mxu0
    %v242 = vadd.f32 0.0, %v241
    %v243 = vpop.f32.mrb[0].mxu0
    %244 = vdwg.mxu0
    %v245 = vsub.f32 %v126, %v227
    %v246 = vsub.f32 %v131, %v232
    %v247 = vsub.f32 %v136, %v237
    %v248 = vsub.f32 %v141, %v242
    %v249 = vmul.f32 %v245, %v245
    %v250 = vmul.f32 %v246, %v246
    %v251 = vmul.f32 %v247, %v247
    %v252 = vmul.f32 %v248, %v248
    %253 = vmatprep.subr.mxu0 0.0
    %254 = vmatpush1.msra.mxu0 %v144
    %255 = vmatprep.subr.mxu0 0.0
    %256 = vmatpush1.msra.mxu0 %v145
    %257 = vmatprep.subr.mxu0 0.0
    %258 = vmatpush1.msra.mxu0 %v146
    %259 = vmatprep.subr.mxu0 0.0
    %260 = vmatpush1.msra.mxu0 %v147
    %261 = vmatprep.subr.mxu0 0.0
    %262 = vmatpush1.msra.mxu0 %v148
    %263 = vmatprep.subr.mxu0 0.0
    %264 = vmatpush1.msra.mxu0 %v149
    %265 = vmatprep.subr.mxu0 0.0
    %266 = vmatpush1.msra.mxu0 %v150
    %267 = vmatprep.subr.mxu0 0.0
    %268 = vmatpush1.msra.mxu0 %v151
    %269 = vmatprep.subr.mxu0 0.0
    %270 = vmatpush1.msra.mxu0 %v152
    %271 = vmatprep.subr.mxu0 0.0
    %272 = vmatpush1.msra.mxu0 %v153
    %273 = vmatprep.subr.mxu0 0.0
    %274 = vmatpush1.msra.mxu0 %v154
    %275 = vmatprep.subr.mxu0 0.0
    %276 = vmatpush1.msra.mxu0 %v155
    %277 = vmatprep.subr.mxu0 0.0
    %278 = vmatpush1.msra.mxu0 %v156
    %279 = vmatprep.subr.mxu0 0.0
    %280 = vmatpush1.msra.mxu0 %v157
    %281 = vmatprep.subr.mxu0 0.0
    %282 = vmatpush1.msra.mxu0 %v158
    %283 = vmatprep.subr.mxu0 0.0
    %284 = vmatpush1.msra.mxu0 %v159
    %285 = vmatprep.subr.mxu0 0.0
    %286 = vmatpush1.msra.mxu0 0.0
    %287 = vmatprep.subr.mxu0 0.0
    %288 = vmatpush1.msra.mxu0 0.0
    %289 = vmatprep.subr.mxu0 0.0
    %290 = vmatpush1.msra.mxu0 0.0
    %291 = vmatprep.subr.mxu0 0.0
    %292 = vmatpush1.msra.mxu0 0.0
    %293 = vmatprep.subr.mxu0 0.0
    %294 = vmatpush1.msra.mxu0 0.0
    %295 = vmatprep.subr.mxu0 0.0
    %296 = vmatpush1.msra.mxu0 0.0
    %297 = vmatprep.subr.mxu0 0.0
    %298 = vmatpush1.msra.mxu0 0.0
    %299 = vmatprep.subr.mxu0 0.0
    %300 = vmatpush1.msra.mxu0 0.0
    %301 = vmatprep.subr.mxu0 0.0
    %302 = vmatpush1.msra.mxu0 0.0
    %303 = vmatprep.subr.mxu0 0.0
    %304 = vmatpush1.msra.mxu0 0.0
    %305 = vmatprep.subr.mxu0 0.0
    %306 = vmatpush1.msra.mxu0 0.0
    %307 = vmatprep.subr.mxu0 0.0
    %308 = vmatpush1.msra.mxu0 0.0
    %309 = vmatprep.subr.mxu0 0.0
    %310 = vmatpush1.msra.mxu0 0.0
    %311 = vmatprep.subr.mxu0 0.0
    %312 = vmatpush1.msra.mxu0 0.0
    %313 = vmatprep.subr.mxu0 0.0
    %314 = vmatpush1.msra.mxu0 0.0
    %315 = vmatprep.subr.mxu0 0.0
    %316 = vmatpush1.msra.mxu0 0.0
    %317 = vmatprep.mubr.f32.mxu0 0.0
    %318 = vmatmul.mubr.f32.gmra.mrb[0].mxu0 %v249
    %v319 = vpop.f32.mrb[0].mxu0
    %v320 = vadd.f32 1e-05, %v319
    %v321 = vpop.f32.mrb[0].mxu0
    %322 = vmatprep.mubr.f32.mxu0 0.0
    %323 = vmatmul.mubr.f32.gmra.mrb[0].mxu0 %v250
    %v324 = vpop.f32.mrb[0].mxu0
    %v325 = vadd.f32 1e-05, %v324
    %v326 = vpop.f32.mrb[0].mxu0
    %327 = vmatprep.mubr.f32.mxu0 0.0
    %328 = vmatmul.mubr.f32.gmra.mrb[0].mxu0 %v251
    %v329 = vpop.f32.mrb[0].mxu0
    %v330 = vadd.f32 1e-05, %v329
    %v331 = vpop.f32.mrb[0].mxu0
    %332 = vmatprep.mubr.f32.mxu0 0.0
    %333 = vmatmul.mubr.f32.gmra.mrb[0].mxu0 %v252
    %v334 = vpop.f32.mrb[0].mxu0
    %v335 = vadd.f32 1e-05, %v334
    %v336 = vpop.f32.mrb[0].mxu0
    %337 = vdwg.mxu0
    %v338 = vrsqrt.pop %v320
    %v339 = vrsqrt.pop %v325
    %v340 = vrsqrt.pop %v330
    %v341 = vrsqrt.pop %v335
    %v342 = vmul.f32 %v245, %v338
    %v343 = vmul.f32 %v246, %v339
    %v344 = vmul.f32 %v247, %v340
    %v345 = vmul.f32 %v248, %v341
    %v346 = vld [vmem:[%s3] sm:$0x1]
    %v348 = vlaneseq
    %v349 = vshrl.u32 %v348, 7
    %v350 = vsub.s32 0, %v349
    %v351 = vrot.slane %v346, %v350
    %v353 = vmul.f32 %v342, %v351
    %v354 = vmul.f32 %v343, %v351
    %v355 = vmul.f32 %v344, %v351
    %v356 = vmul.f32 %v345, %v351
    %v357 = vld [vmem:[%s4] sm:$0x1]
    %v359 = vlaneseq
    %v360 = vshrl.u32 %v359, 7
    %v361 = vsub.s32 0, %v360
    %v362 = vrot.slane %v357, %v361
    %v364 = vadd.f32 %v353, %v362
    %v365 = vadd.f32 %v354, %v362
    %v366 = vadd.f32 %v355, %v362
    %v367 = vadd.f32 %v356, %v362
    %368 = vst [vmem:[%s5] sm:$0xff] %v364
    %369 = vst [vmem:[%s5 + $0x8] sm:$0xff] %v365
    %370 = vst [vmem:[%s5 + $0x10] sm:$0xff] %v366
    %371 = vst [vmem:[%s5 + $0x18] sm:$0xff] %v367
    // Predicated region
    $region26: #{decoder_forward.8} parent=1 // pred_check
      _
    $region27: #{decoder_forward.8} parent=1 // pred_check_branch
      %373 = sbr.rel (0) target = $region29
    $region28: #{decoder_forward.8} parent=1 // pred_region
      _
    $region29: #{decoder_forward.8} parent=1 // pred_fallthru
      _
    // Predicated region
    $region30: #{decoder_forward.8} parent=1 // pred_check
      _
    $region31: #{decoder_forward.8} parent=1 // pred_check_branch
      %375 = sbr.rel (0) target = $region33
    $region32: #{decoder_forward.8} parent=1 // pred_region
      _
    $region33: #{decoder_forward.8} parent=1 // pred_fallthru
      _
    %376 = vsyncpa [#allocation3], 1

// kernel: decoder_forward.7
$region0: #{decoder_forward.7}
  #allocation0 [shape = 'u32[]', space=smem, size = 0x4, offset = 0x4, fixed_abs, tag = 'smem constant byte address 0x4 - core index']
  #allocation1 [shape = 'u32[144,128]{1,0:T(1,128)}', space=vmem, size = 0x12000, scoped, tag = 'internal scratch']
  %s0 = inlined_call_operand.vmem [shape: f32[2,16,64], index: 0, kind: input, shape index: {}]
  %s1 = inlined_call_operand.hbm [shape: f32[2,16,64], index: 1, kind: input, shape index: {}]
  %s2 = inlined_call_operand.vmem [shape: f32[64,64], index: 2, kind: input, shape index: {}]
  %s3 = inlined_call_operand.vmem [shape: f32[64,64], index: 3, kind: input, shape index: {}]
  %s4 = inlined_call_operand.hbm [shape: f32[1,64], index: 4, kind: input, shape index: {}]
  %s5 = inlined_call_operand.vmem [shape: f32[64,4], index: 5, kind: input, shape index: {}]
  %s6 = inlined_call_operand.hbm [shape: f32[4,64], index: 6, kind: input, shape index: {}]
  %s7 = inlined_call_operand.vmem [shape: f32[2,16,16], index: 7, kind: input, shape index: {}]
  %s8 = inlined_call_operand.vmem [shape: f32[2,16,64], index: 8, kind: output, shape index: {}]
  %s9 = sld [smem:[#allocation0]]
  $region77: #{decoder_forward.7} parent=0
    _
  %s11 = ssub.s32 1, %s9
  %s12 = scalar_select 0, %s11, %s9
  $region1: #{decoder_forward.7} parent=0
    #allocation2 [shape = 'u8[16384]{0}', space=vmem, size = 0x4000, scoped, tag = 'input window, operand 1']
    #allocation3 [shape = 's32[2]{0}', space=sflag, size = 0x8, scoped, tag = 'scoped memory for decoder_forward.7']
    #allocation4 [shape = 'u8[512]{0}', space=vmem, size = 0x400, scoped, tag = 'input window, operand 4, single buffered']
    #allocation5 [shape = 's32[1]{0}', space=sflag, size = 0x4, scoped, tag = 'scoped memory for decoder_forward.7']
    #allocation6 [shape = 'u8[2048]{0}', space=vmem, size = 0x800, scoped, tag = 'input window, operand 6, single buffered']
    %13 = vsyncpa [#allocation3], 0
    %s14 = scalar_lea.sflag [#allocation3], 1
    %15 = vsyncpa %s14, 0
    %16 = vsyncpa [#allocation5], 0
    loop: start=0, step=1, limit=4
    $region2: #{decoder_forward.7} parent=1 // loop_pre_header
      _
    $region3: #{decoder_forward.7} parent=1 // loop_header
      %s18 = sphi 0, %s22
      %p19 = scmp.ge.s32.totalorder %s18, 4
      %s28 = sphi 0, %s30
      %s31 = sphi 0, %s28
      %s32 = sphi 0, %s31
      %s48 = sphi 0, %s32
      %s54 = sphi 0, %s56
      %s57 = sphi 0, %s54
      %s58 = sphi 0, %s57
      %s74 = sphi 0, %s58
      %s78 = sphi 0, %s78
      %s80 = sphi 0, %s78
      %s81 = sphi 0, %s80
      %s95 = sphi 0, %s81
      %s99 = sphi 0, %s99
      %s101 = sphi 0, %s99
      %s102 = sphi 0, %s101
      %s116 = sphi 0, %s102
      %s120 = sphi 0, %s120
      %s122 = sphi 0, %s120
      %s123 = sphi 0, %s122
      %s137 = sphi 0, %s123
      %s141 = sphi 0, %s141
      %s143 = sphi 0, %s141
      %s144 = sphi 0, %s143
      %s158 = sphi 0, %s144
      %s162 = sphi 0, %s162
      %s164 = sphi 0, %s162
      %s165 = sphi 0, %s164
      %s179 = sphi 0, %s165
      %s183 = sphi 0, %s183
      %s185 = sphi 0, %s183
      %s186 = sphi 0, %s185
      %s200 = sphi 0, %s186
      %s206 = sphi 0, %s208
      %s209 = sphi 0, %s206
      %s210 = sphi 0, %s209
      %s226 = sphi 0, %s210
    $region4: #{decoder_forward.7} parent=1 // loop_header_branch
      %21 = sbr.rel (%p19) target = $region8
    $region5: #{decoder_forward.7} parent=1 // loop_body
      %s23 = ssub.s32 %s18, 1
      %s24 = ssub.s32 %s18, 2
      %s25 = sadd.s32 %s18, 1
      %s26 = ssub.s32 %s18, %s25
      %p27 = scmp.eq.s32.totalorder %s26, 0
      %s29 = sadd.s32 %s28, 1
      %s30 = scalar_select %p27, %s28, %s29
      %p33 = pneg %p27
      %p34 = scmp.eq.s32.totalorder %s18, 1
      %p35 = por %p33, %p34
      %p36 = scmp.ne.s32.totalorder %s28, %s31
      %p37 = scmp.eq.s32.totalorder %s18, 0
      %p38 = por %p36, %p37
      %p39 = scmp.ne.s32.totalorder %s28, %s31
      %p40 = scmp.eq.s32.totalorder %s23, 1
      %p41 = por %p39, %p40
      %p42 = scmp.ne.s32.totalorder %s31, %s32
      %p43 = scmp.eq.s32.totalorder %s23, 0
      %p44 = por %p42, %p43
      %p45 = scmp.ne.s32.totalorder %s31, %s32
      %p46 = scmp.eq.s32.totalorder %s24, 1
      %p47 = por %p45, %p46
      %p49 = scmp.ne.s32.totalorder %s32, %s48
      %p50 = scmp.eq.s32.totalorder %s24, 0
      %p51 = por %p49, %p50
      %s52 = ssub.s32 %s18, %s25
      %p53 = scmp.eq.s32.totalorder %s52, 0
      %s55 = sadd.s32 %s54, 1
      %s56 = scalar_select %p53, %s54, %s55
      %p59 = pneg %p53
      %p60 = scmp.eq.s32.totalorder %s18, 1
      %p61 = por %p59, %p60
      %p62 = scmp.ne.s32.totalorder %s54, %s57
      %p63 = scmp.eq.s32.totalorder %s18, 0
      %p64 = por %p62, %p63
      %p65 = scmp.ne.s32.totalorder %s54, %s57
      %p66 = scmp.eq.s32.totalorder %s23, 1
      %p67 = por %p65, %p66
      %p68 = scmp.ne.s32.totalorder %s57, %s58
      %p69 = scmp.eq.s32.totalorder %s23, 0
      %p70 = por %p68, %p69
      %p71 = scmp.ne.s32.totalorder %s57, %s58
      %p72 = scmp.eq.s32.totalorder %s24, 1
      %p73 = por %p71, %p72
      %p75 = scmp.ne.s32.totalorder %s58, %s74
      %p76 = scmp.eq.s32.totalorder %s24, 0
      %p77 = por %p75, %p76
      %s79 = sadd.s32 %s78, 1
      %p82 = scmp.eq.s32.totalorder %s18, 1
      %p83 = scmp.ne.s32.totalorder %s78, %s80
      %p84 = scmp.eq.s32.totalorder %s18, 0
      %p85 = por %p83, %p84
      %p86 = scmp.ne.s32.totalorder %s78, %s80
      %p87 = scmp.eq.s32.totalorder %s23, 1
      %p88 = por %p86, %p87
      %p89 = scmp.ne.s32.totalorder %s80, %s81
      %p90 = scmp.eq.s32.totalorder %s23, 0
      %p91 = por %p89, %p90
      %p92 = scmp.ne.s32.totalorder %s80, %s81
      %p93 = scmp.eq.s32.totalorder %s24, 1
      %p94 = por %p92, %p93
      %p96 = scmp.ne.s32.totalorder %s81, %s95
      %p97 = scmp.eq.s32.totalorder %s24, 0
      %p98 = por %p96, %p97
      %s100 = sadd.s32 %s99, 1
      %p103 = scmp.eq.s32.totalorder %s18, 1
      %p104 = scmp.ne.s32.totalorder %s99, %s101
      %p105 = scmp.eq.s32.totalorder %s18, 0
      %p106 = por %p104, %p105
      %p107 = scmp.ne.s32.totalorder %s99, %s101
      %p108 = scmp.eq.s32.totalorder %s23, 1
      %p109 = por %p107, %p108
      %p110 = scmp.ne.s32.totalorder %s101, %s102
      %p111 = scmp.eq.s32.totalorder %s23, 0
      %p112 = por %p110, %p111
      %p113 = scmp.ne.s32.totalorder %s101, %s102
      %p114 = scmp.eq.s32.totalorder %s24, 1
      %p115 = por %p113, %p114
      %p117 = scmp.ne.s32.totalorder %s102, %s116
      %p118 = scmp.eq.s32.totalorder %s24, 0
      %p119 = por %p117, %p118
      %s121 = sadd.s32 %s120, 1
      %p124 = scmp.eq.s32.totalorder %s18, 1
      %p125 = scmp.ne.s32.totalorder %s120, %s122
      %p126 = scmp.eq.s32.totalorder %s18, 0
      %p127 = por %p125, %p126
      %p128 = scmp.ne.s32.totalorder %s120, %s122
      %p129 = scmp.eq.s32.totalorder %s23, 1
      %p130 = por %p128, %p129
      %p131 = scmp.ne.s32.totalorder %s122, %s123
      %p132 = scmp.eq.s32.totalorder %s23, 0
      %p133 = por %p131, %p132
      %p134 = scmp.ne.s32.totalorder %s122, %s123
      %p135 = scmp.eq.s32.totalorder %s24, 1
      %p136 = por %p134, %p135
      %p138 = scmp.ne.s32.totalorder %s123, %s137
      %p139 = scmp.eq.s32.totalorder %s24, 0
      %p140 = por %p138, %p139
      %s142 = sadd.s32 %s141, 1
      %p145 = scmp.eq.s32.totalorder %s18, 1
      %p146 = scmp.ne.s32.totalorder %s141, %s143
      %p147 = scmp.eq.s32.totalorder %s18, 0
      %p148 = por %p146, %p147
      %p149 = scmp.ne.s32.totalorder %s141, %s143
      %p150 = scmp.eq.s32.totalorder %s23, 1
      %p151 = por %p149, %p150
      %p152 = scmp.ne.s32.totalorder %s143, %s144
      %p153 = scmp.eq.s32.totalorder %s23, 0
      %p154 = por %p152, %p153
      %p155 = scmp.ne.s32.totalorder %s143, %s144
      %p156 = scmp.eq.s32.totalorder %s24, 1
      %p157 = por %p155, %p156
      %p159 = scmp.ne.s32.totalorder %s144, %s158
      %p160 = scmp.eq.s32.totalorder %s24, 0
      %p161 = por %p159, %p160
      %s163 = sadd.s32 %s162, 1
      %p166 = scmp.eq.s32.totalorder %s18, 1
      %p167 = scmp.ne.s32.totalorder %s162, %s164
      %p168 = scmp.eq.s32.totalorder %s18, 0
      %p169 = por %p167, %p168
      %p170 = scmp.ne.s32.totalorder %s162, %s164
      %p171 = scmp.eq.s32.totalorder %s23, 1
      %p172 = por %p170, %p171
      %p173 = scmp.ne.s32.totalorder %s164, %s165
      %p174 = scmp.eq.s32.totalorder %s23, 0
      %p175 = por %p173, %p174
      %p176 = scmp.ne.s32.totalorder %s164, %s165
      %p177 = scmp.eq.s32.totalorder %s24, 1
      %p178 = por %p176, %p177
      %p180 = scmp.ne.s32.totalorder %s165, %s179
      %p181 = scmp.eq.s32.totalorder %s24, 0
      %p182 = por %p180, %p181
      %s184 = sadd.s32 %s183, 1
      %p187 = scmp.eq.s32.totalorder %s18, 1
      %p188 = scmp.ne.s32.totalorder %s183, %s185
      %p189 = scmp.eq.s32.totalorder %s18, 0
      %p190 = por %p188, %p189
      %p191 = scmp.ne.s32.totalorder %s183, %s185
      %p192 = scmp.eq.s32.totalorder %s23, 1
      %p193 = por %p191, %p192
      %p194 = scmp.ne.s32.totalorder %s185, %s186
      %p195 = scmp.eq.s32.totalorder %s23, 0
      %p196 = por %p194, %p195
      %p197 = scmp.ne.s32.totalorder %s185, %s186
      %p198 = scmp.eq.s32.totalorder %s24, 1
      %p199 = por %p197, %p198
      %p201 = scmp.ne.s32.totalorder %s186, %s200
      %p202 = scmp.eq.s32.totalorder %s24, 0
      %p203 = por %p201, %p202
      %s204 = ssub.s32 %s18, %s25
      %p205 = scmp.eq.s32.totalorder %s204, 0
      %s207 = sadd.s32 %s206, 1
      %s208 = scalar_select %p205, %s206, %s207
      %p211 = pneg %p205
      %p212 = scmp.eq.s32.totalorder %s18, 1
      %p213 = por %p211, %p212
      %p214 = scmp.ne.s32.totalorder %s206, %s209
      %p215 = scmp.eq.s32.totalorder %s18, 0
      %p216 = por %p214, %p215
      %p217 = scmp.ne.s32.totalorder %s206, %s209
      %p218 = scmp.eq.s32.totalorder %s23, 1
      %p219 = por %p217, %p218
      %p220 = scmp.ne.s32.totalorder %s209, %s210
      %p221 = scmp.eq.s32.totalorder %s23, 0
      %p222 = por %p220, %p221
      %p223 = scmp.ne.s32.totalorder %s209, %s210
      %p224 = scmp.eq.s32.totalorder %s24, 1
      %p225 = por %p223, %p224
      %p227 = scmp.ne.s32.totalorder %s210, %s226
      %p228 = scmp.eq.s32.totalorder %s24, 0
      %p229 = por %p227, %p228
      %p230 = scmp.le.s32.totalorder 1, %s18
      %p231 = scmp.lt.s32.totalorder %s18, 3
      %p232 = pnand %p230, %p231
      %p233 = pneg %p232
      // Predicated region
      $region9: #{decoder_forward.7} parent=5 // pred_check
        _
      $region10: #{decoder_forward.7} parent=5 // pred_check_branch
        %235 = sbr.rel (%p232) target = $region12
      $region11: #{decoder_forward.7} parent=5 // pred_region
        %s236 = ssub.s32 %s18, 1
        // Predicated region
        $region13: #{decoder_forward.7} parent=11 // pred_check
          %p237 = pneg %p91
        $region14: #{decoder_forward.7} parent=11 // pred_check_branch
          %239 = sbr.rel (%p237) target = $region16
        $region15: #{decoder_forward.7} parent=11 // pred_region
          _
        $region16: #{decoder_forward.7} parent=11 // pred_fallthru
          _
        // Predicated region
        $region17: #{decoder_forward.7} parent=11 // pred_check
          %p240 = pneg %p112
        $region18: #{decoder_forward.7} parent=11 // pred_check_branch
          %242 = sbr.rel (%p240) target = $region20
        $region19: #{decoder_forward.7} parent=11 // pred_region
          _
        $region20: #{decoder_forward.7} parent=11 // pred_fallthru
          _
        // Predicated region
        $region21: #{decoder_forward.7} parent=11 // pred_check
          %p243 = pneg %p133
        $region22: #{decoder_forward.7} parent=11 // pred_check_branch
          %245 = sbr.rel (%p243) target = $region24
        $region23: #{decoder_forward.7} parent=11 // pred_region
          %s247 = ssub.s32 16, 16
          %248 = vsyncadd [#allocation5], %s247
          %s250 = sshll.u32 [#allocation4], 4
          %s251 = int_to_ptr.vmem [resolvable:$true] %s250
          %253 = dma.hbm_to_vmem [thread:$0]  %s4, 16, %s251, [#allocation5]
        $region24: #{decoder_forward.7} parent=11 // pred_fallthru
          _
        // Predicated region
        $region25: #{decoder_forward.7} parent=11 // pred_check
          %p254 = pneg %p154
        $region26: #{decoder_forward.7} parent=11 // pred_check_branch
          %256 = sbr.rel (%p254) target = $region28
        $region27: #{decoder_forward.7} parent=11 // pred_region
          _
        $region28: #{decoder_forward.7} parent=11 // pred_fallthru
          _
        // Predicated region
        $region29: #{decoder_forward.7} parent=11 // pred_check
          %p257 = pneg %p175
        $region30: #{decoder_forward.7} parent=11 // pred_check_branch
          %259 = sbr.rel (%p257) target = $region32
        $region31: #{decoder_forward.7} parent=11 // pred_region
          %s261 = ssub.s32 64, 64
          %262 = vsyncadd [#allocation5], %s261
          %s264 = sshll.u32 [#allocation6], 4
          %s265 = int_to_ptr.vmem [resolvable:$true] %s264
          %267 = dma.hbm_to_vmem [thread:$0]  %s6, 64, %s265, [#allocation5]
        $region32: #{decoder_forward.7} parent=11 // pred_fallthru
          _
        // Predicated region
        $region33: #{decoder_forward.7} parent=11 // pred_check
          %p268 = pneg %p196
        $region34: #{decoder_forward.7} parent=11 // pred_check_branch
          %270 = sbr.rel (%p268) target = $region36
        $region35: #{decoder_forward.7} parent=11 // pred_region
          _
        $region36: #{decoder_forward.7} parent=11 // pred_fallthru
          _
      $region12: #{decoder_forward.7} parent=5 // pred_fallthru
        _
      %p271 = scmp.lt.s32.totalorder %s18, 2
      // Predicated region
      $region37: #{decoder_forward.7} parent=5 // pred_check
        %p272 = pneg %p271
      $region38: #{decoder_forward.7} parent=5 // pred_check_branch
        %274 = sbr.rel (%p272) target = $region40
      $region39: #{decoder_forward.7} parent=5 // pred_region
        // Predicated region
        $region41: #{decoder_forward.7} parent=39 // pred_check
          %p275 = pneg %p38
        $region42: #{decoder_forward.7} parent=39 // pred_check_branch
          %277 = sbr.rel (%p275) target = $region44
        $region43: #{decoder_forward.7} parent=39 // pred_region
          %p278 = scmp.lt.s32.totalorder %s18, 1
          %s279 = scalar_select %p278, %s18, 1
          %s280 = smul.addr %s279, 2
          %s281 = smul.addr %s280, 8
          %s282 = scalar_lea.vmem %s0, %s281
        $region44: #{decoder_forward.7} parent=39 // pred_fallthru
          _
        // Predicated region
        $region45: #{decoder_forward.7} parent=39 // pred_check
          %p283 = pneg %p64
        $region46: #{decoder_forward.7} parent=39 // pred_check_branch
          %285 = sbr.rel (%p283) target = $region48
        $region47: #{decoder_forward.7} parent=39 // pred_region
          %s286 = sand.u32 %s54, 1
          %s287 = scalar_lea.sflag [#allocation3], %s286
          %s288 = sand.u32 %s54, 1
          %s289 = smul.addr %s288, 16
          %s290 = scalar_lea.vmem [#allocation2], %s289
          %s292 = ssub.s32 256, 256
          %293 = vsyncadd %s287, %s292
          %s294 = smul.addr %s18, 2
          %s295 = smul.addr %s294, 128
          %s296 = scalar_lea.hbm %s1, %s295
          %s297 = sshll.u32 %s290, 4
          %s298 = int_to_ptr.vmem [resolvable:$true] %s297
          %303 = dma.hbm_to_vmem [thread:$0]  %s296, 256, %s298, %s287, 128, 128, 8
        $region48: #{decoder_forward.7} parent=39 // pred_fallthru
          _
      $region40: #{decoder_forward.7} parent=5 // pred_fallthru
        _
      %p304 = scmp.le.s32.totalorder 1, %s18
      %p305 = scmp.lt.s32.totalorder %s18, 3
      %p306 = pnand %p304, %p305
      %p307 = pneg %p306
      // Predicated region
      $region49: #{decoder_forward.7} parent=5 // pred_check
        _
      $region50: #{decoder_forward.7} parent=5 // pred_check_branch
        %309 = sbr.rel (%p306) target = $region52
      $region51: #{decoder_forward.7} parent=5 // pred_region
        %s310 = ssub.s32 %s18, 1
        %s311 = sand.u32 %s57, 1
        %s312 = scalar_lea.sflag [#allocation3], %s311
        %s313 = sand.u32 %s57, 1
        %s314 = smul.addr %s313, 16
        %s315 = scalar_lea.vmem [#allocation2], %s314
        // Predicated region
        $region53: #{decoder_forward.7} parent=51 // pred_check
          %p316 = pneg %p70
        $region54: #{decoder_forward.7} parent=51 // pred_check_branch
          %318 = sbr.rel (%p316) target = $region56
        $region55: #{decoder_forward.7} parent=51 // pred_region
          %319 = dma.done %s312, 256
        $region56: #{decoder_forward.7} parent=51 // pred_fallthru
          _
        // Predicated region
        $region57: #{decoder_forward.7} parent=51 // pred_check
          %p320 = pneg %p133
        $region58: #{decoder_forward.7} parent=51 // pred_check_branch
          %322 = sbr.rel (%p320) target = $region60
        $region59: #{decoder_forward.7} parent=51 // pred_region
          %323 = dma.done [#allocation5], 16
        $region60: #{decoder_forward.7} parent=51 // pred_fallthru
          _
        // Predicated region
        $region61: #{decoder_forward.7} parent=51 // pred_check
          %p324 = pneg %p175
        $region62: #{decoder_forward.7} parent=51 // pred_check_branch
          %326 = sbr.rel (%p324) target = $region64
        $region63: #{decoder_forward.7} parent=51 // pred_region
          %327 = dma.done [#allocation5], 64
        $region64: #{decoder_forward.7} parent=51 // pred_fallthru
          _
        %p328 = scmp.lt.s32.totalorder %s23, 1
        %s329 = scalar_select %p328, %s23, 1
        %s330 = smul.addr %s329, 2
        %s331 = smul.addr %s330, 8
        %s332 = scalar_lea.vmem %s0, %s331
        %p333 = pneg %p44
        %p334 = pneg %p41
        %s335 = sand.u32 %s57, 1
        %s336 = scalar_lea.sflag [#allocation3], %s335
        %s337 = sand.u32 %s57, 1
        %s338 = smul.addr %s337, 16
        %s339 = scalar_lea.vmem [#allocation2], %s338
        %p340 = pneg %p70
        %p341 = pneg %p67
        %p342 = pneg %p91
        %p343 = pneg %p88
        %p344 = pneg %p112
        %p345 = pneg %p109
        %p346 = pneg %p133
        %p347 = pneg %p130
        %p348 = pneg %p154
        %p349 = pneg %p151
        %p350 = pneg %p175
        %p351 = pneg %p172
        %p352 = pneg %p196
        %p353 = pneg %p193
        %p354 = pneg %p222
        %p355 = pneg %p219
        %p356 = scmp.lt.s32.totalorder %s23, 1
        %s357 = scalar_select %p356, %s23, 1
        %s358 = smul.addr %s357, 2
        %s359 = smul.addr %s358, 8
        %s360 = scalar_lea.vmem %s8, %s359
        %p361 = scmp.lt.s32.totalorder %s23, 1
        %s362 = scalar_select %p361, %s23, 1
        %s363 = smul.addr %s362, 2
        %s364 = smul.addr %s363, 8
        %s365 = scalar_lea.vmem %s0, %s364
        %p366 = scmp.lt.s32.totalorder %s23, 1
        %s367 = scalar_select %p366, %s23, 1
        %s368 = smul.addr %s367, 2
        %s369 = smul.addr %s368, 8
        %s370 = scalar_lea.vmem %s8, %s369
        %v371 = vld [vmem:[%s365] sm:$0xff]
        %v372 = vld [vmem:[%s365 + $0x8] sm:$0xff]
        %v373 = vld [vmem:[%s2] sm:$0xff]
        %v374 = vld [vmem:[%s2 + $0x8] sm:$0xff]
        %v375 = vld [vmem:[%s2 + $0x10] sm:$0xff]
        %v376 = vld [vmem:[%s2 + $0x18] sm:$0xff]
        %v377 = vld [vmem:[%s2 + $0x20] sm:$0xff]
        %v378 = vld [vmem:[%s2 + $0x28] sm:$0xff]
        %v379 = vld [vmem:[%s2 + $0x30] sm:$0xff]
        %v380 = vld [vmem:[%s2 + $0x38] sm:$0xff]
        %v381 = vld [vmem:[%s315] sm:$0xff]
        %v382 = vld [vmem:[%s315 + $0x8] sm:$0xff]
        %v383 = vld [vmem:[%s3] sm:$0xff]
        %v384 = vld [vmem:[%s3 + $0x8] sm:$0xff]
        %v385 = vld [vmem:[%s3 + $0x10] sm:$0xff]
        %v386 = vld [vmem:[%s3 + $0x18] sm:$0xff]
        %v387 = vld [vmem:[%s3 + $0x20] sm:$0xff]
        %v388 = vld [vmem:[%s3 + $0x28] sm:$0xff]
        %v389 = vld [vmem:[%s3 + $0x30] sm:$0xff]
        %v390 = vld [vmem:[%s3 + $0x38] sm:$0xff]
        %vm391 = vcmask 523264
        %v393 = vsel %vm391, %v381, 0
        %v396 = vsel %vm391, %v382, 0
        %398 = vmatprep.subr.mxu0 0.0
        %399 = vmatpush1.msra.mxu0 %v383
        %400 = vmatprep.subr.mxu0 0.0
        %401 = vmatpush1.msra.mxu0 %v384
        %402 = vmatprep.subr.mxu0 0.0
        %403 = vmatpush1.msra.mxu0 %v385
        %404 = vmatprep.subr.mxu0 0.0
        %405 = vmatpush1.msra.mxu0 %v386
        %406 = vmatprep.subr.mxu0 0.0
        %407 = vmatpush1.msra.mxu0 %v387
        %408 = vmatprep.subr.mxu0 0.0
        %409 = vmatpush1.msra.mxu0 %v388
        %410 = vmatprep.subr.mxu0 0.0
        %411 = vmatpush1.msra.mxu0 %v389
        %412 = vmatprep.subr.mxu0 0.0
        %413 = vmatpush1.msra.mxu0 %v390
        %414 = vmatprep.subr.mxu0 0.0
        %415 = vmatpush1.msra.mxu0 0.0
        %416 = vmatprep.subr.mxu0 0.0
        %417 = vmatpush1.msra.mxu0 0.0
        %418 = vmatprep.subr.mxu0 0.0
        %419 = vmatpush1.msra.mxu0 0.0
        %420 = vmatprep.subr.mxu0 0.0
        %421 = vmatpush1.msra.mxu0 0.0
        %422 = vmatprep.subr.mxu0 0.0
        %423 = vmatpush1.msra.mxu0 0.0
        %424 = vmatprep.subr.mxu0 0.0
        %425 = vmatpush1.msra.mxu0 0.0
        %426 = vmatprep.subr.mxu0 0.0
        %427 = vmatpush1.msra.mxu0 0.0
        %428 = vmatprep.subr.mxu0 0.0
        %429 = vmatpush1.msra.mxu0 0.0
        %430 = vmatprep.subr.mxu0 0.0
        %431 = vmatpush1.msra.mxu0 0.0
        %432 = vmatprep.subr.mxu0 0.0
        %433 = vmatpush1.msra.mxu0 0.0
        %434 = vmatprep.subr.mxu0 0.0
        %435 = vmatpush1.msra.mxu0 0.0
        %436 = vmatprep.subr.mxu0 0.0
        %437 = vmatpush1.msra.mxu0 0.0
        %438 = vmatprep.subr.mxu0 0.0
        %439 = vmatpush1.msra.mxu0 0.0
        %440 = vmatprep.subr.mxu0 0.0
        %441 = vmatpush1.msra.mxu0 0.0
        %442 = vmatprep.subr.mxu0 0.0
        %443 = vmatpush1.msra.mxu0 0.0
        %444 = vmatprep.subr.mxu0 0.0
        %445 = vmatpush1.msra.mxu0 0.0
        %446 = vmatprep.subr.mxu0 0.0
        %447 = vmatpush1.msra.mxu0 0.0
        %448 = vmatprep.subr.mxu0 0.0
        %449 = vmatpush1.msra.mxu0 0.0
        %450 = vmatprep.subr.mxu0 0.0
        %451 = vmatpush1.msra.mxu0 0.0
        %452 = vmatprep.subr.mxu0 0.0
        %453 = vmatpush1.msra.mxu0 0.0
        %454 = vmatprep.subr.mxu0 0.0
        %455 = vmatpush1.msra.mxu0 0.0
        %456 = vmatprep.subr.mxu0 0.0
        %457 = vmatpush1.msra.mxu0 0.0
        %458 = vmatprep.subr.mxu0 0.0
        %459 = vmatpush1.msra.mxu0 0.0
        %460 = vmatprep.subr.mxu0 0.0
        %461 = vmatpush1.msra.mxu0 0.0
        %462 = vmatprep.mubr.f32.mxu0 0.0
        %463 = vmatmul.mubr.f32.gmra.mrb[0].mxu0 %v393
        %v464 = vpop.f32.mrb[0].mxu0
        %v465 = vadd.f32 0.0, %v464
        %v466 = vpop.f32.mrb[0].mxu0
        %467 = vmatprep.mubr.f32.mxu0 0.0
        %468 = vmatmul.mubr.f32.gmra.mrb[0].mxu0 %v396
        %v469 = vpop.f32.mrb[0].mxu0
        %v470 = vadd.f32 0.0, %v469
        %v471 = vpop.f32.mrb[0].mxu0
        %472 = vdwg.mxu0
        %v474 = vsel %vm391, %v371, 0
        %v477 = vsel %vm391, %v372, 0
        %479 = vmatprep.subr.mxu0 0.0
        %480 = vmatpush1.msra.mxu0 %v373
        %481 = vmatprep.subr.mxu0 0.0
        %482 = vmatpush1.msra.mxu0 %v374
        %483 = vmatprep.subr.mxu0 0.0
        %484 = vmatpush1.msra.mxu0 %v375
        %485 = vmatprep.subr.mxu0 0.0
        %486 = vmatpush1.msra.mxu0 %v376
        %487 = vmatprep.subr.mxu0 0.0
        %488 = vmatpush1.msra.mxu0 %v377
        %489 = vmatprep.subr.mxu0 0.0
        %490 = vmatpush1.msra.mxu0 %v378
        %491 = vmatprep.subr.mxu0 0.0
        %492 = vmatpush1.msra.mxu0 %v379
        %493 = vmatprep.subr.mxu0 0.0
        %494 = vmatpush1.msra.mxu0 %v380
        %495 = vmatprep.subr.mxu0 0.0
        %496 = vmatpush1.msra.mxu0 0.0
        %497 = vmatprep.subr.mxu0 0.0
        %498 = vmatpush1.msra.mxu0 0.0
        %499 = vmatprep.subr.mxu0 0.0
        %500 = vmatpush1.msra.mxu0 0.0
        %501 = vmatprep.subr.mxu0 0.0
        %502 = vmatpush1.msra.mxu0 0.0
        %503 = vmatprep.subr.mxu0 0.0
        %504 = vmatpush1.msra.mxu0 0.0
        %505 = vmatprep.subr.mxu0 0.0
        %506 = vmatpush1.msra.mxu0 0.0
        %507 = vmatprep.subr.mxu0 0.0
        %508 = vmatpush1.msra.mxu0 0.0
        %509 = vmatprep.subr.mxu0 0.0
        %510 = vmatpush1.msra.mxu0 0.0
        %511 = vmatprep.subr.mxu0 0.0
        %512 = vmatpush1.msra.mxu0 0.0
        %513 = vmatprep.subr.mxu0 0.0
        %514 = vmatpush1.msra.mxu0 0.0
        %515 = vmatprep.subr.mxu0 0.0
        %516 = vmatpush1.msra.mxu0 0.0
        %517 = vmatprep.subr.mxu0 0.0
        %518 = vmatpush1.msra.mxu0 0.0
        %519 = vmatprep.subr.mxu0 0.0
        %520 = vmatpush1.msra.mxu0 0.0
        %521 = vmatprep.subr.mxu0 0.0
        %522 = vmatpush1.msra.mxu0 0.0
        %523 = vmatprep.subr.mxu0 0.0
        %524 = vmatpush1.msra.mxu0 0.0
        %525 = vmatprep.subr.mxu0 0.0
        %526 = vmatpush1.msra.mxu0 0.0
        %527 = vmatprep.subr.mxu0 0.0
        %528 = vmatpush1.msra.mxu0 0.0
        %529 = vmatprep.subr.mxu0 0.0
        %530 = vmatpush1.msra.mxu0 0.0
        %531 = vmatprep.subr.mxu0 0.0
        %532 = vmatpush1.msra.mxu0 0.0
        %533 = vmatprep.subr.mxu0 0.0
        %534 = vmatpush1.msra.mxu0 0.0
        %535 = vmatprep.subr.mxu0 0.0
        %536 = vmatpush1.msra.mxu0 0.0
        %537 = vmatprep.subr.mxu0 0.0
        %538 = vmatpush1.msra.mxu0 0.0
        %539 = vmatprep.subr.mxu0 0.0
        %540 = vmatpush1.msra.mxu0 0.0
        %541 = vmatprep.subr.mxu0 0.0
        %542 = vmatpush1.msra.mxu0 0.0
        %543 = vmatprep.mubr.f32.mxu0 0.0
        %544 = vmatmul.mubr.f32.gmra.mrb[0].mxu0 %v474
        %v545 = vpop.f32.mrb[0].mxu0
        %v546 = vadd.f32 %v465, %v545
        %v547 = vpop.f32.mrb[0].mxu0
        %548 = vmatprep.mubr.f32.mxu0 0.0
        %549 = vmatmul.mubr.f32.gmra.mrb[0].mxu0 %v477
        %v550 = vpop.f32.mrb[0].mxu0
        %v551 = vadd.f32 %v470, %v550
        %v552 = vpop.f32.mrb[0].mxu0
        %553 = vdwg.mxu0
        %v554 = vld [vmem:[#allocation4] sm:$0x1]
        %v556 = vlaneseq
        %v557 = vshrl.u32 %v556, 7
        %v558 = vsub.s32 0, %v557
        %v559 = vrot.slane %v554, %v558
        %v561 = vadd.f32 %v546, %v559
        %v562 = vadd.f32 %v551, %v559
        %v563 = vsel %vm391, %v561, 0.0
        %v564 = vsel %vm391, %v562, 0.0
        %v565 = vadd.f32 %v563, %v564
        %v566 = vrot.slane %v565, 4
        %v567 = vadd.f32 %v565, %v566
        %v568 = vrot.slane %v567, 2
        %v569 = vadd.f32 %v567, %v568
        %v570 = vrot.slane %v569, 1
        %v571 = vadd.f32 %v569, %v570
        %v572 = vrcp.pop 16.0
        %v573 = vmul.f32 %v571, %v572
        %v574 = vsel %vm391, %v561, -inf
        %v575 = vsel %vm391, %v562, -inf
        %v576 = vmax.f32 %v574, %v575
        %v577 = vrot.slane %v576, 4
        %v578 = vmax.f32 %v576, %v577
        %v579 = vrot.slane %v578, 2
        %v580 = vmax.f32 %v578, %v579
        %v581 = vrot.slane %v580, 1
        %v582 = vmax.f32 %v580, %v581
        %v583 = vld [vmem:[%s5] sm:$0xff]
        %v584 = vld [vmem:[%s5 + $0x8] sm:$0xff]
        %v585 = vld [vmem:[%s5 + $0x10] sm:$0xff]
        %v586 = vld [vmem:[%s5 + $0x18] sm:$0xff]
        %v587 = vld [vmem:[%s5 + $0x20] sm:$0xff]
        %v588 = vld [vmem:[%s5 + $0x28] sm:$0xff]
        %v589 = vld [vmem:[%s5 + $0x30] sm:$0xff]
        %v590 = vld [vmem:[%s5 + $0x38] sm:$0xff]
        %v592 = vsel %vm391, %v573, 0
        %594 = vmatprep.subr.mxu0 0.0
        %595 = vmatpush1.msra.mxu0 %v583
        %596 = vmatprep.subr.mxu0 0.0
        %597 = vmatpush1.msra.mxu0 %v584
        %598 = vmatprep.subr.mxu0 0.0
        %599 = vmatpush1.msra.mxu0 %v585
        %600 = vmatprep.subr.mxu0 0.0
        %601 = vmatpush1.msra.mxu0 %v586
        %602 = vmatprep.subr.mxu0 0.0
        %603 = vmatpush1.msra.mxu0 %v587
        %604 = vmatprep.subr.mxu0 0.0
        %605 = vmatpush1.msra.mxu0 %v588
        %606 = vmatprep.subr.mxu0 0.0
        %607 = vmatpush1.msra.mxu0 %v589
        %608 = vmatprep.subr.mxu0 0.0
        %609 = vmatpush1.msra.mxu0 %v590
        %610 = vmatprep.subr.mxu0 0.0
        %611 = vmatpush1.msra.mxu0 0.0
        %612 = vmatprep.subr.mxu0 0.0
        %613 = vmatpush1.msra.mxu0 0.0
        %614 = vmatprep.subr.mxu0 0.0
        %615 = vmatpush1.msra.mxu0 0.0
        %616 = vmatprep.subr.mxu0 0.0
        %617 = vmatpush1.msra.mxu0 0.0
        %618 = vmatprep.subr.mxu0 0.0
        %619 = vmatpush1.msra.mxu0 0.0
        %620 = vmatprep.subr.mxu0 0.0
        %621 = vmatpush1.msra.mxu0 0.0
        %622 = vmatprep.subr.mxu0 0.0
        %623 = vmatpush1.msra.mxu0 0.0
        %624 = vmatprep.subr.mxu0 0.0
        %625 = vmatpush1.msra.mxu0 0.0
        %626 = vmatprep.subr.mxu0 0.0
        %627 = vmatpush1.msra.mxu0 0.0
        %628 = vmatprep.subr.mxu0 0.0
        %629 = vmatpush1.msra.mxu0 0.0
        %630 = vmatprep.subr.mxu0 0.0
        %631 = vmatpush1.msra.mxu0 0.0
        %632 = vmatprep.subr.mxu0 0.0
        %633 = vmatpush1.msra.mxu0 0.0
        %634 = vmatprep.subr.mxu0 0.0
        %635 = vmatpush1.msra.mxu0 0.0
        %636 = vmatprep.subr.mxu0 0.0
        %637 = vmatpush1.msra.mxu0 0.0
        %638 = vmatprep.subr.mxu0 0.0
        %639 = vmatpush1.msra.mxu0 0.0
        %640 = vmatprep.subr.mxu0 0.0
        %641 = vmatpush1.msra.mxu0 0.0
        %642 = vmatprep.subr.mxu0 0.0
        %643 = vmatpush1.msra.mxu0 0.0
        %644 = vmatprep.subr.mxu0 0.0
        %645 = vmatpush1.msra.mxu0 0.0
        %646 = vmatprep.subr.mxu0 0.0
        %647 = vmatpush1.msra.mxu0 0.0
        %648 = vmatprep.subr.mxu0 0.0
        %649 = vmatpush1.msra.mxu0 0.0
        %650 = vmatprep.subr.mxu0 0.0
        %651 = vmatpush1.msra.mxu0 0.0
        %652 = vmatprep.subr.mxu0 0.0
        %653 = vmatpush1.msra.mxu0 0.0
        %654 = vmatprep.subr.mxu0 0.0
        %655 = vmatpush1.msra.mxu0 0.0
        %656 = vmatprep.subr.mxu0 0.0
        %657 = vmatpush1.msra.mxu0 0.0
        %658 = vmatprep.mubr.f32.mxu0 0.0
        %659 = vmatmul.mubr.f32.gmra.mrb[0].mxu0 %v592
        %v660 = vpop.f32.mrb[0].mxu0
        %v661 = vadd.f32 0.0, %v660
        %v662 = vpop.f32.mrb[0].mxu0
        %663 = vdwg.mxu0
        %v664 = vmax.f32 %v661, 0.0
        %v665 = vld [vmem:[#allocation6] sm:$0xf]
        %v667 = vsel %vm391, %v582, 0
        %669 = vmatprep.subr.mxu0 0.0
        %670 = vmatpush1.msra.mxu0 %v583
        %671 = vmatprep.subr.mxu0 0.0
        %672 = vmatpush1.msra.mxu0 %v584
        %673 = vmatprep.subr.mxu0 0.0
        %674 = vmatpush1.msra.mxu0 %v585
        %675 = vmatprep.subr.mxu0 0.0
        %676 = vmatpush1.msra.mxu0 %v586
        %677 = vmatprep.subr.mxu0 0.0
        %678 = vmatpush1.msra.mxu0 %v587
        %679 = vmatprep.subr.mxu0 0.0
        %680 = vmatpush1.msra.mxu0 %v588
        %681 = vmatprep.subr.mxu0 0.0
        %682 = vmatpush1.msra.mxu0 %v589
        %683 = vmatprep.subr.mxu0 0.0
        %684 = vmatpush1.msra.mxu0 %v590
        %685 = vmatprep.subr.mxu0 0.0
        %686 = vmatpush1.msra.mxu0 0.0
        %687 = vmatprep.subr.mxu0 0.0
        %688 = vmatpush1.msra.mxu0 0.0
        %689 = vmatprep.subr.mxu0 0.0
        %690 = vmatpush1.msra.mxu0 0.0
        %691 = vmatprep.subr.mxu0 0.0
        %692 = vmatpush1.msra.mxu0 0.0
        %693 = vmatprep.subr.mxu0 0.0
        %694 = vmatpush1.msra.mxu0 0.0
        %695 = vmatprep.subr.mxu0 0.0
        %696 = vmatpush1.msra.mxu0 0.0
        %697 = vmatprep.subr.mxu0 0.0
        %698 = vmatpush1.msra.mxu0 0.0
        %699 = vmatprep.subr.mxu0 0.0
        %700 = vmatpush1.msra.mxu0 0.0
        %701 = vmatprep.subr.mxu0 0.0
        %702 = vmatpush1.msra.mxu0 0.0
        %703 = vmatprep.subr.mxu0 0.0
        %704 = vmatpush1.msra.mxu0 0.0
        %705 = vmatprep.subr.mxu0 0.0
        %706 = vmatpush1.msra.mxu0 0.0
        %707 = vmatprep.subr.mxu0 0.0
        %708 = vmatpush1.msra.mxu0 0.0
        %709 = vmatprep.subr.mxu0 0.0
        %710 = vmatpush1.msra.mxu0 0.0
        %711 = vmatprep.subr.mxu0 0.0
        %712 = vmatpush1.msra.mxu0 0.0
        %713 = vmatprep.subr.mxu0 0.0
        %714 = vmatpush1.msra.mxu0 0.0
        %715 = vmatprep.subr.mxu0 0.0
        %716 = vmatpush1.msra.mxu0 0.0
        %717 = vmatprep.subr.mxu0 0.0
        %718 = vmatpush1.msra.mxu0 0.0
        %719 = vmatprep.subr.mxu0 0.0
        %720 = vmatpush1.msra.mxu0 0.0
        %721 = vmatprep.subr.mxu0 0.0
        %722 = vmatpush1.msra.mxu0 0.0
        %723 = vmatprep.subr.mxu0 0.0
        %724 = vmatpush1.msra.mxu0 0.0
        %725 = vmatprep.subr.mxu0 0.0
        %726 = vmatpush1.msra.mxu0 0.0
        %727 = vmatprep.subr.mxu0 0.0
        %728 = vmatpush1.msra.mxu0 0.0
        %729 = vmatprep.subr.mxu0 0.0
        %730 = vmatpush1.msra.mxu0 0.0
        %731 = vmatprep.subr.mxu0 0.0
        %732 = vmatpush1.msra.mxu0 0.0
        %733 = vmatprep.mubr.f32.mxu0 0.0
        %734 = vmatmul.mubr.f32.gmra.mrb[0].mxu0 %v667
        %v735 = vpop.f32.mrb[0].mxu0
        %v736 = vadd.f32 0.0, %v735
        %v737 = vpop.f32.mrb[0].mxu0
        %738 = vdwg.mxu0
        %v739 = vmax.f32 %v736, 0.0
        %vm740 = vcmask 31744
        %v742 = vsel %vm740, %v739, 0
        %vm744 = vcmask 1043456
        %v746 = vsel %vm744, %v665, 0
        %748 = vmatprep.subr.mxu0 0.0
        %749 = vmatpush1.msra.mxu0 %v746
        %750 = vmatprep.subr.mxu0 0.0
        %751 = vmatpush1.msra.mxu0 0.0
        %752 = vmatprep.subr.mxu0 0.0
        %753 = vmatpush1.msra.mxu0 0.0
        %754 = vmatprep.subr.mxu0 0.0
        %755 = vmatpush1.msra.mxu0 0.0
        %756 = vmatprep.subr.mxu0 0.0
        %757 = vmatpush1.msra.mxu0 0.0
        %758 = vmatprep.subr.mxu0 0.0
        %759 = vmatpush1.msra.mxu0 0.0
        %760 = vmatprep.subr.mxu0 0.0
        %761 = vmatpush1.msra.mxu0 0.0
        %762 = vmatprep.subr.mxu0 0.0
        %763 = vmatpush1.msra.mxu0 0.0
        %764 = vmatprep.subr.mxu0 0.0
        %765 = vmatpush1.msra.mxu0 0.0
        %766 = vmatprep.subr.mxu0 0.0
        %767 = vmatpush1.msra.mxu0 0.0
        %768 = vmatprep.subr.mxu0 0.0
        %769 = vmatpush1.msra.mxu0 0.0
        %770 = vmatprep.subr.mxu0 0.0
        %771 = vmatpush1.msra.mxu0 0.0
        %772 = vmatprep.subr.mxu0 0.0
        %773 = vmatpush1.msra.mxu0 0.0
        %774 = vmatprep.subr.mxu0 0.0
        %775 = vmatpush1.msra.mxu0 0.0
        %776 = vmatprep.subr.mxu0 0.0
        %777 = vmatpush1.msra.mxu0 0.0
        %778 = vmatprep.subr.mxu0 0.0
        %779 = vmatpush1.msra.mxu0 0.0
        %780 = vmatprep.subr.mxu0 0.0
        %781 = vmatpush1.msra.mxu0 0.0
        %782 = vmatprep.subr.mxu0 0.0
        %783 = vmatpush1.msra.mxu0 0.0
        %784 = vmatprep.subr.mxu0 0.0
        %785 = vmatpush1.msra.mxu0 0.0
        %786 = vmatprep.subr.mxu0 0.0
        %787 = vmatpush1.msra.mxu0 0.0
        %788 = vmatprep.subr.mxu0 0.0
        %789 = vmatpush1.msra.mxu0 0.0
        %790 = vmatprep.subr.mxu0 0.0
        %791 = vmatpush1.msra.mxu0 0.0
        %792 = vmatprep.subr.mxu0 0.0
        %793 = vmatpush1.msra.mxu0 0.0
        %794 = vmatprep.subr.mxu0 0.0
        %795 = vmatpush1.msra.mxu0 0.0
        %796 = vmatprep.subr.mxu0 0.0
        %797 = vmatpush1.msra.mxu0 0.0
        %798 = vmatprep.subr.mxu0 0.0
        %799 = vmatpush1.msra.mxu0 0.0
        %800 = vmatprep.subr.mxu0 0.0
        %801 = vmatpush1.msra.mxu0 0.0
        %802 = vmatprep.subr.mxu0 0.0
        %803 = vmatpush1.msra.mxu0 0.0
        %804 = vmatprep.subr.mxu0 0.0
        %805 = vmatpush1.msra.mxu0 0.0
        %806 = vmatprep.subr.mxu0 0.0
        %807 = vmatpush1.msra.mxu0 0.0
        %808 = vmatprep.subr.mxu0 0.0
        %809 = vmatpush1.msra.mxu0 0.0
        %810 = vmatprep.subr.mxu0 0.0
        %811 = vmatpush1.msra.mxu0 0.0
        %812 = vmatprep.mubr.f32.mxu0 0.0
        %813 = vmatmul.mubr.f32.gmra.mrb[0].mxu0 %v742
        %v814 = vpop.f32.mrb[0].mxu0
        %v815 = vadd.f32 0.0, %v814
        %v816 = vpop.f32.mrb[0].mxu0
        %817 = vdwg.mxu0
        %v819 = vsel %vm740, %v664, 0
        %821 = vmatprep.subr.mxu0 0.0
        %822 = vmatpush1.msra.mxu0 %v746
        %823 = vmatprep.subr.mxu0 0.0
        %824 = vmatpush1.msra.mxu0 0.0
        %825 = vmatprep.subr.mxu0 0.0
        %826 = vmatpush1.msra.mxu0 0.0
        %827 = vmatprep.subr.mxu0 0.0
        %828 = vmatpush1.msra.mxu0 0.0
        %829 = vmatprep.subr.mxu0 0.0
        %830 = vmatpush1.msra.mxu0 0.0
        %831 = vmatprep.subr.mxu0 0.0
        %832 = vmatpush1.msra.mxu0 0.0
        %833 = vmatprep.subr.mxu0 0.0
        %834 = vmatpush1.msra.mxu0 0.0
        %835 = vmatprep.subr.mxu0 0.0
        %836 = vmatpush1.msra.mxu0 0.0
        %837 = vmatprep.subr.mxu0 0.0
        %838 = vmatpush1.msra.mxu0 0.0
        %839 = vmatprep.subr.mxu0 0.0
        %840 = vmatpush1.msra.mxu0 0.0
        %841 = vmatprep.subr.mxu0 0.0
        %842 = vmatpush1.msra.mxu0 0.0
        %843 = vmatprep.subr.mxu0 0.0
        %844 = vmatpush1.msra.mxu0 0.0
        %845 = vmatprep.subr.mxu0 0.0
        %846 = vmatpush1.msra.mxu0 0.0
        %847 = vmatprep.subr.mxu0 0.0
        %848 = vmatpush1.msra.mxu0 0.0
        %849 = vmatprep.subr.mxu0 0.0
        %850 = vmatpush1.msra.mxu0 0.0
        %851 = vmatprep.subr.mxu0 0.0
        %852 = vmatpush1.msra.mxu0 0.0
        %853 = vmatprep.subr.mxu0 0.0
        %854 = vmatpush1.msra.mxu0 0.0
        %855 = vmatprep.subr.mxu0 0.0
        %856 = vmatpush1.msra.mxu0 0.0
        %857 = vmatprep.subr.mxu0 0.0
        %858 = vmatpush1.msra.mxu0 0.0
        %859 = vmatprep.subr.mxu0 0.0
        %860 = vmatpush1.msra.mxu0 0.0
        %861 = vmatprep.subr.mxu0 0.0
        %862 = vmatpush1.msra.mxu0 0.0
        %863 = vmatprep.subr.mxu0 0.0
        %864 = vmatpush1.msra.mxu0 0.0
        %865 = vmatprep.subr.mxu0 0.0
        %866 = vmatpush1.msra.mxu0 0.0
        %867 = vmatprep.subr.mxu0 0.0
        %868 = vmatpush1.msra.mxu0 0.0
        %869 = vmatprep.subr.mxu0 0.0
        %870 = vmatpush1.msra.mxu0 0.0
        %871 = vmatprep.subr.mxu0 0.0
        %872 = vmatpush1.msra.mxu0 0.0
        %873 = vmatprep.subr.mxu0 0.0
        %874 = vmatpush1.msra.mxu0 0.0
        %875 = vmatprep.subr.mxu0 0.0
        %876 = vmatpush1.msra.mxu0 0.0
        %877 = vmatprep.subr.mxu0 0.0
        %878 = vmatpush1.msra.mxu0 0.0
        %879 = vmatprep.subr.mxu0 0.0
        %880 = vmatpush1.msra.mxu0 0.0
        %881 = vmatprep.subr.mxu0 0.0
        %882 = vmatpush1.msra.mxu0 0.0
        %883 = vmatprep.subr.mxu0 0.0
        %884 = vmatpush1.msra.mxu0 0.0
        %885 = vmatprep.mubr.f32.mxu0 0.0
        %886 = vmatmul.mubr.f32.gmra.mrb[0].mxu0 %v819
        %v887 = vpop.f32.mrb[0].mxu0
        %v888 = vadd.f32 %v815, %v887
        %v889 = vpop.f32.mrb[0].mxu0
        %890 = vdwg.mxu0
        %v891 = vxor.u32 %v888, 2147483648
        %v892 = vmul.f32 %v891, 1.442695
        %v893 = vpow.pop %v892
        %v894 = vadd.f32 %v893, 1.0
        %v895 = vrcp.pop %v894
        %v896 = vmul.f32 1.0, %v895
        %v897 = vlaneseq
        %v898 = vshrl.u32 %v897, 7
        %v899 = vsub.s32 0, %v898
        %v900 = vrot.slane %v896, %v899
        %v901 = vmul.f32 %v561, %v900
        %v902 = vmul.f32 %v562, %v900
        %v903 = vsel %vm391, %v901, 0.0
        %904 = vadd.xlane.f32.xlu0 %v903
        %v905 = vpop.xlane.xlu0 %904
        %v906 = vsel %vm391, %v902, 0.0
        %907 = vadd.xlane.f32.xlu0 %v906
        %v908 = vpop.xlane.xlu0 %907
        %v909 = vrcp.pop 64.0
        %v910 = vmul.f32 %v905, %v909
        %v911 = vmul.f32 %v908, %v909
        %v912 = vsel %vm391, %v901, -inf
        %913 = vmax.xlane.f32.xlu0 %v912
        %v914 = vpop.xlane.xlu0 %913
        %v915 = vsel %vm391, %v902, -inf
        %916 = vmax.xlane.f32.xlu0 %v915
        %v917 = vpop.xlane.xlu0 %916
        %v918 = vld [vmem:[%s7] sm:$0xff]
        %v919 = vld [vmem:[%s7 + $0x8] sm:$0xff]
        %s920 = scalar_lea.vmem %s7, 16
        %v921 = vld [vmem:[%s920] sm:$0xff]
        %v922 = vld [vmem:[%s920 + $0x8] sm:$0xff]
        %vm923 = vcmask 130048
        %v925 = vsel %vm923, %v921, 0
        %v928 = vsel %vm923, %v922, 0
        %930 = vmatprep.subr.mxu0 0.0
        %931 = vmatpush1.msra.mxu0 %v914
        %932 = vmatprep.subr.mxu0 0.0
        %933 = vmatpush1.msra.mxu0 %v917
        %934 = vmatprep.subr.mxu0 0.0
        %935 = vmatpush1.msra.mxu0 0.0
        %936 = vmatprep.subr.mxu0 0.0
        %937 = vmatpush1.msra.mxu0 0.0
        %938 = vmatprep.subr.mxu0 0.0
        %939 = vmatpush1.msra.mxu0 0.0
        %940 = vmatprep.subr.mxu0 0.0
        %941 = vmatpush1.msra.mxu0 0.0
        %942 = vmatprep.subr.mxu0 0.0
        %943 = vmatpush1.msra.mxu0 0.0
        %944 = vmatprep.subr.mxu0 0.0
        %945 = vmatpush1.msra.mxu0 0.0
        %946 = vmatprep.subr.mxu0 0.0
        %947 = vmatpush1.msra.mxu0 0.0
        %948 = vmatprep.subr.mxu0 0.0
        %949 = vmatpush1.msra.mxu0 0.0
        %950 = vmatprep.subr.mxu0 0.0
        %951 = vmatpush1.msra.mxu0 0.0
        %952 = vmatprep.subr.mxu0 0.0
        %953 = vmatpush1.msra.mxu0 0.0
        %954 = vmatprep.subr.mxu0 0.0
        %955 = vmatpush1.msra.mxu0 0.0
        %956 = vmatprep.subr.mxu0 0.0
        %957 = vmatpush1.msra.mxu0 0.0
        %958 = vmatprep.subr.mxu0 0.0
        %959 = vmatpush1.msra.mxu0 0.0
        %960 = vmatprep.subr.mxu0 0.0
        %961 = vmatpush1.msra.mxu0 0.0
        %962 = vmatprep.subr.mxu0 0.0
        %963 = vmatpush1.msra.mxu0 0.0
        %964 = vmatprep.subr.mxu0 0.0
        %965 = vmatpush1.msra.mxu0 0.0
        %966 = vmatprep.subr.mxu0 0.0
        %967 = vmatpush1.msra.mxu0 0.0
        %968 = vmatprep.subr.mxu0 0.0
        %969 = vmatpush1.msra.mxu0 0.0
        %970 = vmatprep.subr.mxu0 0.0
        %971 = vmatpush1.msra.mxu0 0.0
        %972 = vmatprep.subr.mxu0 0.0
        %973 = vmatpush1.msra.mxu0 0.0
        %974 = vmatprep.subr.mxu0 0.0
        %975 = vmatpush1.msra.mxu0 0.0
        %976 = vmatprep.subr.mxu0 0.0
        %977 = vmatpush1.msra.mxu0 0.0
        %978 = vmatprep.subr.mxu0 0.0
        %979 = vmatpush1.msra.mxu0 0.0
        %980 = vmatprep.subr.mxu0 0.0
        %981 = vmatpush1.msra.mxu0 0.0
        %982 = vmatprep.subr.mxu0 0.0
        %983 = vmatpush1.msra.mxu0 0.0
        %984 = vmatprep.subr.mxu0 0.0
        %985 = vmatpush1.msra.mxu0 0.0
        %986 = vmatprep.subr.mxu0 0.0
        %987 = vmatpush1.msra.mxu0 0.0
        %988 = vmatprep.subr.mxu0 0.0
        %989 = vmatpush1.msra.mxu0 0.0
        %990 = vmatprep.subr.mxu0 0.0
        %991 = vmatpush1.msra.mxu0 0.0
        %992 = vmatprep.subr.mxu0 0.0
        %993 = vmatpush1.msra.mxu0 0.0
        %994 = vmatprep.mubr.f32.mxu0 0.0
        %995 = vmatmul.mubr.f32.gmra.mrb[0].mxu0 %v925
        %v996 = vpop.f32.mrb[0].mxu0
        %v997 = vadd.f32 0.0, %v996
        %v998 = vpop.f32.mrb[0].mxu0
        %999 = vmatprep.mubr.f32.mxu0 0.0
        %1000 = vmatmul.mubr.f32.gmra.mrb[0].mxu0 %v928
        %v1001 = vpop.f32.mrb[0].mxu0
        %v1002 = vadd.f32 0.0, %v1001
        %v1003 = vpop.f32.mrb[0].mxu0
        %1004 = vdwg.mxu0
        %v1006 = vsel %vm923, %v918, 0
        %v1009 = vsel %vm923, %v919, 0
        %1011 = vmatprep.subr.mxu0 0.0
        %1012 = vmatpush1.msra.mxu0 %v910
        %1013 = vmatprep.subr.mxu0 0.0
        %1014 = vmatpush1.msra.mxu0 %v911
        %1015 = vmatprep.subr.mxu0 0.0
        %1016 = vmatpush1.msra.mxu0 0.0
        %1017 = vmatprep.subr.mxu0 0.0
        %1018 = vmatpush1.msra.mxu0 0.0
        %1019 = vmatprep.subr.mxu0 0.0
        %1020 = vmatpush1.msra.mxu0 0.0
        %1021 = vmatprep.subr.mxu0 0.0
        %1022 = vmatpush1.msra.mxu0 0.0
        %1023 = vmatprep.subr.mxu0 0.0
        %1024 = vmatpush1.msra.mxu0 0.0
        %1025 = vmatprep.subr.mxu0 0.0
        %1026 = vmatpush1.msra.mxu0 0.0
        %1027 = vmatprep.subr.mxu0 0.0
        %1028 = vmatpush1.msra.mxu0 0.0
        %1029 = vmatprep.subr.mxu0 0.0
        %1030 = vmatpush1.msra.mxu0 0.0
        %1031 = vmatprep.subr.mxu0 0.0
        %1032 = vmatpush1.msra.mxu0 0.0
        %1033 = vmatprep.subr.mxu0 0.0
        %1034 = vmatpush1.msra.mxu0 0.0
        %1035 = vmatprep.subr.mxu0 0.0
        %1036 = vmatpush1.msra.mxu0 0.0
        %1037 = vmatprep.subr.mxu0 0.0
        %1038 = vmatpush1.msra.mxu0 0.0
        %1039 = vmatprep.subr.mxu0 0.0
        %1040 = vmatpush1.msra.mxu0 0.0
        %1041 = vmatprep.subr.mxu0 0.0
        %1042 = vmatpush1.msra.mxu0 0.0
        %1043 = vmatprep.subr.mxu0 0.0
        %1044 = vmatpush1.msra.mxu0 0.0
        %1045 = vmatprep.subr.mxu0 0.0
        %1046 = vmatpush1.msra.mxu0 0.0
        %1047 = vmatprep.subr.mxu0 0.0
        %1048 = vmatpush1.msra.mxu0 0.0
        %1049 = vmatprep.subr.mxu0 0.0
        %1050 = vmatpush1.msra.mxu0 0.0
        %1051 = vmatprep.subr.mxu0 0.0
        %1052 = vmatpush1.msra.mxu0 0.0
        %1053 = vmatprep.subr.mxu0 0.0
        %1054 = vmatpush1.msra.mxu0 0.0
        %1055 = vmatprep.subr.mxu0 0.0
        %1056 = vmatpush1.msra.mxu0 0.0
        %1057 = vmatprep.subr.mxu0 0.0
        %1058 = vmatpush1.msra.mxu0 0.0
        %1059 = vmatprep.subr.mxu0 0.0
        %1060 = vmatpush1.msra.mxu0 0.0
        %1061 = vmatprep.subr.mxu0 0.0
        %1062 = vmatpush1.msra.mxu0 0.0
        %1063 = vmatprep.subr.mxu0 0.0
        %1064 = vmatpush1.msra.mxu0 0.0
        %1065 = vmatprep.subr.mxu0 0.0
        %1066 = vmatpush1.msra.mxu0 0.0
        %1067 = vmatprep.subr.mxu0 0.0
        %1068 = vmatpush1.msra.mxu0 0.0
        %1069 = vmatprep.subr.mxu0 0.0
        %1070 = vmatpush1.msra.mxu0 0.0
        %1071 = vmatprep.subr.mxu0 0.0
        %1072 = vmatpush1.msra.mxu0 0.0
        %1073 = vmatprep.subr.mxu0 0.0
        %1074 = vmatpush1.msra.mxu0 0.0
        %1075 = vmatprep.mubr.f32.mxu0 0.0
        %1076 = vmatmul.mubr.f32.gmra.mrb[0].mxu0 %v1006
        %v1077 = vpop.f32.mrb[0].mxu0
        %v1078 = vadd.f32 %v997, %v1077
        %v1079 = vpop.f32.mrb[0].mxu0
        %1080 = vmatprep.mubr.f32.mxu0 0.0
        %1081 = vmatmul.mubr.f32.gmra.mrb[0].mxu0 %v1009
        %v1082 = vpop.f32.mrb[0].mxu0
        %v1083 = vadd.f32 %v1002, %v1082
        %v1084 = vpop.f32.mrb[0].mxu0
        %1085 = vdwg.mxu0
        %v1086 = vxor.u32 %v1078, 2147483648
        %v1087 = vxor.u32 %v1083, 2147483648
        %v1088 = vmul.f32 %v1086, 1.442695
        %v1089 = vpow.pop %v1088
        %v1090 = vmul.f32 %v1087, 1.442695
        %v1091 = vpow.pop %v1090
        %v1092 = vadd.f32 %v1089, 1.0
        %v1093 = vadd.f32 %v1091, 1.0
        %v1094 = vrcp.pop %v1092
        %v1095 = vmul.f32 1.0, %v1094
        %v1096 = vrcp.pop %v1093
        %v1097 = vmul.f32 1.0, %v1096
        %1099 = vset.pattern.permute.xlu0 0
        %1100 = vperm.xlu0 %1099, %v1095
        %v1101 = vpop.permute.xlu0 %1100
        %1104 = vset.pattern.permute.xlu0 0
        %1105 = vperm.xlu0 %1104, %v1097
        %v1106 = vpop.permute.xlu0 %1105
        %v1108 = vmul.f32 %v901, %v1101
        %v1109 = vmul.f32 %v902, %v1106
        %1110 = vst.msk [vmem:[%s370] sm:$0xff] %vm391, %v1108
        %1111 = vst.msk [vmem:[%s370 + $0x8] sm:$0xff] %vm391, %v1109
        %p1112 = scmp.lt.s32.totalorder %s23, 1
        %s1113 = scalar_select %p1112, %s23, 1
        %s1114 = smul.addr %s1113, 2
        %s1115 = smul.addr %s1114, 8
        %s1116 = scalar_lea.vmem %s8, %s1115
        // Predicated region
        $region65: #{decoder_forward.7} parent=51 // pred_check
          %p1117 = pneg %p219
        $region66: #{decoder_forward.7} parent=51 // pred_check_branch
          %1119 = sbr.rel (%p1117) target = $region68
        $region67: #{decoder_forward.7} parent=51 // pred_region
          _
        $region68: #{decoder_forward.7} parent=51 // pred_fallthru
          _
      $region52: #{decoder_forward.7} parent=5 // pred_fallthru
        _
      %p1120 = scmp.le.s32.totalorder 2, %s18
      // Predicated region
      $region69: #{decoder_forward.7} parent=5 // pred_check
        %p1121 = pneg %p1120
      $region70: #{decoder_forward.7} parent=5 // pred_check_branch
        %1123 = sbr.rel (%p1121) target = $region72
      $region71: #{decoder_forward.7} parent=5 // pred_region
        %s1124 = ssub.s32 %s18, 2
        // Predicated region
        $region73: #{decoder_forward.7} parent=71 // pred_check
          %p1125 = pneg %p225
        $region74: #{decoder_forward.7} parent=71 // pred_check_branch
          %1127 = sbr.rel (%p1125) target = $region76
        $region75: #{decoder_forward.7} parent=71 // pred_region
          %p1128 = scmp.lt.s32.totalorder %s24, 1
          %s1129 = scalar_select %p1128, %s24, 1
          %s1130 = smul.addr %s1129, 2
          %s1131 = smul.addr %s1130, 8
          %s1132 = scalar_lea.vmem %s8, %s1131
        $region76: #{decoder_forward.7} parent=71 // pred_fallthru
          _
      $region72: #{decoder_forward.7} parent=5 // pred_fallthru
        _
    $region6: #{decoder_forward.7} parent=1 // loop_footer
      %s22 = sadd.s32 1, %s18
    $region7: #{decoder_forward.7} parent=1 // loop_footer_branch
      %17 = sbr.rel target = $region3
    $region8: #{decoder_forward.7} parent=1 // loop_exit
      _
    %1133 = vsyncpa [#allocation3], 1
    %s1134 = scalar_lea.sflag [#allocation3], 1
    %1135 = vsyncpa %s1134, 1
    %1136 = vsyncpa [#allocation5], 1

// kernel: tile.83
$region0: #{tile.83}
  #allocation2 [shape = 's32[1]{0}', space=sflag, size = 0x4, scoped, tag = 'scoped memory for tile.83']
  %s0 = inlined_call_operand.hbm [shape: f32[16], index: 0, kind: input, shape index: {}]
  %s1 = inlined_call_operand.vmem [shape: f32[4,16], index: 1, kind: output, shape index: {}]
  $region1: #{tile.83} parent=0
    #allocation0 [shape = 'u8[512]{0}', space=vmem, size = 0x400, scoped, tag = 'operand span for operand 0']
    #allocation1 [shape = 's32[1]{0}', space=sflag, size = 0x4, scoped, tag = 'scoped memory for tile.83']
    %2 = vsyncpa [#allocation1], 0
    // Predicated region
    $region2: #{tile.83} parent=1 // pred_check
      _
    $region3: #{tile.83} parent=1 // pred_check_branch
      %4 = sbr.rel (0) target = $region5
    $region4: #{tile.83} parent=1 // pred_region
      %s6 = ssub.s32 16, 16
      %7 = vsyncadd [#allocation1], %s6
      %s9 = sshll.u32 [#allocation0], 4
      %s10 = int_to_ptr.vmem [resolvable:$true] %s9
      %12 = dma.hbm_to_vmem [thread:$0]  %s0, 16, %s10, [#allocation1]
    $region5: #{tile.83} parent=1 // pred_fallthru
      _
    // Predicated region
    $region6: #{tile.83} parent=1 // pred_check
      _
    $region7: #{tile.83} parent=1 // pred_check_branch
      %14 = sbr.rel (0) target = $region9
    $region8: #{tile.83} parent=1 // pred_region
      %15 = dma.done [#allocation1], 16
    $region9: #{tile.83} parent=1 // pred_fallthru
      _
    %v16 = vld [vmem:[#allocation0] ss:$0 sm:$0xff]
    %17 = vst [vmem:[%s1] sm:$0xf] %v16
    %18 = vsyncpa [#allocation1], 1

// kernel: tile.84
$region0: #{tile.84}
  %s0 = inlined_call_operand.vmem [shape: f32[4,16], index: 0, kind: input, shape index: {}]
  %s1 = inlined_call_operand.vmem [shape: f32[1,64], index: 1, kind: output, shape index: {}]
  $region1: #{tile.84} parent=0
    #allocation0 [shape = 'u8[4096]{0}', space=vmem, size = 0x1000, scoped, tag = 'scoped mem for output reshape']
    #allocation1 [shape = 'u8[4096]{0}', space=vmem, size = 0x1000, scoped, tag = 'scoped mem for input reshape']
    %s3 = sshllo.u32 0, 4
    %v4 = vld [vmem:[%s0] sm:%s3]
    %5 = vst [vmem:[#allocation1] sm:%s3] %v4
    %v6 = vld [vmem:[#allocation1] sm:$0x1]
    %vm7 = vcmask 130048
    %8 = vst.msk [vmem:[#allocation0] sm:$0x1] %vm7, %v6
    %s9 = scalar_lea.vmem [#allocation1], 3
    %v10 = vld [vmem:[%s9] sm:$0x1]
    %11 = vrot.lane.b32.xlu0 %v10, 48
    %v12 = vpop.permute.xlu0 %11
    %vm13 = vcmask 523648
    %14 = vst.msk [vmem:[#allocation0] sm:$0x1] %vm13, %v12
    %s15 = scalar_lea.vmem [#allocation1], 2
    %v16 = vld [vmem:[%s15] sm:$0x1]
    %17 = vrot.lane.b32.xlu0 %v16, 32
    %v18 = vpop.permute.xlu0 %17
    %vm19 = vcmask 392448
    %20 = vst.msk [vmem:[#allocation0] sm:$0x1] %vm19, %v18
    %s21 = scalar_lea.vmem [#allocation1], 1
    %v22 = vld [vmem:[%s21] sm:$0x1]
    %23 = vrot.lane.b32.xlu0 %v22, 16
    %v24 = vpop.permute.xlu0 %23
    %vm25 = vcmask 261248
    %26 = vst.msk [vmem:[#allocation0] sm:$0x1] %vm25, %v24
    %s28 = sshllo.u32 0, 1
    %v30 = vld [vmem:[#allocation0] sm:%s28]
    %s31 = sshllo.u32 0, 1
    %32 = vst [vmem:[%s1] sm:%s31] %v30

// kernel: decoder_forward.9
$region0: #{decoder_forward.9}
  #allocation0 [shape = 'u32[]', space=smem, size = 0x4, offset = 0x4, fixed_abs, tag = 'smem constant byte address 0x4 - core index']
  #allocation1 [shape = 'u32[144,128]{1,0:T(1,128)}', space=vmem, size = 0x12000, scoped, tag = 'internal scratch']
  %s0 = inlined_call_operand.vmem [shape: f32[2,64,32], index: 0, kind: input, shape index: {}]
  %s1 = inlined_call_operand.hbm [shape: f32[2,64,32], index: 1, kind: input, shape index: {}]
  %s2 = inlined_call_operand.vmem [shape: f32[32,32], index: 2, kind: input, shape index: {}]
  %s3 = inlined_call_operand.vmem [shape: f32[32,32], index: 3, kind: input, shape index: {}]
  %s4 = inlined_call_operand.hbm [shape: f32[1,32], index: 4, kind: input, shape index: {}]
  %s5 = inlined_call_operand.vmem [shape: f32[32,2], index: 5, kind: input, shape index: {}]
  %s6 = inlined_call_operand.hbm [shape: f32[2,32], index: 6, kind: input, shape index: {}]
  %s7 = inlined_call_operand.vmem [shape: f32[2,64,64], index: 7, kind: input, shape index: {}]
  %s8 = inlined_call_operand.vmem [shape: f32[2,64,32], index: 8, kind: output, shape index: {}]
  %s9 = sld [smem:[#allocation0]]
  $region77: #{decoder_forward.9} parent=0
    _
  %s11 = ssub.s32 1, %s9
  %s12 = scalar_select 0, %s11, %s9
  $region1: #{decoder_forward.9} parent=0
    #allocation2 [shape = 'u8[65536]{0}', space=vmem, size = 0x10000, scoped, tag = 'input window, operand 1']
    #allocation3 [shape = 's32[2]{0}', space=sflag, size = 0x8, scoped, tag = 'scoped memory for decoder_forward.9']
    #allocation4 [shape = 'u8[512]{0}', space=vmem, size = 0x400, scoped, tag = 'input window, operand 4, single buffered']
    #allocation5 [shape = 's32[1]{0}', space=sflag, size = 0x4, scoped, tag = 'scoped memory for decoder_forward.9']
    #allocation6 [shape = 'u8[1024]{0}', space=vmem, size = 0x400, scoped, tag = 'input window, operand 6, single buffered']
    %13 = vsyncpa [#allocation3], 0
    %s14 = scalar_lea.sflag [#allocation3], 1
    %15 = vsyncpa %s14, 0
    %16 = vsyncpa [#allocation5], 0
    loop: start=0, step=1, limit=4
    $region2: #{decoder_forward.9} parent=1 // loop_pre_header
      _
    $region3: #{decoder_forward.9} parent=1 // loop_header
      %s18 = sphi 0, %s22
      %p19 = scmp.ge.s32.totalorder %s18, 4
      %s28 = sphi 0, %s30
      %s31 = sphi 0, %s28
      %s32 = sphi 0, %s31
      %s48 = sphi 0, %s32
      %s54 = sphi 0, %s56
      %s57 = sphi 0, %s54
      %s58 = sphi 0, %s57
      %s74 = sphi 0, %s58
      %s78 = sphi 0, %s78
      %s80 = sphi 0, %s78
      %s81 = sphi 0, %s80
      %s95 = sphi 0, %s81
      %s99 = sphi 0, %s99
      %s101 = sphi 0, %s99
      %s102 = sphi 0, %s101
      %s116 = sphi 0, %s102
      %s120 = sphi 0, %s120
      %s122 = sphi 0, %s120
      %s123 = sphi 0, %s122
      %s137 = sphi 0, %s123
      %s141 = sphi 0, %s141
      %s143 = sphi 0, %s141
      %s144 = sphi 0, %s143
      %s158 = sphi 0, %s144
      %s162 = sphi 0, %s162
      %s164 = sphi 0, %s162
      %s165 = sphi 0, %s164
      %s179 = sphi 0, %s165
      %s183 = sphi 0, %s183
      %s185 = sphi 0, %s183
      %s186 = sphi 0, %s185
      %s200 = sphi 0, %s186
      %s206 = sphi 0, %s208
      %s209 = sphi 0, %s206
      %s210 = sphi 0, %s209
      %s226 = sphi 0, %s210
    $region4: #{decoder_forward.9} parent=1 // loop_header_branch
      %21 = sbr.rel (%p19) target = $region8
    $region5: #{decoder_forward.9} parent=1 // loop_body
      %s23 = ssub.s32 %s18, 1
      %s24 = ssub.s32 %s18, 2
      %s25 = sadd.s32 %s18, 1
      %s26 = ssub.s32 %s18, %s25
      %p27 = scmp.eq.s32.totalorder %s26, 0
      %s29 = sadd.s32 %s28, 1
      %s30 = scalar_select %p27, %s28, %s29
      %p33 = pneg %p27
      %p34 = scmp.eq.s32.totalorder %s18, 1
      %p35 = por %p33, %p34
      %p36 = scmp.ne.s32.totalorder %s28, %s31
      %p37 = scmp.eq.s32.totalorder %s18, 0
      %p38 = por %p36, %p37
      %p39 = scmp.ne.s32.totalorder %s28, %s31
      %p40 = scmp.eq.s32.totalorder %s23, 1
      %p41 = por %p39, %p40
      %p42 = scmp.ne.s32.totalorder %s31, %s32
      %p43 = scmp.eq.s32.totalorder %s23, 0
      %p44 = por %p42, %p43
      %p45 = scmp.ne.s32.totalorder %s31, %s32
      %p46 = scmp.eq.s32.totalorder %s24, 1
      %p47 = por %p45, %p46
      %p49 = scmp.ne.s32.totalorder %s32, %s48
      %p50 = scmp.eq.s32.totalorder %s24, 0
      %p51 = por %p49, %p50
      %s52 = ssub.s32 %s18, %s25
      %p53 = scmp.eq.s32.totalorder %s52, 0
      %s55 = sadd.s32 %s54, 1
      %s56 = scalar_select %p53, %s54, %s55
      %p59 = pneg %p53
      %p60 = scmp.eq.s32.totalorder %s18, 1
      %p61 = por %p59, %p60
      %p62 = scmp.ne.s32.totalorder %s54, %s57
      %p63 = scmp.eq.s32.totalorder %s18, 0
      %p64 = por %p62, %p63
      %p65 = scmp.ne.s32.totalorder %s54, %s57
      %p66 = scmp.eq.s32.totalorder %s23, 1
      %p67 = por %p65, %p66
      %p68 = scmp.ne.s32.totalorder %s57, %s58
      %p69 = scmp.eq.s32.totalorder %s23, 0
      %p70 = por %p68, %p69
      %p71 = scmp.ne.s32.totalorder %s57, %s58
      %p72 = scmp.eq.s32.totalorder %s24, 1
      %p73 = por %p71, %p72
      %p75 = scmp.ne.s32.totalorder %s58, %s74
      %p76 = scmp.eq.s32.totalorder %s24, 0
      %p77 = por %p75, %p76
      %s79 = sadd.s32 %s78, 1
      %p82 = scmp.eq.s32.totalorder %s18, 1
      %p83 = scmp.ne.s32.totalorder %s78, %s80
      %p84 = scmp.eq.s32.totalorder %s18, 0
      %p85 = por %p83, %p84
      %p86 = scmp.ne.s32.totalorder %s78, %s80
      %p87 = scmp.eq.s32.totalorder %s23, 1
      %p88 = por %p86, %p87
      %p89 = scmp.ne.s32.totalorder %s80, %s81
      %p90 = scmp.eq.s32.totalorder %s23, 0
      %p91 = por %p89, %p90
      %p92 = scmp.ne.s32.totalorder %s80, %s81
      %p93 = scmp.eq.s32.totalorder %s24, 1
      %p94 = por %p92, %p93
      %p96 = scmp.ne.s32.totalorder %s81, %s95
      %p97 = scmp.eq.s32.totalorder %s24, 0
      %p98 = por %p96, %p97
      %s100 = sadd.s32 %s99, 1
      %p103 = scmp.eq.s32.totalorder %s18, 1
      %p104 = scmp.ne.s32.totalorder %s99, %s101
      %p105 = scmp.eq.s32.totalorder %s18, 0
      %p106 = por %p104, %p105
      %p107 = scmp.ne.s32.totalorder %s99, %s101
      %p108 = scmp.eq.s32.totalorder %s23, 1
      %p109 = por %p107, %p108
      %p110 = scmp.ne.s32.totalorder %s101, %s102
      %p111 = scmp.eq.s32.totalorder %s23, 0
      %p112 = por %p110, %p111
      %p113 = scmp.ne.s32.totalorder %s101, %s102
      %p114 = scmp.eq.s32.totalorder %s24, 1
      %p115 = por %p113, %p114
      %p117 = scmp.ne.s32.totalorder %s102, %s116
      %p118 = scmp.eq.s32.totalorder %s24, 0
      %p119 = por %p117, %p118
      %s121 = sadd.s32 %s120, 1
      %p124 = scmp.eq.s32.totalorder %s18, 1
      %p125 = scmp.ne.s32.totalorder %s120, %s122
      %p126 = scmp.eq.s32.totalorder %s18, 0
      %p127 = por %p125, %p126
      %p128 = scmp.ne.s32.totalorder %s120, %s122
      %p129 = scmp.eq.s32.totalorder %s23, 1
      %p130 = por %p128, %p129
      %p131 = scmp.ne.s32.totalorder %s122, %s123
      %p132 = scmp.eq.s32.totalorder %s23, 0
      %p133 = por %p131, %p132
      %p134 = scmp.ne.s32.totalorder %s122, %s123
      %p135 = scmp.eq.s32.totalorder %s24, 1
      %p136 = por %p134, %p135
      %p138 = scmp.ne.s32.totalorder %s123, %s137
      %p139 = scmp.eq.s32.totalorder %s24, 0
      %p140 = por %p138, %p139
      %s142 = sadd.s32 %s141, 1
      %p145 = scmp.eq.s32.totalorder %s18, 1
      %p146 = scmp.ne.s32.totalorder %s141, %s143
      %p147 = scmp.eq.s32.totalorder %s18, 0
      %p148 = por %p146, %p147
      %p149 = scmp.ne.s32.totalorder %s141, %s143
      %p150 = scmp.eq.s32.totalorder %s23, 1
      %p151 = por %p149, %p150
      %p152 = scmp.ne.s32.totalorder %s143, %s144
      %p153 = scmp.eq.s32.totalorder %s23, 0
      %p154 = por %p152, %p153
      %p155 = scmp.ne.s32.totalorder %s143, %s144
      %p156 = scmp.eq.s32.totalorder %s24, 1
      %p157 = por %p155, %p156
      %p159 = scmp.ne.s32.totalorder %s144, %s158
      %p160 = scmp.eq.s32.totalorder %s24, 0
      %p161 = por %p159, %p160
      %s163 = sadd.s32 %s162, 1
      %p166 = scmp.eq.s32.totalorder %s18, 1
      %p167 = scmp.ne.s32.totalorder %s162, %s164
      %p168 = scmp.eq.s32.totalorder %s18, 0
      %p169 = por %p167, %p168
      %p170 = scmp.ne.s32.totalorder %s162, %s164
      %p171 = scmp.eq.s32.totalorder %s23, 1
      %p172 = por %p170, %p171
      %p173 = scmp.ne.s32.totalorder %s164, %s165
      %p174 = scmp.eq.s32.totalorder %s23, 0
      %p175 = por %p173, %p174
      %p176 = scmp.ne.s32.totalorder %s164, %s165
      %p177 = scmp.eq.s32.totalorder %s24, 1
      %p178 = por %p176, %p177
      %p180 = scmp.ne.s32.totalorder %s165, %s179
      %p181 = scmp.eq.s32.totalorder %s24, 0
      %p182 = por %p180, %p181
      %s184 = sadd.s32 %s183, 1
      %p187 = scmp.eq.s32.totalorder %s18, 1
      %p188 = scmp.ne.s32.totalorder %s183, %s185
      %p189 = scmp.eq.s32.totalorder %s18, 0
      %p190 = por %p188, %p189
      %p191 = scmp.ne.s32.totalorder %s183, %s185
      %p192 = scmp.eq.s32.totalorder %s23, 1
      %p193 = por %p191, %p192
      %p194 = scmp.ne.s32.totalorder %s185, %s186
      %p195 = scmp.eq.s32.totalorder %s23, 0
      %p196 = por %p194, %p195
      %p197 = scmp.ne.s32.totalorder %s185, %s186
      %p198 = scmp.eq.s32.totalorder %s24, 1
      %p199 = por %p197, %p198
      %p201 = scmp.ne.s32.totalorder %s186, %s200
      %p202 = scmp.eq.s32.totalorder %s24, 0
      %p203 = por %p201, %p202
      %s204 = ssub.s32 %s18, %s25
      %p205 = scmp.eq.s32.totalorder %s204, 0
      %s207 = sadd.s32 %s206, 1
      %s208 = scalar_select %p205, %s206, %s207
      %p211 = pneg %p205
      %p212 = scmp.eq.s32.totalorder %s18, 1
      %p213 = por %p211, %p212
      %p214 = scmp.ne.s32.totalorder %s206, %s209
      %p215 = scmp.eq.s32.totalorder %s18, 0
      %p216 = por %p214, %p215
      %p217 = scmp.ne.s32.totalorder %s206, %s209
      %p218 = scmp.eq.s32.totalorder %s23, 1
      %p219 = por %p217, %p218
      %p220 = scmp.ne.s32.totalorder %s209, %s210
      %p221 = scmp.eq.s32.totalorder %s23, 0
      %p222 = por %p220, %p221
      %p223 = scmp.ne.s32.totalorder %s209, %s210
      %p224 = scmp.eq.s32.totalorder %s24, 1
      %p225 = por %p223, %p224
      %p227 = scmp.ne.s32.totalorder %s210, %s226
      %p228 = scmp.eq.s32.totalorder %s24, 0
      %p229 = por %p227, %p228
      %p230 = scmp.le.s32.totalorder 1, %s18
      %p231 = scmp.lt.s32.totalorder %s18, 3
      %p232 = pnand %p230, %p231
      %p233 = pneg %p232
      // Predicated region
      $region9: #{decoder_forward.9} parent=5 // pred_check
        _
      $region10: #{decoder_forward.9} parent=5 // pred_check_branch
        %235 = sbr.rel (%p232) target = $region12
      $region11: #{decoder_forward.9} parent=5 // pred_region
        %s236 = ssub.s32 %s18, 1
        // Predicated region
        $region13: #{decoder_forward.9} parent=11 // pred_check
          %p237 = pneg %p91
        $region14: #{decoder_forward.9} parent=11 // pred_check_branch
          %239 = sbr.rel (%p237) target = $region16
        $region15: #{decoder_forward.9} parent=11 // pred_region
          _
        $region16: #{decoder_forward.9} parent=11 // pred_fallthru
          _
        // Predicated region
        $region17: #{decoder_forward.9} parent=11 // pred_check
          %p240 = pneg %p112
        $region18: #{decoder_forward.9} parent=11 // pred_check_branch
          %242 = sbr.rel (%p240) target = $region20
        $region19: #{decoder_forward.9} parent=11 // pred_region
          _
        $region20: #{decoder_forward.9} parent=11 // pred_fallthru
          _
        // Predicated region
        $region21: #{decoder_forward.9} parent=11 // pred_check
          %p243 = pneg %p133
        $region22: #{decoder_forward.9} parent=11 // pred_check_branch
          %245 = sbr.rel (%p243) target = $region24
        $region23: #{decoder_forward.9} parent=11 // pred_region
          %s247 = ssub.s32 16, 16
          %248 = vsyncadd [#allocation5], %s247
          %s250 = sshll.u32 [#allocation4], 4
          %s251 = int_to_ptr.vmem [resolvable:$true] %s250
          %253 = dma.hbm_to_vmem [thread:$0]  %s4, 16, %s251, [#allocation5]
        $region24: #{decoder_forward.9} parent=11 // pred_fallthru
          _
        // Predicated region
        $region25: #{decoder_forward.9} parent=11 // pred_check
          %p254 = pneg %p154
        $region26: #{decoder_forward.9} parent=11 // pred_check_branch
          %256 = sbr.rel (%p254) target = $region28
        $region27: #{decoder_forward.9} parent=11 // pred_region
          _
        $region28: #{decoder_forward.9} parent=11 // pred_fallthru
          _
        // Predicated region
        $region29: #{decoder_forward.9} parent=11 // pred_check
          %p257 = pneg %p175
        $region30: #{decoder_forward.9} parent=11 // pred_check_branch
          %259 = sbr.rel (%p257) target = $region32
        $region31: #{decoder_forward.9} parent=11 // pred_region
          %s261 = ssub.s32 32, 32
          %262 = vsyncadd [#allocation5], %s261
          %s264 = sshll.u32 [#allocation6], 4
          %s265 = int_to_ptr.vmem [resolvable:$true] %s264
          %267 = dma.hbm_to_vmem [thread:$0]  %s6, 32, %s265, [#allocation5]
        $region32: #{decoder_forward.9} parent=11 // pred_fallthru
          _
        // Predicated region
        $region33: #{decoder_forward.9} parent=11 // pred_check
          %p268 = pneg %p196
        $region34: #{decoder_forward.9} parent=11 // pred_check_branch
          %270 = sbr.rel (%p268) target = $region36
        $region35: #{decoder_forward.9} parent=11 // pred_region
          _
        $region36: #{decoder_forward.9} parent=11 // pred_fallthru
          _
      $region12: #{decoder_forward.9} parent=5 // pred_fallthru
        _
      %p271 = scmp.lt.s32.totalorder %s18, 2
      // Predicated region
      $region37: #{decoder_forward.9} parent=5 // pred_check
        %p272 = pneg %p271
      $region38: #{decoder_forward.9} parent=5 // pred_check_branch
        %274 = sbr.rel (%p272) target = $region40
      $region39: #{decoder_forward.9} parent=5 // pred_region
        // Predicated region
        $region41: #{decoder_forward.9} parent=39 // pred_check
          %p275 = pneg %p38
        $region42: #{decoder_forward.9} parent=39 // pred_check_branch
          %277 = sbr.rel (%p275) target = $region44
        $region43: #{decoder_forward.9} parent=39 // pred_region
          %p278 = scmp.lt.s32.totalorder %s18, 1
          %s279 = scalar_select %p278, %s18, 1
          %s280 = smul.addr %s279, 8
          %s281 = smul.addr %s280, 8
          %s282 = scalar_lea.vmem %s0, %s281
        $region44: #{decoder_forward.9} parent=39 // pred_fallthru
          _
        // Predicated region
        $region45: #{decoder_forward.9} parent=39 // pred_check
          %p283 = pneg %p64
        $region46: #{decoder_forward.9} parent=39 // pred_check_branch
          %285 = sbr.rel (%p283) target = $region48
        $region47: #{decoder_forward.9} parent=39 // pred_region
          %s286 = sand.u32 %s54, 1
          %s287 = scalar_lea.sflag [#allocation3], %s286
          %s288 = sand.u32 %s54, 1
          %s289 = smul.addr %s288, 64
          %s290 = scalar_lea.vmem [#allocation2], %s289
          %s292 = ssub.s32 1024, 1024
          %293 = vsyncadd %s287, %s292
          %s294 = smul.addr %s18, 8
          %s295 = smul.addr %s294, 128
          %s296 = scalar_lea.hbm %s1, %s295
          %s297 = sshll.u32 %s290, 4
          %s298 = int_to_ptr.vmem [resolvable:$true] %s297
          %303 = dma.hbm_to_vmem [thread:$0]  %s296, 1024, %s298, %s287, 128, 128, 8
        $region48: #{decoder_forward.9} parent=39 // pred_fallthru
          _
      $region40: #{decoder_forward.9} parent=5 // pred_fallthru
        _
      %p304 = scmp.le.s32.totalorder 1, %s18
      %p305 = scmp.lt.s32.totalorder %s18, 3
      %p306 = pnand %p304, %p305
      %p307 = pneg %p306
      // Predicated region
      $region49: #{decoder_forward.9} parent=5 // pred_check
        _
      $region50: #{decoder_forward.9} parent=5 // pred_check_branch
        %309 = sbr.rel (%p306) target = $region52
      $region51: #{decoder_forward.9} parent=5 // pred_region
        %s310 = ssub.s32 %s18, 1
        %s311 = sand.u32 %s57, 1
        %s312 = scalar_lea.sflag [#allocation3], %s311
        %s313 = sand.u32 %s57, 1
        %s314 = smul.addr %s313, 64
        %s315 = scalar_lea.vmem [#allocation2], %s314
        // Predicated region
        $region53: #{decoder_forward.9} parent=51 // pred_check
          %p316 = pneg %p70
        $region54: #{decoder_forward.9} parent=51 // pred_check_branch
          %318 = sbr.rel (%p316) target = $region56
        $region55: #{decoder_forward.9} parent=51 // pred_region
          %319 = dma.done %s312, 1024
        $region56: #{decoder_forward.9} parent=51 // pred_fallthru
          _
        // Predicated region
        $region57: #{decoder_forward.9} parent=51 // pred_check
          %p320 = pneg %p133
        $region58: #{decoder_forward.9} parent=51 // pred_check_branch
          %322 = sbr.rel (%p320) target = $region60
        $region59: #{decoder_forward.9} parent=51 // pred_region
          %323 = dma.done [#allocation5], 16
        $region60: #{decoder_forward.9} parent=51 // pred_fallthru
          _
        // Predicated region
        $region61: #{decoder_forward.9} parent=51 // pred_check
          %p324 = pneg %p175
        $region62: #{decoder_forward.9} parent=51 // pred_check_branch
          %326 = sbr.rel (%p324) target = $region64
        $region63: #{decoder_forward.9} parent=51 // pred_region
          %327 = dma.done [#allocation5], 32
        $region64: #{decoder_forward.9} parent=51 // pred_fallthru
          _
        %p328 = scmp.lt.s32.totalorder %s23, 1
        %s329 = scalar_select %p328, %s23, 1
        %s330 = smul.addr %s329, 8
        %s331 = smul.addr %s330, 8
        %s332 = scalar_lea.vmem %s0, %s331
        %p333 = pneg %p44
        %p334 = pneg %p41
        %s335 = sand.u32 %s57, 1
        %s336 = scalar_lea.sflag [#allocation3], %s335
        %s337 = sand.u32 %s57, 1
        %s338 = smul.addr %s337, 64
        %s339 = scalar_lea.vmem [#allocation2], %s338
        %p340 = pneg %p70
        %p341 = pneg %p67
        %p342 = pneg %p91
        %p343 = pneg %p88
        %p344 = pneg %p112
        %p345 = pneg %p109
        %p346 = pneg %p133
        %p347 = pneg %p130
        %p348 = pneg %p154
        %p349 = pneg %p151
        %p350 = pneg %p175
        %p351 = pneg %p172
        %p352 = pneg %p196
        %p353 = pneg %p193
        %p354 = pneg %p222
        %p355 = pneg %p219
        %p356 = scmp.lt.s32.totalorder %s23, 1
        %s357 = scalar_select %p356, %s23, 1
        %s358 = smul.addr %s357, 8
        %s359 = smul.addr %s358, 8
        %s360 = scalar_lea.vmem %s8, %s359
        %p361 = scmp.lt.s32.totalorder %s23, 1
        %s362 = scalar_select %p361, %s23, 1
        %s363 = smul.addr %s362, 8
        %s364 = smul.addr %s363, 8
        %s365 = scalar_lea.vmem %s0, %s364
        %p366 = scmp.lt.s32.totalorder %s23, 1
        %s367 = scalar_select %p366, %s23, 1
        %s368 = smul.addr %s367, 8
        %s369 = smul.addr %s368, 8
        %s370 = scalar_lea.vmem %s8, %s369
        %v371 = vld [vmem:[%s365] sm:$0xff]
        %v372 = vld [vmem:[%s365 + $0x8] sm:$0xff]
        %v373 = vld [vmem:[%s365 + $0x10] sm:$0xff]
        %v374 = vld [vmem:[%s365 + $0x18] sm:$0xff]
        %v375 = vld [vmem:[%s365 + $0x20] sm:$0xff]
        %v376 = vld [vmem:[%s365 + $0x28] sm:$0xff]
        %v377 = vld [vmem:[%s365 + $0x30] sm:$0xff]
        %v378 = vld [vmem:[%s365 + $0x38] sm:$0xff]
        %v379 = vld [vmem:[%s2] sm:$0xff]
        %v380 = vld [vmem:[%s2 + $0x8] sm:$0xff]
        %v381 = vld [vmem:[%s2 + $0x10] sm:$0xff]
        %v382 = vld [vmem:[%s2 + $0x18] sm:$0xff]
        %v383 = vld [vmem:[%s315] sm:$0xff]
        %v384 = vld [vmem:[%s315 + $0x8] sm:$0xff]
        %v385 = vld [vmem:[%s315 + $0x10] sm:$0xff]
        %v386 = vld [vmem:[%s315 + $0x18] sm:$0xff]
        %v387 = vld [vmem:[%s315 + $0x20] sm:$0xff]
        %v388 = vld [vmem:[%s315 + $0x28] sm:$0xff]
        %v389 = vld [vmem:[%s315 + $0x30] sm:$0xff]
        %v390 = vld [vmem:[%s315 + $0x38] sm:$0xff]
        %v391 = vld [vmem:[%s3] sm:$0xff]
        %v392 = vld [vmem:[%s3 + $0x8] sm:$0xff]
        %v393 = vld [vmem:[%s3 + $0x10] sm:$0xff]
        %v394 = vld [vmem:[%s3 + $0x18] sm:$0xff]
        %vm395 = vcmask 261120
        %v397 = vsel %vm395, %v383, 0
        %v400 = vsel %vm395, %v384, 0
        %v403 = vsel %vm395, %v385, 0
        %v406 = vsel %vm395, %v386, 0
        %v409 = vsel %vm395, %v387, 0
        %v412 = vsel %vm395, %v388, 0
        %v415 = vsel %vm395, %v389, 0
        %v418 = vsel %vm395, %v390, 0
        %420 = vmatprep.subr.mxu0 0.0
        %421 = vmatpush1.msra.mxu0 %v391
        %422 = vmatprep.subr.mxu0 0.0
        %423 = vmatpush1.msra.mxu0 %v392
        %424 = vmatprep.subr.mxu0 0.0
        %425 = vmatpush1.msra.mxu0 %v393
        %426 = vmatprep.subr.mxu0 0.0
        %427 = vmatpush1.msra.mxu0 %v394
        %428 = vmatprep.subr.mxu0 0.0
        %429 = vmatpush1.msra.mxu0 0.0
        %430 = vmatprep.subr.mxu0 0.0
        %431 = vmatpush1.msra.mxu0 0.0
        %432 = vmatprep.subr.mxu0 0.0
        %433 = vmatpush1.msra.mxu0 0.0
        %434 = vmatprep.subr.mxu0 0.0
        %435 = vmatpush1.msra.mxu0 0.0
        %436 = vmatprep.subr.mxu0 0.0
        %437 = vmatpush1.msra.mxu0 0.0
        %438 = vmatprep.subr.mxu0 0.0
        %439 = vmatpush1.msra.mxu0 0.0
        %440 = vmatprep.subr.mxu0 0.0
        %441 = vmatpush1.msra.mxu0 0.0
        %442 = vmatprep.subr.mxu0 0.0
        %443 = vmatpush1.msra.mxu0 0.0
        %444 = vmatprep.subr.mxu0 0.0
        %445 = vmatpush1.msra.mxu0 0.0
        %446 = vmatprep.subr.mxu0 0.0
        %447 = vmatpush1.msra.mxu0 0.0
        %448 = vmatprep.subr.mxu0 0.0
        %449 = vmatpush1.msra.mxu0 0.0
        %450 = vmatprep.subr.mxu0 0.0
        %451 = vmatpush1.msra.mxu0 0.0
        %452 = vmatprep.subr.mxu0 0.0
        %453 = vmatpush1.msra.mxu0 0.0
        %454 = vmatprep.subr.mxu0 0.0
        %455 = vmatpush1.msra.mxu0 0.0
        %456 = vmatprep.subr.mxu0 0.0
        %457 = vmatpush1.msra.mxu0 0.0
        %458 = vmatprep.subr.mxu0 0.0
        %459 = vmatpush1.msra.mxu0 0.0
        %460 = vmatprep.subr.mxu0 0.0
        %461 = vmatpush1.msra.mxu0 0.0
        %462 = vmatprep.subr.mxu0 0.0
        %463 = vmatpush1.msra.mxu0 0.0
        %464 = vmatprep.subr.mxu0 0.0
        %465 = vmatpush1.msra.mxu0 0.0
        %466 = vmatprep.subr.mxu0 0.0
        %467 = vmatpush1.msra.mxu0 0.0
        %468 = vmatprep.subr.mxu0 0.0
        %469 = vmatpush1.msra.mxu0 0.0
        %470 = vmatprep.subr.mxu0 0.0
        %471 = vmatpush1.msra.mxu0 0.0
        %472 = vmatprep.subr.mxu0 0.0
        %473 = vmatpush1.msra.mxu0 0.0
        %474 = vmatprep.subr.mxu0 0.0
        %475 = vmatpush1.msra.mxu0 0.0
        %476 = vmatprep.subr.mxu0 0.0
        %477 = vmatpush1.msra.mxu0 0.0
        %478 = vmatprep.subr.mxu0 0.0
        %479 = vmatpush1.msra.mxu0 0.0
        %480 = vmatprep.subr.mxu0 0.0
        %481 = vmatpush1.msra.mxu0 0.0
        %482 = vmatprep.subr.mxu0 0.0
        %483 = vmatpush1.msra.mxu0 0.0
        %484 = vmatprep.mubr.f32.mxu0 0.0
        %485 = vmatmul.mubr.f32.gmra.mrb[0].mxu0 %v397
        %v486 = vpop.f32.mrb[0].mxu0
        %v487 = vadd.f32 0.0, %v486
        %v488 = vpop.f32.mrb[0].mxu0
        %489 = vmatprep.mubr.f32.mxu0 0.0
        %490 = vmatmul.mubr.f32.gmra.mrb[0].mxu0 %v400
        %v491 = vpop.f32.mrb[0].mxu0
        %v492 = vadd.f32 0.0, %v491
        %v493 = vpop.f32.mrb[0].mxu0
        %494 = vmatprep.mubr.f32.mxu0 0.0
        %495 = vmatmul.mubr.f32.gmra.mrb[0].mxu0 %v403
        %v496 = vpop.f32.mrb[0].mxu0
        %v497 = vadd.f32 0.0, %v496
        %v498 = vpop.f32.mrb[0].mxu0
        %499 = vmatprep.mubr.f32.mxu0 0.0
        %500 = vmatmul.mubr.f32.gmra.mrb[0].mxu0 %v406
        %v501 = vpop.f32.mrb[0].mxu0
        %v502 = vadd.f32 0.0, %v501
        %v503 = vpop.f32.mrb[0].mxu0
        %504 = vmatprep.mubr.f32.mxu0 0.0
        %505 = vmatmul.mubr.f32.gmra.mrb[0].mxu0 %v409
        %v506 = vpop.f32.mrb[0].mxu0
        %v507 = vadd.f32 0.0, %v506
        %v508 = vpop.f32.mrb[0].mxu0
        %509 = vmatprep.mubr.f32.mxu0 0.0
        %510 = vmatmul.mubr.f32.gmra.mrb[0].mxu0 %v412
        %v511 = vpop.f32.mrb[0].mxu0
        %v512 = vadd.f32 0.0, %v511
        %v513 = vpop.f32.mrb[0].mxu0
        %514 = vmatprep.mubr.f32.mxu0 0.0
        %515 = vmatmul.mubr.f32.gmra.mrb[0].mxu0 %v415
        %v516 = vpop.f32.mrb[0].mxu0
        %v517 = vadd.f32 0.0, %v516
        %v518 = vpop.f32.mrb[0].mxu0
        %519 = vmatprep.mubr.f32.mxu0 0.0
        %520 = vmatmul.mubr.f32.gmra.mrb[0].mxu0 %v418
        %v521 = vpop.f32.mrb[0].mxu0
        %v522 = vadd.f32 0.0, %v521
        %v523 = vpop.f32.mrb[0].mxu0
        %524 = vdwg.mxu0
        %v526 = vsel %vm395, %v371, 0
        %v529 = vsel %vm395, %v372, 0
        %v532 = vsel %vm395, %v373, 0
        %v535 = vsel %vm395, %v374, 0
        %v538 = vsel %vm395, %v375, 0
        %v541 = vsel %vm395, %v376, 0
        %v544 = vsel %vm395, %v377, 0
        %v547 = vsel %vm395, %v378, 0
        %549 = vmatprep.subr.mxu0 0.0
        %550 = vmatpush1.msra.mxu0 %v379
        %551 = vmatprep.subr.mxu0 0.0
        %552 = vmatpush1.msra.mxu0 %v380
        %553 = vmatprep.subr.mxu0 0.0
        %554 = vmatpush1.msra.mxu0 %v381
        %555 = vmatprep.subr.mxu0 0.0
        %556 = vmatpush1.msra.mxu0 %v382
        %557 = vmatprep.subr.mxu0 0.0
        %558 = vmatpush1.msra.mxu0 0.0
        %559 = vmatprep.subr.mxu0 0.0
        %560 = vmatpush1.msra.mxu0 0.0
        %561 = vmatprep.subr.mxu0 0.0
        %562 = vmatpush1.msra.mxu0 0.0
        %563 = vmatprep.subr.mxu0 0.0
        %564 = vmatpush1.msra.mxu0 0.0
        %565 = vmatprep.subr.mxu0 0.0
        %566 = vmatpush1.msra.mxu0 0.0
        %567 = vmatprep.subr.mxu0 0.0
        %568 = vmatpush1.msra.mxu0 0.0
        %569 = vmatprep.subr.mxu0 0.0
        %570 = vmatpush1.msra.mxu0 0.0
        %571 = vmatprep.subr.mxu0 0.0
        %572 = vmatpush1.msra.mxu0 0.0
        %573 = vmatprep.subr.mxu0 0.0
        %574 = vmatpush1.msra.mxu0 0.0
        %575 = vmatprep.subr.mxu0 0.0
        %576 = vmatpush1.msra.mxu0 0.0
        %577 = vmatprep.subr.mxu0 0.0
        %578 = vmatpush1.msra.mxu0 0.0
        %579 = vmatprep.subr.mxu0 0.0
        %580 = vmatpush1.msra.mxu0 0.0
        %581 = vmatprep.subr.mxu0 0.0
        %582 = vmatpush1.msra.mxu0 0.0
        %583 = vmatprep.subr.mxu0 0.0
        %584 = vmatpush1.msra.mxu0 0.0
        %585 = vmatprep.subr.mxu0 0.0
        %586 = vmatpush1.msra.mxu0 0.0
        %587 = vmatprep.subr.mxu0 0.0
        %588 = vmatpush1.msra.mxu0 0.0
        %589 = vmatprep.subr.mxu0 0.0
        %590 = vmatpush1.msra.mxu0 0.0
        %591 = vmatprep.subr.mxu0 0.0
        %592 = vmatpush1.msra.mxu0 0.0
        %593 = vmatprep.subr.mxu0 0.0
        %594 = vmatpush1.msra.mxu0 0.0
        %595 = vmatprep.subr.mxu0 0.0
        %596 = vmatpush1.msra.mxu0 0.0
        %597 = vmatprep.subr.mxu0 0.0
        %598 = vmatpush1.msra.mxu0 0.0
        %599 = vmatprep.subr.mxu0 0.0
        %600 = vmatpush1.msra.mxu0 0.0
        %601 = vmatprep.subr.mxu0 0.0
        %602 = vmatpush1.msra.mxu0 0.0
        %603 = vmatprep.subr.mxu0 0.0
        %604 = vmatpush1.msra.mxu0 0.0
        %605 = vmatprep.subr.mxu0 0.0
        %606 = vmatpush1.msra.mxu0 0.0
        %607 = vmatprep.subr.mxu0 0.0
        %608 = vmatpush1.msra.mxu0 0.0
        %609 = vmatprep.subr.mxu0 0.0
        %610 = vmatpush1.msra.mxu0 0.0
        %611 = vmatprep.subr.mxu0 0.0
        %612 = vmatpush1.msra.mxu0 0.0
        %613 = vmatprep.mubr.f32.mxu0 0.0
        %614 = vmatmul.mubr.f32.gmra.mrb[0].mxu0 %v526
        %v615 = vpop.f32.mrb[0].mxu0
        %v616 = vadd.f32 %v487, %v615
        %v617 = vpop.f32.mrb[0].mxu0
        %618 = vmatprep.mubr.f32.mxu0 0.0
        %619 = vmatmul.mubr.f32.gmra.mrb[0].mxu0 %v529
        %v620 = vpop.f32.mrb[0].mxu0
        %v621 = vadd.f32 %v492, %v620
        %v622 = vpop.f32.mrb[0].mxu0
        %623 = vmatprep.mubr.f32.mxu0 0.0
        %624 = vmatmul.mubr.f32.gmra.mrb[0].mxu0 %v532
        %v625 = vpop.f32.mrb[0].mxu0
        %v626 = vadd.f32 %v497, %v625
        %v627 = vpop.f32.mrb[0].mxu0
        %628 = vmatprep.mubr.f32.mxu0 0.0
        %629 = vmatmul.mubr.f32.gmra.mrb[0].mxu0 %v535
        %v630 = vpop.f32.mrb[0].mxu0
        %v631 = vadd.f32 %v502, %v630
        %v632 = vpop.f32.mrb[0].mxu0
        %633 = vmatprep.mubr.f32.mxu0 0.0
        %634 = vmatmul.mubr.f32.gmra.mrb[0].mxu0 %v538
        %v635 = vpop.f32.mrb[0].mxu0
        %v636 = vadd.f32 %v507, %v635
        %v637 = vpop.f32.mrb[0].mxu0
        %638 = vmatprep.mubr.f32.mxu0 0.0
        %639 = vmatmul.mubr.f32.gmra.mrb[0].mxu0 %v541
        %v640 = vpop.f32.mrb[0].mxu0
        %v641 = vadd.f32 %v512, %v640
        %v642 = vpop.f32.mrb[0].mxu0
        %643 = vmatprep.mubr.f32.mxu0 0.0
        %644 = vmatmul.mubr.f32.gmra.mrb[0].mxu0 %v544
        %v645 = vpop.f32.mrb[0].mxu0
        %v646 = vadd.f32 %v517, %v645
        %v647 = vpop.f32.mrb[0].mxu0
        %648 = vmatprep.mubr.f32.mxu0 0.0
        %649 = vmatmul.mubr.f32.gmra.mrb[0].mxu0 %v547
        %v650 = vpop.f32.mrb[0].mxu0
        %v651 = vadd.f32 %v522, %v650
        %v652 = vpop.f32.mrb[0].mxu0
        %653 = vdwg.mxu0
        %v654 = vld [vmem:[#allocation4] sm:$0x1]
        %v656 = vlaneseq
        %v657 = vshrl.u32 %v656, 7
        %v658 = vsub.s32 0, %v657
        %v659 = vrot.slane %v654, %v658
        %v661 = vadd.f32 %v616, %v659
        %v662 = vadd.f32 %v621, %v659
        %v663 = vadd.f32 %v626, %v659
        %v664 = vadd.f32 %v631, %v659
        %v665 = vadd.f32 %v636, %v659
        %v666 = vadd.f32 %v641, %v659
        %v667 = vadd.f32 %v646, %v659
        %v668 = vadd.f32 %v651, %v659
        %v669 = vsel %vm395, %v661, 0.0
        %v670 = vsel %vm395, %v662, 0.0
        %v671 = vadd.f32 %v669, %v670
        %v672 = vsel %vm395, %v663, 0.0
        %v673 = vadd.f32 %v671, %v672
        %v674 = vsel %vm395, %v664, 0.0
        %v675 = vadd.f32 %v673, %v674
        %v676 = vsel %vm395, %v665, 0.0
        %v677 = vadd.f32 %v675, %v676
        %v678 = vsel %vm395, %v666, 0.0
        %v679 = vadd.f32 %v677, %v678
        %v680 = vsel %vm395, %v667, 0.0
        %v681 = vadd.f32 %v679, %v680
        %v682 = vsel %vm395, %v668, 0.0
        %v683 = vadd.f32 %v681, %v682
        %v684 = vrot.slane %v683, 4
        %v685 = vadd.f32 %v683, %v684
        %v686 = vrot.slane %v685, 2
        %v687 = vadd.f32 %v685, %v686
        %v688 = vrot.slane %v687, 1
        %v689 = vadd.f32 %v687, %v688
        %v690 = vrcp.pop 64.0
        %v691 = vmul.f32 %v689, %v690
        %v692 = vsel %vm395, %v661, -inf
        %v693 = vsel %vm395, %v662, -inf
        %v694 = vsel %vm395, %v663, -inf
        %v695 = vsel %vm395, %v664, -inf
        %v696 = vsel %vm395, %v665, -inf
        %v697 = vmax.f32 %v692, %v696
        %v698 = vsel %vm395, %v666, -inf
        %v699 = vmax.f32 %v693, %v698
        %v700 = vsel %vm395, %v667, -inf
        %v701 = vmax.f32 %v694, %v700
        %v702 = vsel %vm395, %v668, -inf
        %v703 = vmax.f32 %v695, %v702
        %v704 = vmax.f32 %v697, %v699
        %v705 = vmax.f32 %v701, %v703
        %v706 = vmax.f32 %v704, %v705
        %v707 = vrot.slane %v706, 4
        %v708 = vmax.f32 %v706, %v707
        %v709 = vrot.slane %v708, 2
        %v710 = vmax.f32 %v708, %v709
        %v711 = vrot.slane %v710, 1
        %v712 = vmax.f32 %v710, %v711
        %v713 = vld [vmem:[%s5] sm:$0xff]
        %v714 = vld [vmem:[%s5 + $0x8] sm:$0xff]
        %v715 = vld [vmem:[%s5 + $0x10] sm:$0xff]
        %v716 = vld [vmem:[%s5 + $0x18] sm:$0xff]
        %v718 = vsel %vm395, %v691, 0
        %720 = vmatprep.subr.mxu0 0.0
        %721 = vmatpush1.msra.mxu0 %v713
        %722 = vmatprep.subr.mxu0 0.0
        %723 = vmatpush1.msra.mxu0 %v714
        %724 = vmatprep.subr.mxu0 0.0
        %725 = vmatpush1.msra.mxu0 %v715
        %726 = vmatprep.subr.mxu0 0.0
        %727 = vmatpush1.msra.mxu0 %v716
        %728 = vmatprep.subr.mxu0 0.0
        %729 = vmatpush1.msra.mxu0 0.0
        %730 = vmatprep.subr.mxu0 0.0
        %731 = vmatpush1.msra.mxu0 0.0
        %732 = vmatprep.subr.mxu0 0.0
        %733 = vmatpush1.msra.mxu0 0.0
        %734 = vmatprep.subr.mxu0 0.0
        %735 = vmatpush1.msra.mxu0 0.0
        %736 = vmatprep.subr.mxu0 0.0
        %737 = vmatpush1.msra.mxu0 0.0
        %738 = vmatprep.subr.mxu0 0.0
        %739 = vmatpush1.msra.mxu0 0.0
        %740 = vmatprep.subr.mxu0 0.0
        %741 = vmatpush1.msra.mxu0 0.0
        %742 = vmatprep.subr.mxu0 0.0
        %743 = vmatpush1.msra.mxu0 0.0
        %744 = vmatprep.subr.mxu0 0.0
        %745 = vmatpush1.msra.mxu0 0.0
        %746 = vmatprep.subr.mxu0 0.0
        %747 = vmatpush1.msra.mxu0 0.0
        %748 = vmatprep.subr.mxu0 0.0
        %749 = vmatpush1.msra.mxu0 0.0
        %750 = vmatprep.subr.mxu0 0.0
        %751 = vmatpush1.msra.mxu0 0.0
        %752 = vmatprep.subr.mxu0 0.0
        %753 = vmatpush1.msra.mxu0 0.0
        %754 = vmatprep.subr.mxu0 0.0
        %755 = vmatpush1.msra.mxu0 0.0
        %756 = vmatprep.subr.mxu0 0.0
        %757 = vmatpush1.msra.mxu0 0.0
        %758 = vmatprep.subr.mxu0 0.0
        %759 = vmatpush1.msra.mxu0 0.0
        %760 = vmatprep.subr.mxu0 0.0
        %761 = vmatpush1.msra.mxu0 0.0
        %762 = vmatprep.subr.mxu0 0.0
        %763 = vmatpush1.msra.mxu0 0.0
        %764 = vmatprep.subr.mxu0 0.0
        %765 = vmatpush1.msra.mxu0 0.0
        %766 = vmatprep.subr.mxu0 0.0
        %767 = vmatpush1.msra.mxu0 0.0
        %768 = vmatprep.subr.mxu0 0.0
        %769 = vmatpush1.msra.mxu0 0.0
        %770 = vmatprep.subr.mxu0 0.0
        %771 = vmatpush1.msra.mxu0 0.0
        %772 = vmatprep.subr.mxu0 0.0
        %773 = vmatpush1.msra.mxu0 0.0
        %774 = vmatprep.subr.mxu0 0.0
        %775 = vmatpush1.msra.mxu0 0.0
        %776 = vmatprep.subr.mxu0 0.0
        %777 = vmatpush1.msra.mxu0 0.0
        %778 = vmatprep.subr.mxu0 0.0
        %779 = vmatpush1.msra.mxu0 0.0
        %780 = vmatprep.subr.mxu0 0.0
        %781 = vmatpush1.msra.mxu0 0.0
        %782 = vmatprep.subr.mxu0 0.0
        %783 = vmatpush1.msra.mxu0 0.0
        %784 = vmatprep.mubr.f32.mxu0 0.0
        %785 = vmatmul.mubr.f32.gmra.mrb[0].mxu0 %v718
        %v786 = vpop.f32.mrb[0].mxu0
        %v787 = vadd.f32 0.0, %v786
        %v788 = vpop.f32.mrb[0].mxu0
        %789 = vdwg.mxu0
        %v790 = vmax.f32 %v787, 0.0
        %v791 = vld [vmem:[#allocation6] sm:$0x3]
        %v793 = vsel %vm395, %v712, 0
        %795 = vmatprep.subr.mxu0 0.0
        %796 = vmatpush1.msra.mxu0 %v713
        %797 = vmatprep.subr.mxu0 0.0
        %798 = vmatpush1.msra.mxu0 %v714
        %799 = vmatprep.subr.mxu0 0.0
        %800 = vmatpush1.msra.mxu0 %v715
        %801 = vmatprep.subr.mxu0 0.0
        %802 = vmatpush1.msra.mxu0 %v716
        %803 = vmatprep.subr.mxu0 0.0
        %804 = vmatpush1.msra.mxu0 0.0
        %805 = vmatprep.subr.mxu0 0.0
        %806 = vmatpush1.msra.mxu0 0.0
        %807 = vmatprep.subr.mxu0 0.0
        %808 = vmatpush1.msra.mxu0 0.0
        %809 = vmatprep.subr.mxu0 0.0
        %810 = vmatpush1.msra.mxu0 0.0
        %811 = vmatprep.subr.mxu0 0.0
        %812 = vmatpush1.msra.mxu0 0.0
        %813 = vmatprep.subr.mxu0 0.0
        %814 = vmatpush1.msra.mxu0 0.0
        %815 = vmatprep.subr.mxu0 0.0
        %816 = vmatpush1.msra.mxu0 0.0
        %817 = vmatprep.subr.mxu0 0.0
        %818 = vmatpush1.msra.mxu0 0.0
        %819 = vmatprep.subr.mxu0 0.0
        %820 = vmatpush1.msra.mxu0 0.0
        %821 = vmatprep.subr.mxu0 0.0
        %822 = vmatpush1.msra.mxu0 0.0
        %823 = vmatprep.subr.mxu0 0.0
        %824 = vmatpush1.msra.mxu0 0.0
        %825 = vmatprep.subr.mxu0 0.0
        %826 = vmatpush1.msra.mxu0 0.0
        %827 = vmatprep.subr.mxu0 0.0
        %828 = vmatpush1.msra.mxu0 0.0
        %829 = vmatprep.subr.mxu0 0.0
        %830 = vmatpush1.msra.mxu0 0.0
        %831 = vmatprep.subr.mxu0 0.0
        %832 = vmatpush1.msra.mxu0 0.0
        %833 = vmatprep.subr.mxu0 0.0
        %834 = vmatpush1.msra.mxu0 0.0
        %835 = vmatprep.subr.mxu0 0.0
        %836 = vmatpush1.msra.mxu0 0.0
        %837 = vmatprep.subr.mxu0 0.0
        %838 = vmatpush1.msra.mxu0 0.0
        %839 = vmatprep.subr.mxu0 0.0
        %840 = vmatpush1.msra.mxu0 0.0
        %841 = vmatprep.subr.mxu0 0.0
        %842 = vmatpush1.msra.mxu0 0.0
        %843 = vmatprep.subr.mxu0 0.0
        %844 = vmatpush1.msra.mxu0 0.0
        %845 = vmatprep.subr.mxu0 0.0
        %846 = vmatpush1.msra.mxu0 0.0
        %847 = vmatprep.subr.mxu0 0.0
        %848 = vmatpush1.msra.mxu0 0.0
        %849 = vmatprep.subr.mxu0 0.0
        %850 = vmatpush1.msra.mxu0 0.0
        %851 = vmatprep.subr.mxu0 0.0
        %852 = vmatpush1.msra.mxu0 0.0
        %853 = vmatprep.subr.mxu0 0.0
        %854 = vmatpush1.msra.mxu0 0.0
        %855 = vmatprep.subr.mxu0 0.0
        %856 = vmatpush1.msra.mxu0 0.0
        %857 = vmatprep.subr.mxu0 0.0
        %858 = vmatpush1.msra.mxu0 0.0
        %859 = vmatprep.mubr.f32.mxu0 0.0
        %860 = vmatmul.mubr.f32.gmra.mrb[0].mxu0 %v793
        %v861 = vpop.f32.mrb[0].mxu0
        %v862 = vadd.f32 0.0, %v861
        %v863 = vpop.f32.mrb[0].mxu0
        %864 = vdwg.mxu0
        %v865 = vmax.f32 %v862, 0.0
        %vm866 = vcmask 15360
        %v868 = vsel %vm866, %v865, 0
        %vm870 = vcmask 1041408
        %v872 = vsel %vm870, %v791, 0
        %874 = vmatprep.subr.mxu0 0.0
        %875 = vmatpush1.msra.mxu0 %v872
        %876 = vmatprep.subr.mxu0 0.0
        %877 = vmatpush1.msra.mxu0 0.0
        %878 = vmatprep.subr.mxu0 0.0
        %879 = vmatpush1.msra.mxu0 0.0
        %880 = vmatprep.subr.mxu0 0.0
        %881 = vmatpush1.msra.mxu0 0.0
        %882 = vmatprep.subr.mxu0 0.0
        %883 = vmatpush1.msra.mxu0 0.0
        %884 = vmatprep.subr.mxu0 0.0
        %885 = vmatpush1.msra.mxu0 0.0
        %886 = vmatprep.subr.mxu0 0.0
        %887 = vmatpush1.msra.mxu0 0.0
        %888 = vmatprep.subr.mxu0 0.0
        %889 = vmatpush1.msra.mxu0 0.0
        %890 = vmatprep.subr.mxu0 0.0
        %891 = vmatpush1.msra.mxu0 0.0
        %892 = vmatprep.subr.mxu0 0.0
        %893 = vmatpush1.msra.mxu0 0.0
        %894 = vmatprep.subr.mxu0 0.0
        %895 = vmatpush1.msra.mxu0 0.0
        %896 = vmatprep.subr.mxu0 0.0
        %897 = vmatpush1.msra.mxu0 0.0
        %898 = vmatprep.subr.mxu0 0.0
        %899 = vmatpush1.msra.mxu0 0.0
        %900 = vmatprep.subr.mxu0 0.0
        %901 = vmatpush1.msra.mxu0 0.0
        %902 = vmatprep.subr.mxu0 0.0
        %903 = vmatpush1.msra.mxu0 0.0
        %904 = vmatprep.subr.mxu0 0.0
        %905 = vmatpush1.msra.mxu0 0.0
        %906 = vmatprep.subr.mxu0 0.0
        %907 = vmatpush1.msra.mxu0 0.0
        %908 = vmatprep.subr.mxu0 0.0
        %909 = vmatpush1.msra.mxu0 0.0
        %910 = vmatprep.subr.mxu0 0.0
        %911 = vmatpush1.msra.mxu0 0.0
        %912 = vmatprep.subr.mxu0 0.0
        %913 = vmatpush1.msra.mxu0 0.0
        %914 = vmatprep.subr.mxu0 0.0
        %915 = vmatpush1.msra.mxu0 0.0
        %916 = vmatprep.subr.mxu0 0.0
        %917 = vmatpush1.msra.mxu0 0.0
        %918 = vmatprep.subr.mxu0 0.0
        %919 = vmatpush1.msra.mxu0 0.0
        %920 = vmatprep.subr.mxu0 0.0
        %921 = vmatpush1.msra.mxu0 0.0
        %922 = vmatprep.subr.mxu0 0.0
        %923 = vmatpush1.msra.mxu0 0.0
        %924 = vmatprep.subr.mxu0 0.0
        %925 = vmatpush1.msra.mxu0 0.0
        %926 = vmatprep.subr.mxu0 0.0
        %927 = vmatpush1.msra.mxu0 0.0
        %928 = vmatprep.subr.mxu0 0.0
        %929 = vmatpush1.msra.mxu0 0.0
        %930 = vmatprep.subr.mxu0 0.0
        %931 = vmatpush1.msra.mxu0 0.0
        %932 = vmatprep.subr.mxu0 0.0
        %933 = vmatpush1.msra.mxu0 0.0
        %934 = vmatprep.subr.mxu0 0.0
        %935 = vmatpush1.msra.mxu0 0.0
        %936 = vmatprep.subr.mxu0 0.0
        %937 = vmatpush1.msra.mxu0 0.0
        %938 = vmatprep.mubr.f32.mxu0 0.0
        %939 = vmatmul.mubr.f32.gmra.mrb[0].mxu0 %v868
        %v940 = vpop.f32.mrb[0].mxu0
        %v941 = vadd.f32 0.0, %v940
        %v942 = vpop.f32.mrb[0].mxu0
        %943 = vdwg.mxu0
        %v945 = vsel %vm866, %v790, 0
        %947 = vmatprep.subr.mxu0 0.0
        %948 = vmatpush1.msra.mxu0 %v872
        %949 = vmatprep.subr.mxu0 0.0
        %950 = vmatpush1.msra.mxu0 0.0
        %951 = vmatprep.subr.mxu0 0.0
        %952 = vmatpush1.msra.mxu0 0.0
        %953 = vmatprep.subr.mxu0 0.0
        %954 = vmatpush1.msra.mxu0 0.0
        %955 = vmatprep.subr.mxu0 0.0
        %956 = vmatpush1.msra.mxu0 0.0
        %957 = vmatprep.subr.mxu0 0.0
        %958 = vmatpush1.msra.mxu0 0.0
        %959 = vmatprep.subr.mxu0 0.0
        %960 = vmatpush1.msra.mxu0 0.0
        %961 = vmatprep.subr.mxu0 0.0
        %962 = vmatpush1.msra.mxu0 0.0
        %963 = vmatprep.subr.mxu0 0.0
        %964 = vmatpush1.msra.mxu0 0.0
        %965 = vmatprep.subr.mxu0 0.0
        %966 = vmatpush1.msra.mxu0 0.0
        %967 = vmatprep.subr.mxu0 0.0
        %968 = vmatpush1.msra.mxu0 0.0
        %969 = vmatprep.subr.mxu0 0.0
        %970 = vmatpush1.msra.mxu0 0.0
        %971 = vmatprep.subr.mxu0 0.0
        %972 = vmatpush1.msra.mxu0 0.0
        %973 = vmatprep.subr.mxu0 0.0
        %974 = vmatpush1.msra.mxu0 0.0
        %975 = vmatprep.subr.mxu0 0.0
        %976 = vmatpush1.msra.mxu0 0.0
        %977 = vmatprep.subr.mxu0 0.0
        %978 = vmatpush1.msra.mxu0 0.0
        %979 = vmatprep.subr.mxu0 0.0
        %980 = vmatpush1.msra.mxu0 0.0
        %981 = vmatprep.subr.mxu0 0.0
        %982 = vmatpush1.msra.mxu0 0.0
        %983 = vmatprep.subr.mxu0 0.0
        %984 = vmatpush1.msra.mxu0 0.0
        %985 = vmatprep.subr.mxu0 0.0
        %986 = vmatpush1.msra.mxu0 0.0
        %987 = vmatprep.subr.mxu0 0.0
        %988 = vmatpush1.msra.mxu0 0.0
        %989 = vmatprep.subr.mxu0 0.0
        %990 = vmatpush1.msra.mxu0 0.0
        %991 = vmatprep.subr.mxu0 0.0
        %992 = vmatpush1.msra.mxu0 0.0
        %993 = vmatprep.subr.mxu0 0.0
        %994 = vmatpush1.msra.mxu0 0.0
        %995 = vmatprep.subr.mxu0 0.0
        %996 = vmatpush1.msra.mxu0 0.0
        %997 = vmatprep.subr.mxu0 0.0
        %998 = vmatpush1.msra.mxu0 0.0
        %999 = vmatprep.subr.mxu0 0.0
        %1000 = vmatpush1.msra.mxu0 0.0
        %1001 = vmatprep.subr.mxu0 0.0
        %1002 = vmatpush1.msra.mxu0 0.0
        %1003 = vmatprep.subr.mxu0 0.0
        %1004 = vmatpush1.msra.mxu0 0.0
        %1005 = vmatprep.subr.mxu0 0.0
        %1006 = vmatpush1.msra.mxu0 0.0
        %1007 = vmatprep.subr.mxu0 0.0
        %1008 = vmatpush1.msra.mxu0 0.0
        %1009 = vmatprep.subr.mxu0 0.0
        %1010 = vmatpush1.msra.mxu0 0.0
        %1011 = vmatprep.mubr.f32.mxu0 0.0
        %1012 = vmatmul.mubr.f32.gmra.mrb[0].mxu0 %v945
        %v1013 = vpop.f32.mrb[0].mxu0
        %v1014 = vadd.f32 %v941, %v1013
        %v1015 = vpop.f32.mrb[0].mxu0
        %1016 = vdwg.mxu0
        %v1017 = vxor.u32 %v1014, 2147483648
        %v1018 = vmul.f32 %v1017, 1.442695
        %v1019 = vpow.pop %v1018
        %v1020 = vadd.f32 %v1019, 1.0
        %v1021 = vrcp.pop %v1020
        %v1022 = vmul.f32 1.0, %v1021
        %v1023 = vlaneseq
        %v1024 = vshrl.u32 %v1023, 7
        %v1025 = vsub.s32 0, %v1024
        %v1026 = vrot.slane %v1022, %v1025
        %v1027 = vmul.f32 %v661, %v1026
        %v1028 = vmul.f32 %v662, %v1026
        %v1029 = vmul.f32 %v663, %v1026
        %v1030 = vmul.f32 %v664, %v1026
        %v1031 = vmul.f32 %v665, %v1026
        %v1032 = vmul.f32 %v666, %v1026
        %v1033 = vmul.f32 %v667, %v1026
        %v1034 = vmul.f32 %v668, %v1026
        %v1035 = vsel %vm395, %v1027, 0.0
        %1036 = vadd.xlane.f32.xlu0 %v1035
        %v1037 = vpop.xlane.xlu0 %1036
        %v1038 = vsel %vm395, %v1028, 0.0
        %1039 = vadd.xlane.f32.xlu0 %v1038
        %v1040 = vpop.xlane.xlu0 %1039
        %v1041 = vsel %vm395, %v1029, 0.0
        %1042 = vadd.xlane.f32.xlu0 %v1041
        %v1043 = vpop.xlane.xlu0 %1042
        %v1044 = vsel %vm395, %v1030, 0.0
        %1045 = vadd.xlane.f32.xlu0 %v1044
        %v1046 = vpop.xlane.xlu0 %1045
        %v1047 = vsel %vm395, %v1031, 0.0
        %1048 = vadd.xlane.f32.xlu0 %v1047
        %v1049 = vpop.xlane.xlu0 %1048
        %v1050 = vsel %vm395, %v1032, 0.0
        %1051 = vadd.xlane.f32.xlu0 %v1050
        %v1052 = vpop.xlane.xlu0 %1051
        %v1053 = vsel %vm395, %v1033, 0.0
        %1054 = vadd.xlane.f32.xlu0 %v1053
        %v1055 = vpop.xlane.xlu0 %1054
        %v1056 = vsel %vm395, %v1034, 0.0
        %1057 = vadd.xlane.f32.xlu0 %v1056
        %v1058 = vpop.xlane.xlu0 %1057
        %v1059 = vrcp.pop 32.0
        %v1060 = vmul.f32 %v1037, %v1059
        %v1061 = vmul.f32 %v1040, %v1059
        %v1062 = vmul.f32 %v1043, %v1059
        %v1063 = vmul.f32 %v1046, %v1059
        %v1064 = vmul.f32 %v1049, %v1059
        %v1065 = vmul.f32 %v1052, %v1059
        %v1066 = vmul.f32 %v1055, %v1059
        %v1067 = vmul.f32 %v1058, %v1059
        %v1068 = vsel %vm395, %v1027, -inf
        %1069 = vmax.xlane.f32.xlu0 %v1068
        %v1070 = vpop.xlane.xlu0 %1069
        %v1071 = vsel %vm395, %v1028, -inf
        %1072 = vmax.xlane.f32.xlu0 %v1071
        %v1073 = vpop.xlane.xlu0 %1072
        %v1074 = vsel %vm395, %v1029, -inf
        %1075 = vmax.xlane.f32.xlu0 %v1074
        %v1076 = vpop.xlane.xlu0 %1075
        %v1077 = vsel %vm395, %v1030, -inf
        %1078 = vmax.xlane.f32.xlu0 %v1077
        %v1079 = vpop.xlane.xlu0 %1078
        %v1080 = vsel %vm395, %v1031, -inf
        %1081 = vmax.xlane.f32.xlu0 %v1080
        %v1082 = vpop.xlane.xlu0 %1081
        %v1083 = vsel %vm395, %v1032, -inf
        %1084 = vmax.xlane.f32.xlu0 %v1083
        %v1085 = vpop.xlane.xlu0 %1084
        %v1086 = vsel %vm395, %v1033, -inf
        %1087 = vmax.xlane.f32.xlu0 %v1086
        %v1088 = vpop.xlane.xlu0 %1087
        %v1089 = vsel %vm395, %v1034, -inf
        %1090 = vmax.xlane.f32.xlu0 %v1089
        %v1091 = vpop.xlane.xlu0 %1090
        %v1092 = vld [vmem:[%s7] sm:$0xff]
        %v1093 = vld [vmem:[%s7 + $0x8] sm:$0xff]
        %v1094 = vld [vmem:[%s7 + $0x10] sm:$0xff]
        %v1095 = vld [vmem:[%s7 + $0x18] sm:$0xff]
        %v1096 = vld [vmem:[%s7 + $0x20] sm:$0xff]
        %v1097 = vld [vmem:[%s7 + $0x28] sm:$0xff]
        %v1098 = vld [vmem:[%s7 + $0x30] sm:$0xff]
        %v1099 = vld [vmem:[%s7 + $0x38] sm:$0xff]
        %s1100 = scalar_lea.vmem %s7, 64
        %v1101 = vld [vmem:[%s1100] sm:$0xff]
        %v1102 = vld [vmem:[%s1100 + $0x8] sm:$0xff]
        %v1103 = vld [vmem:[%s1100 + $0x10] sm:$0xff]
        %v1104 = vld [vmem:[%s1100 + $0x18] sm:$0xff]
        %v1105 = vld [vmem:[%s1100 + $0x20] sm:$0xff]
        %v1106 = vld [vmem:[%s1100 + $0x28] sm:$0xff]
        %v1107 = vld [vmem:[%s1100 + $0x30] sm:$0xff]
        %v1108 = vld [vmem:[%s1100 + $0x38] sm:$0xff]
        %vm1109 = vcmask 523264
        %v1111 = vsel %vm1109, %v1101, 0
        %v1114 = vsel %vm1109, %v1102, 0
        %v1117 = vsel %vm1109, %v1103, 0
        %v1120 = vsel %vm1109, %v1104, 0
        %v1123 = vsel %vm1109, %v1105, 0
        %v1126 = vsel %vm1109, %v1106, 0
        %v1129 = vsel %vm1109, %v1107, 0
        %v1132 = vsel %vm1109, %v1108, 0
        %1134 = vmatprep.subr.mxu0 0.0
        %1135 = vmatpush1.msra.mxu0 %v1070
        %1136 = vmatprep.subr.mxu0 0.0
        %1137 = vmatpush1.msra.mxu0 %v1073
        %1138 = vmatprep.subr.mxu0 0.0
        %1139 = vmatpush1.msra.mxu0 %v1076
        %1140 = vmatprep.subr.mxu0 0.0
        %1141 = vmatpush1.msra.mxu0 %v1079
        %1142 = vmatprep.subr.mxu0 0.0
        %1143 = vmatpush1.msra.mxu0 %v1082
        %1144 = vmatprep.subr.mxu0 0.0
        %1145 = vmatpush1.msra.mxu0 %v1085
        %1146 = vmatprep.subr.mxu0 0.0
        %1147 = vmatpush1.msra.mxu0 %v1088
        %1148 = vmatprep.subr.mxu0 0.0
        %1149 = vmatpush1.msra.mxu0 %v1091
        %1150 = vmatprep.subr.mxu0 0.0
        %1151 = vmatpush1.msra.mxu0 0.0
        %1152 = vmatprep.subr.mxu0 0.0
        %1153 = vmatpush1.msra.mxu0 0.0
        %1154 = vmatprep.subr.mxu0 0.0
        %1155 = vmatpush1.msra.mxu0 0.0
        %1156 = vmatprep.subr.mxu0 0.0
        %1157 = vmatpush1.msra.mxu0 0.0
        %1158 = vmatprep.subr.mxu0 0.0
        %1159 = vmatpush1.msra.mxu0 0.0
        %1160 = vmatprep.subr.mxu0 0.0
        %1161 = vmatpush1.msra.mxu0 0.0
        %1162 = vmatprep.subr.mxu0 0.0
        %1163 = vmatpush1.msra.mxu0 0.0
        %1164 = vmatprep.subr.mxu0 0.0
        %1165 = vmatpush1.msra.mxu0 0.0
        %1166 = vmatprep.subr.mxu0 0.0
        %1167 = vmatpush1.msra.mxu0 0.0
        %1168 = vmatprep.subr.mxu0 0.0
        %1169 = vmatpush1.msra.mxu0 0.0
        %1170 = vmatprep.subr.mxu0 0.0
        %1171 = vmatpush1.msra.mxu0 0.0
        %1172 = vmatprep.subr.mxu0 0.0
        %1173 = vmatpush1.msra.mxu0 0.0
        %1174 = vmatprep.subr.mxu0 0.0
        %1175 = vmatpush1.msra.mxu0 0.0
        %1176 = vmatprep.subr.mxu0 0.0
        %1177 = vmatpush1.msra.mxu0 0.0
        %1178 = vmatprep.subr.mxu0 0.0
        %1179 = vmatpush1.msra.mxu0 0.0
        %1180 = vmatprep.subr.mxu0 0.0
        %1181 = vmatpush1.msra.mxu0 0.0
        %1182 = vmatprep.subr.mxu0 0.0
        %1183 = vmatpush1.msra.mxu0 0.0
        %1184 = vmatprep.subr.mxu0 0.0
        %1185 = vmatpush1.msra.mxu0 0.0
        %1186 = vmatprep.subr.mxu0 0.0
        %1187 = vmatpush1.msra.mxu0 0.0
        %1188 = vmatprep.subr.mxu0 0.0
        %1189 = vmatpush1.msra.mxu0 0.0
        %1190 = vmatprep.subr.mxu0 0.0
        %1191 = vmatpush1.msra.mxu0 0.0
        %1192 = vmatprep.subr.mxu0 0.0
        %1193 = vmatpush1.msra.mxu0 0.0
        %1194 = vmatprep.subr.mxu0 0.0
        %1195 = vmatpush1.msra.mxu0 0.0
        %1196 = vmatprep.subr.mxu0 0.0
        %1197 = vmatpush1.msra.mxu0 0.0
        %1198 = vmatprep.mubr.f32.mxu0 0.0
        %1199 = vmatmul.mubr.f32.gmra.mrb[0].mxu0 %v1111
        %v1200 = vpop.f32.mrb[0].mxu0
        %v1201 = vadd.f32 0.0, %v1200
        %v1202 = vpop.f32.mrb[0].mxu0
        %1203 = vmatprep.mubr.f32.mxu0 0.0
        %1204 = vmatmul.mubr.f32.gmra.mrb[0].mxu0 %v1114
        %v1205 = vpop.f32.mrb[0].mxu0
        %v1206 = vadd.f32 0.0, %v1205
        %v1207 = vpop.f32.mrb[0].mxu0
        %1208 = vmatprep.mubr.f32.mxu0 0.0
        %1209 = vmatmul.mubr.f32.gmra.mrb[0].mxu0 %v1117
        %v1210 = vpop.f32.mrb[0].mxu0
        %v1211 = vadd.f32 0.0, %v1210
        %v1212 = vpop.f32.mrb[0].mxu0
        %1213 = vmatprep.mubr.f32.mxu0 0.0
        %1214 = vmatmul.mubr.f32.gmra.mrb[0].mxu0 %v1120
        %v1215 = vpop.f32.mrb[0].mxu0
        %v1216 = vadd.f32 0.0, %v1215
        %v1217 = vpop.f32.mrb[0].mxu0
        %1218 = vmatprep.mubr.f32.mxu0 0.0
        %1219 = vmatmul.mubr.f32.gmra.mrb[0].mxu0 %v1123
        %v1220 = vpop.f32.mrb[0].mxu0
        %v1221 = vadd.f32 0.0, %v1220
        %v1222 = vpop.f32.mrb[0].mxu0
        %1223 = vmatprep.mubr.f32.mxu0 0.0
        %1224 = vmatmul.mubr.f32.gmra.mrb[0].mxu0 %v1126
        %v1225 = vpop.f32.mrb[0].mxu0
        %v1226 = vadd.f32 0.0, %v1225
        %v1227 = vpop.f32.mrb[0].mxu0
        %1228 = vmatprep.mubr.f32.mxu0 0.0
        %1229 = vmatmul.mubr.f32.gmra.mrb[0].mxu0 %v1129
        %v1230 = vpop.f32.mrb[0].mxu0
        %v1231 = vadd.f32 0.0, %v1230
        %v1232 = vpop.f32.mrb[0].mxu0
        %1233 = vmatprep.mubr.f32.mxu0 0.0
        %1234 = vmatmul.mubr.f32.gmra.mrb[0].mxu0 %v1132
        %v1235 = vpop.f32.mrb[0].mxu0
        %v1236 = vadd.f32 0.0, %v1235
        %v1237 = vpop.f32.mrb[0].mxu0
        %1238 = vdwg.mxu0
        %v1240 = vsel %vm1109, %v1092, 0
        %v1243 = vsel %vm1109, %v1093, 0
        %v1246 = vsel %vm1109, %v1094, 0
        %v1249 = vsel %vm1109, %v1095, 0
        %v1252 = vsel %vm1109, %v1096, 0
        %v1255 = vsel %vm1109, %v1097, 0
        %v1258 = vsel %vm1109, %v1098, 0
        %v1261 = vsel %vm1109, %v1099, 0
        %1263 = vmatprep.subr.mxu0 0.0
        %1264 = vmatpush1.msra.mxu0 %v1060
        %1265 = vmatprep.subr.mxu0 0.0
        %1266 = vmatpush1.msra.mxu0 %v1061
        %1267 = vmatprep.subr.mxu0 0.0
        %1268 = vmatpush1.msra.mxu0 %v1062
        %1269 = vmatprep.subr.mxu0 0.0
        %1270 = vmatpush1.msra.mxu0 %v1063
        %1271 = vmatprep.subr.mxu0 0.0
        %1272 = vmatpush1.msra.mxu0 %v1064
        %1273 = vmatprep.subr.mxu0 0.0
        %1274 = vmatpush1.msra.mxu0 %v1065
        %1275 = vmatprep.subr.mxu0 0.0
        %1276 = vmatpush1.msra.mxu0 %v1066
        %1277 = vmatprep.subr.mxu0 0.0
        %1278 = vmatpush1.msra.mxu0 %v1067
        %1279 = vmatprep.subr.mxu0 0.0
        %1280 = vmatpush1.msra.mxu0 0.0
        %1281 = vmatprep.subr.mxu0 0.0
        %1282 = vmatpush1.msra.mxu0 0.0
        %1283 = vmatprep.subr.mxu0 0.0
        %1284 = vmatpush1.msra.mxu0 0.0
        %1285 = vmatprep.subr.mxu0 0.0
        %1286 = vmatpush1.msra.mxu0 0.0
        %1287 = vmatprep.subr.mxu0 0.0
        %1288 = vmatpush1.msra.mxu0 0.0
        %1289 = vmatprep.subr.mxu0 0.0
        %1290 = vmatpush1.msra.mxu0 0.0
        %1291 = vmatprep.subr.mxu0 0.0
        %1292 = vmatpush1.msra.mxu0 0.0
        %1293 = vmatprep.subr.mxu0 0.0
        %1294 = vmatpush1.msra.mxu0 0.0
        %1295 = vmatprep.subr.mxu0 0.0
        %1296 = vmatpush1.msra.mxu0 0.0
        %1297 = vmatprep.subr.mxu0 0.0
        %1298 = vmatpush1.msra.mxu0 0.0
        %1299 = vmatprep.subr.mxu0 0.0
        %1300 = vmatpush1.msra.mxu0 0.0
        %1301 = vmatprep.subr.mxu0 0.0
        %1302 = vmatpush1.msra.mxu0 0.0
        %1303 = vmatprep.subr.mxu0 0.0
        %1304 = vmatpush1.msra.mxu0 0.0
        %1305 = vmatprep.subr.mxu0 0.0
        %1306 = vmatpush1.msra.mxu0 0.0
        %1307 = vmatprep.subr.mxu0 0.0
        %1308 = vmatpush1.msra.mxu0 0.0
        %1309 = vmatprep.subr.mxu0 0.0
        %1310 = vmatpush1.msra.mxu0 0.0
        %1311 = vmatprep.subr.mxu0 0.0
        %1312 = vmatpush1.msra.mxu0 0.0
        %1313 = vmatprep.subr.mxu0 0.0
        %1314 = vmatpush1.msra.mxu0 0.0
        %1315 = vmatprep.subr.mxu0 0.0
        %1316 = vmatpush1.msra.mxu0 0.0
        %1317 = vmatprep.subr.mxu0 0.0
        %1318 = vmatpush1.msra.mxu0 0.0
        %1319 = vmatprep.subr.mxu0 0.0
        %1320 = vmatpush1.msra.mxu0 0.0
        %1321 = vmatprep.subr.mxu0 0.0
        %1322 = vmatpush1.msra.mxu0 0.0
        %1323 = vmatprep.subr.mxu0 0.0
        %1324 = vmatpush1.msra.mxu0 0.0
        %1325 = vmatprep.subr.mxu0 0.0
        %1326 = vmatpush1.msra.mxu0 0.0
        %1327 = vmatprep.mubr.f32.mxu0 0.0
        %1328 = vmatmul.mubr.f32.gmra.mrb[0].mxu0 %v1240
        %v1329 = vpop.f32.mrb[0].mxu0
        %v1330 = vadd.f32 %v1201, %v1329
        %v1331 = vpop.f32.mrb[0].mxu0
        %1332 = vmatprep.mubr.f32.mxu0 0.0
        %1333 = vmatmul.mubr.f32.gmra.mrb[0].mxu0 %v1243
        %v1334 = vpop.f32.mrb[0].mxu0
        %v1335 = vadd.f32 %v1206, %v1334
        %v1336 = vpop.f32.mrb[0].mxu0
        %1337 = vmatprep.mubr.f32.mxu0 0.0
        %1338 = vmatmul.mubr.f32.gmra.mrb[0].mxu0 %v1246
        %v1339 = vpop.f32.mrb[0].mxu0
        %v1340 = vadd.f32 %v1211, %v1339
        %v1341 = vpop.f32.mrb[0].mxu0
        %1342 = vmatprep.mubr.f32.mxu0 0.0
        %1343 = vmatmul.mubr.f32.gmra.mrb[0].mxu0 %v1249
        %v1344 = vpop.f32.mrb[0].mxu0
        %v1345 = vadd.f32 %v1216, %v1344
        %v1346 = vpop.f32.mrb[0].mxu0
        %1347 = vmatprep.mubr.f32.mxu0 0.0
        %1348 = vmatmul.mubr.f32.gmra.mrb[0].mxu0 %v1252
        %v1349 = vpop.f32.mrb[0].mxu0
        %v1350 = vadd.f32 %v1221, %v1349
        %v1351 = vpop.f32.mrb[0].mxu0
        %1352 = vmatprep.mubr.f32.mxu0 0.0
        %1353 = vmatmul.mubr.f32.gmra.mrb[0].mxu0 %v1255
        %v1354 = vpop.f32.mrb[0].mxu0
        %v1355 = vadd.f32 %v1226, %v1354
        %v1356 = vpop.f32.mrb[0].mxu0
        %1357 = vmatprep.mubr.f32.mxu0 0.0
        %1358 = vmatmul.mubr.f32.gmra.mrb[0].mxu0 %v1258
        %v1359 = vpop.f32.mrb[0].mxu0
        %v1360 = vadd.f32 %v1231, %v1359
        %v1361 = vpop.f32.mrb[0].mxu0
        %1362 = vmatprep.mubr.f32.mxu0 0.0
        %1363 = vmatmul.mubr.f32.gmra.mrb[0].mxu0 %v1261
        %v1364 = vpop.f32.mrb[0].mxu0
        %v1365 = vadd.f32 %v1236, %v1364
        %v1366 = vpop.f32.mrb[0].mxu0
        %1367 = vdwg.mxu0
        %v1368 = vxor.u32 %v1330, 2147483648
        %v1369 = vxor.u32 %v1335, 2147483648
        %v1370 = vxor.u32 %v1340, 2147483648
        %v1371 = vxor.u32 %v1345, 2147483648
        %v1372 = vxor.u32 %v1350, 2147483648
        %v1373 = vxor.u32 %v1355, 2147483648
        %v1374 = vxor.u32 %v1360, 2147483648
        %v1375 = vxor.u32 %v1365, 2147483648
        %v1376 = vmul.f32 %v1368, 1.442695
        %v1377 = vpow.pop %v1376
        %v1378 = vmul.f32 %v1369, 1.442695
        %v1379 = vpow.pop %v1378
        %v1380 = vmul.f32 %v1370, 1.442695
        %v1381 = vpow.pop %v1380
        %v1382 = vmul.f32 %v1371, 1.442695
        %v1383 = vpow.pop %v1382
        %v1384 = vmul.f32 %v1372, 1.442695
        %v1385 = vpow.pop %v1384
        %v1386 = vmul.f32 %v1373, 1.442695
        %v1387 = vpow.pop %v1386
        %v1388 = vmul.f32 %v1374, 1.442695
        %v1389 = vpow.pop %v1388
        %v1390 = vmul.f32 %v1375, 1.442695
        %v1391 = vpow.pop %v1390
        %v1392 = vadd.f32 %v1377, 1.0
        %v1393 = vadd.f32 %v1379, 1.0
        %v1394 = vadd.f32 %v1381, 1.0
        %v1395 = vadd.f32 %v1383, 1.0
        %v1396 = vadd.f32 %v1385, 1.0
        %v1397 = vadd.f32 %v1387, 1.0
        %v1398 = vadd.f32 %v1389, 1.0
        %v1399 = vadd.f32 %v1391, 1.0
        %v1400 = vrcp.pop %v1392
        %v1401 = vmul.f32 1.0, %v1400
        %v1402 = vrcp.pop %v1393
        %v1403 = vmul.f32 1.0, %v1402
        %v1404 = vrcp.pop %v1394
        %v1405 = vmul.f32 1.0, %v1404
        %v1406 = vrcp.pop %v1395
        %v1407 = vmul.f32 1.0, %v1406
        %v1408 = vrcp.pop %v1396
        %v1409 = vmul.f32 1.0, %v1408
        %v1410 = vrcp.pop %v1397
        %v1411 = vmul.f32 1.0, %v1410
        %v1412 = vrcp.pop %v1398
        %v1413 = vmul.f32 1.0, %v1412
        %v1414 = vrcp.pop %v1399
        %v1415 = vmul.f32 1.0, %v1414
        %1417 = vset.pattern.permute.xlu0 0
        %1418 = vperm.xlu0 %1417, %v1401
        %v1419 = vpop.permute.xlu0 %1418
        %1422 = vset.pattern.permute.xlu0 0
        %1423 = vperm.xlu0 %1422, %v1403
        %v1424 = vpop.permute.xlu0 %1423
        %1427 = vset.pattern.permute.xlu0 0
        %1428 = vperm.xlu0 %1427, %v1405
        %v1429 = vpop.permute.xlu0 %1428
        %1432 = vset.pattern.permute.xlu0 0
        %1433 = vperm.xlu0 %1432, %v1407
        %v1434 = vpop.permute.xlu0 %1433
        %1437 = vset.pattern.permute.xlu0 0
        %1438 = vperm.xlu0 %1437, %v1409
        %v1439 = vpop.permute.xlu0 %1438
        %1442 = vset.pattern.permute.xlu0 0
        %1443 = vperm.xlu0 %1442, %v1411
        %v1444 = vpop.permute.xlu0 %1443
        %1447 = vset.pattern.permute.xlu0 0
        %1448 = vperm.xlu0 %1447, %v1413
        %v1449 = vpop.permute.xlu0 %1448
        %1452 = vset.pattern.permute.xlu0 0
        %1453 = vperm.xlu0 %1452, %v1415
        %v1454 = vpop.permute.xlu0 %1453
        %v1456 = vmul.f32 %v1027, %v1419
        %v1457 = vmul.f32 %v1028, %v1424
        %v1458 = vmul.f32 %v1029, %v1429
        %v1459 = vmul.f32 %v1030, %v1434
        %v1460 = vmul.f32 %v1031, %v1439
        %v1461 = vmul.f32 %v1032, %v1444
        %v1462 = vmul.f32 %v1033, %v1449
        %v1463 = vmul.f32 %v1034, %v1454
        %1464 = vst.msk [vmem:[%s370] sm:$0xff] %vm395, %v1456
        %1465 = vst.msk [vmem:[%s370 + $0x8] sm:$0xff] %vm395, %v1457
        %1466 = vst.msk [vmem:[%s370 + $0x10] sm:$0xff] %vm395, %v1458
        %1467 = vst.msk [vmem:[%s370 + $0x18] sm:$0xff] %vm395, %v1459
        %1468 = vst.msk [vmem:[%s370 + $0x20] sm:$0xff] %vm395, %v1460
        %1469 = vst.msk [vmem:[%s370 + $0x28] sm:$0xff] %vm395, %v1461
        %1470 = vst.msk [vmem:[%s370 + $0x30] sm:$0xff] %vm395, %v1462
        %1471 = vst.msk [vmem:[%s370 + $0x38] sm:$0xff] %vm395, %v1463
        %p1472 = scmp.lt.s32.totalorder %s23, 1
        %s1473 = scalar_select %p1472, %s23, 1
        %s1474 = smul.addr %s1473, 8
        %s1475 = smul.addr %s1474, 8
        %s1476 = scalar_lea.vmem %s8, %s1475
        // Predicated region
        $region65: #{decoder_forward.9} parent=51 // pred_check
          %p1477 = pneg %p219
        $region66: #{decoder_forward.9} parent=51 // pred_check_branch
          %1479 = sbr.rel (%p1477) target = $region68
        $region67: #{decoder_forward.9} parent=51 // pred_region
          _
        $region68: #{decoder_forward.9} parent=51 // pred_fallthru
          _
      $region52: #{decoder_forward.9} parent=5 // pred_fallthru
        _
      %p1480 = scmp.le.s32.totalorder 2, %s18
      // Predicated region
      $region69: #{decoder_forward.9} parent=5 // pred_check
        %p1481 = pneg %p1480
      $region70: #{decoder_forward.9} parent=5 // pred_check_branch
        %1483 = sbr.rel (%p1481) target = $region72
      $region71: #{decoder_forward.9} parent=5 // pred_region
        %s1484 = ssub.s32 %s18, 2
        // Predicated region
        $region73: #{decoder_forward.9} parent=71 // pred_check
          %p1485 = pneg %p225
        $region74: #{decoder_forward.9} parent=71 // pred_check_branch
          %1487 = sbr.rel (%p1485) target = $region76
        $region75: #{decoder_forward.9} parent=71 // pred_region
          %p1488 = scmp.lt.s32.totalorder %s24, 1
          %s1489 = scalar_select %p1488, %s24, 1
          %s1490 = smul.addr %s1489, 8
          %s1491 = smul.addr %s1490, 8
          %s1492 = scalar_lea.vmem %s8, %s1491
        $region76: #{decoder_forward.9} parent=71 // pred_fallthru
          _
      $region72: #{decoder_forward.9} parent=5 // pred_fallthru
        _
    $region6: #{decoder_forward.9} parent=1 // loop_footer
      %s22 = sadd.s32 1, %s18
    $region7: #{decoder_forward.9} parent=1 // loop_footer_branch
      %17 = sbr.rel target = $region3
    $region8: #{decoder_forward.9} parent=1 // loop_exit
      _
    %1493 = vsyncpa [#allocation3], 1
    %s1494 = scalar_lea.sflag [#allocation3], 1
    %1495 = vsyncpa %s1494, 1
    %1496 = vsyncpa [#allocation5], 1

// kernel: decoder_forward.10
$region0: #{decoder_forward.10}
  #allocation0 [shape = 'u32[]', space=smem, size = 0x4, offset = 0x4, fixed_abs, tag = 'smem constant byte address 0x4 - core index']
  #allocation1 [shape = 'u32[144,128]{1,0:T(1,128)}', space=vmem, size = 0x12000, scoped, tag = 'internal scratch']
  %s0 = inlined_call_operand.vmem [shape: f32[128,32], index: 0, kind: input, shape index: {}]
  %s1 = inlined_call_operand.hbm [shape: f32[32,64], index: 1, kind: input, shape index: {}]
  %s2 = inlined_call_operand.vmem [shape: f32[64,64], index: 2, kind: input, shape index: {}]
  %s3 = inlined_call_operand.vmem [shape: f32[1,64], index: 3, kind: input, shape index: {}]
  %s4 = inlined_call_operand.vmem [shape: f32[1,64], index: 4, kind: input, shape index: {}]
  %s5 = inlined_call_operand.vmem [shape: f32[128,64], index: 5, kind: output, shape index: {}]
  %s6 = sld [smem:[#allocation0]]
  $region34: #{decoder_forward.10} parent=0
    _
  %s8 = ssub.s32 1, %s6
  %s9 = scalar_select 0, %s8, %s6
  $region1: #{decoder_forward.10} parent=0
    #allocation2 [shape = 'u8[16384]{0}', space=vmem, size = 0x4000, scoped, tag = 'input window, operand 1, single buffered']
    #allocation3 [shape = 's32[1]{0}', space=sflag, size = 0x4, scoped, tag = 'scoped memory for decoder_forward.10']
    %10 = vsyncpa [#allocation3], 0
    // Predicated region
    $region2: #{decoder_forward.10} parent=1 // pred_check
      _
    $region3: #{decoder_forward.10} parent=1 // pred_check_branch
      %12 = sbr.rel (0) target = $region5
    $region4: #{decoder_forward.10} parent=1 // pred_region
      _
    $region5: #{decoder_forward.10} parent=1 // pred_fallthru
      _
    // Predicated region
    $region6: #{decoder_forward.10} parent=1 // pred_check
      _
    $region7: #{decoder_forward.10} parent=1 // pred_check_branch
      %14 = sbr.rel (0) target = $region9
    $region8: #{decoder_forward.10} parent=1 // pred_region
      %s16 = ssub.s32 512, 512
      %17 = vsyncadd [#allocation3], %s16
      %s18 = sshll.u32 [#allocation2], 4
      %s19 = int_to_ptr.vmem [resolvable:$true] %s18
      %24 = dma.hbm_to_vmem [thread:$0]  %s1, 512, %s19, [#allocation3], 128, 128, 8
    $region9: #{decoder_forward.10} parent=1 // pred_fallthru
      _
    // Predicated region
    $region10: #{decoder_forward.10} parent=1 // pred_check
      _
    $region11: #{decoder_forward.10} parent=1 // pred_check_branch
      %26 = sbr.rel (0) target = $region13
    $region12: #{decoder_forward.10} parent=1 // pred_region
      _
    $region13: #{decoder_forward.10} parent=1 // pred_fallthru
      _
    // Predicated region
    $region14: #{decoder_forward.10} parent=1 // pred_check
      _
    $region15: #{decoder_forward.10} parent=1 // pred_check_branch
      %28 = sbr.rel (0) target = $region17
    $region16: #{decoder_forward.10} parent=1 // pred_region
      _
    $region17: #{decoder_forward.10} parent=1 // pred_fallthru
      _
    // Predicated region
    $region18: #{decoder_forward.10} parent=1 // pred_check
      _
    $region19: #{decoder_forward.10} parent=1 // pred_check_branch
      %30 = sbr.rel (0) target = $region21
    $region20: #{decoder_forward.10} parent=1 // pred_region
      _
    $region21: #{decoder_forward.10} parent=1 // pred_fallthru
      _
    // Predicated region
    $region22: #{decoder_forward.10} parent=1 // pred_check
      _
    $region23: #{decoder_forward.10} parent=1 // pred_check_branch
      %32 = sbr.rel (0) target = $region25
    $region24: #{decoder_forward.10} parent=1 // pred_region
      %33 = dma.done [#allocation3], 512
    $region25: #{decoder_forward.10} parent=1 // pred_fallthru
      _
    %v34 = vld [vmem:[%s0] sm:$0xff]
    %v35 = vld [vmem:[%s0 + $0x8] sm:$0xff]
    %v36 = vld [vmem:[%s0 + $0x10] sm:$0xff]
    %v37 = vld [vmem:[%s0 + $0x18] sm:$0xff]
    %v38 = vld [vmem:[%s0 + $0x20] sm:$0xff]
    %v39 = vld [vmem:[%s0 + $0x28] sm:$0xff]
    %v40 = vld [vmem:[%s0 + $0x30] sm:$0xff]
    %v41 = vld [vmem:[%s0 + $0x38] sm:$0xff]
    %v42 = vld [vmem:[%s0 + $0x40] sm:$0xff]
    %v43 = vld [vmem:[%s0 + $0x48] sm:$0xff]
    %v44 = vld [vmem:[%s0 + $0x50] sm:$0xff]
    %v45 = vld [vmem:[%s0 + $0x58] sm:$0xff]
    %v46 = vld [vmem:[%s0 + $0x60] sm:$0xff]
    %v47 = vld [vmem:[%s0 + $0x68] sm:$0xff]
    %v48 = vld [vmem:[%s0 + $0x70] sm:$0xff]
    %v49 = vld [vmem:[%s0 + $0x78] sm:$0xff]
    %v50 = vld [vmem:[#allocation2] sm:$0xff]
    %v51 = vld [vmem:[#allocation2 + $0x8] sm:$0xff]
    %v52 = vld [vmem:[#allocation2 + $0x10] sm:$0xff]
    %v53 = vld [vmem:[#allocation2 + $0x18] sm:$0xff]
    %vm54 = vcmask 261120
    %v56 = vsel %vm54, %v34, 0
    %v59 = vsel %vm54, %v35, 0
    %v62 = vsel %vm54, %v36, 0
    %v65 = vsel %vm54, %v37, 0
    %v68 = vsel %vm54, %v38, 0
    %v71 = vsel %vm54, %v39, 0
    %v74 = vsel %vm54, %v40, 0
    %v77 = vsel %vm54, %v41, 0
    %v80 = vsel %vm54, %v42, 0
    %v83 = vsel %vm54, %v43, 0
    %v86 = vsel %vm54, %v44, 0
    %v89 = vsel %vm54, %v45, 0
    %v92 = vsel %vm54, %v46, 0
    %v95 = vsel %vm54, %v47, 0
    %v98 = vsel %vm54, %v48, 0
    %v101 = vsel %vm54, %v49, 0
    %103 = vmatprep.subr.mxu0 0.0
    %104 = vmatpush1.msra.mxu0 %v50
    %105 = vmatprep.subr.mxu0 0.0
    %106 = vmatpush1.msra.mxu0 %v51
    %107 = vmatprep.subr.mxu0 0.0
    %108 = vmatpush1.msra.mxu0 %v52
    %109 = vmatprep.subr.mxu0 0.0
    %110 = vmatpush1.msra.mxu0 %v53
    %111 = vmatprep.subr.mxu0 0.0
    %112 = vmatpush1.msra.mxu0 0.0
    %113 = vmatprep.subr.mxu0 0.0
    %114 = vmatpush1.msra.mxu0 0.0
    %115 = vmatprep.subr.mxu0 0.0
    %116 = vmatpush1.msra.mxu0 0.0
    %117 = vmatprep.subr.mxu0 0.0
    %118 = vmatpush1.msra.mxu0 0.0
    %119 = vmatprep.subr.mxu0 0.0
    %120 = vmatpush1.msra.mxu0 0.0
    %121 = vmatprep.subr.mxu0 0.0
    %122 = vmatpush1.msra.mxu0 0.0
    %123 = vmatprep.subr.mxu0 0.0
    %124 = vmatpush1.msra.mxu0 0.0
    %125 = vmatprep.subr.mxu0 0.0
    %126 = vmatpush1.msra.mxu0 0.0
    %127 = vmatprep.subr.mxu0 0.0
    %128 = vmatpush1.msra.mxu0 0.0
    %129 = vmatprep.subr.mxu0 0.0
    %130 = vmatpush1.msra.mxu0 0.0
    %131 = vmatprep.subr.mxu0 0.0
    %132 = vmatpush1.msra.mxu0 0.0
    %133 = vmatprep.subr.mxu0 0.0
    %134 = vmatpush1.msra.mxu0 0.0
    %135 = vmatprep.subr.mxu0 0.0
    %136 = vmatpush1.msra.mxu0 0.0
    %137 = vmatprep.subr.mxu0 0.0
    %138 = vmatpush1.msra.mxu0 0.0
    %139 = vmatprep.subr.mxu0 0.0
    %140 = vmatpush1.msra.mxu0 0.0
    %141 = vmatprep.subr.mxu0 0.0
    %142 = vmatpush1.msra.mxu0 0.0
    %143 = vmatprep.subr.mxu0 0.0
    %144 = vmatpush1.msra.mxu0 0.0
    %145 = vmatprep.subr.mxu0 0.0
    %146 = vmatpush1.msra.mxu0 0.0
    %147 = vmatprep.subr.mxu0 0.0
    %148 = vmatpush1.msra.mxu0 0.0
    %149 = vmatprep.subr.mxu0 0.0
    %150 = vmatpush1.msra.mxu0 0.0
    %151 = vmatprep.subr.mxu0 0.0
    %152 = vmatpush1.msra.mxu0 0.0
    %153 = vmatprep.subr.mxu0 0.0
    %154 = vmatpush1.msra.mxu0 0.0
    %155 = vmatprep.subr.mxu0 0.0
    %156 = vmatpush1.msra.mxu0 0.0
    %157 = vmatprep.subr.mxu0 0.0
    %158 = vmatpush1.msra.mxu0 0.0
    %159 = vmatprep.subr.mxu0 0.0
    %160 = vmatpush1.msra.mxu0 0.0
    %161 = vmatprep.subr.mxu0 0.0
    %162 = vmatpush1.msra.mxu0 0.0
    %163 = vmatprep.subr.mxu0 0.0
    %164 = vmatpush1.msra.mxu0 0.0
    %165 = vmatprep.subr.mxu0 0.0
    %166 = vmatpush1.msra.mxu0 0.0
    %167 = vmatprep.mubr.f32.mxu0 0.0
    %168 = vmatmul.mubr.f32.gmra.mrb[0].mxu0 %v56
    %v169 = vpop.f32.mrb[0].mxu0
    %v170 = vadd.f32 0.0, %v169
    %v171 = vpop.f32.mrb[0].mxu0
    %172 = vmatprep.mubr.f32.mxu0 0.0
    %173 = vmatmul.mubr.f32.gmra.mrb[0].mxu0 %v59
    %v174 = vpop.f32.mrb[0].mxu0
    %v175 = vadd.f32 0.0, %v174
    %v176 = vpop.f32.mrb[0].mxu0
    %177 = vmatprep.mubr.f32.mxu0 0.0
    %178 = vmatmul.mubr.f32.gmra.mrb[0].mxu0 %v62
    %v179 = vpop.f32.mrb[0].mxu0
    %v180 = vadd.f32 0.0, %v179
    %v181 = vpop.f32.mrb[0].mxu0
    %182 = vmatprep.mubr.f32.mxu0 0.0
    %183 = vmatmul.mubr.f32.gmra.mrb[0].mxu0 %v65
    %v184 = vpop.f32.mrb[0].mxu0
    %v185 = vadd.f32 0.0, %v184
    %v186 = vpop.f32.mrb[0].mxu0
    %187 = vmatprep.mubr.f32.mxu0 0.0
    %188 = vmatmul.mubr.f32.gmra.mrb[0].mxu0 %v68
    %v189 = vpop.f32.mrb[0].mxu0
    %v190 = vadd.f32 0.0, %v189
    %v191 = vpop.f32.mrb[0].mxu0
    %192 = vmatprep.mubr.f32.mxu0 0.0
    %193 = vmatmul.mubr.f32.gmra.mrb[0].mxu0 %v71
    %v194 = vpop.f32.mrb[0].mxu0
    %v195 = vadd.f32 0.0, %v194
    %v196 = vpop.f32.mrb[0].mxu0
    %197 = vmatprep.mubr.f32.mxu0 0.0
    %198 = vmatmul.mubr.f32.gmra.mrb[0].mxu0 %v74
    %v199 = vpop.f32.mrb[0].mxu0
    %v200 = vadd.f32 0.0, %v199
    %v201 = vpop.f32.mrb[0].mxu0
    %202 = vmatprep.mubr.f32.mxu0 0.0
    %203 = vmatmul.mubr.f32.gmra.mrb[0].mxu0 %v77
    %v204 = vpop.f32.mrb[0].mxu0
    %v205 = vadd.f32 0.0, %v204
    %v206 = vpop.f32.mrb[0].mxu0
    %207 = vmatprep.mubr.f32.mxu0 0.0
    %208 = vmatmul.mubr.f32.gmra.mrb[0].mxu0 %v80
    %v209 = vpop.f32.mrb[0].mxu0
    %v210 = vadd.f32 0.0, %v209
    %v211 = vpop.f32.mrb[0].mxu0
    %212 = vmatprep.mubr.f32.mxu0 0.0
    %213 = vmatmul.mubr.f32.gmra.mrb[0].mxu0 %v83
    %v214 = vpop.f32.mrb[0].mxu0
    %v215 = vadd.f32 0.0, %v214
    %v216 = vpop.f32.mrb[0].mxu0
    %217 = vmatprep.mubr.f32.mxu0 0.0
    %218 = vmatmul.mubr.f32.gmra.mrb[0].mxu0 %v86
    %v219 = vpop.f32.mrb[0].mxu0
    %v220 = vadd.f32 0.0, %v219
    %v221 = vpop.f32.mrb[0].mxu0
    %222 = vmatprep.mubr.f32.mxu0 0.0
    %223 = vmatmul.mubr.f32.gmra.mrb[0].mxu0 %v89
    %v224 = vpop.f32.mrb[0].mxu0
    %v225 = vadd.f32 0.0, %v224
    %v226 = vpop.f32.mrb[0].mxu0
    %227 = vmatprep.mubr.f32.mxu0 0.0
    %228 = vmatmul.mubr.f32.gmra.mrb[0].mxu0 %v92
    %v229 = vpop.f32.mrb[0].mxu0
    %v230 = vadd.f32 0.0, %v229
    %v231 = vpop.f32.mrb[0].mxu0
    %232 = vmatprep.mubr.f32.mxu0 0.0
    %233 = vmatmul.mubr.f32.gmra.mrb[0].mxu0 %v95
    %v234 = vpop.f32.mrb[0].mxu0
    %v235 = vadd.f32 0.0, %v234
    %v236 = vpop.f32.mrb[0].mxu0
    %237 = vmatprep.mubr.f32.mxu0 0.0
    %238 = vmatmul.mubr.f32.gmra.mrb[0].mxu0 %v98
    %v239 = vpop.f32.mrb[0].mxu0
    %v240 = vadd.f32 0.0, %v239
    %v241 = vpop.f32.mrb[0].mxu0
    %242 = vmatprep.mubr.f32.mxu0 0.0
    %243 = vmatmul.mubr.f32.gmra.mrb[0].mxu0 %v101
    %v244 = vpop.f32.mrb[0].mxu0
    %v245 = vadd.f32 0.0, %v244
    %v246 = vpop.f32.mrb[0].mxu0
    %247 = vdwg.mxu0
    %v248 = vld [vmem:[%s2] sm:$0xff]
    %v249 = vld [vmem:[%s2 + $0x8] sm:$0xff]
    %v250 = vld [vmem:[%s2 + $0x10] sm:$0xff]
    %v251 = vld [vmem:[%s2 + $0x18] sm:$0xff]
    %v252 = vld [vmem:[%s2 + $0x20] sm:$0xff]
    %v253 = vld [vmem:[%s2 + $0x28] sm:$0xff]
    %v254 = vld [vmem:[%s2 + $0x30] sm:$0xff]
    %v255 = vld [vmem:[%s2 + $0x38] sm:$0xff]
    %vm256 = vcmask 523264
    %v258 = vsel %vm256, %v170, 0
    %v261 = vsel %vm256, %v175, 0
    %v264 = vsel %vm256, %v180, 0
    %v267 = vsel %vm256, %v185, 0
    %v270 = vsel %vm256, %v190, 0
    %v273 = vsel %vm256, %v195, 0
    %v276 = vsel %vm256, %v200, 0
    %v279 = vsel %vm256, %v205, 0
    %v282 = vsel %vm256, %v210, 0
    %v285 = vsel %vm256, %v215, 0
    %v288 = vsel %vm256, %v220, 0
    %v291 = vsel %vm256, %v225, 0
    %v294 = vsel %vm256, %v230, 0
    %v297 = vsel %vm256, %v235, 0
    %v300 = vsel %vm256, %v240, 0
    %v303 = vsel %vm256, %v245, 0
    %305 = vmatprep.subr.mxu0 0.0
    %306 = vmatpush1.msra.mxu0 %v248
    %307 = vmatprep.subr.mxu0 0.0
    %308 = vmatpush1.msra.mxu0 %v249
    %309 = vmatprep.subr.mxu0 0.0
    %310 = vmatpush1.msra.mxu0 %v250
    %311 = vmatprep.subr.mxu0 0.0
    %312 = vmatpush1.msra.mxu0 %v251
    %313 = vmatprep.subr.mxu0 0.0
    %314 = vmatpush1.msra.mxu0 %v252
    %315 = vmatprep.subr.mxu0 0.0
    %316 = vmatpush1.msra.mxu0 %v253
    %317 = vmatprep.subr.mxu0 0.0
    %318 = vmatpush1.msra.mxu0 %v254
    %319 = vmatprep.subr.mxu0 0.0
    %320 = vmatpush1.msra.mxu0 %v255
    %321 = vmatprep.subr.mxu0 0.0
    %322 = vmatpush1.msra.mxu0 0.0
    %323 = vmatprep.subr.mxu0 0.0
    %324 = vmatpush1.msra.mxu0 0.0
    %325 = vmatprep.subr.mxu0 0.0
    %326 = vmatpush1.msra.mxu0 0.0
    %327 = vmatprep.subr.mxu0 0.0
    %328 = vmatpush1.msra.mxu0 0.0
    %329 = vmatprep.subr.mxu0 0.0
    %330 = vmatpush1.msra.mxu0 0.0
    %331 = vmatprep.subr.mxu0 0.0
    %332 = vmatpush1.msra.mxu0 0.0
    %333 = vmatprep.subr.mxu0 0.0
    %334 = vmatpush1.msra.mxu0 0.0
    %335 = vmatprep.subr.mxu0 0.0
    %336 = vmatpush1.msra.mxu0 0.0
    %337 = vmatprep.subr.mxu0 0.0
    %338 = vmatpush1.msra.mxu0 0.0
    %339 = vmatprep.subr.mxu0 0.0
    %340 = vmatpush1.msra.mxu0 0.0
    %341 = vmatprep.subr.mxu0 0.0
    %342 = vmatpush1.msra.mxu0 0.0
    %343 = vmatprep.subr.mxu0 0.0
    %344 = vmatpush1.msra.mxu0 0.0
    %345 = vmatprep.subr.mxu0 0.0
    %346 = vmatpush1.msra.mxu0 0.0
    %347 = vmatprep.subr.mxu0 0.0
    %348 = vmatpush1.msra.mxu0 0.0
    %349 = vmatprep.subr.mxu0 0.0
    %350 = vmatpush1.msra.mxu0 0.0
    %351 = vmatprep.subr.mxu0 0.0
    %352 = vmatpush1.msra.mxu0 0.0
    %353 = vmatprep.subr.mxu0 0.0
    %354 = vmatpush1.msra.mxu0 0.0
    %355 = vmatprep.subr.mxu0 0.0
    %356 = vmatpush1.msra.mxu0 0.0
    %357 = vmatprep.subr.mxu0 0.0
    %358 = vmatpush1.msra.mxu0 0.0
    %359 = vmatprep.subr.mxu0 0.0
    %360 = vmatpush1.msra.mxu0 0.0
    %361 = vmatprep.subr.mxu0 0.0
    %362 = vmatpush1.msra.mxu0 0.0
    %363 = vmatprep.subr.mxu0 0.0
    %364 = vmatpush1.msra.mxu0 0.0
    %365 = vmatprep.subr.mxu0 0.0
    %366 = vmatpush1.msra.mxu0 0.0
    %367 = vmatprep.subr.mxu0 0.0
    %368 = vmatpush1.msra.mxu0 0.0
    %369 = vmatprep.mubr.f32.mxu0 0.0
    %370 = vmatmul.mubr.f32.gmra.mrb[0].mxu0 %v258
    %v371 = vpop.f32.mrb[0].mxu0
    %v372 = vadd.f32 0.0, %v371
    %v373 = vpop.f32.mrb[0].mxu0
    %374 = vmatprep.mubr.f32.mxu0 0.0
    %375 = vmatmul.mubr.f32.gmra.mrb[0].mxu0 %v261
    %v376 = vpop.f32.mrb[0].mxu0
    %v377 = vadd.f32 0.0, %v376
    %v378 = vpop.f32.mrb[0].mxu0
    %379 = vmatprep.mubr.f32.mxu0 0.0
    %380 = vmatmul.mubr.f32.gmra.mrb[0].mxu0 %v264
    %v381 = vpop.f32.mrb[0].mxu0
    %v382 = vadd.f32 0.0, %v381
    %v383 = vpop.f32.mrb[0].mxu0
    %384 = vmatprep.mubr.f32.mxu0 0.0
    %385 = vmatmul.mubr.f32.gmra.mrb[0].mxu0 %v267
    %v386 = vpop.f32.mrb[0].mxu0
    %v387 = vadd.f32 0.0, %v386
    %v388 = vpop.f32.mrb[0].mxu0
    %389 = vmatprep.mubr.f32.mxu0 0.0
    %390 = vmatmul.mubr.f32.gmra.mrb[0].mxu0 %v270
    %v391 = vpop.f32.mrb[0].mxu0
    %v392 = vadd.f32 0.0, %v391
    %v393 = vpop.f32.mrb[0].mxu0
    %394 = vmatprep.mubr.f32.mxu0 0.0
    %395 = vmatmul.mubr.f32.gmra.mrb[0].mxu0 %v273
    %v396 = vpop.f32.mrb[0].mxu0
    %v397 = vadd.f32 0.0, %v396
    %v398 = vpop.f32.mrb[0].mxu0
    %399 = vmatprep.mubr.f32.mxu0 0.0
    %400 = vmatmul.mubr.f32.gmra.mrb[0].mxu0 %v276
    %v401 = vpop.f32.mrb[0].mxu0
    %v402 = vadd.f32 0.0, %v401
    %v403 = vpop.f32.mrb[0].mxu0
    %404 = vmatprep.mubr.f32.mxu0 0.0
    %405 = vmatmul.mubr.f32.gmra.mrb[0].mxu0 %v279
    %v406 = vpop.f32.mrb[0].mxu0
    %v407 = vadd.f32 0.0, %v406
    %v408 = vpop.f32.mrb[0].mxu0
    %409 = vmatprep.mubr.f32.mxu0 0.0
    %410 = vmatmul.mubr.f32.gmra.mrb[0].mxu0 %v282
    %v411 = vpop.f32.mrb[0].mxu0
    %v412 = vadd.f32 0.0, %v411
    %v413 = vpop.f32.mrb[0].mxu0
    %414 = vmatprep.mubr.f32.mxu0 0.0
    %415 = vmatmul.mubr.f32.gmra.mrb[0].mxu0 %v285
    %v416 = vpop.f32.mrb[0].mxu0
    %v417 = vadd.f32 0.0, %v416
    %v418 = vpop.f32.mrb[0].mxu0
    %419 = vmatprep.mubr.f32.mxu0 0.0
    %420 = vmatmul.mubr.f32.gmra.mrb[0].mxu0 %v288
    %v421 = vpop.f32.mrb[0].mxu0
    %v422 = vadd.f32 0.0, %v421
    %v423 = vpop.f32.mrb[0].mxu0
    %424 = vmatprep.mubr.f32.mxu0 0.0
    %425 = vmatmul.mubr.f32.gmra.mrb[0].mxu0 %v291
    %v426 = vpop.f32.mrb[0].mxu0
    %v427 = vadd.f32 0.0, %v426
    %v428 = vpop.f32.mrb[0].mxu0
    %429 = vmatprep.mubr.f32.mxu0 0.0
    %430 = vmatmul.mubr.f32.gmra.mrb[0].mxu0 %v294
    %v431 = vpop.f32.mrb[0].mxu0
    %v432 = vadd.f32 0.0, %v431
    %v433 = vpop.f32.mrb[0].mxu0
    %434 = vmatprep.mubr.f32.mxu0 0.0
    %435 = vmatmul.mubr.f32.gmra.mrb[0].mxu0 %v297
    %v436 = vpop.f32.mrb[0].mxu0
    %v437 = vadd.f32 0.0, %v436
    %v438 = vpop.f32.mrb[0].mxu0
    %439 = vmatprep.mubr.f32.mxu0 0.0
    %440 = vmatmul.mubr.f32.gmra.mrb[0].mxu0 %v300
    %v441 = vpop.f32.mrb[0].mxu0
    %v442 = vadd.f32 0.0, %v441
    %v443 = vpop.f32.mrb[0].mxu0
    %444 = vmatprep.mubr.f32.mxu0 0.0
    %445 = vmatmul.mubr.f32.gmra.mrb[0].mxu0 %v303
    %v446 = vpop.f32.mrb[0].mxu0
    %v447 = vadd.f32 0.0, %v446
    %v448 = vpop.f32.mrb[0].mxu0
    %449 = vdwg.mxu0
    %v450 = vsub.f32 %v170, %v372
    %v451 = vsub.f32 %v175, %v377
    %v452 = vsub.f32 %v180, %v382
    %v453 = vsub.f32 %v185, %v387
    %v454 = vsub.f32 %v190, %v392
    %v455 = vsub.f32 %v195, %v397
    %v456 = vsub.f32 %v200, %v402
    %v457 = vsub.f32 %v205, %v407
    %v458 = vsub.f32 %v210, %v412
    %v459 = vsub.f32 %v215, %v417
    %v460 = vsub.f32 %v220, %v422
    %v461 = vsub.f32 %v225, %v427
    %v462 = vsub.f32 %v230, %v432
    %v463 = vsub.f32 %v235, %v437
    %v464 = vsub.f32 %v240, %v442
    %v465 = vsub.f32 %v245, %v447
    %v466 = vmul.f32 %v450, %v450
    %v467 = vmul.f32 %v451, %v451
    %v468 = vmul.f32 %v452, %v452
    %v469 = vmul.f32 %v453, %v453
    %v470 = vmul.f32 %v454, %v454
    %v471 = vmul.f32 %v455, %v455
    %v472 = vmul.f32 %v456, %v456
    %v473 = vmul.f32 %v457, %v457
    %v474 = vmul.f32 %v458, %v458
    %v475 = vmul.f32 %v459, %v459
    %v476 = vmul.f32 %v460, %v460
    %v477 = vmul.f32 %v461, %v461
    %v478 = vmul.f32 %v462, %v462
    %v479 = vmul.f32 %v463, %v463
    %v480 = vmul.f32 %v464, %v464
    %v481 = vmul.f32 %v465, %v465
    %v483 = vsel %vm256, %v466, 0
    %v486 = vsel %vm256, %v467, 0
    %v489 = vsel %vm256, %v468, 0
    %v492 = vsel %vm256, %v469, 0
    %v495 = vsel %vm256, %v470, 0
    %v498 = vsel %vm256, %v471, 0
    %v501 = vsel %vm256, %v472, 0
    %v504 = vsel %vm256, %v473, 0
    %v507 = vsel %vm256, %v474, 0
    %v510 = vsel %vm256, %v475, 0
    %v513 = vsel %vm256, %v476, 0
    %v516 = vsel %vm256, %v477, 0
    %v519 = vsel %vm256, %v478, 0
    %v522 = vsel %vm256, %v479, 0
    %v525 = vsel %vm256, %v480, 0
    %v528 = vsel %vm256, %v481, 0
    %530 = vmatprep.subr.mxu0 0.0
    %531 = vmatpush1.msra.mxu0 %v248
    %532 = vmatprep.subr.mxu0 0.0
    %533 = vmatpush1.msra.mxu0 %v249
    %534 = vmatprep.subr.mxu0 0.0
    %535 = vmatpush1.msra.mxu0 %v250
    %536 = vmatprep.subr.mxu0 0.0
    %537 = vmatpush1.msra.mxu0 %v251
    %538 = vmatprep.subr.mxu0 0.0
    %539 = vmatpush1.msra.mxu0 %v252
    %540 = vmatprep.subr.mxu0 0.0
    %541 = vmatpush1.msra.mxu0 %v253
    %542 = vmatprep.subr.mxu0 0.0
    %543 = vmatpush1.msra.mxu0 %v254
    %544 = vmatprep.subr.mxu0 0.0
    %545 = vmatpush1.msra.mxu0 %v255
    %546 = vmatprep.subr.mxu0 0.0
    %547 = vmatpush1.msra.mxu0 0.0
    %548 = vmatprep.subr.mxu0 0.0
    %549 = vmatpush1.msra.mxu0 0.0
    %550 = vmatprep.subr.mxu0 0.0
    %551 = vmatpush1.msra.mxu0 0.0
    %552 = vmatprep.subr.mxu0 0.0
    %553 = vmatpush1.msra.mxu0 0.0
    %554 = vmatprep.subr.mxu0 0.0
    %555 = vmatpush1.msra.mxu0 0.0
    %556 = vmatprep.subr.mxu0 0.0
    %557 = vmatpush1.msra.mxu0 0.0
    %558 = vmatprep.subr.mxu0 0.0
    %559 = vmatpush1.msra.mxu0 0.0
    %560 = vmatprep.subr.mxu0 0.0
    %561 = vmatpush1.msra.mxu0 0.0
    %562 = vmatprep.subr.mxu0 0.0
    %563 = vmatpush1.msra.mxu0 0.0
    %564 = vmatprep.subr.mxu0 0.0
    %565 = vmatpush1.msra.mxu0 0.0
    %566 = vmatprep.subr.mxu0 0.0
    %567 = vmatpush1.msra.mxu0 0.0
    %568 = vmatprep.subr.mxu0 0.0
    %569 = vmatpush1.msra.mxu0 0.0
    %570 = vmatprep.subr.mxu0 0.0
    %571 = vmatpush1.msra.mxu0 0.0
    %572 = vmatprep.subr.mxu0 0.0
    %573 = vmatpush1.msra.mxu0 0.0
    %574 = vmatprep.subr.mxu0 0.0
    %575 = vmatpush1.msra.mxu0 0.0
    %576 = vmatprep.subr.mxu0 0.0
    %577 = vmatpush1.msra.mxu0 0.0
    %578 = vmatprep.subr.mxu0 0.0
    %579 = vmatpush1.msra.mxu0 0.0
    %580 = vmatprep.subr.mxu0 0.0
    %581 = vmatpush1.msra.mxu0 0.0
    %582 = vmatprep.subr.mxu0 0.0
    %583 = vmatpush1.msra.mxu0 0.0
    %584 = vmatprep.subr.mxu0 0.0
    %585 = vmatpush1.msra.mxu0 0.0
    %586 = vmatprep.subr.mxu0 0.0
    %587 = vmatpush1.msra.mxu0 0.0
    %588 = vmatprep.subr.mxu0 0.0
    %589 = vmatpush1.msra.mxu0 0.0
    %590 = vmatprep.subr.mxu0 0.0
    %591 = vmatpush1.msra.mxu0 0.0
    %592 = vmatprep.subr.mxu0 0.0
    %593 = vmatpush1.msra.mxu0 0.0
    %594 = vmatprep.mubr.f32.mxu0 0.0
    %595 = vmatmul.mubr.f32.gmra.mrb[0].mxu0 %v483
    %v596 = vpop.f32.mrb[0].mxu0
    %v597 = vadd.f32 1e-05, %v596
    %v598 = vpop.f32.mrb[0].mxu0
    %599 = vmatprep.mubr.f32.mxu0 0.0
    %600 = vmatmul.mubr.f32.gmra.mrb[0].mxu0 %v486
    %v601 = vpop.f32.mrb[0].mxu0
    %v602 = vadd.f32 1e-05, %v601
    %v603 = vpop.f32.mrb[0].mxu0
    %604 = vmatprep.mubr.f32.mxu0 0.0
    %605 = vmatmul.mubr.f32.gmra.mrb[0].mxu0 %v489
    %v606 = vpop.f32.mrb[0].mxu0
    %v607 = vadd.f32 1e-05, %v606
    %v608 = vpop.f32.mrb[0].mxu0
    %609 = vmatprep.mubr.f32.mxu0 0.0
    %610 = vmatmul.mubr.f32.gmra.mrb[0].mxu0 %v492
    %v611 = vpop.f32.mrb[0].mxu0
    %v612 = vadd.f32 1e-05, %v611
    %v613 = vpop.f32.mrb[0].mxu0
    %614 = vmatprep.mubr.f32.mxu0 0.0
    %615 = vmatmul.mubr.f32.gmra.mrb[0].mxu0 %v495
    %v616 = vpop.f32.mrb[0].mxu0
    %v617 = vadd.f32 1e-05, %v616
    %v618 = vpop.f32.mrb[0].mxu0
    %619 = vmatprep.mubr.f32.mxu0 0.0
    %620 = vmatmul.mubr.f32.gmra.mrb[0].mxu0 %v498
    %v621 = vpop.f32.mrb[0].mxu0
    %v622 = vadd.f32 1e-05, %v621
    %v623 = vpop.f32.mrb[0].mxu0
    %624 = vmatprep.mubr.f32.mxu0 0.0
    %625 = vmatmul.mubr.f32.gmra.mrb[0].mxu0 %v501
    %v626 = vpop.f32.mrb[0].mxu0
    %v627 = vadd.f32 1e-05, %v626
    %v628 = vpop.f32.mrb[0].mxu0
    %629 = vmatprep.mubr.f32.mxu0 0.0
    %630 = vmatmul.mubr.f32.gmra.mrb[0].mxu0 %v504
    %v631 = vpop.f32.mrb[0].mxu0
    %v632 = vadd.f32 1e-05, %v631
    %v633 = vpop.f32.mrb[0].mxu0
    %634 = vmatprep.mubr.f32.mxu0 0.0
    %635 = vmatmul.mubr.f32.gmra.mrb[0].mxu0 %v507
    %v636 = vpop.f32.mrb[0].mxu0
    %v637 = vadd.f32 1e-05, %v636
    %v638 = vpop.f32.mrb[0].mxu0
    %639 = vmatprep.mubr.f32.mxu0 0.0
    %640 = vmatmul.mubr.f32.gmra.mrb[0].mxu0 %v510
    %v641 = vpop.f32.mrb[0].mxu0
    %v642 = vadd.f32 1e-05, %v641
    %v643 = vpop.f32.mrb[0].mxu0
    %644 = vmatprep.mubr.f32.mxu0 0.0
    %645 = vmatmul.mubr.f32.gmra.mrb[0].mxu0 %v513
    %v646 = vpop.f32.mrb[0].mxu0
    %v647 = vadd.f32 1e-05, %v646
    %v648 = vpop.f32.mrb[0].mxu0
    %649 = vmatprep.mubr.f32.mxu0 0.0
    %650 = vmatmul.mubr.f32.gmra.mrb[0].mxu0 %v516
    %v651 = vpop.f32.mrb[0].mxu0
    %v652 = vadd.f32 1e-05, %v651
    %v653 = vpop.f32.mrb[0].mxu0
    %654 = vmatprep.mubr.f32.mxu0 0.0
    %655 = vmatmul.mubr.f32.gmra.mrb[0].mxu0 %v519
    %v656 = vpop.f32.mrb[0].mxu0
    %v657 = vadd.f32 1e-05, %v656
    %v658 = vpop.f32.mrb[0].mxu0
    %659 = vmatprep.mubr.f32.mxu0 0.0
    %660 = vmatmul.mubr.f32.gmra.mrb[0].mxu0 %v522
    %v661 = vpop.f32.mrb[0].mxu0
    %v662 = vadd.f32 1e-05, %v661
    %v663 = vpop.f32.mrb[0].mxu0
    %664 = vmatprep.mubr.f32.mxu0 0.0
    %665 = vmatmul.mubr.f32.gmra.mrb[0].mxu0 %v525
    %v666 = vpop.f32.mrb[0].mxu0
    %v667 = vadd.f32 1e-05, %v666
    %v668 = vpop.f32.mrb[0].mxu0
    %669 = vmatprep.mubr.f32.mxu0 0.0
    %670 = vmatmul.mubr.f32.gmra.mrb[0].mxu0 %v528
    %v671 = vpop.f32.mrb[0].mxu0
    %v672 = vadd.f32 1e-05, %v671
    %v673 = vpop.f32.mrb[0].mxu0
    %674 = vdwg.mxu0
    %v675 = vrsqrt.pop %v597
    %v676 = vrsqrt.pop %v602
    %v677 = vrsqrt.pop %v607
    %v678 = vrsqrt.pop %v612
    %v679 = vrsqrt.pop %v617
    %v680 = vrsqrt.pop %v622
    %v681 = vrsqrt.pop %v627
    %v682 = vrsqrt.pop %v632
    %v683 = vrsqrt.pop %v637
    %v684 = vrsqrt.pop %v642
    %v685 = vrsqrt.pop %v647
    %v686 = vrsqrt.pop %v652
    %v687 = vrsqrt.pop %v657
    %v688 = vrsqrt.pop %v662
    %v689 = vrsqrt.pop %v667
    %v690 = vrsqrt.pop %v672
    %v691 = vmul.f32 %v450, %v675
    %v692 = vmul.f32 %v451, %v676
    %v693 = vmul.f32 %v452, %v677
    %v694 = vmul.f32 %v453, %v678
    %v695 = vmul.f32 %v454, %v679
    %v696 = vmul.f32 %v455, %v680
    %v697 = vmul.f32 %v456, %v681
    %v698 = vmul.f32 %v457, %v682
    %v699 = vmul.f32 %v458, %v683
    %v700 = vmul.f32 %v459, %v684
    %v701 = vmul.f32 %v460, %v685
    %v702 = vmul.f32 %v461, %v686
    %v703 = vmul.f32 %v462, %v687
    %v704 = vmul.f32 %v463, %v688
    %v705 = vmul.f32 %v464, %v689
    %v706 = vmul.f32 %v465, %v690
    %v707 = vld [vmem:[%s3] sm:$0x1]
    %v709 = vlaneseq
    %v710 = vshrl.u32 %v709, 7
    %v711 = vsub.s32 0, %v710
    %v712 = vrot.slane %v707, %v711
    %v714 = vmul.f32 %v691, %v712
    %v715 = vmul.f32 %v692, %v712
    %v716 = vmul.f32 %v693, %v712
    %v717 = vmul.f32 %v694, %v712
    %v718 = vmul.f32 %v695, %v712
    %v719 = vmul.f32 %v696, %v712
    %v720 = vmul.f32 %v697, %v712
    %v721 = vmul.f32 %v698, %v712
    %v722 = vmul.f32 %v699, %v712
    %v723 = vmul.f32 %v700, %v712
    %v724 = vmul.f32 %v701, %v712
    %v725 = vmul.f32 %v702, %v712
    %v726 = vmul.f32 %v703, %v712
    %v727 = vmul.f32 %v704, %v712
    %v728 = vmul.f32 %v705, %v712
    %v729 = vmul.f32 %v706, %v712
    %v730 = vld [vmem:[%s4] sm:$0x1]
    %v732 = vlaneseq
    %v733 = vshrl.u32 %v732, 7
    %v734 = vsub.s32 0, %v733
    %v735 = vrot.slane %v730, %v734
    %v737 = vadd.f32 %v714, %v735
    %v738 = vadd.f32 %v715, %v735
    %v739 = vadd.f32 %v716, %v735
    %v740 = vadd.f32 %v717, %v735
    %v741 = vadd.f32 %v718, %v735
    %v742 = vadd.f32 %v719, %v735
    %v743 = vadd.f32 %v720, %v735
    %v744 = vadd.f32 %v721, %v735
    %v745 = vadd.f32 %v722, %v735
    %v746 = vadd.f32 %v723, %v735
    %v747 = vadd.f32 %v724, %v735
    %v748 = vadd.f32 %v725, %v735
    %v749 = vadd.f32 %v726, %v735
    %v750 = vadd.f32 %v727, %v735
    %v751 = vadd.f32 %v728, %v735
    %v752 = vadd.f32 %v729, %v735
    %753 = vst.msk [vmem:[%s5] sm:$0xff] %vm256, %v737
    %754 = vst.msk [vmem:[%s5 + $0x8] sm:$0xff] %vm256, %v738
    %755 = vst.msk [vmem:[%s5 + $0x10] sm:$0xff] %vm256, %v739
    %756 = vst.msk [vmem:[%s5 + $0x18] sm:$0xff] %vm256, %v740
    %757 = vst.msk [vmem:[%s5 + $0x20] sm:$0xff] %vm256, %v741
    %758 = vst.msk [vmem:[%s5 + $0x28] sm:$0xff] %vm256, %v742
    %759 = vst.msk [vmem:[%s5 + $0x30] sm:$0xff] %vm256, %v743
    %760 = vst.msk [vmem:[%s5 + $0x38] sm:$0xff] %vm256, %v744
    %761 = vst.msk [vmem:[%s5 + $0x40] sm:$0xff] %vm256, %v745
    %762 = vst.msk [vmem:[%s5 + $0x48] sm:$0xff] %vm256, %v746
    %763 = vst.msk [vmem:[%s5 + $0x50] sm:$0xff] %vm256, %v747
    %764 = vst.msk [vmem:[%s5 + $0x58] sm:$0xff] %vm256, %v748
    %765 = vst.msk [vmem:[%s5 + $0x60] sm:$0xff] %vm256, %v749
    %766 = vst.msk [vmem:[%s5 + $0x68] sm:$0xff] %vm256, %v750
    %767 = vst.msk [vmem:[%s5 + $0x70] sm:$0xff] %vm256, %v751
    %768 = vst.msk [vmem:[%s5 + $0x78] sm:$0xff] %vm256, %v752
    // Predicated region
    $region26: #{decoder_forward.10} parent=1 // pred_check
      _
    $region27: #{decoder_forward.10} parent=1 // pred_check_branch
      %770 = sbr.rel (0) target = $region29
    $region28: #{decoder_forward.10} parent=1 // pred_region
      _
    $region29: #{decoder_forward.10} parent=1 // pred_fallthru
      _
    // Predicated region
    $region30: #{decoder_forward.10} parent=1 // pred_check
      _
    $region31: #{decoder_forward.10} parent=1 // pred_check_branch
      %772 = sbr.rel (0) target = $region33
    $region32: #{decoder_forward.10} parent=1 // pred_region
      _
    $region33: #{decoder_forward.10} parent=1 // pred_fallthru
      _
    %773 = vsyncpa [#allocation3], 1

// kernel: decoder_forward.11
$region0: #{decoder_forward.11}
  #allocation0 [shape = 'u32[]', space=smem, size = 0x4, offset = 0x4, fixed_abs, tag = 'smem constant byte address 0x4 - core index']
  #allocation1 [shape = 'u32[144,128]{1,0:T(1,128)}', space=vmem, size = 0x12000, scoped, tag = 'internal scratch']
  %s0 = inlined_call_operand.vmem [shape: f32[2,256,16], index: 0, kind: input, shape index: {}]
  %s1 = inlined_call_operand.vmem [shape: f32[2,256,16], index: 1, kind: input, shape index: {}]
  %s2 = inlined_call_operand.vmem [shape: f32[16,16], index: 2, kind: input, shape index: {}]
  %s3 = inlined_call_operand.vmem [shape: f32[16,16], index: 3, kind: input, shape index: {}]
  %s4 = inlined_call_operand.vmem [shape: f32[1,16], index: 4, kind: input, shape index: {}]
  %s5 = inlined_call_operand.vmem [shape: f32[16,1], index: 5, kind: input, shape index: {}]
  %s6 = inlined_call_operand.vmem [shape: f32[1,16], index: 6, kind: input, shape index: {}]
  %s7 = inlined_call_operand.vmem [shape: f32[2,256,256], index: 7, kind: input, shape index: {}]
  %s8 = inlined_call_operand.hbm [shape: f32[2,256,16], index: 8, kind: output, shape index: {}]
  %s9 = sld [smem:[#allocation0]]
  $region65: #{decoder_forward.11} parent=0
    _
  %s11 = ssub.s32 1, %s9
  %s12 = scalar_select 0, %s11, %s9
  $region1: #{decoder_forward.11} parent=0
    #allocation2 [shape = 'u8[262144]{0}', space=vmem, size = 0x40000, scoped, tag = 'output window, operand 0']
    #allocation3 [shape = 's32[2]{0}', space=sflag, size = 0x8, scoped, tag = 'scoped memory for decoder_forward.11']
    %13 = vsyncpa [#allocation3], 0
    %s14 = scalar_lea.sflag [#allocation3], 1
    %15 = vsyncpa %s14, 0
    loop: start=0, step=1, limit=4
    $region2: #{decoder_forward.11} parent=1 // loop_pre_header
      _
    $region3: #{decoder_forward.11} parent=1 // loop_header
      %s17 = sphi 0, %s21
      %p18 = scmp.ge.s32.totalorder %s17, 4
      %s27 = sphi 0, %s29
      %s30 = sphi 0, %s27
      %s31 = sphi 0, %s30
      %s47 = sphi 0, %s31
      %s53 = sphi 0, %s55
      %s56 = sphi 0, %s53
      %s57 = sphi 0, %s56
      %s73 = sphi 0, %s57
      %s77 = sphi 0, %s77
      %s79 = sphi 0, %s77
      %s80 = sphi 0, %s79
      %s94 = sphi 0, %s80
      %s98 = sphi 0, %s98
      %s100 = sphi 0, %s98
      %s101 = sphi 0, %s100
      %s115 = sphi 0, %s101
      %s119 = sphi 0, %s119
      %s121 = sphi 0, %s119
      %s122 = sphi 0, %s121
      %s136 = sphi 0, %s122
      %s140 = sphi 0, %s140
      %s142 = sphi 0, %s140
      %s143 = sphi 0, %s142
      %s157 = sphi 0, %s143
      %s161 = sphi 0, %s161
      %s163 = sphi 0, %s161
      %s164 = sphi 0, %s163
      %s178 = sphi 0, %s164
      %s182 = sphi 0, %s182
      %s184 = sphi 0, %s182
      %s185 = sphi 0, %s184
      %s199 = sphi 0, %s185
      %s205 = sphi 0, %s207
      %s208 = sphi 0, %s205
      %s209 = sphi 0, %s208
      %s225 = sphi 0, %s209
    $region4: #{decoder_forward.11} parent=1 // loop_header_branch
      %20 = sbr.rel (%p18) target = $region8
    $region5: #{decoder_forward.11} parent=1 // loop_body
      %s22 = ssub.s32 %s17, 1
      %s23 = ssub.s32 %s17, 2
      %s24 = sadd.s32 %s17, 1
      %s25 = ssub.s32 %s17, %s24
      %p26 = scmp.eq.s32.totalorder %s25, 0
      %s28 = sadd.s32 %s27, 1
      %s29 = scalar_select %p26, %s27, %s28
      %p32 = pneg %p26
      %p33 = scmp.eq.s32.totalorder %s17, 1
      %p34 = por %p32, %p33
      %p35 = scmp.ne.s32.totalorder %s27, %s30
      %p36 = scmp.eq.s32.totalorder %s17, 0
      %p37 = por %p35, %p36
      %p38 = scmp.ne.s32.totalorder %s27, %s30
      %p39 = scmp.eq.s32.totalorder %s22, 1
      %p40 = por %p38, %p39
      %p41 = scmp.ne.s32.totalorder %s30, %s31
      %p42 = scmp.eq.s32.totalorder %s22, 0
      %p43 = por %p41, %p42
      %p44 = scmp.ne.s32.totalorder %s30, %s31
      %p45 = scmp.eq.s32.totalorder %s23, 1
      %p46 = por %p44, %p45
      %p48 = scmp.ne.s32.totalorder %s31, %s47
      %p49 = scmp.eq.s32.totalorder %s23, 0
      %p50 = por %p48, %p49
      %s51 = ssub.s32 %s17, %s24
      %p52 = scmp.eq.s32.totalorder %s51, 0
      %s54 = sadd.s32 %s53, 1
      %s55 = scalar_select %p52, %s53, %s54
      %p58 = pneg %p52
      %p59 = scmp.eq.s32.totalorder %s17, 1
      %p60 = por %p58, %p59
      %p61 = scmp.ne.s32.totalorder %s53, %s56
      %p62 = scmp.eq.s32.totalorder %s17, 0
      %p63 = por %p61, %p62
      %p64 = scmp.ne.s32.totalorder %s53, %s56
      %p65 = scmp.eq.s32.totalorder %s22, 1
      %p66 = por %p64, %p65
      %p67 = scmp.ne.s32.totalorder %s56, %s57
      %p68 = scmp.eq.s32.totalorder %s22, 0
      %p69 = por %p67, %p68
      %p70 = scmp.ne.s32.totalorder %s56, %s57
      %p71 = scmp.eq.s32.totalorder %s23, 1
      %p72 = por %p70, %p71
      %p74 = scmp.ne.s32.totalorder %s57, %s73
      %p75 = scmp.eq.s32.totalorder %s23, 0
      %p76 = por %p74, %p75
      %s78 = sadd.s32 %s77, 1
      %p81 = scmp.eq.s32.totalorder %s17, 1
      %p82 = scmp.ne.s32.totalorder %s77, %s79
      %p83 = scmp.eq.s32.totalorder %s17, 0
      %p84 = por %p82, %p83
      %p85 = scmp.ne.s32.totalorder %s77, %s79
      %p86 = scmp.eq.s32.totalorder %s22, 1
      %p87 = por %p85, %p86
      %p88 = scmp.ne.s32.totalorder %s79, %s80
      %p89 = scmp.eq.s32.totalorder %s22, 0
      %p90 = por %p88, %p89
      %p91 = scmp.ne.s32.totalorder %s79, %s80
      %p92 = scmp.eq.s32.totalorder %s23, 1
      %p93 = por %p91, %p92
      %p95 = scmp.ne.s32.totalorder %s80, %s94
      %p96 = scmp.eq.s32.totalorder %s23, 0
      %p97 = por %p95, %p96
      %s99 = sadd.s32 %s98, 1
      %p102 = scmp.eq.s32.totalorder %s17, 1
      %p103 = scmp.ne.s32.totalorder %s98, %s100
      %p104 = scmp.eq.s32.totalorder %s17, 0
      %p105 = por %p103, %p104
      %p106 = scmp.ne.s32.totalorder %s98, %s100
      %p107 = scmp.eq.s32.totalorder %s22, 1
      %p108 = por %p106, %p107
      %p109 = scmp.ne.s32.totalorder %s100, %s101
      %p110 = scmp.eq.s32.totalorder %s22, 0
      %p111 = por %p109, %p110
      %p112 = scmp.ne.s32.totalorder %s100, %s101
      %p113 = scmp.eq.s32.totalorder %s23, 1
      %p114 = por %p112, %p113
      %p116 = scmp.ne.s32.totalorder %s101, %s115
      %p117 = scmp.eq.s32.totalorder %s23, 0
      %p118 = por %p116, %p117
      %s120 = sadd.s32 %s119, 1
      %p123 = scmp.eq.s32.totalorder %s17, 1
      %p124 = scmp.ne.s32.totalorder %s119, %s121
      %p125 = scmp.eq.s32.totalorder %s17, 0
      %p126 = por %p124, %p125
      %p127 = scmp.ne.s32.totalorder %s119, %s121
      %p128 = scmp.eq.s32.totalorder %s22, 1
      %p129 = por %p127, %p128
      %p130 = scmp.ne.s32.totalorder %s121, %s122
      %p131 = scmp.eq.s32.totalorder %s22, 0
      %p132 = por %p130, %p131
      %p133 = scmp.ne.s32.totalorder %s121, %s122
      %p134 = scmp.eq.s32.totalorder %s23, 1
      %p135 = por %p133, %p134
      %p137 = scmp.ne.s32.totalorder %s122, %s136
      %p138 = scmp.eq.s32.totalorder %s23, 0
      %p139 = por %p137, %p138
      %s141 = sadd.s32 %s140, 1
      %p144 = scmp.eq.s32.totalorder %s17, 1
      %p145 = scmp.ne.s32.totalorder %s140, %s142
      %p146 = scmp.eq.s32.totalorder %s17, 0
      %p147 = por %p145, %p146
      %p148 = scmp.ne.s32.totalorder %s140, %s142
      %p149 = scmp.eq.s32.totalorder %s22, 1
      %p150 = por %p148, %p149
      %p151 = scmp.ne.s32.totalorder %s142, %s143
      %p152 = scmp.eq.s32.totalorder %s22, 0
      %p153 = por %p151, %p152
      %p154 = scmp.ne.s32.totalorder %s142, %s143
      %p155 = scmp.eq.s32.totalorder %s23, 1
      %p156 = por %p154, %p155
      %p158 = scmp.ne.s32.totalorder %s143, %s157
      %p159 = scmp.eq.s32.totalorder %s23, 0
      %p160 = por %p158, %p159
      %s162 = sadd.s32 %s161, 1
      %p165 = scmp.eq.s32.totalorder %s17, 1
      %p166 = scmp.ne.s32.totalorder %s161, %s163
      %p167 = scmp.eq.s32.totalorder %s17, 0
      %p168 = por %p166, %p167
      %p169 = scmp.ne.s32.totalorder %s161, %s163
      %p170 = scmp.eq.s32.totalorder %s22, 1
      %p171 = por %p169, %p170
      %p172 = scmp.ne.s32.totalorder %s163, %s164
      %p173 = scmp.eq.s32.totalorder %s22, 0
      %p174 = por %p172, %p173
      %p175 = scmp.ne.s32.totalorder %s163, %s164
      %p176 = scmp.eq.s32.totalorder %s23, 1
      %p177 = por %p175, %p176
      %p179 = scmp.ne.s32.totalorder %s164, %s178
      %p180 = scmp.eq.s32.totalorder %s23, 0
      %p181 = por %p179, %p180
      %s183 = sadd.s32 %s182, 1
      %p186 = scmp.eq.s32.totalorder %s17, 1
      %p187 = scmp.ne.s32.totalorder %s182, %s184
      %p188 = scmp.eq.s32.totalorder %s17, 0
      %p189 = por %p187, %p188
      %p190 = scmp.ne.s32.totalorder %s182, %s184
      %p191 = scmp.eq.s32.totalorder %s22, 1
      %p192 = por %p190, %p191
      %p193 = scmp.ne.s32.totalorder %s184, %s185
      %p194 = scmp.eq.s32.totalorder %s22, 0
      %p195 = por %p193, %p194
      %p196 = scmp.ne.s32.totalorder %s184, %s185
      %p197 = scmp.eq.s32.totalorder %s23, 1
      %p198 = por %p196, %p197
      %p200 = scmp.ne.s32.totalorder %s185, %s199
      %p201 = scmp.eq.s32.totalorder %s23, 0
      %p202 = por %p200, %p201
      %s203 = ssub.s32 %s17, %s24
      %p204 = scmp.eq.s32.totalorder %s203, 0
      %s206 = sadd.s32 %s205, 1
      %s207 = scalar_select %p204, %s205, %s206
      %p210 = pneg %p204
      %p211 = scmp.eq.s32.totalorder %s17, 1
      %p212 = por %p210, %p211
      %p213 = scmp.ne.s32.totalorder %s205, %s208
      %p214 = scmp.eq.s32.totalorder %s17, 0
      %p215 = por %p213, %p214
      %p216 = scmp.ne.s32.totalorder %s205, %s208
      %p217 = scmp.eq.s32.totalorder %s22, 1
      %p218 = por %p216, %p217
      %p219 = scmp.ne.s32.totalorder %s208, %s209
      %p220 = scmp.eq.s32.totalorder %s22, 0
      %p221 = por %p219, %p220
      %p222 = scmp.ne.s32.totalorder %s208, %s209
      %p223 = scmp.eq.s32.totalorder %s23, 1
      %p224 = por %p222, %p223
      %p226 = scmp.ne.s32.totalorder %s209, %s225
      %p227 = scmp.eq.s32.totalorder %s23, 0
      %p228 = por %p226, %p227
      %p229 = scmp.le.s32.totalorder 1, %s17
      %p230 = scmp.lt.s32.totalorder %s17, 3
      %p231 = pnand %p229, %p230
      %p232 = pneg %p231
      // Predicated region
      $region9: #{decoder_forward.11} parent=5 // pred_check
        _
      $region10: #{decoder_forward.11} parent=5 // pred_check_branch
        %234 = sbr.rel (%p231) target = $region12
      $region11: #{decoder_forward.11} parent=5 // pred_region
        %s235 = ssub.s32 %s17, 1
        // Predicated region
        $region13: #{decoder_forward.11} parent=11 // pred_check
          %p236 = pneg %p90
        $region14: #{decoder_forward.11} parent=11 // pred_check_branch
          %238 = sbr.rel (%p236) target = $region16
        $region15: #{decoder_forward.11} parent=11 // pred_region
          _
        $region16: #{decoder_forward.11} parent=11 // pred_fallthru
          _
        // Predicated region
        $region17: #{decoder_forward.11} parent=11 // pred_check
          %p239 = pneg %p111
        $region18: #{decoder_forward.11} parent=11 // pred_check_branch
          %241 = sbr.rel (%p239) target = $region20
        $region19: #{decoder_forward.11} parent=11 // pred_region
          _
        $region20: #{decoder_forward.11} parent=11 // pred_fallthru
          _
        // Predicated region
        $region21: #{decoder_forward.11} parent=11 // pred_check
          %p242 = pneg %p132
        $region22: #{decoder_forward.11} parent=11 // pred_check_branch
          %244 = sbr.rel (%p242) target = $region24
        $region23: #{decoder_forward.11} parent=11 // pred_region
          _
        $region24: #{decoder_forward.11} parent=11 // pred_fallthru
          _
        // Predicated region
        $region25: #{decoder_forward.11} parent=11 // pred_check
          %p245 = pneg %p153
        $region26: #{decoder_forward.11} parent=11 // pred_check_branch
          %247 = sbr.rel (%p245) target = $region28
        $region27: #{decoder_forward.11} parent=11 // pred_region
          _
        $region28: #{decoder_forward.11} parent=11 // pred_fallthru
          _
        // Predicated region
        $region29: #{decoder_forward.11} parent=11 // pred_check
          %p248 = pneg %p174
        $region30: #{decoder_forward.11} parent=11 // pred_check_branch
          %250 = sbr.rel (%p248) target = $region32
        $region31: #{decoder_forward.11} parent=11 // pred_region
          _
        $region32: #{decoder_forward.11} parent=11 // pred_fallthru
          _
        // Predicated region
        $region33: #{decoder_forward.11} parent=11 // pred_check
          %p251 = pneg %p195
        $region34: #{decoder_forward.11} parent=11 // pred_check_branch
          %253 = sbr.rel (%p251) target = $region36
        $region35: #{decoder_forward.11} parent=11 // pred_region
          _
        $region36: #{decoder_forward.11} parent=11 // pred_fallthru
          _
      $region12: #{decoder_forward.11} parent=5 // pred_fallthru
        _
      %p254 = scmp.lt.s32.totalorder %s17, 2
      // Predicated region
      $region37: #{decoder_forward.11} parent=5 // pred_check
        %p255 = pneg %p254
      $region38: #{decoder_forward.11} parent=5 // pred_check_branch
        %257 = sbr.rel (%p255) target = $region40
      $region39: #{decoder_forward.11} parent=5 // pred_region
        // Predicated region
        $region41: #{decoder_forward.11} parent=39 // pred_check
          %p258 = pneg %p37
        $region42: #{decoder_forward.11} parent=39 // pred_check_branch
          %260 = sbr.rel (%p258) target = $region44
        $region43: #{decoder_forward.11} parent=39 // pred_region
          %p261 = scmp.lt.s32.totalorder %s17, 1
          %s262 = scalar_select %p261, %s17, 1
          %s263 = smul.addr %s262, 32
          %s264 = smul.addr %s263, 8
          %s265 = scalar_lea.vmem %s0, %s264
        $region44: #{decoder_forward.11} parent=39 // pred_fallthru
          _
        // Predicated region
        $region45: #{decoder_forward.11} parent=39 // pred_check
          %p266 = pneg %p63
        $region46: #{decoder_forward.11} parent=39 // pred_check_branch
          %268 = sbr.rel (%p266) target = $region48
        $region47: #{decoder_forward.11} parent=39 // pred_region
          %p269 = scmp.lt.s32.totalorder %s17, 1
          %s270 = scalar_select %p269, %s17, 1
          %s271 = smul.addr %s270, 32
          %s272 = smul.addr %s271, 8
          %s273 = scalar_lea.vmem %s1, %s272
        $region48: #{decoder_forward.11} parent=39 // pred_fallthru
          _
      $region40: #{decoder_forward.11} parent=5 // pred_fallthru
        _
      %p274 = scmp.le.s32.totalorder 1, %s17
      %p275 = scmp.lt.s32.totalorder %s17, 3
      %p276 = pnand %p274, %p275
      %p277 = pneg %p276
      // Predicated region
      $region49: #{decoder_forward.11} parent=5 // pred_check
        _
      $region50: #{decoder_forward.11} parent=5 // pred_check_branch
        %279 = sbr.rel (%p276) target = $region52
      $region51: #{decoder_forward.11} parent=5 // pred_region
        %s280 = ssub.s32 %s17, 1
        %p281 = scmp.lt.s32.totalorder %s22, 1
        %s282 = scalar_select %p281, %s22, 1
        %s283 = smul.addr %s282, 32
        %s284 = smul.addr %s283, 8
        %s285 = scalar_lea.vmem %s0, %s284
        %p286 = pneg %p43
        %p287 = pneg %p40
        %p288 = scmp.lt.s32.totalorder %s22, 1
        %s289 = scalar_select %p288, %s22, 1
        %s290 = smul.addr %s289, 32
        %s291 = smul.addr %s290, 8
        %s292 = scalar_lea.vmem %s1, %s291
        %p293 = pneg %p69
        %p294 = pneg %p66
        %p295 = pneg %p90
        %p296 = pneg %p87
        %p297 = pneg %p111
        %p298 = pneg %p108
        %p299 = pneg %p132
        %p300 = pneg %p129
        %p301 = pneg %p153
        %p302 = pneg %p150
        %p303 = pneg %p174
        %p304 = pneg %p171
        %p305 = pneg %p195
        %p306 = pneg %p192
        %p307 = pneg %p221
        %p308 = pneg %p218
        %s309 = sand.u32 %s208, 1
        %s310 = scalar_lea.sflag [#allocation3], %s309
        %s311 = sand.u32 %s208, 1
        %s312 = smul.addr %s311, 256
        %s313 = scalar_lea.vmem [#allocation2], %s312
        %p314 = scmp.lt.s32.totalorder %s22, 1
        %s315 = scalar_select %p314, %s22, 1
        %s316 = smul.addr %s315, 32
        %s317 = smul.addr %s316, 8
        %s318 = scalar_lea.vmem %s0, %s317
        %p319 = scmp.lt.s32.totalorder %s22, 1
        %s320 = scalar_select %p319, %s22, 1
        %s321 = smul.addr %s320, 32
        %s322 = smul.addr %s321, 8
        %s323 = scalar_lea.vmem %s1, %s322
        %v324 = vld [vmem:[%s318] sm:$0xff]
        %v325 = vld [vmem:[%s318 + $0x8] sm:$0xff]
        %v326 = vld [vmem:[%s318 + $0x10] sm:$0xff]
        %v327 = vld [vmem:[%s318 + $0x18] sm:$0xff]
        %v328 = vld [vmem:[%s318 + $0x20] sm:$0xff]
        %v329 = vld [vmem:[%s318 + $0x28] sm:$0xff]
        %v330 = vld [vmem:[%s318 + $0x30] sm:$0xff]
        %v331 = vld [vmem:[%s318 + $0x38] sm:$0xff]
        %v332 = vld [vmem:[%s318 + $0x40] sm:$0xff]
        %v333 = vld [vmem:[%s318 + $0x48] sm:$0xff]
        %v334 = vld [vmem:[%s318 + $0x50] sm:$0xff]
        %v335 = vld [vmem:[%s318 + $0x58] sm:$0xff]
        %v336 = vld [vmem:[%s318 + $0x60] sm:$0xff]
        %v337 = vld [vmem:[%s318 + $0x68] sm:$0xff]
        %v338 = vld [vmem:[%s318 + $0x70] sm:$0xff]
        %v339 = vld [vmem:[%s318 + $0x78] sm:$0xff]
        %v340 = vld [vmem:[%s318 + $0x80] sm:$0xff]
        %v341 = vld [vmem:[%s318 + $0x88] sm:$0xff]
        %v342 = vld [vmem:[%s318 + $0x90] sm:$0xff]
        %v343 = vld [vmem:[%s318 + $0x98] sm:$0xff]
        %v344 = vld [vmem:[%s318 + $0xa0] sm:$0xff]
        %v345 = vld [vmem:[%s318 + $0xa8] sm:$0xff]
        %v346 = vld [vmem:[%s318 + $0xb0] sm:$0xff]
        %v347 = vld [vmem:[%s318 + $0xb8] sm:$0xff]
        %v348 = vld [vmem:[%s318 + $0xc0] sm:$0xff]
        %v349 = vld [vmem:[%s318 + $0xc8] sm:$0xff]
        %v350 = vld [vmem:[%s318 + $0xd0] sm:$0xff]
        %v351 = vld [vmem:[%s318 + $0xd8] sm:$0xff]
        %v352 = vld [vmem:[%s318 + $0xe0] sm:$0xff]
        %v353 = vld [vmem:[%s318 + $0xe8] sm:$0xff]
        %v354 = vld [vmem:[%s318 + $0xf0] sm:$0xff]
        %v355 = vld [vmem:[%s318 + $0xf8] sm:$0xff]
        %v356 = vld [vmem:[%s2] sm:$0xff]
        %v357 = vld [vmem:[%s2 + $0x8] sm:$0xff]
        %v358 = vld [vmem:[%s323] sm:$0xff]
        %v359 = vld [vmem:[%s323 + $0x8] sm:$0xff]
        %v360 = vld [vmem:[%s323 + $0x10] sm:$0xff]
        %v361 = vld [vmem:[%s323 + $0x18] sm:$0xff]
        %v362 = vld [vmem:[%s323 + $0x20] sm:$0xff]
        %v363 = vld [vmem:[%s323 + $0x28] sm:$0xff]
        %v364 = vld [vmem:[%s323 + $0x30] sm:$0xff]
        %v365 = vld [vmem:[%s323 + $0x38] sm:$0xff]
        %v366 = vld [vmem:[%s323 + $0x40] sm:$0xff]
        %v367 = vld [vmem:[%s323 + $0x48] sm:$0xff]
        %v368 = vld [vmem:[%s323 + $0x50] sm:$0xff]
        %v369 = vld [vmem:[%s323 + $0x58] sm:$0xff]
        %v370 = vld [vmem:[%s323 + $0x60] sm:$0xff]
        %v371 = vld [vmem:[%s323 + $0x68] sm:$0xff]
        %v372 = vld [vmem:[%s323 + $0x70] sm:$0xff]
        %v373 = vld [vmem:[%s323 + $0x78] sm:$0xff]
        %v374 = vld [vmem:[%s323 + $0x80] sm:$0xff]
        %v375 = vld [vmem:[%s323 + $0x88] sm:$0xff]
        %v376 = vld [vmem:[%s323 + $0x90] sm:$0xff]
        %v377 = vld [vmem:[%s323 + $0x98] sm:$0xff]
        %v378 = vld [vmem:[%s323 + $0xa0] sm:$0xff]
        %v379 = vld [vmem:[%s323 + $0xa8] sm:$0xff]
        %v380 = vld [vmem:[%s323 + $0xb0] sm:$0xff]
        %v381 = vld [vmem:[%s323 + $0xb8] sm:$0xff]
        %v382 = vld [vmem:[%s323 + $0xc0] sm:$0xff]
        %v383 = vld [vmem:[%s323 + $0xc8] sm:$0xff]
        %v384 = vld [vmem:[%s323 + $0xd0] sm:$0xff]
        %v385 = vld [vmem:[%s323 + $0xd8] sm:$0xff]
        %v386 = vld [vmem:[%s323 + $0xe0] sm:$0xff]
        %v387 = vld [vmem:[%s323 + $0xe8] sm:$0xff]
        %v388 = vld [vmem:[%s323 + $0xf0] sm:$0xff]
        %v389 = vld [vmem:[%s323 + $0xf8] sm:$0xff]
        %v390 = vld [vmem:[%s3] sm:$0xff]
        %v391 = vld [vmem:[%s3 + $0x8] sm:$0xff]
        %vm392 = vcmask 130048
        %v394 = vsel %vm392, %v358, 0
        %v397 = vsel %vm392, %v359, 0
        %v400 = vsel %vm392, %v360, 0
        %v403 = vsel %vm392, %v361, 0
        %v406 = vsel %vm392, %v362, 0
        %v409 = vsel %vm392, %v363, 0
        %v412 = vsel %vm392, %v364, 0
        %v415 = vsel %vm392, %v365, 0
        %v418 = vsel %vm392, %v366, 0
        %v421 = vsel %vm392, %v367, 0
        %v424 = vsel %vm392, %v368, 0
        %v427 = vsel %vm392, %v369, 0
        %v430 = vsel %vm392, %v370, 0
        %v433 = vsel %vm392, %v371, 0
        %v436 = vsel %vm392, %v372, 0
        %v439 = vsel %vm392, %v373, 0
        %v442 = vsel %vm392, %v374, 0
        %v445 = vsel %vm392, %v375, 0
        %v448 = vsel %vm392, %v376, 0
        %v451 = vsel %vm392, %v377, 0
        %v454 = vsel %vm392, %v378, 0
        %v457 = vsel %vm392, %v379, 0
        %v460 = vsel %vm392, %v380, 0
        %v463 = vsel %vm392, %v381, 0
        %v466 = vsel %vm392, %v382, 0
        %v469 = vsel %vm392, %v383, 0
        %v472 = vsel %vm392, %v384, 0
        %v475 = vsel %vm392, %v385, 0
        %v478 = vsel %vm392, %v386, 0
        %v481 = vsel %vm392, %v387, 0
        %v484 = vsel %vm392, %v388, 0
        %v487 = vsel %vm392, %v389, 0
        %489 = vmatprep.subr.mxu0 0.0
        %490 = vmatpush1.msra.mxu0 %v390
        %491 = vmatprep.subr.mxu0 0.0
        %492 = vmatpush1.msra.mxu0 %v391
        %493 = vmatprep.subr.mxu0 0.0
        %494 = vmatpush1.msra.mxu0 0.0
        %495 = vmatprep.subr.mxu0 0.0
        %496 = vmatpush1.msra.mxu0 0.0
        %497 = vmatprep.subr.mxu0 0.0
        %498 = vmatpush1.msra.mxu0 0.0
        %499 = vmatprep.subr.mxu0 0.0
        %500 = vmatpush1.msra.mxu0 0.0
        %501 = vmatprep.subr.mxu0 0.0
        %502 = vmatpush1.msra.mxu0 0.0
        %503 = vmatprep.subr.mxu0 0.0
        %504 = vmatpush1.msra.mxu0 0.0
        %505 = vmatprep.subr.mxu0 0.0
        %506 = vmatpush1.msra.mxu0 0.0
        %507 = vmatprep.subr.mxu0 0.0
        %508 = vmatpush1.msra.mxu0 0.0
        %509 = vmatprep.subr.mxu0 0.0
        %510 = vmatpush1.msra.mxu0 0.0
        %511 = vmatprep.subr.mxu0 0.0
        %512 = vmatpush1.msra.mxu0 0.0
        %513 = vmatprep.subr.mxu0 0.0
        %514 = vmatpush1.msra.mxu0 0.0
        %515 = vmatprep.subr.mxu0 0.0
        %516 = vmatpush1.msra.mxu0 0.0
        %517 = vmatprep.subr.mxu0 0.0
        %518 = vmatpush1.msra.mxu0 0.0
        %519 = vmatprep.subr.mxu0 0.0
        %520 = vmatpush1.msra.mxu0 0.0
        %521 = vmatprep.subr.mxu0 0.0
        %522 = vmatpush1.msra.mxu0 0.0
        %523 = vmatprep.subr.mxu0 0.0
        %524 = vmatpush1.msra.mxu0 0.0
        %525 = vmatprep.subr.mxu0 0.0
        %526 = vmatpush1.msra.mxu0 0.0
        %527 = vmatprep.subr.mxu0 0.0
        %528 = vmatpush1.msra.mxu0 0.0
        %529 = vmatprep.subr.mxu0 0.0
        %530 = vmatpush1.msra.mxu0 0.0
        %531 = vmatprep.subr.mxu0 0.0
        %532 = vmatpush1.msra.mxu0 0.0
        %533 = vmatprep.subr.mxu0 0.0
        %534 = vmatpush1.msra.mxu0 0.0
        %535 = vmatprep.subr.mxu0 0.0
        %536 = vmatpush1.msra.mxu0 0.0
        %537 = vmatprep.subr.mxu0 0.0
        %538 = vmatpush1.msra.mxu0 0.0
        %539 = vmatprep.subr.mxu0 0.0
        %540 = vmatpush1.msra.mxu0 0.0
        %541 = vmatprep.subr.mxu0 0.0
        %542 = vmatpush1.msra.mxu0 0.0
        %543 = vmatprep.subr.mxu0 0.0
        %544 = vmatpush1.msra.mxu0 0.0
        %545 = vmatprep.subr.mxu0 0.0
        %546 = vmatpush1.msra.mxu0 0.0
        %547 = vmatprep.subr.mxu0 0.0
        %548 = vmatpush1.msra.mxu0 0.0
        %549 = vmatprep.subr.mxu0 0.0
        %550 = vmatpush1.msra.mxu0 0.0
        %551 = vmatprep.subr.mxu0 0.0
        %552 = vmatpush1.msra.mxu0 0.0
        %553 = vmatprep.mubr.f32.mxu0 0.0
        %554 = vmatmul.mubr.f32.gmra.mrb[0].mxu0 %v394
        %v555 = vpop.f32.mrb[0].mxu0
        %v556 = vadd.f32 0.0, %v555
        %v557 = vpop.f32.mrb[0].mxu0
        %558 = vmatprep.mubr.f32.mxu0 0.0
        %559 = vmatmul.mubr.f32.gmra.mrb[0].mxu0 %v397
        %v560 = vpop.f32.mrb[0].mxu0
        %v561 = vadd.f32 0.0, %v560
        %v562 = vpop.f32.mrb[0].mxu0
        %563 = vmatprep.mubr.f32.mxu0 0.0
        %564 = vmatmul.mubr.f32.gmra.mrb[0].mxu0 %v400
        %v565 = vpop.f32.mrb[0].mxu0
        %v566 = vadd.f32 0.0, %v565
        %v567 = vpop.f32.mrb[0].mxu0
        %568 = vmatprep.mubr.f32.mxu0 0.0
        %569 = vmatmul.mubr.f32.gmra.mrb[0].mxu0 %v403
        %v570 = vpop.f32.mrb[0].mxu0
        %v571 = vadd.f32 0.0, %v570
        %v572 = vpop.f32.mrb[0].mxu0
        %573 = vmatprep.mubr.f32.mxu0 0.0
        %574 = vmatmul.mubr.f32.gmra.mrb[0].mxu0 %v406
        %v575 = vpop.f32.mrb[0].mxu0
        %v576 = vadd.f32 0.0, %v575
        %v577 = vpop.f32.mrb[0].mxu0
        %578 = vmatprep.mubr.f32.mxu0 0.0
        %579 = vmatmul.mubr.f32.gmra.mrb[0].mxu0 %v409
        %v580 = vpop.f32.mrb[0].mxu0
        %v581 = vadd.f32 0.0, %v580
        %v582 = vpop.f32.mrb[0].mxu0
        %583 = vmatprep.mubr.f32.mxu0 0.0
        %584 = vmatmul.mubr.f32.gmra.mrb[0].mxu0 %v412
        %v585 = vpop.f32.mrb[0].mxu0
        %v586 = vadd.f32 0.0, %v585
        %v587 = vpop.f32.mrb[0].mxu0
        %588 = vmatprep.mubr.f32.mxu0 0.0
        %589 = vmatmul.mubr.f32.gmra.mrb[0].mxu0 %v415
        %v590 = vpop.f32.mrb[0].mxu0
        %v591 = vadd.f32 0.0, %v590
        %v592 = vpop.f32.mrb[0].mxu0
        %593 = vmatprep.mubr.f32.mxu0 0.0
        %594 = vmatmul.mubr.f32.gmra.mrb[0].mxu0 %v418
        %v595 = vpop.f32.mrb[0].mxu0
        %v596 = vadd.f32 0.0, %v595
        %v597 = vpop.f32.mrb[0].mxu0
        %598 = vmatprep.mubr.f32.mxu0 0.0
        %599 = vmatmul.mubr.f32.gmra.mrb[0].mxu0 %v421
        %v600 = vpop.f32.mrb[0].mxu0
        %v601 = vadd.f32 0.0, %v600
        %v602 = vpop.f32.mrb[0].mxu0
        %603 = vmatprep.mubr.f32.mxu0 0.0
        %604 = vmatmul.mubr.f32.gmra.mrb[0].mxu0 %v424
        %v605 = vpop.f32.mrb[0].mxu0
        %v606 = vadd.f32 0.0, %v605
        %v607 = vpop.f32.mrb[0].mxu0
        %608 = vmatprep.mubr.f32.mxu0 0.0
        %609 = vmatmul.mubr.f32.gmra.mrb[0].mxu0 %v427
        %v610 = vpop.f32.mrb[0].mxu0
        %v611 = vadd.f32 0.0, %v610
        %v612 = vpop.f32.mrb[0].mxu0
        %613 = vmatprep.mubr.f32.mxu0 0.0
        %614 = vmatmul.mubr.f32.gmra.mrb[0].mxu0 %v430
        %v615 = vpop.f32.mrb[0].mxu0
        %v616 = vadd.f32 0.0, %v615
        %v617 = vpop.f32.mrb[0].mxu0
        %618 = vmatprep.mubr.f32.mxu0 0.0
        %619 = vmatmul.mubr.f32.gmra.mrb[0].mxu0 %v433
        %v620 = vpop.f32.mrb[0].mxu0
        %v621 = vadd.f32 0.0, %v620
        %v622 = vpop.f32.mrb[0].mxu0
        %623 = vmatprep.mubr.f32.mxu0 0.0
        %624 = vmatmul.mubr.f32.gmra.mrb[0].mxu0 %v436
        %v625 = vpop.f32.mrb[0].mxu0
        %v626 = vadd.f32 0.0, %v625
        %v627 = vpop.f32.mrb[0].mxu0
        %628 = vmatprep.mubr.f32.mxu0 0.0
        %629 = vmatmul.mubr.f32.gmra.mrb[0].mxu0 %v439
        %v630 = vpop.f32.mrb[0].mxu0
        %v631 = vadd.f32 0.0, %v630
        %v632 = vpop.f32.mrb[0].mxu0
        %633 = vmatprep.mubr.f32.mxu0 0.0
        %634 = vmatmul.mubr.f32.gmra.mrb[0].mxu0 %v442
        %v635 = vpop.f32.mrb[0].mxu0
        %v636 = vadd.f32 0.0, %v635
        %v637 = vpop.f32.mrb[0].mxu0
        %638 = vmatprep.mubr.f32.mxu0 0.0
        %639 = vmatmul.mubr.f32.gmra.mrb[0].mxu0 %v445
        %v640 = vpop.f32.mrb[0].mxu0
        %v641 = vadd.f32 0.0, %v640
        %v642 = vpop.f32.mrb[0].mxu0
        %643 = vmatprep.mubr.f32.mxu0 0.0
        %644 = vmatmul.mubr.f32.gmra.mrb[0].mxu0 %v448
        %v645 = vpop.f32.mrb[0].mxu0
        %v646 = vadd.f32 0.0, %v645
        %v647 = vpop.f32.mrb[0].mxu0
        %648 = vmatprep.mubr.f32.mxu0 0.0
        %649 = vmatmul.mubr.f32.gmra.mrb[0].mxu0 %v451
        %v650 = vpop.f32.mrb[0].mxu0
        %v651 = vadd.f32 0.0, %v650
        %v652 = vpop.f32.mrb[0].mxu0
        %653 = vmatprep.mubr.f32.mxu0 0.0
        %654 = vmatmul.mubr.f32.gmra.mrb[0].mxu0 %v454
        %v655 = vpop.f32.mrb[0].mxu0
        %v656 = vadd.f32 0.0, %v655
        %v657 = vpop.f32.mrb[0].mxu0
        %658 = vmatprep.mubr.f32.mxu0 0.0
        %659 = vmatmul.mubr.f32.gmra.mrb[0].mxu0 %v457
        %v660 = vpop.f32.mrb[0].mxu0
        %v661 = vadd.f32 0.0, %v660
        %v662 = vpop.f32.mrb[0].mxu0
        %663 = vmatprep.mubr.f32.mxu0 0.0
        %664 = vmatmul.mubr.f32.gmra.mrb[0].mxu0 %v460
        %v665 = vpop.f32.mrb[0].mxu0
        %v666 = vadd.f32 0.0, %v665
        %v667 = vpop.f32.mrb[0].mxu0
        %668 = vmatprep.mubr.f32.mxu0 0.0
        %669 = vmatmul.mubr.f32.gmra.mrb[0].mxu0 %v463
        %v670 = vpop.f32.mrb[0].mxu0
        %v671 = vadd.f32 0.0, %v670
        %v672 = vpop.f32.mrb[0].mxu0
        %673 = vmatprep.mubr.f32.mxu0 0.0
        %674 = vmatmul.mubr.f32.gmra.mrb[0].mxu0 %v466
        %v675 = vpop.f32.mrb[0].mxu0
        %v676 = vadd.f32 0.0, %v675
        %v677 = vpop.f32.mrb[0].mxu0
        %678 = vmatprep.mubr.f32.mxu0 0.0
        %679 = vmatmul.mubr.f32.gmra.mrb[0].mxu0 %v469
        %v680 = vpop.f32.mrb[0].mxu0
        %v681 = vadd.f32 0.0, %v680
        %v682 = vpop.f32.mrb[0].mxu0
        %683 = vmatprep.mubr.f32.mxu0 0.0
        %684 = vmatmul.mubr.f32.gmra.mrb[0].mxu0 %v472
        %v685 = vpop.f32.mrb[0].mxu0
        %v686 = vadd.f32 0.0, %v685
        %v687 = vpop.f32.mrb[0].mxu0
        %688 = vmatprep.mubr.f32.mxu0 0.0
        %689 = vmatmul.mubr.f32.gmra.mrb[0].mxu0 %v475
        %v690 = vpop.f32.mrb[0].mxu0
        %v691 = vadd.f32 0.0, %v690
        %v692 = vpop.f32.mrb[0].mxu0
        %693 = vmatprep.mubr.f32.mxu0 0.0
        %694 = vmatmul.mubr.f32.gmra.mrb[0].mxu0 %v478
        %v695 = vpop.f32.mrb[0].mxu0
        %v696 = vadd.f32 0.0, %v695
        %v697 = vpop.f32.mrb[0].mxu0
        %698 = vmatprep.mubr.f32.mxu0 0.0
        %699 = vmatmul.mubr.f32.gmra.mrb[0].mxu0 %v481
        %v700 = vpop.f32.mrb[0].mxu0
        %v701 = vadd.f32 0.0, %v700
        %v702 = vpop.f32.mrb[0].mxu0
        %703 = vmatprep.mubr.f32.mxu0 0.0
        %704 = vmatmul.mubr.f32.gmra.mrb[0].mxu0 %v484
        %v705 = vpop.f32.mrb[0].mxu0
        %v706 = vadd.f32 0.0, %v705
        %v707 = vpop.f32.mrb[0].mxu0
        %708 = vmatprep.mubr.f32.mxu0 0.0
        %709 = vmatmul.mubr.f32.gmra.mrb[0].mxu0 %v487
        %v710 = vpop.f32.mrb[0].mxu0
        %v711 = vadd.f32 0.0, %v710
        %v712 = vpop.f32.mrb[0].mxu0
        %713 = vdwg.mxu0
        %v715 = vsel %vm392, %v324, 0
        %v718 = vsel %vm392, %v325, 0
        %v721 = vsel %vm392, %v326, 0
        %v724 = vsel %vm392, %v327, 0
        %v727 = vsel %vm392, %v328, 0
        %v730 = vsel %vm392, %v329, 0
        %v733 = vsel %vm392, %v330, 0
        %v736 = vsel %vm392, %v331, 0
        %v739 = vsel %vm392, %v332, 0
        %v742 = vsel %vm392, %v333, 0
        %v745 = vsel %vm392, %v334, 0
        %v748 = vsel %vm392, %v335, 0
        %v751 = vsel %vm392, %v336, 0
        %v754 = vsel %vm392, %v337, 0
        %v757 = vsel %vm392, %v338, 0
        %v760 = vsel %vm392, %v339, 0
        %v763 = vsel %vm392, %v340, 0
        %v766 = vsel %vm392, %v341, 0
        %v769 = vsel %vm392, %v342, 0
        %v772 = vsel %vm392, %v343, 0
        %v775 = vsel %vm392, %v344, 0
        %v778 = vsel %vm392, %v345, 0
        %v781 = vsel %vm392, %v346, 0
        %v784 = vsel %vm392, %v347, 0
        %v787 = vsel %vm392, %v348, 0
        %v790 = vsel %vm392, %v349, 0
        %v793 = vsel %vm392, %v350, 0
        %v796 = vsel %vm392, %v351, 0
        %v799 = vsel %vm392, %v352, 0
        %v802 = vsel %vm392, %v353, 0
        %v805 = vsel %vm392, %v354, 0
        %v808 = vsel %vm392, %v355, 0
        %810 = vmatprep.subr.mxu0 0.0
        %811 = vmatpush1.msra.mxu0 %v356
        %812 = vmatprep.subr.mxu0 0.0
        %813 = vmatpush1.msra.mxu0 %v357
        %814 = vmatprep.subr.mxu0 0.0
        %815 = vmatpush1.msra.mxu0 0.0
        %816 = vmatprep.subr.mxu0 0.0
        %817 = vmatpush1.msra.mxu0 0.0
        %818 = vmatprep.subr.mxu0 0.0
        %819 = vmatpush1.msra.mxu0 0.0
        %820 = vmatprep.subr.mxu0 0.0
        %821 = vmatpush1.msra.mxu0 0.0
        %822 = vmatprep.subr.mxu0 0.0
        %823 = vmatpush1.msra.mxu0 0.0
        %824 = vmatprep.subr.mxu0 0.0
        %825 = vmatpush1.msra.mxu0 0.0
        %826 = vmatprep.subr.mxu0 0.0
        %827 = vmatpush1.msra.mxu0 0.0
        %828 = vmatprep.subr.mxu0 0.0
        %829 = vmatpush1.msra.mxu0 0.0
        %830 = vmatprep.subr.mxu0 0.0
        %831 = vmatpush1.msra.mxu0 0.0
        %832 = vmatprep.subr.mxu0 0.0
        %833 = vmatpush1.msra.mxu0 0.0
        %834 = vmatprep.subr.mxu0 0.0
        %835 = vmatpush1.msra.mxu0 0.0
        %836 = vmatprep.subr.mxu0 0.0
        %837 = vmatpush1.msra.mxu0 0.0
        %838 = vmatprep.subr.mxu0 0.0
        %839 = vmatpush1.msra.mxu0 0.0
        %840 = vmatprep.subr.mxu0 0.0
        %841 = vmatpush1.msra.mxu0 0.0
        %842 = vmatprep.subr.mxu0 0.0
        %843 = vmatpush1.msra.mxu0 0.0
        %844 = vmatprep.subr.mxu0 0.0
        %845 = vmatpush1.msra.mxu0 0.0
        %846 = vmatprep.subr.mxu0 0.0
        %847 = vmatpush1.msra.mxu0 0.0
        %848 = vmatprep.subr.mxu0 0.0
        %849 = vmatpush1.msra.mxu0 0.0
        %850 = vmatprep.subr.mxu0 0.0
        %851 = vmatpush1.msra.mxu0 0.0
        %852 = vmatprep.subr.mxu0 0.0
        %853 = vmatpush1.msra.mxu0 0.0
        %854 = vmatprep.subr.mxu0 0.0
        %855 = vmatpush1.msra.mxu0 0.0
        %856 = vmatprep.subr.mxu0 0.0
        %857 = vmatpush1.msra.mxu0 0.0
        %858 = vmatprep.subr.mxu0 0.0
        %859 = vmatpush1.msra.mxu0 0.0
        %860 = vmatprep.subr.mxu0 0.0
        %861 = vmatpush1.msra.mxu0 0.0
        %862 = vmatprep.subr.mxu0 0.0
        %863 = vmatpush1.msra.mxu0 0.0
        %864 = vmatprep.subr.mxu0 0.0
        %865 = vmatpush1.msra.mxu0 0.0
        %866 = vmatprep.subr.mxu0 0.0
        %867 = vmatpush1.msra.mxu0 0.0
        %868 = vmatprep.subr.mxu0 0.0
        %869 = vmatpush1.msra.mxu0 0.0
        %870 = vmatprep.subr.mxu0 0.0
        %871 = vmatpush1.msra.mxu0 0.0
        %872 = vmatprep.subr.mxu0 0.0
        %873 = vmatpush1.msra.mxu0 0.0
        %874 = vmatprep.mubr.f32.mxu0 0.0
        %875 = vmatmul.mubr.f32.gmra.mrb[0].mxu0 %v715
        %v876 = vpop.f32.mrb[0].mxu0
        %v877 = vadd.f32 %v556, %v876
        %v878 = vpop.f32.mrb[0].mxu0
        %879 = vmatprep.mubr.f32.mxu0 0.0
        %880 = vmatmul.mubr.f32.gmra.mrb[0].mxu0 %v718
        %v881 = vpop.f32.mrb[0].mxu0
        %v882 = vadd.f32 %v561, %v881
        %v883 = vpop.f32.mrb[0].mxu0
        %884 = vmatprep.mubr.f32.mxu0 0.0
        %885 = vmatmul.mubr.f32.gmra.mrb[0].mxu0 %v721
        %v886 = vpop.f32.mrb[0].mxu0
        %v887 = vadd.f32 %v566, %v886
        %v888 = vpop.f32.mrb[0].mxu0
        %889 = vmatprep.mubr.f32.mxu0 0.0
        %890 = vmatmul.mubr.f32.gmra.mrb[0].mxu0 %v724
        %v891 = vpop.f32.mrb[0].mxu0
        %v892 = vadd.f32 %v571, %v891
        %v893 = vpop.f32.mrb[0].mxu0
        %894 = vmatprep.mubr.f32.mxu0 0.0
        %895 = vmatmul.mubr.f32.gmra.mrb[0].mxu0 %v727
        %v896 = vpop.f32.mrb[0].mxu0
        %v897 = vadd.f32 %v576, %v896
        %v898 = vpop.f32.mrb[0].mxu0
        %899 = vmatprep.mubr.f32.mxu0 0.0
        %900 = vmatmul.mubr.f32.gmra.mrb[0].mxu0 %v730
        %v901 = vpop.f32.mrb[0].mxu0
        %v902 = vadd.f32 %v581, %v901
        %v903 = vpop.f32.mrb[0].mxu0
        %904 = vmatprep.mubr.f32.mxu0 0.0
        %905 = vmatmul.mubr.f32.gmra.mrb[0].mxu0 %v733
        %v906 = vpop.f32.mrb[0].mxu0
        %v907 = vadd.f32 %v586, %v906
        %v908 = vpop.f32.mrb[0].mxu0
        %909 = vmatprep.mubr.f32.mxu0 0.0
        %910 = vmatmul.mubr.f32.gmra.mrb[0].mxu0 %v736
        %v911 = vpop.f32.mrb[0].mxu0
        %v912 = vadd.f32 %v591, %v911
        %v913 = vpop.f32.mrb[0].mxu0
        %914 = vmatprep.mubr.f32.mxu0 0.0
        %915 = vmatmul.mubr.f32.gmra.mrb[0].mxu0 %v739
        %v916 = vpop.f32.mrb[0].mxu0
        %v917 = vadd.f32 %v596, %v916
        %v918 = vpop.f32.mrb[0].mxu0
        %919 = vmatprep.mubr.f32.mxu0 0.0
        %920 = vmatmul.mubr.f32.gmra.mrb[0].mxu0 %v742
        %v921 = vpop.f32.mrb[0].mxu0
        %v922 = vadd.f32 %v601, %v921
        %v923 = vpop.f32.mrb[0].mxu0
        %924 = vmatprep.mubr.f32.mxu0 0.0
        %925 = vmatmul.mubr.f32.gmra.mrb[0].mxu0 %v745
        %v926 = vpop.f32.mrb[0].mxu0
        %v927 = vadd.f32 %v606, %v926
        %v928 = vpop.f32.mrb[0].mxu0
        %929 = vmatprep.mubr.f32.mxu0 0.0
        %930 = vmatmul.mubr.f32.gmra.mrb[0].mxu0 %v748
        %v931 = vpop.f32.mrb[0].mxu0
        %v932 = vadd.f32 %v611, %v931
        %v933 = vpop.f32.mrb[0].mxu0
        %934 = vmatprep.mubr.f32.mxu0 0.0
        %935 = vmatmul.mubr.f32.gmra.mrb[0].mxu0 %v751
        %v936 = vpop.f32.mrb[0].mxu0
        %v937 = vadd.f32 %v616, %v936
        %v938 = vpop.f32.mrb[0].mxu0
        %939 = vmatprep.mubr.f32.mxu0 0.0
        %940 = vmatmul.mubr.f32.gmra.mrb[0].mxu0 %v754
        %v941 = vpop.f32.mrb[0].mxu0
        %v942 = vadd.f32 %v621, %v941
        %v943 = vpop.f32.mrb[0].mxu0
        %944 = vmatprep.mubr.f32.mxu0 0.0
        %945 = vmatmul.mubr.f32.gmra.mrb[0].mxu0 %v757
        %v946 = vpop.f32.mrb[0].mxu0
        %v947 = vadd.f32 %v626, %v946
        %v948 = vpop.f32.mrb[0].mxu0
        %949 = vmatprep.mubr.f32.mxu0 0.0
        %950 = vmatmul.mubr.f32.gmra.mrb[0].mxu0 %v760
        %v951 = vpop.f32.mrb[0].mxu0
        %v952 = vadd.f32 %v631, %v951
        %v953 = vpop.f32.mrb[0].mxu0
        %954 = vmatprep.mubr.f32.mxu0 0.0
        %955 = vmatmul.mubr.f32.gmra.mrb[0].mxu0 %v763
        %v956 = vpop.f32.mrb[0].mxu0
        %v957 = vadd.f32 %v636, %v956
        %v958 = vpop.f32.mrb[0].mxu0
        %959 = vmatprep.mubr.f32.mxu0 0.0
        %960 = vmatmul.mubr.f32.gmra.mrb[0].mxu0 %v766
        %v961 = vpop.f32.mrb[0].mxu0
        %v962 = vadd.f32 %v641, %v961
        %v963 = vpop.f32.mrb[0].mxu0
        %964 = vmatprep.mubr.f32.mxu0 0.0
        %965 = vmatmul.mubr.f32.gmra.mrb[0].mxu0 %v769
        %v966 = vpop.f32.mrb[0].mxu0
        %v967 = vadd.f32 %v646, %v966
        %v968 = vpop.f32.mrb[0].mxu0
        %969 = vmatprep.mubr.f32.mxu0 0.0
        %970 = vmatmul.mubr.f32.gmra.mrb[0].mxu0 %v772
        %v971 = vpop.f32.mrb[0].mxu0
        %v972 = vadd.f32 %v651, %v971
        %v973 = vpop.f32.mrb[0].mxu0
        %974 = vmatprep.mubr.f32.mxu0 0.0
        %975 = vmatmul.mubr.f32.gmra.mrb[0].mxu0 %v775
        %v976 = vpop.f32.mrb[0].mxu0
        %v977 = vadd.f32 %v656, %v976
        %v978 = vpop.f32.mrb[0].mxu0
        %979 = vmatprep.mubr.f32.mxu0 0.0
        %980 = vmatmul.mubr.f32.gmra.mrb[0].mxu0 %v778
        %v981 = vpop.f32.mrb[0].mxu0
        %v982 = vadd.f32 %v661, %v981
        %v983 = vpop.f32.mrb[0].mxu0
        %984 = vmatprep.mubr.f32.mxu0 0.0
        %985 = vmatmul.mubr.f32.gmra.mrb[0].mxu0 %v781
        %v986 = vpop.f32.mrb[0].mxu0
        %v987 = vadd.f32 %v666, %v986
        %v988 = vpop.f32.mrb[0].mxu0
        %989 = vmatprep.mubr.f32.mxu0 0.0
        %990 = vmatmul.mubr.f32.gmra.mrb[0].mxu0 %v784
        %v991 = vpop.f32.mrb[0].mxu0
        %v992 = vadd.f32 %v671, %v991
        %v993 = vpop.f32.mrb[0].mxu0
        %994 = vmatprep.mubr.f32.mxu0 0.0
        %995 = vmatmul.mubr.f32.gmra.mrb[0].mxu0 %v787
        %v996 = vpop.f32.mrb[0].mxu0
        %v997 = vadd.f32 %v676, %v996
        %v998 = vpop.f32.mrb[0].mxu0
        %999 = vmatprep.mubr.f32.mxu0 0.0
        %1000 = vmatmul.mubr.f32.gmra.mrb[0].mxu0 %v790
        %v1001 = vpop.f32.mrb[0].mxu0
        %v1002 = vadd.f32 %v681, %v1001
        %v1003 = vpop.f32.mrb[0].mxu0
        %1004 = vmatprep.mubr.f32.mxu0 0.0
        %1005 = vmatmul.mubr.f32.gmra.mrb[0].mxu0 %v793
        %v1006 = vpop.f32.mrb[0].mxu0
        %v1007 = vadd.f32 %v686, %v1006
        %v1008 = vpop.f32.mrb[0].mxu0
        %1009 = vmatprep.mubr.f32.mxu0 0.0
        %1010 = vmatmul.mubr.f32.gmra.mrb[0].mxu0 %v796
        %v1011 = vpop.f32.mrb[0].mxu0
        %v1012 = vadd.f32 %v691, %v1011
        %v1013 = vpop.f32.mrb[0].mxu0
        %1014 = vmatprep.mubr.f32.mxu0 0.0
        %1015 = vmatmul.mubr.f32.gmra.mrb[0].mxu0 %v799
        %v1016 = vpop.f32.mrb[0].mxu0
        %v1017 = vadd.f32 %v696, %v1016
        %v1018 = vpop.f32.mrb[0].mxu0
        %1019 = vmatprep.mubr.f32.mxu0 0.0
        %1020 = vmatmul.mubr.f32.gmra.mrb[0].mxu0 %v802
        %v1021 = vpop.f32.mrb[0].mxu0
        %v1022 = vadd.f32 %v701, %v1021
        %v1023 = vpop.f32.mrb[0].mxu0
        %1024 = vmatprep.mubr.f32.mxu0 0.0
        %1025 = vmatmul.mubr.f32.gmra.mrb[0].mxu0 %v805
        %v1026 = vpop.f32.mrb[0].mxu0
        %v1027 = vadd.f32 %v706, %v1026
        %v1028 = vpop.f32.mrb[0].mxu0
        %1029 = vmatprep.mubr.f32.mxu0 0.0
        %1030 = vmatmul.mubr.f32.gmra.mrb[0].mxu0 %v808
        %v1031 = vpop.f32.mrb[0].mxu0
        %v1032 = vadd.f32 %v711, %v1031
        %v1033 = vpop.f32.mrb[0].mxu0
        %1034 = vdwg.mxu0
        %v1035 = vld [vmem:[%s4] sm:$0x1]
        %v1037 = vlaneseq
        %v1038 = vshrl.u32 %v1037, 7
        %v1039 = vsub.s32 0, %v1038
        %v1040 = vrot.slane %v1035, %v1039
        %v1042 = vadd.f32 %v877, %v1040
        %v1043 = vadd.f32 %v882, %v1040
        %v1044 = vadd.f32 %v887, %v1040
        %v1045 = vadd.f32 %v892, %v1040
        %v1046 = vadd.f32 %v897, %v1040
        %v1047 = vadd.f32 %v902, %v1040
        %v1048 = vadd.f32 %v907, %v1040
        %v1049 = vadd.f32 %v912, %v1040
        %v1050 = vadd.f32 %v917, %v1040
        %v1051 = vadd.f32 %v922, %v1040
        %v1052 = vadd.f32 %v927, %v1040
        %v1053 = vadd.f32 %v932, %v1040
        %v1054 = vadd.f32 %v937, %v1040
        %v1055 = vadd.f32 %v942, %v1040
        %v1056 = vadd.f32 %v947, %v1040
        %v1057 = vadd.f32 %v952, %v1040
        %v1058 = vadd.f32 %v957, %v1040
        %v1059 = vadd.f32 %v962, %v1040
        %v1060 = vadd.f32 %v967, %v1040
        %v1061 = vadd.f32 %v972, %v1040
        %v1062 = vadd.f32 %v977, %v1040
        %v1063 = vadd.f32 %v982, %v1040
        %v1064 = vadd.f32 %v987, %v1040
        %v1065 = vadd.f32 %v992, %v1040
        %v1066 = vadd.f32 %v997, %v1040
        %v1067 = vadd.f32 %v1002, %v1040
        %v1068 = vadd.f32 %v1007, %v1040
        %v1069 = vadd.f32 %v1012, %v1040
        %v1070 = vadd.f32 %v1017, %v1040
        %v1071 = vadd.f32 %v1022, %v1040
        %v1072 = vadd.f32 %v1027, %v1040
        %v1073 = vadd.f32 %v1032, %v1040
        %v1074 = vsel %vm392, %v1042, 0.0
        %v1075 = vsel %vm392, %v1043, 0.0
        %v1076 = vadd.f32 %v1074, %v1075
        %v1077 = vsel %vm392, %v1044, 0.0
        %v1078 = vadd.f32 %v1076, %v1077
        %v1079 = vsel %vm392, %v1045, 0.0
        %v1080 = vadd.f32 %v1078, %v1079
        %v1081 = vsel %vm392, %v1046, 0.0
        %v1082 = vadd.f32 %v1080, %v1081
        %v1083 = vsel %vm392, %v1047, 0.0
        %v1084 = vadd.f32 %v1082, %v1083
        %v1085 = vsel %vm392, %v1048, 0.0
        %v1086 = vadd.f32 %v1084, %v1085
        %v1087 = vsel %vm392, %v1049, 0.0
        %v1088 = vadd.f32 %v1086, %v1087
        %v1089 = vsel %vm392, %v1050, 0.0
        %v1090 = vadd.f32 %v1088, %v1089
        %v1091 = vsel %vm392, %v1051, 0.0
        %v1092 = vadd.f32 %v1090, %v1091
        %v1093 = vsel %vm392, %v1052, 0.0
        %v1094 = vadd.f32 %v1092, %v1093
        %v1095 = vsel %vm392, %v1053, 0.0
        %v1096 = vadd.f32 %v1094, %v1095
        %v1097 = vsel %vm392, %v1054, 0.0
        %v1098 = vadd.f32 %v1096, %v1097
        %v1099 = vsel %vm392, %v1055, 0.0
        %v1100 = vadd.f32 %v1098, %v1099
        %v1101 = vsel %vm392, %v1056, 0.0
        %v1102 = vadd.f32 %v1100, %v1101
        %v1103 = vsel %vm392, %v1057, 0.0
        %v1104 = vadd.f32 %v1102, %v1103
        %v1105 = vsel %vm392, %v1058, 0.0
        %v1106 = vadd.f32 %v1104, %v1105
        %v1107 = vsel %vm392, %v1059, 0.0
        %v1108 = vadd.f32 %v1106, %v1107
        %v1109 = vsel %vm392, %v1060, 0.0
        %v1110 = vadd.f32 %v1108, %v1109
        %v1111 = vsel %vm392, %v1061, 0.0
        %v1112 = vadd.f32 %v1110, %v1111
        %v1113 = vsel %vm392, %v1062, 0.0
        %v1114 = vadd.f32 %v1112, %v1113
        %v1115 = vsel %vm392, %v1063, 0.0
        %v1116 = vadd.f32 %v1114, %v1115
        %v1117 = vsel %vm392, %v1064, 0.0
        %v1118 = vadd.f32 %v1116, %v1117
        %v1119 = vsel %vm392, %v1065, 0.0
        %v1120 = vadd.f32 %v1118, %v1119
        %v1121 = vsel %vm392, %v1066, 0.0
        %v1122 = vadd.f32 %v1120, %v1121
        %v1123 = vsel %vm392, %v1067, 0.0
        %v1124 = vadd.f32 %v1122, %v1123
        %v1125 = vsel %vm392, %v1068, 0.0
        %v1126 = vadd.f32 %v1124, %v1125
        %v1127 = vsel %vm392, %v1069, 0.0
        %v1128 = vadd.f32 %v1126, %v1127
        %v1129 = vsel %vm392, %v1070, 0.0
        %v1130 = vadd.f32 %v1128, %v1129
        %v1131 = vsel %vm392, %v1071, 0.0
        %v1132 = vadd.f32 %v1130, %v1131
        %v1133 = vsel %vm392, %v1072, 0.0
        %v1134 = vadd.f32 %v1132, %v1133
        %v1135 = vsel %vm392, %v1073, 0.0
        %v1136 = vadd.f32 %v1134, %v1135
        %v1137 = vrot.slane %v1136, 4
        %v1138 = vadd.f32 %v1136, %v1137
        %v1139 = vrot.slane %v1138, 2
        %v1140 = vadd.f32 %v1138, %v1139
        %v1141 = vrot.slane %v1140, 1
        %v1142 = vadd.f32 %v1140, %v1141
        %v1143 = vrcp.pop 256.0
        %v1144 = vmul.f32 %v1142, %v1143
        %v1145 = vsel %vm392, %v1042, -inf
        %v1146 = vsel %vm392, %v1043, -inf
        %v1147 = vsel %vm392, %v1044, -inf
        %v1148 = vsel %vm392, %v1045, -inf
        %v1149 = vsel %vm392, %v1046, -inf
        %v1150 = vmax.f32 %v1145, %v1149
        %v1151 = vsel %vm392, %v1047, -inf
        %v1152 = vmax.f32 %v1146, %v1151
        %v1153 = vsel %vm392, %v1048, -inf
        %v1154 = vmax.f32 %v1147, %v1153
        %v1155 = vsel %vm392, %v1049, -inf
        %v1156 = vmax.f32 %v1148, %v1155
        %v1157 = vsel %vm392, %v1050, -inf
        %v1158 = vmax.f32 %v1150, %v1157
        %v1159 = vsel %vm392, %v1051, -inf
        %v1160 = vmax.f32 %v1152, %v1159
        %v1161 = vsel %vm392, %v1052, -inf
        %v1162 = vmax.f32 %v1154, %v1161
        %v1163 = vsel %vm392, %v1053, -inf
        %v1164 = vmax.f32 %v1156, %v1163
        %v1165 = vsel %vm392, %v1054, -inf
        %v1166 = vmax.f32 %v1158, %v1165
        %v1167 = vsel %vm392, %v1055, -inf
        %v1168 = vmax.f32 %v1160, %v1167
        %v1169 = vsel %vm392, %v1056, -inf
        %v1170 = vmax.f32 %v1162, %v1169
        %v1171 = vsel %vm392, %v1057, -inf
        %v1172 = vmax.f32 %v1164, %v1171
        %v1173 = vsel %vm392, %v1058, -inf
        %v1174 = vmax.f32 %v1166, %v1173
        %v1175 = vsel %vm392, %v1059, -inf
        %v1176 = vmax.f32 %v1168, %v1175
        %v1177 = vsel %vm392, %v1060, -inf
        %v1178 = vmax.f32 %v1170, %v1177
        %v1179 = vsel %vm392, %v1061, -inf
        %v1180 = vmax.f32 %v1172, %v1179
        %v1181 = vsel %vm392, %v1062, -inf
        %v1182 = vmax.f32 %v1174, %v1181
        %v1183 = vsel %vm392, %v1063, -inf
        %v1184 = vmax.f32 %v1176, %v1183
        %v1185 = vsel %vm392, %v1064, -inf
        %v1186 = vmax.f32 %v1178, %v1185
        %v1187 = vsel %vm392, %v1065, -inf
        %v1188 = vmax.f32 %v1180, %v1187
        %v1189 = vsel %vm392, %v1066, -inf
        %v1190 = vmax.f32 %v1182, %v1189
        %v1191 = vsel %vm392, %v1067, -inf
        %v1192 = vmax.f32 %v1184, %v1191
        %v1193 = vsel %vm392, %v1068, -inf
        %v1194 = vmax.f32 %v1186, %v1193
        %v1195 = vsel %vm392, %v1069, -inf
        %v1196 = vmax.f32 %v1188, %v1195
        %v1197 = vsel %vm392, %v1070, -inf
        %v1198 = vmax.f32 %v1190, %v1197
        %v1199 = vsel %vm392, %v1071, -inf
        %v1200 = vmax.f32 %v1192, %v1199
        %v1201 = vsel %vm392, %v1072, -inf
        %v1202 = vmax.f32 %v1194, %v1201
        %v1203 = vsel %vm392, %v1073, -inf
        %v1204 = vmax.f32 %v1196, %v1203
        %v1205 = vmax.f32 %v1198, %v1200
        %v1206 = vmax.f32 %v1202, %v1204
        %v1207 = vmax.f32 %v1205, %v1206
        %v1208 = vrot.slane %v1207, 4
        %v1209 = vmax.f32 %v1207, %v1208
        %v1210 = vrot.slane %v1209, 2
        %v1211 = vmax.f32 %v1209, %v1210
        %v1212 = vrot.slane %v1211, 1
        %v1213 = vmax.f32 %v1211, %v1212
        %v1214 = vld [vmem:[%s5] sm:$0xff]
        %v1215 = vld [vmem:[%s5 + $0x8] sm:$0xff]
        %v1217 = vsel %vm392, %v1144, 0
        %1219 = vmatprep.subr.mxu0 0.0
        %1220 = vmatpush1.msra.mxu0 %v1214
        %1221 = vmatprep.subr.mxu0 0.0
        %1222 = vmatpush1.msra.mxu0 %v1215
        %1223 = vmatprep.subr.mxu0 0.0
        %1224 = vmatpush1.msra.mxu0 0.0
        %1225 = vmatprep.subr.mxu0 0.0
        %1226 = vmatpush1.msra.mxu0 0.0
        %1227 = vmatprep.subr.mxu0 0.0
        %1228 = vmatpush1.msra.mxu0 0.0
        %1229 = vmatprep.subr.mxu0 0.0
        %1230 = vmatpush1.msra.mxu0 0.0
        %1231 = vmatprep.subr.mxu0 0.0
        %1232 = vmatpush1.msra.mxu0 0.0
        %1233 = vmatprep.subr.mxu0 0.0
        %1234 = vmatpush1.msra.mxu0 0.0
        %1235 = vmatprep.subr.mxu0 0.0
        %1236 = vmatpush1.msra.mxu0 0.0
        %1237 = vmatprep.subr.mxu0 0.0
        %1238 = vmatpush1.msra.mxu0 0.0
        %1239 = vmatprep.subr.mxu0 0.0
        %1240 = vmatpush1.msra.mxu0 0.0
        %1241 = vmatprep.subr.mxu0 0.0
        %1242 = vmatpush1.msra.mxu0 0.0
        %1243 = vmatprep.subr.mxu0 0.0
        %1244 = vmatpush1.msra.mxu0 0.0
        %1245 = vmatprep.subr.mxu0 0.0
        %1246 = vmatpush1.msra.mxu0 0.0
        %1247 = vmatprep.subr.mxu0 0.0
        %1248 = vmatpush1.msra.mxu0 0.0
        %1249 = vmatprep.subr.mxu0 0.0
        %1250 = vmatpush1.msra.mxu0 0.0
        %1251 = vmatprep.subr.mxu0 0.0
        %1252 = vmatpush1.msra.mxu0 0.0
        %1253 = vmatprep.subr.mxu0 0.0
        %1254 = vmatpush1.msra.mxu0 0.0
        %1255 = vmatprep.subr.mxu0 0.0
        %1256 = vmatpush1.msra.mxu0 0.0
        %1257 = vmatprep.subr.mxu0 0.0
        %1258 = vmatpush1.msra.mxu0 0.0
        %1259 = vmatprep.subr.mxu0 0.0
        %1260 = vmatpush1.msra.mxu0 0.0
        %1261 = vmatprep.subr.mxu0 0.0
        %1262 = vmatpush1.msra.mxu0 0.0
        %1263 = vmatprep.subr.mxu0 0.0
        %1264 = vmatpush1.msra.mxu0 0.0
        %1265 = vmatprep.subr.mxu0 0.0
        %1266 = vmatpush1.msra.mxu0 0.0
        %1267 = vmatprep.subr.mxu0 0.0
        %1268 = vmatpush1.msra.mxu0 0.0
        %1269 = vmatprep.subr.mxu0 0.0
        %1270 = vmatpush1.msra.mxu0 0.0
        %1271 = vmatprep.subr.mxu0 0.0
        %1272 = vmatpush1.msra.mxu0 0.0
        %1273 = vmatprep.subr.mxu0 0.0
        %1274 = vmatpush1.msra.mxu0 0.0
        %1275 = vmatprep.subr.mxu0 0.0
        %1276 = vmatpush1.msra.mxu0 0.0
        %1277 = vmatprep.subr.mxu0 0.0
        %1278 = vmatpush1.msra.mxu0 0.0
        %1279 = vmatprep.subr.mxu0 0.0
        %1280 = vmatpush1.msra.mxu0 0.0
        %1281 = vmatprep.subr.mxu0 0.0
        %1282 = vmatpush1.msra.mxu0 0.0
        %1283 = vmatprep.mubr.f32.mxu0 0.0
        %1284 = vmatmul.mubr.f32.gmra.mrb[0].mxu0 %v1217
        %v1285 = vpop.f32.mrb[0].mxu0
        %v1286 = vadd.f32 0.0, %v1285
        %v1287 = vpop.f32.mrb[0].mxu0
        %1288 = vdwg.mxu0
        %v1289 = vmax.f32 %v1286, 0.0
        %v1290 = vld [vmem:[%s6] sm:$0x1]
        %v1292 = vsel %vm392, %v1213, 0
        %1294 = vmatprep.subr.mxu0 0.0
        %1295 = vmatpush1.msra.mxu0 %v1214
        %1296 = vmatprep.subr.mxu0 0.0
        %1297 = vmatpush1.msra.mxu0 %v1215
        %1298 = vmatprep.subr.mxu0 0.0
        %1299 = vmatpush1.msra.mxu0 0.0
        %1300 = vmatprep.subr.mxu0 0.0
        %1301 = vmatpush1.msra.mxu0 0.0
        %1302 = vmatprep.subr.mxu0 0.0
        %1303 = vmatpush1.msra.mxu0 0.0
        %1304 = vmatprep.subr.mxu0 0.0
        %1305 = vmatpush1.msra.mxu0 0.0
        %1306 = vmatprep.subr.mxu0 0.0
        %1307 = vmatpush1.msra.mxu0 0.0
        %1308 = vmatprep.subr.mxu0 0.0
        %1309 = vmatpush1.msra.mxu0 0.0
        %1310 = vmatprep.subr.mxu0 0.0
        %1311 = vmatpush1.msra.mxu0 0.0
        %1312 = vmatprep.subr.mxu0 0.0
        %1313 = vmatpush1.msra.mxu0 0.0
        %1314 = vmatprep.subr.mxu0 0.0
        %1315 = vmatpush1.msra.mxu0 0.0
        %1316 = vmatprep.subr.mxu0 0.0
        %1317 = vmatpush1.msra.mxu0 0.0
        %1318 = vmatprep.subr.mxu0 0.0
        %1319 = vmatpush1.msra.mxu0 0.0
        %1320 = vmatprep.subr.mxu0 0.0
        %1321 = vmatpush1.msra.mxu0 0.0
        %1322 = vmatprep.subr.mxu0 0.0
        %1323 = vmatpush1.msra.mxu0 0.0
        %1324 = vmatprep.subr.mxu0 0.0
        %1325 = vmatpush1.msra.mxu0 0.0
        %1326 = vmatprep.subr.mxu0 0.0
        %1327 = vmatpush1.msra.mxu0 0.0
        %1328 = vmatprep.subr.mxu0 0.0
        %1329 = vmatpush1.msra.mxu0 0.0
        %1330 = vmatprep.subr.mxu0 0.0
        %1331 = vmatpush1.msra.mxu0 0.0
        %1332 = vmatprep.subr.mxu0 0.0
        %1333 = vmatpush1.msra.mxu0 0.0
        %1334 = vmatprep.subr.mxu0 0.0
        %1335 = vmatpush1.msra.mxu0 0.0
        %1336 = vmatprep.subr.mxu0 0.0
        %1337 = vmatpush1.msra.mxu0 0.0
        %1338 = vmatprep.subr.mxu0 0.0
        %1339 = vmatpush1.msra.mxu0 0.0
        %1340 = vmatprep.subr.mxu0 0.0
        %1341 = vmatpush1.msra.mxu0 0.0
        %1342 = vmatprep.subr.mxu0 0.0
        %1343 = vmatpush1.msra.mxu0 0.0
        %1344 = vmatprep.subr.mxu0 0.0
        %1345 = vmatpush1.msra.mxu0 0.0
        %1346 = vmatprep.subr.mxu0 0.0
        %1347 = vmatpush1.msra.mxu0 0.0
        %1348 = vmatprep.subr.mxu0 0.0
        %1349 = vmatpush1.msra.mxu0 0.0
        %1350 = vmatprep.subr.mxu0 0.0
        %1351 = vmatpush1.msra.mxu0 0.0
        %1352 = vmatprep.subr.mxu0 0.0
        %1353 = vmatpush1.msra.mxu0 0.0
        %1354 = vmatprep.subr.mxu0 0.0
        %1355 = vmatpush1.msra.mxu0 0.0
        %1356 = vmatprep.subr.mxu0 0.0
        %1357 = vmatpush1.msra.mxu0 0.0
        %1358 = vmatprep.mubr.f32.mxu0 0.0
        %1359 = vmatmul.mubr.f32.gmra.mrb[0].mxu0 %v1292
        %v1360 = vpop.f32.mrb[0].mxu0
        %v1361 = vadd.f32 0.0, %v1360
        %v1362 = vpop.f32.mrb[0].mxu0
        %1363 = vdwg.mxu0
        %v1364 = vmax.f32 %v1361, 0.0
        %vm1365 = vcmask 7168
        %v1367 = vsel %vm1365, %v1364, 0
        %vm1369 = vcmask 1040384
        %v1371 = vsel %vm1369, %v1290, 0
        %1373 = vmatprep.subr.mxu0 0.0
        %1374 = vmatpush1.msra.mxu0 %v1371
        %1375 = vmatprep.subr.mxu0 0.0
        %1376 = vmatpush1.msra.mxu0 0.0
        %1377 = vmatprep.subr.mxu0 0.0
        %1378 = vmatpush1.msra.mxu0 0.0
        %1379 = vmatprep.subr.mxu0 0.0
        %1380 = vmatpush1.msra.mxu0 0.0
        %1381 = vmatprep.subr.mxu0 0.0
        %1382 = vmatpush1.msra.mxu0 0.0
        %1383 = vmatprep.subr.mxu0 0.0
        %1384 = vmatpush1.msra.mxu0 0.0
        %1385 = vmatprep.subr.mxu0 0.0
        %1386 = vmatpush1.msra.mxu0 0.0
        %1387 = vmatprep.subr.mxu0 0.0
        %1388 = vmatpush1.msra.mxu0 0.0
        %1389 = vmatprep.subr.mxu0 0.0
        %1390 = vmatpush1.msra.mxu0 0.0
        %1391 = vmatprep.subr.mxu0 0.0
        %1392 = vmatpush1.msra.mxu0 0.0
        %1393 = vmatprep.subr.mxu0 0.0
        %1394 = vmatpush1.msra.mxu0 0.0
        %1395 = vmatprep.subr.mxu0 0.0
        %1396 = vmatpush1.msra.mxu0 0.0
        %1397 = vmatprep.subr.mxu0 0.0
        %1398 = vmatpush1.msra.mxu0 0.0
        %1399 = vmatprep.subr.mxu0 0.0
        %1400 = vmatpush1.msra.mxu0 0.0
        %1401 = vmatprep.subr.mxu0 0.0
        %1402 = vmatpush1.msra.mxu0 0.0
        %1403 = vmatprep.subr.mxu0 0.0
        %1404 = vmatpush1.msra.mxu0 0.0
        %1405 = vmatprep.subr.mxu0 0.0
        %1406 = vmatpush1.msra.mxu0 0.0
        %1407 = vmatprep.subr.mxu0 0.0
        %1408 = vmatpush1.msra.mxu0 0.0
        %1409 = vmatprep.subr.mxu0 0.0
        %1410 = vmatpush1.msra.mxu0 0.0
        %1411 = vmatprep.subr.mxu0 0.0
        %1412 = vmatpush1.msra.mxu0 0.0
        %1413 = vmatprep.subr.mxu0 0.0
        %1414 = vmatpush1.msra.mxu0 0.0
        %1415 = vmatprep.subr.mxu0 0.0
        %1416 = vmatpush1.msra.mxu0 0.0
        %1417 = vmatprep.subr.mxu0 0.0
        %1418 = vmatpush1.msra.mxu0 0.0
        %1419 = vmatprep.subr.mxu0 0.0
        %1420 = vmatpush1.msra.mxu0 0.0
        %1421 = vmatprep.subr.mxu0 0.0
        %1422 = vmatpush1.msra.mxu0 0.0
        %1423 = vmatprep.subr.mxu0 0.0
        %1424 = vmatpush1.msra.mxu0 0.0
        %1425 = vmatprep.subr.mxu0 0.0
        %1426 = vmatpush1.msra.mxu0 0.0
        %1427 = vmatprep.subr.mxu0 0.0
        %1428 = vmatpush1.msra.mxu0 0.0
        %1429 = vmatprep.subr.mxu0 0.0
        %1430 = vmatpush1.msra.mxu0 0.0
        %1431 = vmatprep.subr.mxu0 0.0
        %1432 = vmatpush1.msra.mxu0 0.0
        %1433 = vmatprep.subr.mxu0 0.0
        %1434 = vmatpush1.msra.mxu0 0.0
        %1435 = vmatprep.subr.mxu0 0.0
        %1436 = vmatpush1.msra.mxu0 0.0
        %1437 = vmatprep.mubr.f32.mxu0 0.0
        %1438 = vmatmul.mubr.f32.gmra.mrb[0].mxu0 %v1367
        %v1439 = vpop.f32.mrb[0].mxu0
        %v1440 = vadd.f32 0.0, %v1439
        %v1441 = vpop.f32.mrb[0].mxu0
        %1442 = vdwg.mxu0
        %v1444 = vsel %vm1365, %v1289, 0
        %1446 = vmatprep.subr.mxu0 0.0
        %1447 = vmatpush1.msra.mxu0 %v1371
        %1448 = vmatprep.subr.mxu0 0.0
        %1449 = vmatpush1.msra.mxu0 0.0
        %1450 = vmatprep.subr.mxu0 0.0
        %1451 = vmatpush1.msra.mxu0 0.0
        %1452 = vmatprep.subr.mxu0 0.0
        %1453 = vmatpush1.msra.mxu0 0.0
        %1454 = vmatprep.subr.mxu0 0.0
        %1455 = vmatpush1.msra.mxu0 0.0
        %1456 = vmatprep.subr.mxu0 0.0
        %1457 = vmatpush1.msra.mxu0 0.0
        %1458 = vmatprep.subr.mxu0 0.0
        %1459 = vmatpush1.msra.mxu0 0.0
        %1460 = vmatprep.subr.mxu0 0.0
        %1461 = vmatpush1.msra.mxu0 0.0
        %1462 = vmatprep.subr.mxu0 0.0
        %1463 = vmatpush1.msra.mxu0 0.0
        %1464 = vmatprep.subr.mxu0 0.0
        %1465 = vmatpush1.msra.mxu0 0.0
        %1466 = vmatprep.subr.mxu0 0.0
        %1467 = vmatpush1.msra.mxu0 0.0
        %1468 = vmatprep.subr.mxu0 0.0
        %1469 = vmatpush1.msra.mxu0 0.0
        %1470 = vmatprep.subr.mxu0 0.0
        %1471 = vmatpush1.msra.mxu0 0.0
        %1472 = vmatprep.subr.mxu0 0.0
        %1473 = vmatpush1.msra.mxu0 0.0
        %1474 = vmatprep.subr.mxu0 0.0
        %1475 = vmatpush1.msra.mxu0 0.0
        %1476 = vmatprep.subr.mxu0 0.0
        %1477 = vmatpush1.msra.mxu0 0.0
        %1478 = vmatprep.subr.mxu0 0.0
        %1479 = vmatpush1.msra.mxu0 0.0
        %1480 = vmatprep.subr.mxu0 0.0
        %1481 = vmatpush1.msra.mxu0 0.0
        %1482 = vmatprep.subr.mxu0 0.0
        %1483 = vmatpush1.msra.mxu0 0.0
        %1484 = vmatprep.subr.mxu0 0.0
        %1485 = vmatpush1.msra.mxu0 0.0
        %1486 = vmatprep.subr.mxu0 0.0
        %1487 = vmatpush1.msra.mxu0 0.0
        %1488 = vmatprep.subr.mxu0 0.0
        %1489 = vmatpush1.msra.mxu0 0.0
        %1490 = vmatprep.subr.mxu0 0.0
        %1491 = vmatpush1.msra.mxu0 0.0
        %1492 = vmatprep.subr.mxu0 0.0
        %1493 = vmatpush1.msra.mxu0 0.0
        %1494 = vmatprep.subr.mxu0 0.0
        %1495 = vmatpush1.msra.mxu0 0.0
        %1496 = vmatprep.subr.mxu0 0.0
        %1497 = vmatpush1.msra.mxu0 0.0
        %1498 = vmatprep.subr.mxu0 0.0
        %1499 = vmatpush1.msra.mxu0 0.0
        %1500 = vmatprep.subr.mxu0 0.0
        %1501 = vmatpush1.msra.mxu0 0.0
        %1502 = vmatprep.subr.mxu0 0.0
        %1503 = vmatpush1.msra.mxu0 0.0
        %1504 = vmatprep.subr.mxu0 0.0
        %1505 = vmatpush1.msra.mxu0 0.0
        %1506 = vmatprep.subr.mxu0 0.0
        %1507 = vmatpush1.msra.mxu0 0.0
        %1508 = vmatprep.subr.mxu0 0.0
        %1509 = vmatpush1.msra.mxu0 0.0
        %1510 = vmatprep.mubr.f32.mxu0 0.0
        %1511 = vmatmul.mubr.f32.gmra.mrb[0].mxu0 %v1444
        %v1512 = vpop.f32.mrb[0].mxu0
        %v1513 = vadd.f32 %v1440, %v1512
        %v1514 = vpop.f32.mrb[0].mxu0
        %1515 = vdwg.mxu0
        %v1516 = vxor.u32 %v1513, 2147483648
        %v1517 = vmul.f32 %v1516, 1.442695
        %v1518 = vpow.pop %v1517
        %v1519 = vadd.f32 %v1518, 1.0
        %v1520 = vrcp.pop %v1519
        %v1521 = vmul.f32 1.0, %v1520
        %v1522 = vlaneseq
        %v1523 = vshrl.u32 %v1522, 7
        %v1524 = vsub.s32 0, %v1523
        %v1525 = vrot.slane %v1521, %v1524
        %v1526 = vmul.f32 %v1042, %v1525
        %v1527 = vmul.f32 %v1043, %v1525
        %v1528 = vmul.f32 %v1044, %v1525
        %v1529 = vmul.f32 %v1045, %v1525
        %v1530 = vmul.f32 %v1046, %v1525
        %v1531 = vmul.f32 %v1047, %v1525
        %v1532 = vmul.f32 %v1048, %v1525
        %v1533 = vmul.f32 %v1049, %v1525
        %v1534 = vmul.f32 %v1050, %v1525
        %v1535 = vmul.f32 %v1051, %v1525
        %v1536 = vmul.f32 %v1052, %v1525
        %v1537 = vmul.f32 %v1053, %v1525
        %v1538 = vmul.f32 %v1054, %v1525
        %v1539 = vmul.f32 %v1055, %v1525
        %v1540 = vmul.f32 %v1056, %v1525
        %v1541 = vmul.f32 %v1057, %v1525
        %v1542 = vmul.f32 %v1058, %v1525
        %v1543 = vmul.f32 %v1059, %v1525
        %v1544 = vmul.f32 %v1060, %v1525
        %v1545 = vmul.f32 %v1061, %v1525
        %v1546 = vmul.f32 %v1062, %v1525
        %v1547 = vmul.f32 %v1063, %v1525
        %v1548 = vmul.f32 %v1064, %v1525
        %v1549 = vmul.f32 %v1065, %v1525
        %v1550 = vmul.f32 %v1066, %v1525
        %v1551 = vmul.f32 %v1067, %v1525
        %v1552 = vmul.f32 %v1068, %v1525
        %v1553 = vmul.f32 %v1069, %v1525
        %v1554 = vmul.f32 %v1070, %v1525
        %v1555 = vmul.f32 %v1071, %v1525
        %v1556 = vmul.f32 %v1072, %v1525
        %v1557 = vmul.f32 %v1073, %v1525
        %v1558 = vsel %vm392, %v1526, 0.0
        %1559 = vadd.xlane.f32.xlu0 %v1558
        %v1560 = vpop.xlane.xlu0 %1559
        %v1561 = vsel %vm392, %v1527, 0.0
        %1562 = vadd.xlane.f32.xlu0 %v1561
        %v1563 = vpop.xlane.xlu0 %1562
        %v1564 = vsel %vm392, %v1528, 0.0
        %1565 = vadd.xlane.f32.xlu0 %v1564
        %v1566 = vpop.xlane.xlu0 %1565
        %v1567 = vsel %vm392, %v1529, 0.0
        %1568 = vadd.xlane.f32.xlu0 %v1567
        %v1569 = vpop.xlane.xlu0 %1568
        %v1570 = vsel %vm392, %v1530, 0.0
        %1571 = vadd.xlane.f32.xlu0 %v1570
        %v1572 = vpop.xlane.xlu0 %1571
        %v1573 = vsel %vm392, %v1531, 0.0
        %1574 = vadd.xlane.f32.xlu0 %v1573
        %v1575 = vpop.xlane.xlu0 %1574
        %v1576 = vsel %vm392, %v1532, 0.0
        %1577 = vadd.xlane.f32.xlu0 %v1576
        %v1578 = vpop.xlane.xlu0 %1577
        %v1579 = vsel %vm392, %v1533, 0.0
        %1580 = vadd.xlane.f32.xlu0 %v1579
        %v1581 = vpop.xlane.xlu0 %1580
        %v1582 = vsel %vm392, %v1534, 0.0
        %1583 = vadd.xlane.f32.xlu0 %v1582
        %v1584 = vpop.xlane.xlu0 %1583
        %v1585 = vsel %vm392, %v1535, 0.0
        %1586 = vadd.xlane.f32.xlu0 %v1585
        %v1587 = vpop.xlane.xlu0 %1586
        %v1588 = vsel %vm392, %v1536, 0.0
        %1589 = vadd.xlane.f32.xlu0 %v1588
        %v1590 = vpop.xlane.xlu0 %1589
        %v1591 = vsel %vm392, %v1537, 0.0
        %1592 = vadd.xlane.f32.xlu0 %v1591
        %v1593 = vpop.xlane.xlu0 %1592
        %v1594 = vsel %vm392, %v1538, 0.0
        %1595 = vadd.xlane.f32.xlu0 %v1594
        %v1596 = vpop.xlane.xlu0 %1595
        %v1597 = vsel %vm392, %v1539, 0.0
        %1598 = vadd.xlane.f32.xlu0 %v1597
        %v1599 = vpop.xlane.xlu0 %1598
        %v1600 = vsel %vm392, %v1540, 0.0
        %1601 = vadd.xlane.f32.xlu0 %v1600
        %v1602 = vpop.xlane.xlu0 %1601
        %v1603 = vsel %vm392, %v1541, 0.0
        %1604 = vadd.xlane.f32.xlu0 %v1603
        %v1605 = vpop.xlane.xlu0 %1604
        %v1606 = vsel %vm392, %v1542, 0.0
        %1607 = vadd.xlane.f32.xlu0 %v1606
        %v1608 = vpop.xlane.xlu0 %1607
        %v1609 = vsel %vm392, %v1543, 0.0
        %1610 = vadd.xlane.f32.xlu0 %v1609
        %v1611 = vpop.xlane.xlu0 %1610
        %v1612 = vsel %vm392, %v1544, 0.0
        %1613 = vadd.xlane.f32.xlu0 %v1612
        %v1614 = vpop.xlane.xlu0 %1613
        %v1615 = vsel %vm392, %v1545, 0.0
        %1616 = vadd.xlane.f32.xlu0 %v1615
        %v1617 = vpop.xlane.xlu0 %1616
        %v1618 = vsel %vm392, %v1546, 0.0
        %1619 = vadd.xlane.f32.xlu0 %v1618
        %v1620 = vpop.xlane.xlu0 %1619
        %v1621 = vsel %vm392, %v1547, 0.0
        %1622 = vadd.xlane.f32.xlu0 %v1621
        %v1623 = vpop.xlane.xlu0 %1622
        %v1624 = vsel %vm392, %v1548, 0.0
        %1625 = vadd.xlane.f32.xlu0 %v1624
        %v1626 = vpop.xlane.xlu0 %1625
        %v1627 = vsel %vm392, %v1549, 0.0
        %1628 = vadd.xlane.f32.xlu0 %v1627
        %v1629 = vpop.xlane.xlu0 %1628
        %v1630 = vsel %vm392, %v1550, 0.0
        %1631 = vadd.xlane.f32.xlu0 %v1630
        %v1632 = vpop.xlane.xlu0 %1631
        %v1633 = vsel %vm392, %v1551, 0.0
        %1634 = vadd.xlane.f32.xlu0 %v1633
        %v1635 = vpop.xlane.xlu0 %1634
        %v1636 = vsel %vm392, %v1552, 0.0
        %1637 = vadd.xlane.f32.xlu0 %v1636
        %v1638 = vpop.xlane.xlu0 %1637
        %v1639 = vsel %vm392, %v1553, 0.0
        %1640 = vadd.xlane.f32.xlu0 %v1639
        %v1641 = vpop.xlane.xlu0 %1640
        %v1642 = vsel %vm392, %v1554, 0.0
        %1643 = vadd.xlane.f32.xlu0 %v1642
        %v1644 = vpop.xlane.xlu0 %1643
        %v1645 = vsel %vm392, %v1555, 0.0
        %1646 = vadd.xlane.f32.xlu0 %v1645
        %v1647 = vpop.xlane.xlu0 %1646
        %v1648 = vsel %vm392, %v1556, 0.0
        %1649 = vadd.xlane.f32.xlu0 %v1648
        %v1650 = vpop.xlane.xlu0 %1649
        %v1651 = vsel %vm392, %v1557, 0.0
        %1652 = vadd.xlane.f32.xlu0 %v1651
        %v1653 = vpop.xlane.xlu0 %1652
        %v1654 = vrcp.pop 16.0
        %v1655 = vmul.f32 %v1560, %v1654
        %v1656 = vmul.f32 %v1563, %v1654
        %v1657 = vmul.f32 %v1566, %v1654
        %v1658 = vmul.f32 %v1569, %v1654
        %v1659 = vmul.f32 %v1572, %v1654
        %v1660 = vmul.f32 %v1575, %v1654
        %v1661 = vmul.f32 %v1578, %v1654
        %v1662 = vmul.f32 %v1581, %v1654
        %v1663 = vmul.f32 %v1584, %v1654
        %v1664 = vmul.f32 %v1587, %v1654
        %v1665 = vmul.f32 %v1590, %v1654
        %v1666 = vmul.f32 %v1593, %v1654
        %v1667 = vmul.f32 %v1596, %v1654
        %v1668 = vmul.f32 %v1599, %v1654
        %v1669 = vmul.f32 %v1602, %v1654
        %v1670 = vmul.f32 %v1605, %v1654
        %v1671 = vmul.f32 %v1608, %v1654
        %v1672 = vmul.f32 %v1611, %v1654
        %v1673 = vmul.f32 %v1614, %v1654
        %v1674 = vmul.f32 %v1617, %v1654
        %v1675 = vmul.f32 %v1620, %v1654
        %v1676 = vmul.f32 %v1623, %v1654
        %v1677 = vmul.f32 %v1626, %v1654
        %v1678 = vmul.f32 %v1629, %v1654
        %v1679 = vmul.f32 %v1632, %v1654
        %v1680 = vmul.f32 %v1635, %v1654
        %v1681 = vmul.f32 %v1638, %v1654
        %v1682 = vmul.f32 %v1641, %v1654
        %v1683 = vmul.f32 %v1644, %v1654
        %v1684 = vmul.f32 %v1647, %v1654
        %v1685 = vmul.f32 %v1650, %v1654
        %v1686 = vmul.f32 %v1653, %v1654
        %v1687 = vsel %vm392, %v1526, -inf
        %1688 = vmax.xlane.f32.xlu0 %v1687
        %v1689 = vpop.xlane.xlu0 %1688
        %v1690 = vsel %vm392, %v1527, -inf
        %1691 = vmax.xlane.f32.xlu0 %v1690
        %v1692 = vpop.xlane.xlu0 %1691
        %v1693 = vsel %vm392, %v1528, -inf
        %1694 = vmax.xlane.f32.xlu0 %v1693
        %v1695 = vpop.xlane.xlu0 %1694
        %v1696 = vsel %vm392, %v1529, -inf
        %1697 = vmax.xlane.f32.xlu0 %v1696
        %v1698 = vpop.xlane.xlu0 %1697
        %v1699 = vsel %vm392, %v1530, -inf
        %1700 = vmax.xlane.f32.xlu0 %v1699
        %v1701 = vpop.xlane.xlu0 %1700
        %v1702 = vsel %vm392, %v1531, -inf
        %1703 = vmax.xlane.f32.xlu0 %v1702
        %v1704 = vpop.xlane.xlu0 %1703
        %v1705 = vsel %vm392, %v1532, -inf
        %1706 = vmax.xlane.f32.xlu0 %v1705
        %v1707 = vpop.xlane.xlu0 %1706
        %v1708 = vsel %vm392, %v1533, -inf
        %1709 = vmax.xlane.f32.xlu0 %v1708
        %v1710 = vpop.xlane.xlu0 %1709
        %v1711 = vsel %vm392, %v1534, -inf
        %1712 = vmax.xlane.f32.xlu0 %v1711
        %v1713 = vpop.xlane.xlu0 %1712
        %v1714 = vsel %vm392, %v1535, -inf
        %1715 = vmax.xlane.f32.xlu0 %v1714
        %v1716 = vpop.xlane.xlu0 %1715
        %v1717 = vsel %vm392, %v1536, -inf
        %1718 = vmax.xlane.f32.xlu0 %v1717
        %v1719 = vpop.xlane.xlu0 %1718
        %v1720 = vsel %vm392, %v1537, -inf
        %1721 = vmax.xlane.f32.xlu0 %v1720
        %v1722 = vpop.xlane.xlu0 %1721
        %v1723 = vsel %vm392, %v1538, -inf
        %1724 = vmax.xlane.f32.xlu0 %v1723
        %v1725 = vpop.xlane.xlu0 %1724
        %v1726 = vsel %vm392, %v1539, -inf
        %1727 = vmax.xlane.f32.xlu0 %v1726
        %v1728 = vpop.xlane.xlu0 %1727
        %v1729 = vsel %vm392, %v1540, -inf
        %1730 = vmax.xlane.f32.xlu0 %v1729
        %v1731 = vpop.xlane.xlu0 %1730
        %v1732 = vsel %vm392, %v1541, -inf
        %1733 = vmax.xlane.f32.xlu0 %v1732
        %v1734 = vpop.xlane.xlu0 %1733
        %v1735 = vsel %vm392, %v1542, -inf
        %1736 = vmax.xlane.f32.xlu0 %v1735
        %v1737 = vpop.xlane.xlu0 %1736
        %v1738 = vsel %vm392, %v1543, -inf
        %1739 = vmax.xlane.f32.xlu0 %v1738
        %v1740 = vpop.xlane.xlu0 %1739
        %v1741 = vsel %vm392, %v1544, -inf
        %1742 = vmax.xlane.f32.xlu0 %v1741
        %v1743 = vpop.xlane.xlu0 %1742
        %v1744 = vsel %vm392, %v1545, -inf
        %1745 = vmax.xlane.f32.xlu0 %v1744
        %v1746 = vpop.xlane.xlu0 %1745
        %v1747 = vsel %vm392, %v1546, -inf
        %1748 = vmax.xlane.f32.xlu0 %v1747
        %v1749 = vpop.xlane.xlu0 %1748
        %v1750 = vsel %vm392, %v1547, -inf
        %1751 = vmax.xlane.f32.xlu0 %v1750
        %v1752 = vpop.xlane.xlu0 %1751
        %v1753 = vsel %vm392, %v1548, -inf
        %1754 = vmax.xlane.f32.xlu0 %v1753
        %v1755 = vpop.xlane.xlu0 %1754
        %v1756 = vsel %vm392, %v1549, -inf
        %1757 = vmax.xlane.f32.xlu0 %v1756
        %v1758 = vpop.xlane.xlu0 %1757
        %v1759 = vsel %vm392, %v1550, -inf
        %1760 = vmax.xlane.f32.xlu0 %v1759
        %v1761 = vpop.xlane.xlu0 %1760
        %v1762 = vsel %vm392, %v1551, -inf
        %1763 = vmax.xlane.f32.xlu0 %v1762
        %v1764 = vpop.xlane.xlu0 %1763
        %v1765 = vsel %vm392, %v1552, -inf
        %1766 = vmax.xlane.f32.xlu0 %v1765
        %v1767 = vpop.xlane.xlu0 %1766
        %v1768 = vsel %vm392, %v1553, -inf
        %1769 = vmax.xlane.f32.xlu0 %v1768
        %v1770 = vpop.xlane.xlu0 %1769
        %v1771 = vsel %vm392, %v1554, -inf
        %1772 = vmax.xlane.f32.xlu0 %v1771
        %v1773 = vpop.xlane.xlu0 %1772
        %v1774 = vsel %vm392, %v1555, -inf
        %1775 = vmax.xlane.f32.xlu0 %v1774
        %v1776 = vpop.xlane.xlu0 %1775
        %v1777 = vsel %vm392, %v1556, -inf
        %1778 = vmax.xlane.f32.xlu0 %v1777
        %v1779 = vpop.xlane.xlu0 %1778
        %v1780 = vsel %vm392, %v1557, -inf
        %1781 = vmax.xlane.f32.xlu0 %v1780
        %v1782 = vpop.xlane.xlu0 %1781
        %v1783 = vld [vmem:[%s7] sm:$0xff]
        %v1784 = vld [vmem:[%s7 + $0x8] sm:$0xff]
        %v1785 = vld [vmem:[%s7 + $0x10] sm:$0xff]
        %v1786 = vld [vmem:[%s7 + $0x18] sm:$0xff]
        %v1787 = vld [vmem:[%s7 + $0x20] sm:$0xff]
        %v1788 = vld [vmem:[%s7 + $0x28] sm:$0xff]
        %v1789 = vld [vmem:[%s7 + $0x30] sm:$0xff]
        %v1790 = vld [vmem:[%s7 + $0x38] sm:$0xff]
        %v1791 = vld [vmem:[%s7 + $0x40] sm:$0xff]
        %v1792 = vld [vmem:[%s7 + $0x48] sm:$0xff]
        %v1793 = vld [vmem:[%s7 + $0x50] sm:$0xff]
        %v1794 = vld [vmem:[%s7 + $0x58] sm:$0xff]
        %v1795 = vld [vmem:[%s7 + $0x60] sm:$0xff]
        %v1796 = vld [vmem:[%s7 + $0x68] sm:$0xff]
        %v1797 = vld [vmem:[%s7 + $0x70] sm:$0xff]
        %v1798 = vld [vmem:[%s7 + $0x78] sm:$0xff]
        %v1799 = vld [vmem:[%s7 + $0x80] sm:$0xff]
        %v1800 = vld [vmem:[%s7 + $0x88] sm:$0xff]
        %v1801 = vld [vmem:[%s7 + $0x90] sm:$0xff]
        %v1802 = vld [vmem:[%s7 + $0x98] sm:$0xff]
        %v1803 = vld [vmem:[%s7 + $0xa0] sm:$0xff]
        %v1804 = vld [vmem:[%s7 + $0xa8] sm:$0xff]
        %v1805 = vld [vmem:[%s7 + $0xb0] sm:$0xff]
        %v1806 = vld [vmem:[%s7 + $0xb8] sm:$0xff]
        %v1807 = vld [vmem:[%s7 + $0xc0] sm:$0xff]
        %v1808 = vld [vmem:[%s7 + $0xc8] sm:$0xff]
        %v1809 = vld [vmem:[%s7 + $0xd0] sm:$0xff]
        %v1810 = vld [vmem:[%s7 + $0xd8] sm:$0xff]
        %v1811 = vld [vmem:[%s7 + $0xe0] sm:$0xff]
        %v1812 = vld [vmem:[%s7 + $0xe8] sm:$0xff]
        %v1813 = vld [vmem:[%s7 + $0xf0] sm:$0xff]
        %v1814 = vld [vmem:[%s7 + $0xf8] sm:$0xff]
        %v1815 = vld [vmem:[%s7 + $0x100] sm:$0xff]
        %v1816 = vld [vmem:[%s7 + $0x108] sm:$0xff]
        %v1817 = vld [vmem:[%s7 + $0x110] sm:$0xff]
        %v1818 = vld [vmem:[%s7 + $0x118] sm:$0xff]
        %v1819 = vld [vmem:[%s7 + $0x120] sm:$0xff]
        %v1820 = vld [vmem:[%s7 + $0x128] sm:$0xff]
        %v1821 = vld [vmem:[%s7 + $0x130] sm:$0xff]
        %v1822 = vld [vmem:[%s7 + $0x138] sm:$0xff]
        %v1823 = vld [vmem:[%s7 + $0x140] sm:$0xff]
        %v1824 = vld [vmem:[%s7 + $0x148] sm:$0xff]
        %v1825 = vld [vmem:[%s7 + $0x150] sm:$0xff]
        %v1826 = vld [vmem:[%s7 + $0x158] sm:$0xff]
        %v1827 = vld [vmem:[%s7 + $0x160] sm:$0xff]
        %v1828 = vld [vmem:[%s7 + $0x168] sm:$0xff]
        %v1829 = vld [vmem:[%s7 + $0x170] sm:$0xff]
        %v1830 = vld [vmem:[%s7 + $0x178] sm:$0xff]
        %v1831 = vld [vmem:[%s7 + $0x180] sm:$0xff]
        %v1832 = vld [vmem:[%s7 + $0x188] sm:$0xff]
        %v1833 = vld [vmem:[%s7 + $0x190] sm:$0xff]
        %v1834 = vld [vmem:[%s7 + $0x198] sm:$0xff]
        %v1835 = vld [vmem:[%s7 + $0x1a0] sm:$0xff]
        %v1836 = vld [vmem:[%s7 + $0x1a8] sm:$0xff]
        %v1837 = vld [vmem:[%s7 + $0x1b0] sm:$0xff]
        %v1838 = vld [vmem:[%s7 + $0x1b8] sm:$0xff]
        %v1839 = vld [vmem:[%s7 + $0x1c0] sm:$0xff]
        %v1840 = vld [vmem:[%s7 + $0x1c8] sm:$0xff]
        %v1841 = vld [vmem:[%s7 + $0x1d0] sm:$0xff]
        %v1842 = vld [vmem:[%s7 + $0x1d8] sm:$0xff]
        %v1843 = vld [vmem:[%s7 + $0x1e0] sm:$0xff]
        %v1844 = vld [vmem:[%s7 + $0x1e8] sm:$0xff]
        %v1845 = vld [vmem:[%s7 + $0x1f0] sm:$0xff]
        %v1846 = vld [vmem:[%s7 + $0x1f8] sm:$0xff]
        %s1847 = scalar_lea.vmem %s7, 512
        %v1848 = vld [vmem:[%s1847] sm:$0xff]
        %v1849 = vld [vmem:[%s1847 + $0x8] sm:$0xff]
        %v1850 = vld [vmem:[%s1847 + $0x10] sm:$0xff]
        %v1851 = vld [vmem:[%s1847 + $0x18] sm:$0xff]
        %v1852 = vld [vmem:[%s1847 + $0x20] sm:$0xff]
        %v1853 = vld [vmem:[%s1847 + $0x28] sm:$0xff]
        %v1854 = vld [vmem:[%s1847 + $0x30] sm:$0xff]
        %v1855 = vld [vmem:[%s1847 + $0x38] sm:$0xff]
        %v1856 = vld [vmem:[%s1847 + $0x40] sm:$0xff]
        %v1857 = vld [vmem:[%s1847 + $0x48] sm:$0xff]
        %v1858 = vld [vmem:[%s1847 + $0x50] sm:$0xff]
        %v1859 = vld [vmem:[%s1847 + $0x58] sm:$0xff]
        %v1860 = vld [vmem:[%s1847 + $0x60] sm:$0xff]
        %v1861 = vld [vmem:[%s1847 + $0x68] sm:$0xff]
        %v1862 = vld [vmem:[%s1847 + $0x70] sm:$0xff]
        %v1863 = vld [vmem:[%s1847 + $0x78] sm:$0xff]
        %v1864 = vld [vmem:[%s1847 + $0x80] sm:$0xff]
        %v1865 = vld [vmem:[%s1847 + $0x88] sm:$0xff]
        %v1866 = vld [vmem:[%s1847 + $0x90] sm:$0xff]
        %v1867 = vld [vmem:[%s1847 + $0x98] sm:$0xff]
        %v1868 = vld [vmem:[%s1847 + $0xa0] sm:$0xff]
        %v1869 = vld [vmem:[%s1847 + $0xa8] sm:$0xff]
        %v1870 = vld [vmem:[%s1847 + $0xb0] sm:$0xff]
        %v1871 = vld [vmem:[%s1847 + $0xb8] sm:$0xff]
        %v1872 = vld [vmem:[%s1847 + $0xc0] sm:$0xff]
        %v1873 = vld [vmem:[%s1847 + $0xc8] sm:$0xff]
        %v1874 = vld [vmem:[%s1847 + $0xd0] sm:$0xff]
        %v1875 = vld [vmem:[%s1847 + $0xd8] sm:$0xff]
        %v1876 = vld [vmem:[%s1847 + $0xe0] sm:$0xff]
        %v1877 = vld [vmem:[%s1847 + $0xe8] sm:$0xff]
        %v1878 = vld [vmem:[%s1847 + $0xf0] sm:$0xff]
        %v1879 = vld [vmem:[%s1847 + $0xf8] sm:$0xff]
        %v1880 = vld [vmem:[%s1847 + $0x100] sm:$0xff]
        %v1881 = vld [vmem:[%s1847 + $0x108] sm:$0xff]
        %v1882 = vld [vmem:[%s1847 + $0x110] sm:$0xff]
        %v1883 = vld [vmem:[%s1847 + $0x118] sm:$0xff]
        %v1884 = vld [vmem:[%s1847 + $0x120] sm:$0xff]
        %v1885 = vld [vmem:[%s1847 + $0x128] sm:$0xff]
        %v1886 = vld [vmem:[%s1847 + $0x130] sm:$0xff]
        %v1887 = vld [vmem:[%s1847 + $0x138] sm:$0xff]
        %v1888 = vld [vmem:[%s1847 + $0x140] sm:$0xff]
        %v1889 = vld [vmem:[%s1847 + $0x148] sm:$0xff]
        %v1890 = vld [vmem:[%s1847 + $0x150] sm:$0xff]
        %v1891 = vld [vmem:[%s1847 + $0x158] sm:$0xff]
        %v1892 = vld [vmem:[%s1847 + $0x160] sm:$0xff]
        %v1893 = vld [vmem:[%s1847 + $0x168] sm:$0xff]
        %v1894 = vld [vmem:[%s1847 + $0x170] sm:$0xff]
        %v1895 = vld [vmem:[%s1847 + $0x178] sm:$0xff]
        %v1896 = vld [vmem:[%s1847 + $0x180] sm:$0xff]
        %v1897 = vld [vmem:[%s1847 + $0x188] sm:$0xff]
        %v1898 = vld [vmem:[%s1847 + $0x190] sm:$0xff]
        %v1899 = vld [vmem:[%s1847 + $0x198] sm:$0xff]
        %v1900 = vld [vmem:[%s1847 + $0x1a0] sm:$0xff]
        %v1901 = vld [vmem:[%s1847 + $0x1a8] sm:$0xff]
        %v1902 = vld [vmem:[%s1847 + $0x1b0] sm:$0xff]
        %v1903 = vld [vmem:[%s1847 + $0x1b8] sm:$0xff]
        %v1904 = vld [vmem:[%s1847 + $0x1c0] sm:$0xff]
        %v1905 = vld [vmem:[%s1847 + $0x1c8] sm:$0xff]
        %v1906 = vld [vmem:[%s1847 + $0x1d0] sm:$0xff]
        %v1907 = vld [vmem:[%s1847 + $0x1d8] sm:$0xff]
        %v1908 = vld [vmem:[%s1847 + $0x1e0] sm:$0xff]
        %v1909 = vld [vmem:[%s1847 + $0x1e8] sm:$0xff]
        %v1910 = vld [vmem:[%s1847 + $0x1f0] sm:$0xff]
        %v1911 = vld [vmem:[%s1847 + $0x1f8] sm:$0xff]
        %1912 = vmatprep.subr.mxu0 0.0
        %1913 = vmatpush1.msra.mxu0 %v1689
        %1914 = vmatprep.subr.mxu0 0.0
        %1915 = vmatpush1.msra.mxu0 %v1692
        %1916 = vmatprep.subr.mxu0 0.0
        %1917 = vmatpush1.msra.mxu0 %v1695
        %1918 = vmatprep.subr.mxu0 0.0
        %1919 = vmatpush1.msra.mxu0 %v1698
        %1920 = vmatprep.subr.mxu0 0.0
        %1921 = vmatpush1.msra.mxu0 %v1701
        %1922 = vmatprep.subr.mxu0 0.0
        %1923 = vmatpush1.msra.mxu0 %v1704
        %1924 = vmatprep.subr.mxu0 0.0
        %1925 = vmatpush1.msra.mxu0 %v1707
        %1926 = vmatprep.subr.mxu0 0.0
        %1927 = vmatpush1.msra.mxu0 %v1710
        %1928 = vmatprep.subr.mxu0 0.0
        %1929 = vmatpush1.msra.mxu0 %v1713
        %1930 = vmatprep.subr.mxu0 0.0
        %1931 = vmatpush1.msra.mxu0 %v1716
        %1932 = vmatprep.subr.mxu0 0.0
        %1933 = vmatpush1.msra.mxu0 %v1719
        %1934 = vmatprep.subr.mxu0 0.0
        %1935 = vmatpush1.msra.mxu0 %v1722
        %1936 = vmatprep.subr.mxu0 0.0
        %1937 = vmatpush1.msra.mxu0 %v1725
        %1938 = vmatprep.subr.mxu0 0.0
        %1939 = vmatpush1.msra.mxu0 %v1728
        %1940 = vmatprep.subr.mxu0 0.0
        %1941 = vmatpush1.msra.mxu0 %v1731
        %1942 = vmatprep.subr.mxu0 0.0
        %1943 = vmatpush1.msra.mxu0 %v1734
        %1944 = vmatprep.subr.mxu0 0.0
        %1945 = vmatpush1.msra.mxu0 %v1737
        %1946 = vmatprep.subr.mxu0 0.0
        %1947 = vmatpush1.msra.mxu0 %v1740
        %1948 = vmatprep.subr.mxu0 0.0
        %1949 = vmatpush1.msra.mxu0 %v1743
        %1950 = vmatprep.subr.mxu0 0.0
        %1951 = vmatpush1.msra.mxu0 %v1746
        %1952 = vmatprep.subr.mxu0 0.0
        %1953 = vmatpush1.msra.mxu0 %v1749
        %1954 = vmatprep.subr.mxu0 0.0
        %1955 = vmatpush1.msra.mxu0 %v1752
        %1956 = vmatprep.subr.mxu0 0.0
        %1957 = vmatpush1.msra.mxu0 %v1755
        %1958 = vmatprep.subr.mxu0 0.0
        %1959 = vmatpush1.msra.mxu0 %v1758
        %1960 = vmatprep.subr.mxu0 0.0
        %1961 = vmatpush1.msra.mxu0 %v1761
        %1962 = vmatprep.subr.mxu0 0.0
        %1963 = vmatpush1.msra.mxu0 %v1764
        %1964 = vmatprep.subr.mxu0 0.0
        %1965 = vmatpush1.msra.mxu0 %v1767
        %1966 = vmatprep.subr.mxu0 0.0
        %1967 = vmatpush1.msra.mxu0 %v1770
        %1968 = vmatprep.subr.mxu0 0.0
        %1969 = vmatpush1.msra.mxu0 %v1773
        %1970 = vmatprep.subr.mxu0 0.0
        %1971 = vmatpush1.msra.mxu0 %v1776
        %1972 = vmatprep.subr.mxu0 0.0
        %1973 = vmatpush1.msra.mxu0 %v1779
        %1974 = vmatprep.subr.mxu0 0.0
        %1975 = vmatpush1.msra.mxu0 %v1782
        %1976 = vmatprep.mubr.f32.mxu0 %v1849
        %1977 = vmatmul.mubr.f32.gmra.mrb[0].mxu0 %v1848
        %v1978 = vpop.f32.mrb[0].mxu0
        %v1979 = vadd.f32 0.0, %v1978
        %v1980 = vpop.f32.mrb[0].mxu0
        %1981 = vmatprep.mubr.f32.mxu0 %v1851
        %1982 = vmatmul.mubr.f32.gmra.mrb[0].mxu0 %v1850
        %v1983 = vpop.f32.mrb[0].mxu0
        %v1984 = vadd.f32 0.0, %v1983
        %v1985 = vpop.f32.mrb[0].mxu0
        %1986 = vmatprep.mubr.f32.mxu0 %v1853
        %1987 = vmatmul.mubr.f32.gmra.mrb[0].mxu0 %v1852
        %v1988 = vpop.f32.mrb[0].mxu0
        %v1989 = vadd.f32 0.0, %v1988
        %v1990 = vpop.f32.mrb[0].mxu0
        %1991 = vmatprep.mubr.f32.mxu0 %v1855
        %1992 = vmatmul.mubr.f32.gmra.mrb[0].mxu0 %v1854
        %v1993 = vpop.f32.mrb[0].mxu0
        %v1994 = vadd.f32 0.0, %v1993
        %v1995 = vpop.f32.mrb[0].mxu0
        %1996 = vmatprep.mubr.f32.mxu0 %v1857
        %1997 = vmatmul.mubr.f32.gmra.mrb[0].mxu0 %v1856
        %v1998 = vpop.f32.mrb[0].mxu0
        %v1999 = vadd.f32 0.0, %v1998
        %v2000 = vpop.f32.mrb[0].mxu0
        %2001 = vmatprep.mubr.f32.mxu0 %v1859
        %2002 = vmatmul.mubr.f32.gmra.mrb[0].mxu0 %v1858
        %v2003 = vpop.f32.mrb[0].mxu0
        %v2004 = vadd.f32 0.0, %v2003
        %v2005 = vpop.f32.mrb[0].mxu0
        %2006 = vmatprep.mubr.f32.mxu0 %v1861
        %2007 = vmatmul.mubr.f32.gmra.mrb[0].mxu0 %v1860
        %v2008 = vpop.f32.mrb[0].mxu0
        %v2009 = vadd.f32 0.0, %v2008
        %v2010 = vpop.f32.mrb[0].mxu0
        %2011 = vmatprep.mubr.f32.mxu0 %v1863
        %2012 = vmatmul.mubr.f32.gmra.mrb[0].mxu0 %v1862
        %v2013 = vpop.f32.mrb[0].mxu0
        %v2014 = vadd.f32 0.0, %v2013
        %v2015 = vpop.f32.mrb[0].mxu0
        %2016 = vmatprep.mubr.f32.mxu0 %v1865
        %2017 = vmatmul.mubr.f32.gmra.mrb[0].mxu0 %v1864
        %v2018 = vpop.f32.mrb[0].mxu0
        %v2019 = vadd.f32 0.0, %v2018
        %v2020 = vpop.f32.mrb[0].mxu0
        %2021 = vmatprep.mubr.f32.mxu0 %v1867
        %2022 = vmatmul.mubr.f32.gmra.mrb[0].mxu0 %v1866
        %v2023 = vpop.f32.mrb[0].mxu0
        %v2024 = vadd.f32 0.0, %v2023
        %v2025 = vpop.f32.mrb[0].mxu0
        %2026 = vmatprep.mubr.f32.mxu0 %v1869
        %2027 = vmatmul.mubr.f32.gmra.mrb[0].mxu0 %v1868
        %v2028 = vpop.f32.mrb[0].mxu0
        %v2029 = vadd.f32 0.0, %v2028
        %v2030 = vpop.f32.mrb[0].mxu0
        %2031 = vmatprep.mubr.f32.mxu0 %v1871
        %2032 = vmatmul.mubr.f32.gmra.mrb[0].mxu0 %v1870
        %v2033 = vpop.f32.mrb[0].mxu0
        %v2034 = vadd.f32 0.0, %v2033
        %v2035 = vpop.f32.mrb[0].mxu0
        %2036 = vmatprep.mubr.f32.mxu0 %v1873
        %2037 = vmatmul.mubr.f32.gmra.mrb[0].mxu0 %v1872
        %v2038 = vpop.f32.mrb[0].mxu0
        %v2039 = vadd.f32 0.0, %v2038
        %v2040 = vpop.f32.mrb[0].mxu0
        %2041 = vmatprep.mubr.f32.mxu0 %v1875
        %2042 = vmatmul.mubr.f32.gmra.mrb[0].mxu0 %v1874
        %v2043 = vpop.f32.mrb[0].mxu0
        %v2044 = vadd.f32 0.0, %v2043
        %v2045 = vpop.f32.mrb[0].mxu0
        %2046 = vmatprep.mubr.f32.mxu0 %v1877
        %2047 = vmatmul.mubr.f32.gmra.mrb[0].mxu0 %v1876
        %v2048 = vpop.f32.mrb[0].mxu0
        %v2049 = vadd.f32 0.0, %v2048
        %v2050 = vpop.f32.mrb[0].mxu0
        %2051 = vmatprep.mubr.f32.mxu0 %v1879
        %2052 = vmatmul.mubr.f32.gmra.mrb[0].mxu0 %v1878
        %v2053 = vpop.f32.mrb[0].mxu0
        %v2054 = vadd.f32 0.0, %v2053
        %v2055 = vpop.f32.mrb[0].mxu0
        %2056 = vmatprep.mubr.f32.mxu0 %v1881
        %2057 = vmatmul.mubr.f32.gmra.mrb[0].mxu0 %v1880
        %v2058 = vpop.f32.mrb[0].mxu0
        %v2059 = vadd.f32 0.0, %v2058
        %v2060 = vpop.f32.mrb[0].mxu0
        %2061 = vmatprep.mubr.f32.mxu0 %v1883
        %2062 = vmatmul.mubr.f32.gmra.mrb[0].mxu0 %v1882
        %v2063 = vpop.f32.mrb[0].mxu0
        %v2064 = vadd.f32 0.0, %v2063
        %v2065 = vpop.f32.mrb[0].mxu0
        %2066 = vmatprep.mubr.f32.mxu0 %v1885
        %2067 = vmatmul.mubr.f32.gmra.mrb[0].mxu0 %v1884
        %v2068 = vpop.f32.mrb[0].mxu0
        %v2069 = vadd.f32 0.0, %v2068
        %v2070 = vpop.f32.mrb[0].mxu0
        %2071 = vmatprep.mubr.f32.mxu0 %v1887
        %2072 = vmatmul.mubr.f32.gmra.mrb[0].mxu0 %v1886
        %v2073 = vpop.f32.mrb[0].mxu0
        %v2074 = vadd.f32 0.0, %v2073
        %v2075 = vpop.f32.mrb[0].mxu0
        %2076 = vmatprep.mubr.f32.mxu0 %v1889
        %2077 = vmatmul.mubr.f32.gmra.mrb[0].mxu0 %v1888
        %v2078 = vpop.f32.mrb[0].mxu0
        %v2079 = vadd.f32 0.0, %v2078
        %v2080 = vpop.f32.mrb[0].mxu0
        %2081 = vmatprep.mubr.f32.mxu0 %v1891
        %2082 = vmatmul.mubr.f32.gmra.mrb[0].mxu0 %v1890
        %v2083 = vpop.f32.mrb[0].mxu0
        %v2084 = vadd.f32 0.0, %v2083
        %v2085 = vpop.f32.mrb[0].mxu0
        %2086 = vmatprep.mubr.f32.mxu0 %v1893
        %2087 = vmatmul.mubr.f32.gmra.mrb[0].mxu0 %v1892
        %v2088 = vpop.f32.mrb[0].mxu0
        %v2089 = vadd.f32 0.0, %v2088
        %v2090 = vpop.f32.mrb[0].mxu0
        %2091 = vmatprep.mubr.f32.mxu0 %v1895
        %2092 = vmatmul.mubr.f32.gmra.mrb[0].mxu0 %v1894
        %v2093 = vpop.f32.mrb[0].mxu0
        %v2094 = vadd.f32 0.0, %v2093
        %v2095 = vpop.f32.mrb[0].mxu0
        %2096 = vmatprep.mubr.f32.mxu0 %v1897
        %2097 = vmatmul.mubr.f32.gmra.mrb[0].mxu0 %v1896
        %v2098 = vpop.f32.mrb[0].mxu0
        %v2099 = vadd.f32 0.0, %v2098
        %v2100 = vpop.f32.mrb[0].mxu0
        %2101 = vmatprep.mubr.f32.mxu0 %v1899
        %2102 = vmatmul.mubr.f32.gmra.mrb[0].mxu0 %v1898
        %v2103 = vpop.f32.mrb[0].mxu0
        %v2104 = vadd.f32 0.0, %v2103
        %v2105 = vpop.f32.mrb[0].mxu0
        %2106 = vmatprep.mubr.f32.mxu0 %v1901
        %2107 = vmatmul.mubr.f32.gmra.mrb[0].mxu0 %v1900
        %v2108 = vpop.f32.mrb[0].mxu0
        %v2109 = vadd.f32 0.0, %v2108
        %v2110 = vpop.f32.mrb[0].mxu0
        %2111 = vmatprep.mubr.f32.mxu0 %v1903
        %2112 = vmatmul.mubr.f32.gmra.mrb[0].mxu0 %v1902
        %v2113 = vpop.f32.mrb[0].mxu0
        %v2114 = vadd.f32 0.0, %v2113
        %v2115 = vpop.f32.mrb[0].mxu0
        %2116 = vmatprep.mubr.f32.mxu0 %v1905
        %2117 = vmatmul.mubr.f32.gmra.mrb[0].mxu0 %v1904
        %v2118 = vpop.f32.mrb[0].mxu0
        %v2119 = vadd.f32 0.0, %v2118
        %v2120 = vpop.f32.mrb[0].mxu0
        %2121 = vmatprep.mubr.f32.mxu0 %v1907
        %2122 = vmatmul.mubr.f32.gmra.mrb[0].mxu0 %v1906
        %v2123 = vpop.f32.mrb[0].mxu0
        %v2124 = vadd.f32 0.0, %v2123
        %v2125 = vpop.f32.mrb[0].mxu0
        %2126 = vmatprep.mubr.f32.mxu0 %v1909
        %2127 = vmatmul.mubr.f32.gmra.mrb[0].mxu0 %v1908
        %v2128 = vpop.f32.mrb[0].mxu0
        %v2129 = vadd.f32 0.0, %v2128
        %v2130 = vpop.f32.mrb[0].mxu0
        %2131 = vmatprep.mubr.f32.mxu0 %v1911
        %2132 = vmatmul.mubr.f32.gmra.mrb[0].mxu0 %v1910
        %v2133 = vpop.f32.mrb[0].mxu0
        %v2134 = vadd.f32 0.0, %v2133
        %v2135 = vpop.f32.mrb[0].mxu0
        %2136 = vdwg.mxu0
        %2137 = vmatprep.subr.mxu0 0.0
        %2138 = vmatpush1.msra.mxu0 %v1655
        %2139 = vmatprep.subr.mxu0 0.0
        %2140 = vmatpush1.msra.mxu0 %v1656
        %2141 = vmatprep.subr.mxu0 0.0
        %2142 = vmatpush1.msra.mxu0 %v1657
        %2143 = vmatprep.subr.mxu0 0.0
        %2144 = vmatpush1.msra.mxu0 %v1658
        %2145 = vmatprep.subr.mxu0 0.0
        %2146 = vmatpush1.msra.mxu0 %v1659
        %2147 = vmatprep.subr.mxu0 0.0
        %2148 = vmatpush1.msra.mxu0 %v1660
        %2149 = vmatprep.subr.mxu0 0.0
        %2150 = vmatpush1.msra.mxu0 %v1661
        %2151 = vmatprep.subr.mxu0 0.0
        %2152 = vmatpush1.msra.mxu0 %v1662
        %2153 = vmatprep.subr.mxu0 0.0
        %2154 = vmatpush1.msra.mxu0 %v1663
        %2155 = vmatprep.subr.mxu0 0.0
        %2156 = vmatpush1.msra.mxu0 %v1664
        %2157 = vmatprep.subr.mxu0 0.0
        %2158 = vmatpush1.msra.mxu0 %v1665
        %2159 = vmatprep.subr.mxu0 0.0
        %2160 = vmatpush1.msra.mxu0 %v1666
        %2161 = vmatprep.subr.mxu0 0.0
        %2162 = vmatpush1.msra.mxu0 %v1667
        %2163 = vmatprep.subr.mxu0 0.0
        %2164 = vmatpush1.msra.mxu0 %v1668
        %2165 = vmatprep.subr.mxu0 0.0
        %2166 = vmatpush1.msra.mxu0 %v1669
        %2167 = vmatprep.subr.mxu0 0.0
        %2168 = vmatpush1.msra.mxu0 %v1670
        %2169 = vmatprep.subr.mxu0 0.0
        %2170 = vmatpush1.msra.mxu0 %v1671
        %2171 = vmatprep.subr.mxu0 0.0
        %2172 = vmatpush1.msra.mxu0 %v1672
        %2173 = vmatprep.subr.mxu0 0.0
        %2174 = vmatpush1.msra.mxu0 %v1673
        %2175 = vmatprep.subr.mxu0 0.0
        %2176 = vmatpush1.msra.mxu0 %v1674
        %2177 = vmatprep.subr.mxu0 0.0
        %2178 = vmatpush1.msra.mxu0 %v1675
        %2179 = vmatprep.subr.mxu0 0.0
        %2180 = vmatpush1.msra.mxu0 %v1676
        %2181 = vmatprep.subr.mxu0 0.0
        %2182 = vmatpush1.msra.mxu0 %v1677
        %2183 = vmatprep.subr.mxu0 0.0
        %2184 = vmatpush1.msra.mxu0 %v1678
        %2185 = vmatprep.subr.mxu0 0.0
        %2186 = vmatpush1.msra.mxu0 %v1679
        %2187 = vmatprep.subr.mxu0 0.0
        %2188 = vmatpush1.msra.mxu0 %v1680
        %2189 = vmatprep.subr.mxu0 0.0
        %2190 = vmatpush1.msra.mxu0 %v1681
        %2191 = vmatprep.subr.mxu0 0.0
        %2192 = vmatpush1.msra.mxu0 %v1682
        %2193 = vmatprep.subr.mxu0 0.0
        %2194 = vmatpush1.msra.mxu0 %v1683
        %2195 = vmatprep.subr.mxu0 0.0
        %2196 = vmatpush1.msra.mxu0 %v1684
        %2197 = vmatprep.subr.mxu0 0.0
        %2198 = vmatpush1.msra.mxu0 %v1685
        %2199 = vmatprep.subr.mxu0 0.0
        %2200 = vmatpush1.msra.mxu0 %v1686
        %2201 = vmatprep.mubr.f32.mxu0 %v1784
        %2202 = vmatmul.mubr.f32.gmra.mrb[0].mxu0 %v1783
        %v2203 = vpop.f32.mrb[0].mxu0
        %v2204 = vadd.f32 %v1979, %v2203
        %v2205 = vpop.f32.mrb[0].mxu0
        %2206 = vmatprep.mubr.f32.mxu0 %v1786
        %2207 = vmatmul.mubr.f32.gmra.mrb[0].mxu0 %v1785
        %v2208 = vpop.f32.mrb[0].mxu0
        %v2209 = vadd.f32 %v1984, %v2208
        %v2210 = vpop.f32.mrb[0].mxu0
        %2211 = vmatprep.mubr.f32.mxu0 %v1788
        %2212 = vmatmul.mubr.f32.gmra.mrb[0].mxu0 %v1787
        %v2213 = vpop.f32.mrb[0].mxu0
        %v2214 = vadd.f32 %v1989, %v2213
        %v2215 = vpop.f32.mrb[0].mxu0
        %2216 = vmatprep.mubr.f32.mxu0 %v1790
        %2217 = vmatmul.mubr.f32.gmra.mrb[0].mxu0 %v1789
        %v2218 = vpop.f32.mrb[0].mxu0
        %v2219 = vadd.f32 %v1994, %v2218
        %v2220 = vpop.f32.mrb[0].mxu0
        %2221 = vmatprep.mubr.f32.mxu0 %v1792
        %2222 = vmatmul.mubr.f32.gmra.mrb[0].mxu0 %v1791
        %v2223 = vpop.f32.mrb[0].mxu0
        %v2224 = vadd.f32 %v1999, %v2223
        %v2225 = vpop.f32.mrb[0].mxu0
        %2226 = vmatprep.mubr.f32.mxu0 %v1794
        %2227 = vmatmul.mubr.f32.gmra.mrb[0].mxu0 %v1793
        %v2228 = vpop.f32.mrb[0].mxu0
        %v2229 = vadd.f32 %v2004, %v2228
        %v2230 = vpop.f32.mrb[0].mxu0
        %2231 = vmatprep.mubr.f32.mxu0 %v1796
        %2232 = vmatmul.mubr.f32.gmra.mrb[0].mxu0 %v1795
        %v2233 = vpop.f32.mrb[0].mxu0
        %v2234 = vadd.f32 %v2009, %v2233
        %v2235 = vpop.f32.mrb[0].mxu0
        %2236 = vmatprep.mubr.f32.mxu0 %v1798
        %2237 = vmatmul.mubr.f32.gmra.mrb[0].mxu0 %v1797
        %v2238 = vpop.f32.mrb[0].mxu0
        %v2239 = vadd.f32 %v2014, %v2238
        %v2240 = vpop.f32.mrb[0].mxu0
        %2241 = vmatprep.mubr.f32.mxu0 %v1800
        %2242 = vmatmul.mubr.f32.gmra.mrb[0].mxu0 %v1799
        %v2243 = vpop.f32.mrb[0].mxu0
        %v2244 = vadd.f32 %v2019, %v2243
        %v2245 = vpop.f32.mrb[0].mxu0
        %2246 = vmatprep.mubr.f32.mxu0 %v1802
        %2247 = vmatmul.mubr.f32.gmra.mrb[0].mxu0 %v1801
        %v2248 = vpop.f32.mrb[0].mxu0
        %v2249 = vadd.f32 %v2024, %v2248
        %v2250 = vpop.f32.mrb[0].mxu0
        %2251 = vmatprep.mubr.f32.mxu0 %v1804
        %2252 = vmatmul.mubr.f32.gmra.mrb[0].mxu0 %v1803
        %v2253 = vpop.f32.mrb[0].mxu0
        %v2254 = vadd.f32 %v2029, %v2253
        %v2255 = vpop.f32.mrb[0].mxu0
        %2256 = vmatprep.mubr.f32.mxu0 %v1806
        %2257 = vmatmul.mubr.f32.gmra.mrb[0].mxu0 %v1805
        %v2258 = vpop.f32.mrb[0].mxu0
        %v2259 = vadd.f32 %v2034, %v2258
        %v2260 = vpop.f32.mrb[0].mxu0
        %2261 = vmatprep.mubr.f32.mxu0 %v1808
        %2262 = vmatmul.mubr.f32.gmra.mrb[0].mxu0 %v1807
        %v2263 = vpop.f32.mrb[0].mxu0
        %v2264 = vadd.f32 %v2039, %v2263
        %v2265 = vpop.f32.mrb[0].mxu0
        %2266 = vmatprep.mubr.f32.mxu0 %v1810
        %2267 = vmatmul.mubr.f32.gmra.mrb[0].mxu0 %v1809
        %v2268 = vpop.f32.mrb[0].mxu0
        %v2269 = vadd.f32 %v2044, %v2268
        %v2270 = vpop.f32.mrb[0].mxu0
        %2271 = vmatprep.mubr.f32.mxu0 %v1812
        %2272 = vmatmul.mubr.f32.gmra.mrb[0].mxu0 %v1811
        %v2273 = vpop.f32.mrb[0].mxu0
        %v2274 = vadd.f32 %v2049, %v2273
        %v2275 = vpop.f32.mrb[0].mxu0
        %2276 = vmatprep.mubr.f32.mxu0 %v1814
        %2277 = vmatmul.mubr.f32.gmra.mrb[0].mxu0 %v1813
        %v2278 = vpop.f32.mrb[0].mxu0
        %v2279 = vadd.f32 %v2054, %v2278
        %v2280 = vpop.f32.mrb[0].mxu0
        %2281 = vmatprep.mubr.f32.mxu0 %v1816
        %2282 = vmatmul.mubr.f32.gmra.mrb[0].mxu0 %v1815
        %v2283 = vpop.f32.mrb[0].mxu0
        %v2284 = vadd.f32 %v2059, %v2283
        %v2285 = vpop.f32.mrb[0].mxu0
        %2286 = vmatprep.mubr.f32.mxu0 %v1818
        %2287 = vmatmul.mubr.f32.gmra.mrb[0].mxu0 %v1817
        %v2288 = vpop.f32.mrb[0].mxu0
        %v2289 = vadd.f32 %v2064, %v2288
        %v2290 = vpop.f32.mrb[0].mxu0
        %2291 = vmatprep.mubr.f32.mxu0 %v1820
        %2292 = vmatmul.mubr.f32.gmra.mrb[0].mxu0 %v1819
        %v2293 = vpop.f32.mrb[0].mxu0
        %v2294 = vadd.f32 %v2069, %v2293
        %v2295 = vpop.f32.mrb[0].mxu0
        %2296 = vmatprep.mubr.f32.mxu0 %v1822
        %2297 = vmatmul.mubr.f32.gmra.mrb[0].mxu0 %v1821
        %v2298 = vpop.f32.mrb[0].mxu0
        %v2299 = vadd.f32 %v2074, %v2298
        %v2300 = vpop.f32.mrb[0].mxu0
        %2301 = vmatprep.mubr.f32.mxu0 %v1824
        %2302 = vmatmul.mubr.f32.gmra.mrb[0].mxu0 %v1823
        %v2303 = vpop.f32.mrb[0].mxu0
        %v2304 = vadd.f32 %v2079, %v2303
        %v2305 = vpop.f32.mrb[0].mxu0
        %2306 = vmatprep.mubr.f32.mxu0 %v1826
        %2307 = vmatmul.mubr.f32.gmra.mrb[0].mxu0 %v1825
        %v2308 = vpop.f32.mrb[0].mxu0
        %v2309 = vadd.f32 %v2084, %v2308
        %v2310 = vpop.f32.mrb[0].mxu0
        %2311 = vmatprep.mubr.f32.mxu0 %v1828
        %2312 = vmatmul.mubr.f32.gmra.mrb[0].mxu0 %v1827
        %v2313 = vpop.f32.mrb[0].mxu0
        %v2314 = vadd.f32 %v2089, %v2313
        %v2315 = vpop.f32.mrb[0].mxu0
        %2316 = vmatprep.mubr.f32.mxu0 %v1830
        %2317 = vmatmul.mubr.f32.gmra.mrb[0].mxu0 %v1829
        %v2318 = vpop.f32.mrb[0].mxu0
        %v2319 = vadd.f32 %v2094, %v2318
        %v2320 = vpop.f32.mrb[0].mxu0
        %2321 = vmatprep.mubr.f32.mxu0 %v1832
        %2322 = vmatmul.mubr.f32.gmra.mrb[0].mxu0 %v1831
        %v2323 = vpop.f32.mrb[0].mxu0
        %v2324 = vadd.f32 %v2099, %v2323
        %v2325 = vpop.f32.mrb[0].mxu0
        %2326 = vmatprep.mubr.f32.mxu0 %v1834
        %2327 = vmatmul.mubr.f32.gmra.mrb[0].mxu0 %v1833
        %v2328 = vpop.f32.mrb[0].mxu0
        %v2329 = vadd.f32 %v2104, %v2328
        %v2330 = vpop.f32.mrb[0].mxu0
        %2331 = vmatprep.mubr.f32.mxu0 %v1836
        %2332 = vmatmul.mubr.f32.gmra.mrb[0].mxu0 %v1835
        %v2333 = vpop.f32.mrb[0].mxu0
        %v2334 = vadd.f32 %v2109, %v2333
        %v2335 = vpop.f32.mrb[0].mxu0
        %2336 = vmatprep.mubr.f32.mxu0 %v1838
        %2337 = vmatmul.mubr.f32.gmra.mrb[0].mxu0 %v1837
        %v2338 = vpop.f32.mrb[0].mxu0
        %v2339 = vadd.f32 %v2114, %v2338
        %v2340 = vpop.f32.mrb[0].mxu0
        %2341 = vmatprep.mubr.f32.mxu0 %v1840
        %2342 = vmatmul.mubr.f32.gmra.mrb[0].mxu0 %v1839
        %v2343 = vpop.f32.mrb[0].mxu0
        %v2344 = vadd.f32 %v2119, %v2343
        %v2345 = vpop.f32.mrb[0].mxu0
        %2346 = vmatprep.mubr.f32.mxu0 %v1842
        %2347 = vmatmul.mubr.f32.gmra.mrb[0].mxu0 %v1841
        %v2348 = vpop.f32.mrb[0].mxu0
        %v2349 = vadd.f32 %v2124, %v2348
        %v2350 = vpop.f32.mrb[0].mxu0
        %2351 = vmatprep.mubr.f32.mxu0 %v1844
        %2352 = vmatmul.mubr.f32.gmra.mrb[0].mxu0 %v1843
        %v2353 = vpop.f32.mrb[0].mxu0
        %v2354 = vadd.f32 %v2129, %v2353
        %v2355 = vpop.f32.mrb[0].mxu0
        %2356 = vmatprep.mubr.f32.mxu0 %v1846
        %2357 = vmatmul.mubr.f32.gmra.mrb[0].mxu0 %v1845
        %v2358 = vpop.f32.mrb[0].mxu0
        %v2359 = vadd.f32 %v2134, %v2358
        %v2360 = vpop.f32.mrb[0].mxu0
        %2361 = vdwg.mxu0
        %v2362 = vxor.u32 %v2204, 2147483648
        %v2363 = vxor.u32 %v2209, 2147483648
        %v2364 = vxor.u32 %v2214, 2147483648
        %v2365 = vxor.u32 %v2219, 2147483648
        %v2366 = vxor.u32 %v2224, 2147483648
        %v2367 = vxor.u32 %v2229, 2147483648
        %v2368 = vxor.u32 %v2234, 2147483648
        %v2369 = vxor.u32 %v2239, 2147483648
        %v2370 = vxor.u32 %v2244, 2147483648
        %v2371 = vxor.u32 %v2249, 2147483648
        %v2372 = vxor.u32 %v2254, 2147483648
        %v2373 = vxor.u32 %v2259, 2147483648
        %v2374 = vxor.u32 %v2264, 2147483648
        %v2375 = vxor.u32 %v2269, 2147483648
        %v2376 = vxor.u32 %v2274, 2147483648
        %v2377 = vxor.u32 %v2279, 2147483648
        %v2378 = vxor.u32 %v2284, 2147483648
        %v2379 = vxor.u32 %v2289, 2147483648
        %v2380 = vxor.u32 %v2294, 2147483648
        %v2381 = vxor.u32 %v2299, 2147483648
        %v2382 = vxor.u32 %v2304, 2147483648
        %v2383 = vxor.u32 %v2309, 2147483648
        %v2384 = vxor.u32 %v2314, 2147483648
        %v2385 = vxor.u32 %v2319, 2147483648
        %v2386 = vxor.u32 %v2324, 2147483648
        %v2387 = vxor.u32 %v2329, 2147483648
        %v2388 = vxor.u32 %v2334, 2147483648
        %v2389 = vxor.u32 %v2339, 2147483648
        %v2390 = vxor.u32 %v2344, 2147483648
        %v2391 = vxor.u32 %v2349, 2147483648
        %v2392 = vxor.u32 %v2354, 2147483648
        %v2393 = vxor.u32 %v2359, 2147483648
        %v2394 = vmul.f32 %v2362, 1.442695
        %v2395 = vpow.pop %v2394
        %v2396 = vmul.f32 %v2363, 1.442695
        %v2397 = vpow.pop %v2396
        %v2398 = vmul.f32 %v2364, 1.442695
        %v2399 = vpow.pop %v2398
        %v2400 = vmul.f32 %v2365, 1.442695
        %v2401 = vpow.pop %v2400
        %v2402 = vmul.f32 %v2366, 1.442695
        %v2403 = vpow.pop %v2402
        %v2404 = vmul.f32 %v2367, 1.442695
        %v2405 = vpow.pop %v2404
        %v2406 = vmul.f32 %v2368, 1.442695
        %v2407 = vpow.pop %v2406
        %v2408 = vmul.f32 %v2369, 1.442695
        %v2409 = vpow.pop %v2408
        %v2410 = vmul.f32 %v2370, 1.442695
        %v2411 = vpow.pop %v2410
        %v2412 = vmul.f32 %v2371, 1.442695
        %v2413 = vpow.pop %v2412
        %v2414 = vmul.f32 %v2372, 1.442695
        %v2415 = vpow.pop %v2414
        %v2416 = vmul.f32 %v2373, 1.442695
        %v2417 = vpow.pop %v2416
        %v2418 = vmul.f32 %v2374, 1.442695
        %v2419 = vpow.pop %v2418
        %v2420 = vmul.f32 %v2375, 1.442695
        %v2421 = vpow.pop %v2420
        %v2422 = vmul.f32 %v2376, 1.442695
        %v2423 = vpow.pop %v2422
        %v2424 = vmul.f32 %v2377, 1.442695
        %v2425 = vpow.pop %v2424
        %v2426 = vmul.f32 %v2378, 1.442695
        %v2427 = vpow.pop %v2426
        %v2428 = vmul.f32 %v2379, 1.442695
        %v2429 = vpow.pop %v2428
        %v2430 = vmul.f32 %v2380, 1.442695
        %v2431 = vpow.pop %v2430
        %v2432 = vmul.f32 %v2381, 1.442695
        %v2433 = vpow.pop %v2432
        %v2434 = vmul.f32 %v2382, 1.442695
        %v2435 = vpow.pop %v2434
        %v2436 = vmul.f32 %v2383, 1.442695
        %v2437 = vpow.pop %v2436
        %v2438 = vmul.f32 %v2384, 1.442695
        %v2439 = vpow.pop %v2438
        %v2440 = vmul.f32 %v2385, 1.442695
        %v2441 = vpow.pop %v2440
        %v2442 = vmul.f32 %v2386, 1.442695
        %v2443 = vpow.pop %v2442
        %v2444 = vmul.f32 %v2387, 1.442695
        %v2445 = vpow.pop %v2444
        %v2446 = vmul.f32 %v2388, 1.442695
        %v2447 = vpow.pop %v2446
        %v2448 = vmul.f32 %v2389, 1.442695
        %v2449 = vpow.pop %v2448
        %v2450 = vmul.f32 %v2390, 1.442695
        %v2451 = vpow.pop %v2450
        %v2452 = vmul.f32 %v2391, 1.442695
        %v2453 = vpow.pop %v2452
        %v2454 = vmul.f32 %v2392, 1.442695
        %v2455 = vpow.pop %v2454
        %v2456 = vmul.f32 %v2393, 1.442695
        %v2457 = vpow.pop %v2456
        %v2458 = vadd.f32 %v2395, 1.0
        %v2459 = vadd.f32 %v2397, 1.0
        %v2460 = vadd.f32 %v2399, 1.0
        %v2461 = vadd.f32 %v2401, 1.0
        %v2462 = vadd.f32 %v2403, 1.0
        %v2463 = vadd.f32 %v2405, 1.0
        %v2464 = vadd.f32 %v2407, 1.0
        %v2465 = vadd.f32 %v2409, 1.0
        %v2466 = vadd.f32 %v2411, 1.0
        %v2467 = vadd.f32 %v2413, 1.0
        %v2468 = vadd.f32 %v2415, 1.0
        %v2469 = vadd.f32 %v2417, 1.0
        %v2470 = vadd.f32 %v2419, 1.0
        %v2471 = vadd.f32 %v2421, 1.0
        %v2472 = vadd.f32 %v2423, 1.0
        %v2473 = vadd.f32 %v2425, 1.0
        %v2474 = vadd.f32 %v2427, 1.0
        %v2475 = vadd.f32 %v2429, 1.0
        %v2476 = vadd.f32 %v2431, 1.0
        %v2477 = vadd.f32 %v2433, 1.0
        %v2478 = vadd.f32 %v2435, 1.0
        %v2479 = vadd.f32 %v2437, 1.0
        %v2480 = vadd.f32 %v2439, 1.0
        %v2481 = vadd.f32 %v2441, 1.0
        %v2482 = vadd.f32 %v2443, 1.0
        %v2483 = vadd.f32 %v2445, 1.0
        %v2484 = vadd.f32 %v2447, 1.0
        %v2485 = vadd.f32 %v2449, 1.0
        %v2486 = vadd.f32 %v2451, 1.0
        %v2487 = vadd.f32 %v2453, 1.0
        %v2488 = vadd.f32 %v2455, 1.0
        %v2489 = vadd.f32 %v2457, 1.0
        %v2490 = vrcp.pop %v2458
        %v2491 = vmul.f32 1.0, %v2490
        %v2492 = vrcp.pop %v2459
        %v2493 = vmul.f32 1.0, %v2492
        %v2494 = vrcp.pop %v2460
        %v2495 = vmul.f32 1.0, %v2494
        %v2496 = vrcp.pop %v2461
        %v2497 = vmul.f32 1.0, %v2496
        %v2498 = vrcp.pop %v2462
        %v2499 = vmul.f32 1.0, %v2498
        %v2500 = vrcp.pop %v2463
        %v2501 = vmul.f32 1.0, %v2500
        %v2502 = vrcp.pop %v2464
        %v2503 = vmul.f32 1.0, %v2502
        %v2504 = vrcp.pop %v2465
        %v2505 = vmul.f32 1.0, %v2504
        %v2506 = vrcp.pop %v2466
        %v2507 = vmul.f32 1.0, %v2506
        %v2508 = vrcp.pop %v2467
        %v2509 = vmul.f32 1.0, %v2508
        %v2510 = vrcp.pop %v2468
        %v2511 = vmul.f32 1.0, %v2510
        %v2512 = vrcp.pop %v2469
        %v2513 = vmul.f32 1.0, %v2512
        %v2514 = vrcp.pop %v2470
        %v2515 = vmul.f32 1.0, %v2514
        %v2516 = vrcp.pop %v2471
        %v2517 = vmul.f32 1.0, %v2516
        %v2518 = vrcp.pop %v2472
        %v2519 = vmul.f32 1.0, %v2518
        %v2520 = vrcp.pop %v2473
        %v2521 = vmul.f32 1.0, %v2520
        %v2522 = vrcp.pop %v2474
        %v2523 = vmul.f32 1.0, %v2522
        %v2524 = vrcp.pop %v2475
        %v2525 = vmul.f32 1.0, %v2524
        %v2526 = vrcp.pop %v2476
        %v2527 = vmul.f32 1.0, %v2526
        %v2528 = vrcp.pop %v2477
        %v2529 = vmul.f32 1.0, %v2528
        %v2530 = vrcp.pop %v2478
        %v2531 = vmul.f32 1.0, %v2530
        %v2532 = vrcp.pop %v2479
        %v2533 = vmul.f32 1.0, %v2532
        %v2534 = vrcp.pop %v2480
        %v2535 = vmul.f32 1.0, %v2534
        %v2536 = vrcp.pop %v2481
        %v2537 = vmul.f32 1.0, %v2536
        %v2538 = vrcp.pop %v2482
        %v2539 = vmul.f32 1.0, %v2538
        %v2540 = vrcp.pop %v2483
        %v2541 = vmul.f32 1.0, %v2540
        %v2542 = vrcp.pop %v2484
        %v2543 = vmul.f32 1.0, %v2542
        %v2544 = vrcp.pop %v2485
        %v2545 = vmul.f32 1.0, %v2544
        %v2546 = vrcp.pop %v2486
        %v2547 = vmul.f32 1.0, %v2546
        %v2548 = vrcp.pop %v2487
        %v2549 = vmul.f32 1.0, %v2548
        %v2550 = vrcp.pop %v2488
        %v2551 = vmul.f32 1.0, %v2550
        %v2552 = vrcp.pop %v2489
        %v2553 = vmul.f32 1.0, %v2552
        %2555 = vset.pattern.permute.xlu0 0
        %2556 = vperm.xlu0 %2555, %v2491
        %v2557 = vpop.permute.xlu0 %2556
        %2560 = vset.pattern.permute.xlu0 0
        %2561 = vperm.xlu0 %2560, %v2493
        %v2562 = vpop.permute.xlu0 %2561
        %2565 = vset.pattern.permute.xlu0 0
        %2566 = vperm.xlu0 %2565, %v2495
        %v2567 = vpop.permute.xlu0 %2566
        %2570 = vset.pattern.permute.xlu0 0
        %2571 = vperm.xlu0 %2570, %v2497
        %v2572 = vpop.permute.xlu0 %2571
        %2575 = vset.pattern.permute.xlu0 0
        %2576 = vperm.xlu0 %2575, %v2499
        %v2577 = vpop.permute.xlu0 %2576
        %2580 = vset.pattern.permute.xlu0 0
        %2581 = vperm.xlu0 %2580, %v2501
        %v2582 = vpop.permute.xlu0 %2581
        %2585 = vset.pattern.permute.xlu0 0
        %2586 = vperm.xlu0 %2585, %v2503
        %v2587 = vpop.permute.xlu0 %2586
        %2590 = vset.pattern.permute.xlu0 0
        %2591 = vperm.xlu0 %2590, %v2505
        %v2592 = vpop.permute.xlu0 %2591
        %2595 = vset.pattern.permute.xlu0 0
        %2596 = vperm.xlu0 %2595, %v2507
        %v2597 = vpop.permute.xlu0 %2596
        %2600 = vset.pattern.permute.xlu0 0
        %2601 = vperm.xlu0 %2600, %v2509
        %v2602 = vpop.permute.xlu0 %2601
        %2605 = vset.pattern.permute.xlu0 0
        %2606 = vperm.xlu0 %2605, %v2511
        %v2607 = vpop.permute.xlu0 %2606
        %2610 = vset.pattern.permute.xlu0 0
        %2611 = vperm.xlu0 %2610, %v2513
        %v2612 = vpop.permute.xlu0 %2611
        %2615 = vset.pattern.permute.xlu0 0
        %2616 = vperm.xlu0 %2615, %v2515
        %v2617 = vpop.permute.xlu0 %2616
        %2620 = vset.pattern.permute.xlu0 0
        %2621 = vperm.xlu0 %2620, %v2517
        %v2622 = vpop.permute.xlu0 %2621
        %2625 = vset.pattern.permute.xlu0 0
        %2626 = vperm.xlu0 %2625, %v2519
        %v2627 = vpop.permute.xlu0 %2626
        %2630 = vset.pattern.permute.xlu0 0
        %2631 = vperm.xlu0 %2630, %v2521
        %v2632 = vpop.permute.xlu0 %2631
        %2635 = vset.pattern.permute.xlu0 0
        %2636 = vperm.xlu0 %2635, %v2523
        %v2637 = vpop.permute.xlu0 %2636
        %2640 = vset.pattern.permute.xlu0 0
        %2641 = vperm.xlu0 %2640, %v2525
        %v2642 = vpop.permute.xlu0 %2641
        %2645 = vset.pattern.permute.xlu0 0
        %2646 = vperm.xlu0 %2645, %v2527
        %v2647 = vpop.permute.xlu0 %2646
        %2650 = vset.pattern.permute.xlu0 0
        %2651 = vperm.xlu0 %2650, %v2529
        %v2652 = vpop.permute.xlu0 %2651
        %2655 = vset.pattern.permute.xlu0 0
        %2656 = vperm.xlu0 %2655, %v2531
        %v2657 = vpop.permute.xlu0 %2656
        %2660 = vset.pattern.permute.xlu0 0
        %2661 = vperm.xlu0 %2660, %v2533
        %v2662 = vpop.permute.xlu0 %2661
        %2665 = vset.pattern.permute.xlu0 0
        %2666 = vperm.xlu0 %2665, %v2535
        %v2667 = vpop.permute.xlu0 %2666
        %2670 = vset.pattern.permute.xlu0 0
        %2671 = vperm.xlu0 %2670, %v2537
        %v2672 = vpop.permute.xlu0 %2671
        %2675 = vset.pattern.permute.xlu0 0
        %2676 = vperm.xlu0 %2675, %v2539
        %v2677 = vpop.permute.xlu0 %2676
        %2680 = vset.pattern.permute.xlu0 0
        %2681 = vperm.xlu0 %2680, %v2541
        %v2682 = vpop.permute.xlu0 %2681
        %2685 = vset.pattern.permute.xlu0 0
        %2686 = vperm.xlu0 %2685, %v2543
        %v2687 = vpop.permute.xlu0 %2686
        %2690 = vset.pattern.permute.xlu0 0
        %2691 = vperm.xlu0 %2690, %v2545
        %v2692 = vpop.permute.xlu0 %2691
        %2695 = vset.pattern.permute.xlu0 0
        %2696 = vperm.xlu0 %2695, %v2547
        %v2697 = vpop.permute.xlu0 %2696
        %2700 = vset.pattern.permute.xlu0 0
        %2701 = vperm.xlu0 %2700, %v2549
        %v2702 = vpop.permute.xlu0 %2701
        %2705 = vset.pattern.permute.xlu0 0
        %2706 = vperm.xlu0 %2705, %v2551
        %v2707 = vpop.permute.xlu0 %2706
        %2710 = vset.pattern.permute.xlu0 0
        %2711 = vperm.xlu0 %2710, %v2553
        %v2712 = vpop.permute.xlu0 %2711
        %v2714 = vmul.f32 %v1526, %v2557
        %v2715 = vmul.f32 %v1527, %v2562
        %v2716 = vmul.f32 %v1528, %v2567
        %v2717 = vmul.f32 %v1529, %v2572
        %v2718 = vmul.f32 %v1530, %v2577
        %v2719 = vmul.f32 %v1531, %v2582
        %v2720 = vmul.f32 %v1532, %v2587
        %v2721 = vmul.f32 %v1533, %v2592
        %v2722 = vmul.f32 %v1534, %v2597
        %v2723 = vmul.f32 %v1535, %v2602
        %v2724 = vmul.f32 %v1536, %v2607
        %v2725 = vmul.f32 %v1537, %v2612
        %v2726 = vmul.f32 %v1538, %v2617
        %v2727 = vmul.f32 %v1539, %v2622
        %v2728 = vmul.f32 %v1540, %v2627
        %v2729 = vmul.f32 %v1541, %v2632
        %v2730 = vmul.f32 %v1542, %v2637
        %v2731 = vmul.f32 %v1543, %v2642
        %v2732 = vmul.f32 %v1544, %v2647
        %v2733 = vmul.f32 %v1545, %v2652
        %v2734 = vmul.f32 %v1546, %v2657
        %v2735 = vmul.f32 %v1547, %v2662
        %v2736 = vmul.f32 %v1548, %v2667
        %v2737 = vmul.f32 %v1549, %v2672
        %v2738 = vmul.f32 %v1550, %v2677
        %v2739 = vmul.f32 %v1551, %v2682
        %v2740 = vmul.f32 %v1552, %v2687
        %v2741 = vmul.f32 %v1553, %v2692
        %v2742 = vmul.f32 %v1554, %v2697
        %v2743 = vmul.f32 %v1555, %v2702
        %v2744 = vmul.f32 %v1556, %v2707
        %v2745 = vmul.f32 %v1557, %v2712
        %2746 = vst.msk [vmem:[%s313] sm:$0xff] %vm392, %v2714
        %2747 = vst.msk [vmem:[%s313 + $0x8] sm:$0xff] %vm392, %v2715
        %2748 = vst.msk [vmem:[%s313 + $0x10] sm:$0xff] %vm392, %v2716
        %2749 = vst.msk [vmem:[%s313 + $0x18] sm:$0xff] %vm392, %v2717
        %2750 = vst.msk [vmem:[%s313 + $0x20] sm:$0xff] %vm392, %v2718
        %2751 = vst.msk [vmem:[%s313 + $0x28] sm:$0xff] %vm392, %v2719
        %2752 = vst.msk [vmem:[%s313 + $0x30] sm:$0xff] %vm392, %v2720
        %2753 = vst.msk [vmem:[%s313 + $0x38] sm:$0xff] %vm392, %v2721
        %2754 = vst.msk [vmem:[%s313 + $0x40] sm:$0xff] %vm392, %v2722
        %2755 = vst.msk [vmem:[%s313 + $0x48] sm:$0xff] %vm392, %v2723
        %2756 = vst.msk [vmem:[%s313 + $0x50] sm:$0xff] %vm392, %v2724
        %2757 = vst.msk [vmem:[%s313 + $0x58] sm:$0xff] %vm392, %v2725
        %2758 = vst.msk [vmem:[%s313 + $0x60] sm:$0xff] %vm392, %v2726
        %2759 = vst.msk [vmem:[%s313 + $0x68] sm:$0xff] %vm392, %v2727
        %2760 = vst.msk [vmem:[%s313 + $0x70] sm:$0xff] %vm392, %v2728
        %2761 = vst.msk [vmem:[%s313 + $0x78] sm:$0xff] %vm392, %v2729
        %2762 = vst.msk [vmem:[%s313 + $0x80] sm:$0xff] %vm392, %v2730
        %2763 = vst.msk [vmem:[%s313 + $0x88] sm:$0xff] %vm392, %v2731
        %2764 = vst.msk [vmem:[%s313 + $0x90] sm:$0xff] %vm392, %v2732
        %2765 = vst.msk [vmem:[%s313 + $0x98] sm:$0xff] %vm392, %v2733
        %2766 = vst.msk [vmem:[%s313 + $0xa0] sm:$0xff] %vm392, %v2734
        %2767 = vst.msk [vmem:[%s313 + $0xa8] sm:$0xff] %vm392, %v2735
        %2768 = vst.msk [vmem:[%s313 + $0xb0] sm:$0xff] %vm392, %v2736
        %2769 = vst.msk [vmem:[%s313 + $0xb8] sm:$0xff] %vm392, %v2737
        %2770 = vst.msk [vmem:[%s313 + $0xc0] sm:$0xff] %vm392, %v2738
        %2771 = vst.msk [vmem:[%s313 + $0xc8] sm:$0xff] %vm392, %v2739
        %2772 = vst.msk [vmem:[%s313 + $0xd0] sm:$0xff] %vm392, %v2740
        %2773 = vst.msk [vmem:[%s313 + $0xd8] sm:$0xff] %vm392, %v2741
        %2774 = vst.msk [vmem:[%s313 + $0xe0] sm:$0xff] %vm392, %v2742
        %2775 = vst.msk [vmem:[%s313 + $0xe8] sm:$0xff] %vm392, %v2743
        %2776 = vst.msk [vmem:[%s313 + $0xf0] sm:$0xff] %vm392, %v2744
        %2777 = vst.msk [vmem:[%s313 + $0xf8] sm:$0xff] %vm392, %v2745
        %s2778 = sand.u32 %s208, 1
        %s2779 = scalar_lea.sflag [#allocation3], %s2778
        %s2780 = sand.u32 %s208, 1
        %s2781 = smul.addr %s2780, 256
        %s2782 = scalar_lea.vmem [#allocation2], %s2781
        // Predicated region
        $region53: #{decoder_forward.11} parent=51 // pred_check
          %p2783 = pneg %p218
        $region54: #{decoder_forward.11} parent=51 // pred_check_branch
          %2785 = sbr.rel (%p2783) target = $region56
        $region55: #{decoder_forward.11} parent=51 // pred_region
          %s2787 = ssub.s32 4096, 4096
          %2788 = vsyncadd %s2779, %s2787
          %s2789 = smul.addr %s22, 32
          %s2790 = smul.addr %s2789, 128
          %s2791 = scalar_lea.hbm %s8, %s2790
          %s2792 = sshll.u32 %s2782, 4
          %s2793 = int_to_ptr.vmem [resolvable:$true] %s2792
          %2798 = dma.vmem_to_hbm [thread:$0]  %s2793, 4096, %s2791, %s2779, 128, 128, 8
        $region56: #{decoder_forward.11} parent=51 // pred_fallthru
          _
      $region52: #{decoder_forward.11} parent=5 // pred_fallthru
        _
      %p2799 = scmp.le.s32.totalorder 2, %s17
      // Predicated region
      $region57: #{decoder_forward.11} parent=5 // pred_check
        %p2800 = pneg %p2799
      $region58: #{decoder_forward.11} parent=5 // pred_check_branch
        %2802 = sbr.rel (%p2800) target = $region60
      $region59: #{decoder_forward.11} parent=5 // pred_region
        %s2803 = ssub.s32 %s17, 2
        // Predicated region
        $region61: #{decoder_forward.11} parent=59 // pred_check
          %p2804 = pneg %p224
        $region62: #{decoder_forward.11} parent=59 // pred_check_branch
          %2806 = sbr.rel (%p2804) target = $region64
        $region63: #{decoder_forward.11} parent=59 // pred_region
          %s2807 = sand.u32 %s209, 1
          %s2808 = scalar_lea.sflag [#allocation3], %s2807
          %s2809 = sand.u32 %s209, 1
          %s2810 = smul.addr %s2809, 256
          %s2811 = scalar_lea.vmem [#allocation2], %s2810
          %2812 = dma.done %s2808, 4096
        $region64: #{decoder_forward.11} parent=59 // pred_fallthru
          _
      $region60: #{decoder_forward.11} parent=5 // pred_fallthru
        _
    $region6: #{decoder_forward.11} parent=1 // loop_footer
      %s21 = sadd.s32 1, %s17
    $region7: #{decoder_forward.11} parent=1 // loop_footer_branch
      %16 = sbr.rel target = $region3
    $region8: #{decoder_forward.11} parent=1 // loop_exit
      _
    %2813 = vsyncpa [#allocation3], 1
    %s2814 = scalar_lea.sflag [#allocation3], 1
    %2815 = vsyncpa %s2814, 1

</llo_original>
